<compile_context>
chip_gen: v5e
topology: v5e:2x2
jax: 0.10.0
libtpu: 0.0.40
codegen_flags: <defaults>
</compile_context>

<pallas_src>
import functools

import jax
import jax.numpy as jnp
from jax import lax
from jax.experimental import pallas as pl
from jax.experimental.pallas import tpu as pltpu


# ------------------------- parameter packing (one-time, hoisted) -------------------------
def _pack_conv(w_oihw, b, cout_pad=None):
    """PyTorch (Cout, Cin, 3, 3) -> per-tap (9, Cin, Cout[_pad]) bf16 + (1, Cout[_pad]) f32.

    Tap ordering k = ky*3 + kx matches the in-kernel (dy, dx) accumulation loop.
    Weights go to bf16 (native MXU rate on v5e/v6e/v7x); biases stay f32 (f32 epilogue).
    """
    cout, cin = w_oihw.shape[0], w_oihw.shape[1]
    w = jnp.transpose(w_oihw, (2, 3, 1, 0)).reshape(9, cin, cout)
    b = b.reshape(1, cout)
    if cout_pad is not None and cout_pad > cout:
        w = jnp.pad(w, ((0, 0), (0, 0), (0, cout_pad - cout)))
        b = jnp.pad(b, ((0, 0), (0, cout_pad - cout)))
    return w.astype(jnp.bfloat16), b.astype(jnp.float32)


def pack_params(params, num_anchors):
    """Pack all 5 conv layers; pad the output layer's Cout to a lane-dense multiple of 128."""
    cout = num_anchors * 4
    cout_pad = ((cout + 127) // 128) * 128          # 36 -> 128
    return (
        _pack_conv(*params["conv1"]),
        _pack_conv(*params["conv2"]),
        _pack_conv(*params["conv3"]),
        _pack_conv(*params["conv4"]),
        _pack_conv(*params["output"], cout_pad=cout_pad),
    )


# ----------------------------------- fused kernel -----------------------------------
def _conv3x3(src_ref, w_ref, b_ref, *, H, W, relu):
    """3x3 / pad=1 conv as 9 accumulated MXU matmuls (no materialized im2col patch).

    src_ref: (H+2, W, Cin) f32 VMEM scratch, zero halo rows at 0 and H+1, data W-aligned.
    w_ref  : (9, Cin, Cout) bf16 (tap k = ky*3 + kx).   b_ref: (1, Cout) f32.
    Returns (H*W, Cout) f32.
    """
    cin = src_ref.shape[-1]
    a = src_ref[...]                                                  # (H+2, W, Cin) f32

    # dx in {-1, 0, +1}: sublane rolls on the XLU + border mask, instead of offset-1
    # sublane slices (which lower to masked vld + relayout copies every layer).
    col = lax.broadcasted_iota(jnp.int32, (H + 2, W, 1), 1)
    left = jnp.where(col == 0, 0.0, pltpu.roll(a, shift=1, axis=1))          # x-1 tap
    right = jnp.where(col == W - 1, 0.0, pltpu.roll(a, shift=W - 1, axis=1))  # x+1 tap

    # bf16 operands for the MXU; accumulation stays f32 (preferred_element_type).
    shifted = (left.astype(jnp.bfloat16),
               a.astype(jnp.bfloat16),
               right.astype(jnp.bfloat16))

    acc = jnp.zeros((H * W, w_ref.shape[-1]), jnp.float32)
    for ky in range(3):
        for kx in range(3):
            lhs = shifted[kx][ky:ky + H].reshape(H * W, cin)          # free leading-axis slice
            acc = acc + jnp.dot(lhs, w_ref[ky * 3 + kx],
                                preferred_element_type=jnp.float32)
    acc = acc + b_ref[...]
    if relu:
        acc = jnp.maximum(acc, 0.0)
    return acc


def _zero_halo_rows(pad_ref, H):
    # Only the two 1-pixel halo rows need zeroing; the interior is always overwritten.
    zrow = jnp.zeros((1,) + tuple(pad_ref.shape[1:]), pad_ref.dtype)
    pad_ref[0:1, :, :] = zrow
    pad_ref[H + 1:H + 2, :, :] = zrow


def _fused_head_kernel(x_ref, w1, b1, w2, b2, w3, b3, w4, b4, w5, b5,
                       ce5_ref, out_ref, xpad_ref, apad_ref, *, H, W, F):
    _zero_halo_rows(xpad_ref, H)
    _zero_halo_rows(apad_ref, H)

    # conv1 + ReLU; its activation is also the Ce5 output.
    xpad_ref[1:H + 1, :, :] = x_ref[0]             # W-aligned store; offset only along H
    a1 = _conv3x3(xpad_ref, w1, b1, H=H, W=W, relu=True)             # (H*W, F) f32
    ce5_ref[...] = a1.reshape(1, H, W, F)
    apad_ref[1:H + 1, :, :] = a1.reshape(H, W, F)

    # conv2..conv4 (+ReLU): layer activations live in the halo scratch between layers.
    for w_r, b_r in ((w2, b2), (w3, b3), (w4, b4)):
        a = _conv3x3(apad_ref, w_r, b_r, H=H, W=W, relu=True)
        apad_ref[1:H + 1, :, :] = a.reshape(H, W, F)

    # Output conv (no ReLU).  Cout zero-padded to 128 -> lane-dense HBM writeback.
    out = _conv3x3(apad_ref, w5, b5, H=H, W=W, relu=False)           # (H*W, 128) f32
    out_ref[...] = out.reshape(1, H * W, -1)


def _fused_head(x_nhwc, packed):
    """Runs the fused 5-conv head. Returns (Ce5 NHWC, output (B, H*W, Cout_pad))."""
    B, H, W, Cin = x_nhwc.shape
    (w1, b1), (w2, b2), (w3, b3), (w4, b4), (w5, b5) = packed
    F = b1.shape[1]
    cout_pad = w5.shape[-1]

    kern = functools.partial(_fused_head_kernel, H=H, W=W, F=F)

    def wspec(arr):
        # Grid-invariant weights/biases (same block every step): single-buffer them so
        # no VMEM is wasted on a second copy of data that never changes.
        return pl.BlockSpec(arr.shape, lambda b: (0,) * arr.ndim,
                            pipeline_mode=pl.Buffered(1))

    ce5, out_pad = pl.pallas_call(
        kern,
        out_shape=(
            jax.ShapeDtypeStruct((B, H, W, F), jnp.float32),
            jax.ShapeDtypeStruct((B, H * W, cout_pad), jnp.float32),
        ),
        grid_spec=pltpu.PrefetchScalarGridSpec(
            num_scalar_prefetch=0,
            grid=(B,),                                  # B=2 -> 2 parallel steps (v7x: 1/TC)
            in_specs=[
                pl.BlockSpec((1, H, W, Cin), lambda b: (b, 0, 0, 0)),
                wspec(w1), wspec(b1),
                wspec(w2), wspec(b2),
                wspec(w3), wspec(b3),
                wspec(w4), wspec(b4),
                wspec(w5), wspec(b5),
            ],
            out_specs=[
                pl.BlockSpec((1, H, W, F), lambda b: (b, 0, 0, 0)),
                pl.BlockSpec((1, H * W, cout_pad), lambda b: (b, 0, 0)),
            ],
            scratch_shapes=[
                pltpu.VMEM((H + 2, W, Cin), jnp.float32),   # H-only-padded input
                pltpu.VMEM((H + 2, W, F), jnp.float32),     # H-only-padded activation
            ],
        ),
        compiler_params=pltpu.CompilerParams(
            dimension_semantics=("parallel",),
            # Safe on every generation (v7x physical VMEM is 64 MiB); raise toward
            # ~96-110 MiB on v5e/v6e once production row tiles are introduced.
            vmem_limit_bytes=48 * 1024 * 1024,
        ),
    )(x_nhwc, w1, b1, w2, b2, w3, b3, w4, b4, w5, b5)
    return ce5, out_pad


@functools.partial(jax.jit, static_argnames=("num_anchors",))
def regression_model_forward(packed_params, x_nchw, *, num_anchors):
    """Mirrors RegressionModel.forward: returns ((B, H*W*A, 4), Ce5 in NCHW)."""
    cout = num_anchors * 4
    # NCHW<->NHWC transposes kept only to mirror the PyTorch contract; drop them in an
    # end-to-end NHWC model (they re-stream the tensors through HBM).
    x = jnp.transpose(x_nchw, (0, 2, 3, 1))
    ce5_nhwc, out_pad = _fused_head(x, packed_params)
    ce5 = jnp.transpose(ce5_nhwc, (0, 3, 1, 2))
    B = out_pad.shape[0]
    reg = out_pad[:, :, :cout].reshape(B, -1, 4)    # drop lane padding; view(B, -1, 4)
    return reg, ce5


# -------------------------------- parameter init --------------------------------
def init_params(key, num_features_in, num_anchors=9, feature_size=256):
    """Deterministic synthetic parameters with the same shapes as the PyTorch module."""
    keys = jax.random.split(key, 10)

    def conv_p(kw, kb, cin, cout):
        w = 0.05 * jax.random.normal(kw, (cout, cin, 3, 3), jnp.float32)
        b = 0.05 * jax.random.normal(kb, (cout,), jnp.float32)
        return w, b

    return {
        "conv1": conv_p(keys[0], keys[1], num_features_in, feature_size),
        "conv2": conv_p(keys[2], keys[3], feature_size, feature_size),
        "conv3": conv_p(keys[4], keys[5], feature_size, feature_size),
        "conv4": conv_p(keys[6], keys[7], feature_size, feature_size),
        "output": conv_p(keys[8], keys[9], feature_size, num_anchors * 4),
    }


# --------------------------- pure-JAX reference (checking) ---------------------------
def _ref_conv3x3(x_nhwc, w_oihw, b, relu):
    w_hwio = jnp.transpose(w_oihw, (2, 3, 1, 0))
    y = lax.conv_general_dilated(
        x_nhwc, w_hwio, window_strides=(1, 1), padding=((1, 1), (1, 1)),
        dimension_numbers=("NHWC", "HWIO", "NHWC"))
    y = y + b
    return jnp.maximum(y, 0.0) if relu else y


def _ref_forward(params, x_nchw):
    x = jnp.transpose(x_nchw, (0, 2, 3, 1))
    out = _ref_conv3x3(x, *params["conv1"], relu=True)
    ce5 = jnp.transpose(out, (0, 3, 1, 2))
    out = _ref_conv3x3(out, *params["conv2"], relu=True)
    out = _ref_conv3x3(out, *params["conv3"], relu=True)
    out = _ref_conv3x3(out, *params["conv4"], relu=True)
    out = _ref_conv3x3(out, *params["output"], relu=False)
    return out.reshape(out.shape[0], -1, 4), ce5


if __name__ == "__main__":
    # Small shapes consistent with the module: batch=2, num_features_in=4,
    # spatial 16x16, feature_size=32, num_anchors=9 (output channels = 36).
    B, C_IN, H, W = 2, 4, 16, 16
    FEATURE_SIZE, NUM_ANCHORS = 32, 9

    key = jax.random.PRNGKey(0)
    k_x, k_p = jax.random.split(key)
    x = jax.random.normal(k_x, (B, C_IN, H, W), jnp.float32)     # NCHW like PyTorch
    params = init_params(k_p, C_IN, NUM_ANCHORS, FEATURE_SIZE)
    packed = pack_params(params, NUM_ANCHORS)                    # one-time weight prep

    reg_out, ce5 = regression_model_forward(packed, x, num_anchors=NUM_ANCHORS)
    reg_out = jax.block_until_ready(reg_out)
    ce5 = jax.block_until_ready(ce5)

    assert reg_out.shape == (B, H * W * NUM_ANCHORS, 4), reg_out.shape
    assert ce5.shape == (B, FEATURE_SIZE, H, W), ce5.shape

    ref_reg, ref_ce5 = _ref_forward(params, x)
    # bf16 MXU operands with f32 accumulation -> slightly looser tolerance than pure f32.
    assert jnp.allclose(reg_out, ref_reg, atol=2e-2, rtol=2e-2), \
        float(jnp.max(jnp.abs(reg_out - ref_reg)))
    assert jnp.allclose(ce5, ref_ce5, atol=2e-2, rtol=2e-2), \
        float(jnp.max(jnp.abs(ce5 - ref_ce5)))

    print("KERNEL_OK")
</pallas_src>

<mosaic_0001>
module attributes {stable_mosaic.version = 11 : i64} {
  func.func @_fused_head_kernel(%arg0: i32, %arg1: memref<1x16x16x4xf32, #tpu.memory_space<vmem>>, %arg2: memref<9x4x32xbf16, #tpu.memory_space<vmem>>, %arg3: memref<1x32xf32, #tpu.memory_space<vmem>>, %arg4: memref<9x32x32xbf16, #tpu.memory_space<vmem>>, %arg5: memref<1x32xf32, #tpu.memory_space<vmem>>, %arg6: memref<9x32x32xbf16, #tpu.memory_space<vmem>>, %arg7: memref<1x32xf32, #tpu.memory_space<vmem>>, %arg8: memref<9x32x32xbf16, #tpu.memory_space<vmem>>, %arg9: memref<1x32xf32, #tpu.memory_space<vmem>>, %arg10: memref<9x32x128xbf16, #tpu.memory_space<vmem>>, %arg11: memref<1x128xf32, #tpu.memory_space<vmem>>, %arg12: memref<1x16x16x32xf32, #tpu.memory_space<vmem>>, %arg13: memref<1x256x128xf32, #tpu.memory_space<vmem>>, %arg14: memref<18x16x4xf32, #tpu.memory_space<vmem>>, %arg15: memref<18x16x32xf32, #tpu.memory_space<vmem>>) attributes {dimension_semantics = [#tpu.dimension_semantics<parallel>], iteration_bounds = array<i64: 2>, scalar_prefetch = 0 : i64, scratch_operands = 2 : i64, tpu.core_type = #tpu.core_type<tc>, window_params = [{transform_indices = @transform_0, window_bounds = array<i64: 1, 16, 16, 4>}, {pipeline_mode = #tpu.pipeline_mode<synchronous>, transform_indices = @transform_1, window_bounds = array<i64: 9, 4, 32>}, {pipeline_mode = #tpu.pipeline_mode<synchronous>, transform_indices = @transform_2, window_bounds = array<i64: 1, 32>}, {pipeline_mode = #tpu.pipeline_mode<synchronous>, transform_indices = @transform_3, window_bounds = array<i64: 9, 32, 32>}, {pipeline_mode = #tpu.pipeline_mode<synchronous>, transform_indices = @transform_4, window_bounds = array<i64: 1, 32>}, {pipeline_mode = #tpu.pipeline_mode<synchronous>, transform_indices = @transform_5, window_bounds = array<i64: 9, 32, 32>}, {pipeline_mode = #tpu.pipeline_mode<synchronous>, transform_indices = @transform_6, window_bounds = array<i64: 1, 32>}, {pipeline_mode = #tpu.pipeline_mode<synchronous>, transform_indices = @transform_7, window_bounds = array<i64: 9, 32, 32>}, {pipeline_mode = #tpu.pipeline_mode<synchronous>, transform_indices = @transform_8, window_bounds = array<i64: 1, 32>}, {pipeline_mode = #tpu.pipeline_mode<synchronous>, transform_indices = @transform_9, window_bounds = array<i64: 9, 32, 128>}, {pipeline_mode = #tpu.pipeline_mode<synchronous>, transform_indices = @transform_10, window_bounds = array<i64: 1, 128>}, {transform_indices = @transform_11, window_bounds = array<i64: 1, 16, 16, 32>}, {transform_indices = @transform_12, window_bounds = array<i64: 1, 256, 128>}]} {
    %cst = arith.constant 0.000000e+00 : f32
    %0 = vector.broadcast %cst : f32 to vector<1x16x4xf32>
    %c0 = arith.constant 0 : index
    %c0_0 = arith.constant 0 : index
    %c0_1 = arith.constant 0 : index
    %1 = vector.load %arg14[%c0, %c0_0, %c0_1] : memref<18x16x4xf32, #tpu.memory_space<vmem>>, vector<1x16x4xf32>
    tpu.vector_store %arg14[%c0, %c0_0, %c0_1], %0 {strides = array<i32>} : memref<18x16x4xf32, #tpu.memory_space<vmem>>, vector<1x16x4xf32>,
    %c17 = arith.constant 17 : index
    %c0_2 = arith.constant 0 : index
    %c0_3 = arith.constant 0 : index
    %2 = vector.load %arg14[%c17, %c0_2, %c0_3] : memref<18x16x4xf32, #tpu.memory_space<vmem>>, vector<1x16x4xf32>
    tpu.vector_store %arg14[%c17, %c0_2, %c0_3], %0 {strides = array<i32>} : memref<18x16x4xf32, #tpu.memory_space<vmem>>, vector<1x16x4xf32>,
    %cst_4 = arith.constant 0.000000e+00 : f32
    %3 = vector.broadcast %cst_4 : f32 to vector<1x16x32xf32>
    %c0_5 = arith.constant 0 : index
    %c0_6 = arith.constant 0 : index
    %c0_7 = arith.constant 0 : index
    %4 = vector.load %arg15[%c0_5, %c0_6, %c0_7] : memref<18x16x32xf32, #tpu.memory_space<vmem>>, vector<1x16x32xf32>
    tpu.vector_store %arg15[%c0_5, %c0_6, %c0_7], %3 {strides = array<i32>} : memref<18x16x32xf32, #tpu.memory_space<vmem>>, vector<1x16x32xf32>,
    %c17_8 = arith.constant 17 : index
    %c0_9 = arith.constant 0 : index
    %c0_10 = arith.constant 0 : index
    %5 = vector.load %arg15[%c17_8, %c0_9, %c0_10] : memref<18x16x32xf32, #tpu.memory_space<vmem>>, vector<1x16x32xf32>
    tpu.vector_store %arg15[%c17_8, %c0_9, %c0_10], %3 {strides = array<i32>} : memref<18x16x32xf32, #tpu.memory_space<vmem>>, vector<1x16x32xf32>,
    %c0_11 = arith.constant 0 : index
    %c0_12 = arith.constant 0 : index
    %c0_13 = arith.constant 0 : index
    %c0_14 = arith.constant 0 : index
    %6 = vector.load %arg1[%c0_11, %c0_12, %c0_13, %c0_14] : memref<1x16x16x4xf32, #tpu.memory_space<vmem>>, vector<1x16x16x4xf32>
    %7 = vector.shape_cast %6 : vector<1x16x16x4xf32> to vector<16x16x4xf32>
    %c1 = arith.constant 1 : index
    %c0_15 = arith.constant 0 : index
    %c0_16 = arith.constant 0 : index
    %8 = vector.load %arg14[%c1, %c0_15, %c0_16] : memref<18x16x4xf32, #tpu.memory_space<vmem>>, vector<16x16x4xf32>
    tpu.vector_store %arg14[%c1, %c0_15, %c0_16], %7 {strides = array<i32>} : memref<18x16x4xf32, #tpu.memory_space<vmem>>, vector<16x16x4xf32>,
    %c0_17 = arith.constant 0 : index
    %c0_18 = arith.constant 0 : index
    %c0_19 = arith.constant 0 : index
    %9 = vector.load %arg14[%c0_17, %c0_18, %c0_19] : memref<18x16x4xf32, #tpu.memory_space<vmem>>, vector<18x16x4xf32>
    %10 = tpu.iota {dimensions = array<i32: 1>} : vector<18x16x1xi32>
    %c0_i32 = arith.constant 0 : i32
    %11 = vector.broadcast %c0_i32 : i32 to vector<18x16x1xi32>
    %12 = arith.cmpi eq, %10, %11 : vector<18x16x1xi32>
    %c1_i32 = arith.constant 1 : i32
    %13 = tpu.dynamic_rotate %9 by %c1_i32 dim 1 : vector<18x16x4xf32>, i32 -> vector<18x16x4xf32>
    %cst_20 = arith.constant 0.000000e+00 : f32
    %14 = vector.shape_cast %12 : vector<18x16x1xi1> to vector<18x16x1xi1>
    %15 = vector.broadcast %14 : vector<18x16x1xi1> to vector<18x16x4xi1>
    %16 = vector.broadcast %cst_20 : f32 to vector<18x16x4xf32>
    %17 = arith.select %15, %16, %13 : vector<18x16x4xi1>, vector<18x16x4xf32>
    %c15_i32 = arith.constant 15 : i32
    %18 = vector.broadcast %c15_i32 : i32 to vector<18x16x1xi32>
    %19 = arith.cmpi eq, %10, %18 : vector<18x16x1xi32>
    %c15_i32_21 = arith.constant 15 : i32
    %20 = tpu.dynamic_rotate %9 by %c15_i32_21 dim 1 : vector<18x16x4xf32>, i32 -> vector<18x16x4xf32>
    %cst_22 = arith.constant 0.000000e+00 : f32
    %21 = vector.shape_cast %19 : vector<18x16x1xi1> to vector<18x16x1xi1>
    %22 = vector.broadcast %21 : vector<18x16x1xi1> to vector<18x16x4xi1>
    %23 = vector.broadcast %cst_22 : f32 to vector<18x16x4xf32>
    %24 = arith.select %22, %23, %20 : vector<18x16x4xi1>, vector<18x16x4xf32>
    %25 = arith.truncf %17 : vector<18x16x4xf32> to vector<18x16x4xbf16>
    %26 = arith.truncf %9 : vector<18x16x4xf32> to vector<18x16x4xbf16>
    %27 = arith.truncf %24 : vector<18x16x4xf32> to vector<18x16x4xbf16>
    %cst_23 = arith.constant 0.000000e+00 : f32
    %28 = vector.broadcast %cst_23 : f32 to vector<256x32xf32>
    %29 = vector.extract_strided_slice %25 {offsets = [0, 0, 0], sizes = [16, 16, 4], strides = [1, 1, 1]} : vector<18x16x4xbf16> to vector<16x16x4xbf16>
    %30 = vector.shape_cast %29 : vector<16x16x4xbf16> to vector<256x4xbf16>
    %c0_24 = arith.constant 0 : index
    %c0_25 = arith.constant 0 : index
    %c0_26 = arith.constant 0 : index
    %31 = vector.load %arg2[%c0_24, %c0_25, %c0_26] : memref<9x4x32xbf16, #tpu.memory_space<vmem>>, vector<1x4x32xbf16>
    %32 = vector.shape_cast %31 : vector<1x4x32xbf16> to vector<4x32xbf16>
    %cst_27 = arith.constant dense<0.000000e+00> : vector<256x32xf32>
    %33 = tpu.matmul %30, %32, %cst_27 {dimension_numbers = #tpu.dot_dimension_numbers<[1], [0], [0], [1], [0, 0, 1, 1], [], []>} : vector<256x4xbf16>, vector<4x32xbf16>, vector<256x32xf32> -> vector<256x32xf32>
    %34 = arith.addf %28, %33 : vector<256x32xf32>
    %35 = vector.extract_strided_slice %26 {offsets = [0, 0, 0], sizes = [16, 16, 4], strides = [1, 1, 1]} : vector<18x16x4xbf16> to vector<16x16x4xbf16>
    %36 = vector.shape_cast %35 : vector<16x16x4xbf16> to vector<256x4xbf16>
    %c1_28 = arith.constant 1 : index
    %c0_29 = arith.constant 0 : index
    %c0_30 = arith.constant 0 : index
    %37 = vector.load %arg2[%c1_28, %c0_29, %c0_30] : memref<9x4x32xbf16, #tpu.memory_space<vmem>>, vector<1x4x32xbf16>
    %38 = vector.shape_cast %37 : vector<1x4x32xbf16> to vector<4x32xbf16>
    %cst_31 = arith.constant dense<0.000000e+00> : vector<256x32xf32>
    %39 = tpu.matmul %36, %38, %cst_31 {dimension_numbers = #tpu.dot_dimension_numbers<[1], [0], [0], [1], [0, 0, 1, 1], [], []>} : vector<256x4xbf16>, vector<4x32xbf16>, vector<256x32xf32> -> vector<256x32xf32>
    %40 = arith.addf %34, %39 : vector<256x32xf32>
    %41 = vector.extract_strided_slice %27 {offsets = [0, 0, 0], sizes = [16, 16, 4], strides = [1, 1, 1]} : vector<18x16x4xbf16> to vector<16x16x4xbf16>
    %42 = vector.shape_cast %41 : vector<16x16x4xbf16> to vector<256x4xbf16>
    %c2 = arith.constant 2 : index
    %c0_32 = arith.constant 0 : index
    %c0_33 = arith.constant 0 : index
    %43 = vector.load %arg2[%c2, %c0_32, %c0_33] : memref<9x4x32xbf16, #tpu.memory_space<vmem>>, vector<1x4x32xbf16>
    %44 = vector.shape_cast %43 : vector<1x4x32xbf16> to vector<4x32xbf16>
    %cst_34 = arith.constant dense<0.000000e+00> : vector<256x32xf32>
    %45 = tpu.matmul %42, %44, %cst_34 {dimension_numbers = #tpu.dot_dimension_numbers<[1], [0], [0], [1], [0, 0, 1, 1], [], []>} : vector<256x4xbf16>, vector<4x32xbf16>, vector<256x32xf32> -> vector<256x32xf32>
    %46 = arith.addf %40, %45 : vector<256x32xf32>
    %47 = vector.extract_strided_slice %25 {offsets = [1, 0, 0], sizes = [16, 16, 4], strides = [1, 1, 1]} : vector<18x16x4xbf16> to vector<16x16x4xbf16>
    %48 = vector.shape_cast %47 : vector<16x16x4xbf16> to vector<256x4xbf16>
    %c3 = arith.constant 3 : index
    %c0_35 = arith.constant 0 : index
    %c0_36 = arith.constant 0 : index
    %49 = vector.load %arg2[%c3, %c0_35, %c0_36] : memref<9x4x32xbf16, #tpu.memory_space<vmem>>, vector<1x4x32xbf16>
    %50 = vector.shape_cast %49 : vector<1x4x32xbf16> to vector<4x32xbf16>
    %cst_37 = arith.constant dense<0.000000e+00> : vector<256x32xf32>
    %51 = tpu.matmul %48, %50, %cst_37 {dimension_numbers = #tpu.dot_dimension_numbers<[1], [0], [0], [1], [0, 0, 1, 1], [], []>} : vector<256x4xbf16>, vector<4x32xbf16>, vector<256x32xf32> -> vector<256x32xf32>
    %52 = arith.addf %46, %51 : vector<256x32xf32>
    %53 = vector.extract_strided_slice %26 {offsets = [1, 0, 0], sizes = [16, 16, 4], strides = [1, 1, 1]} : vector<18x16x4xbf16> to vector<16x16x4xbf16>
    %54 = vector.shape_cast %53 : vector<16x16x4xbf16> to vector<256x4xbf16>
    %c4 = arith.constant 4 : index
    %c0_38 = arith.constant 0 : index
    %c0_39 = arith.constant 0 : index
    %55 = vector.load %arg2[%c4, %c0_38, %c0_39] : memref<9x4x32xbf16, #tpu.memory_space<vmem>>, vector<1x4x32xbf16>
    %56 = vector.shape_cast %55 : vector<1x4x32xbf16> to vector<4x32xbf16>
    %cst_40 = arith.constant dense<0.000000e+00> : vector<256x32xf32>
    %57 = tpu.matmul %54, %56, %cst_40 {dimension_numbers = #tpu.dot_dimension_numbers<[1], [0], [0], [1], [0, 0, 1, 1], [], []>} : vector<256x4xbf16>, vector<4x32xbf16>, vector<256x32xf32> -> vector<256x32xf32>
    %58 = arith.addf %52, %57 : vector<256x32xf32>
    %59 = vector.extract_strided_slice %27 {offsets = [1, 0, 0], sizes = [16, 16, 4], strides = [1, 1, 1]} : vector<18x16x4xbf16> to vector<16x16x4xbf16>
    %60 = vector.shape_cast %59 : vector<16x16x4xbf16> to vector<256x4xbf16>
    %c5 = arith.constant 5 : index
    %c0_41 = arith.constant 0 : index
    %c0_42 = arith.constant 0 : index
    %61 = vector.load %arg2[%c5, %c0_41, %c0_42] : memref<9x4x32xbf16, #tpu.memory_space<vmem>>, vector<1x4x32xbf16>
    %62 = vector.shape_cast %61 : vector<1x4x32xbf16> to vector<4x32xbf16>
    %cst_43 = arith.constant dense<0.000000e+00> : vector<256x32xf32>
    %63 = tpu.matmul %60, %62, %cst_43 {dimension_numbers = #tpu.dot_dimension_numbers<[1], [0], [0], [1], [0, 0, 1, 1], [], []>} : vector<256x4xbf16>, vector<4x32xbf16>, vector<256x32xf32> -> vector<256x32xf32>
    %64 = arith.addf %58, %63 : vector<256x32xf32>
    %65 = vector.extract_strided_slice %25 {offsets = [2, 0, 0], sizes = [16, 16, 4], strides = [1, 1, 1]} : vector<18x16x4xbf16> to vector<16x16x4xbf16>
    %66 = vector.shape_cast %65 : vector<16x16x4xbf16> to vector<256x4xbf16>
    %c6 = arith.constant 6 : index
    %c0_44 = arith.constant 0 : index
    %c0_45 = arith.constant 0 : index
    %67 = vector.load %arg2[%c6, %c0_44, %c0_45] : memref<9x4x32xbf16, #tpu.memory_space<vmem>>, vector<1x4x32xbf16>
    %68 = vector.shape_cast %67 : vector<1x4x32xbf16> to vector<4x32xbf16>
    %cst_46 = arith.constant dense<0.000000e+00> : vector<256x32xf32>
    %69 = tpu.matmul %66, %68, %cst_46 {dimension_numbers = #tpu.dot_dimension_numbers<[1], [0], [0], [1], [0, 0, 1, 1], [], []>} : vector<256x4xbf16>, vector<4x32xbf16>, vector<256x32xf32> -> vector<256x32xf32>
    %70 = arith.addf %64, %69 : vector<256x32xf32>
    %71 = vector.extract_strided_slice %26 {offsets = [2, 0, 0], sizes = [16, 16, 4], strides = [1, 1, 1]} : vector<18x16x4xbf16> to vector<16x16x4xbf16>
    %72 = vector.shape_cast %71 : vector<16x16x4xbf16> to vector<256x4xbf16>
    %c7 = arith.constant 7 : index
    %c0_47 = arith.constant 0 : index
    %c0_48 = arith.constant 0 : index
    %73 = vector.load %arg2[%c7, %c0_47, %c0_48] : memref<9x4x32xbf16, #tpu.memory_space<vmem>>, vector<1x4x32xbf16>
    %74 = vector.shape_cast %73 : vector<1x4x32xbf16> to vector<4x32xbf16>
    %cst_49 = arith.constant dense<0.000000e+00> : vector<256x32xf32>
    %75 = tpu.matmul %72, %74, %cst_49 {dimension_numbers = #tpu.dot_dimension_numbers<[1], [0], [0], [1], [0, 0, 1, 1], [], []>} : vector<256x4xbf16>, vector<4x32xbf16>, vector<256x32xf32> -> vector<256x32xf32>
    %76 = arith.addf %70, %75 : vector<256x32xf32>
    %77 = vector.extract_strided_slice %27 {offsets = [2, 0, 0], sizes = [16, 16, 4], strides = [1, 1, 1]} : vector<18x16x4xbf16> to vector<16x16x4xbf16>
    %78 = vector.shape_cast %77 : vector<16x16x4xbf16> to vector<256x4xbf16>
    %c8 = arith.constant 8 : index
    %c0_50 = arith.constant 0 : index
    %c0_51 = arith.constant 0 : index
    %79 = vector.load %arg2[%c8, %c0_50, %c0_51] : memref<9x4x32xbf16, #tpu.memory_space<vmem>>, vector<1x4x32xbf16>
    %80 = vector.shape_cast %79 : vector<1x4x32xbf16> to vector<4x32xbf16>
    %cst_52 = arith.constant dense<0.000000e+00> : vector<256x32xf32>
    %81 = tpu.matmul %78, %80, %cst_52 {dimension_numbers = #tpu.dot_dimension_numbers<[1], [0], [0], [1], [0, 0, 1, 1], [], []>} : vector<256x4xbf16>, vector<4x32xbf16>, vector<256x32xf32> -> vector<256x32xf32>
    %82 = arith.addf %76, %81 : vector<256x32xf32>
    %c0_53 = arith.constant 0 : index
    %c0_54 = arith.constant 0 : index
    %83 = vector.load %arg3[%c0_53, %c0_54] : memref<1x32xf32, #tpu.memory_space<vmem>>, vector<1x32xf32>
    %84 = vector.broadcast %83 : vector<1x32xf32> to vector<256x32xf32>
    %85 = arith.addf %82, %84 : vector<256x32xf32>
    %cst_55 = arith.constant 0.000000e+00 : f32
    %86 = vector.broadcast %cst_55 : f32 to vector<256x32xf32>
    %87 = arith.maximumf %85, %86 : vector<256x32xf32>
    %88 = vector.shape_cast %87 : vector<256x32xf32> to vector<1x16x16x32xf32>
    %c0_56 = arith.constant 0 : index
    %c0_57 = arith.constant 0 : index
    %c0_58 = arith.constant 0 : index
    %c0_59 = arith.constant 0 : index
    %89 = vector.load %arg12[%c0_56, %c0_57, %c0_58, %c0_59] : memref<1x16x16x32xf32, #tpu.memory_space<vmem>>, vector<1x16x16x32xf32>
    tpu.vector_store %arg12[%c0_56, %c0_57, %c0_58, %c0_59], %88 {strides = array<i32>} : memref<1x16x16x32xf32, #tpu.memory_space<vmem>>, vector<1x16x16x32xf32>,
    %90 = vector.shape_cast %87 : vector<256x32xf32> to vector<16x16x32xf32>
    %c1_60 = arith.constant 1 : index
    %c0_61 = arith.constant 0 : index
    %c0_62 = arith.constant 0 : index
    %91 = vector.load %arg15[%c1_60, %c0_61, %c0_62] : memref<18x16x32xf32, #tpu.memory_space<vmem>>, vector<16x16x32xf32>
    tpu.vector_store %arg15[%c1_60, %c0_61, %c0_62], %90 {strides = array<i32>} : memref<18x16x32xf32, #tpu.memory_space<vmem>>, vector<16x16x32xf32>,
    %c0_63 = arith.constant 0 : index
    %c0_64 = arith.constant 0 : index
    %c0_65 = arith.constant 0 : index
    %92 = vector.load %arg15[%c0_63, %c0_64, %c0_65] : memref<18x16x32xf32, #tpu.memory_space<vmem>>, vector<18x16x32xf32>
    %93 = tpu.iota {dimensions = array<i32: 1>} : vector<18x16x1xi32>
    %c0_i32_66 = arith.constant 0 : i32
    %94 = vector.broadcast %c0_i32_66 : i32 to vector<18x16x1xi32>
    %95 = arith.cmpi eq, %93, %94 : vector<18x16x1xi32>
    %c1_i32_67 = arith.constant 1 : i32
    %96 = tpu.dynamic_rotate %92 by %c1_i32_67 dim 1 : vector<18x16x32xf32>, i32 -> vector<18x16x32xf32>
    %cst_68 = arith.constant 0.000000e+00 : f32
    %97 = vector.shape_cast %95 : vector<18x16x1xi1> to vector<18x16x1xi1>
    %98 = vector.broadcast %97 : vector<18x16x1xi1> to vector<18x16x32xi1>
    %99 = vector.broadcast %cst_68 : f32 to vector<18x16x32xf32>
    %100 = arith.select %98, %99, %96 : vector<18x16x32xi1>, vector<18x16x32xf32>
    %c15_i32_69 = arith.constant 15 : i32
    %101 = vector.broadcast %c15_i32_69 : i32 to vector<18x16x1xi32>
    %102 = arith.cmpi eq, %93, %101 : vector<18x16x1xi32>
    %c15_i32_70 = arith.constant 15 : i32
    %103 = tpu.dynamic_rotate %92 by %c15_i32_70 dim 1 : vector<18x16x32xf32>, i32 -> vector<18x16x32xf32>
    %cst_71 = arith.constant 0.000000e+00 : f32
    %104 = vector.shape_cast %102 : vector<18x16x1xi1> to vector<18x16x1xi1>
    %105 = vector.broadcast %104 : vector<18x16x1xi1> to vector<18x16x32xi1>
    %106 = vector.broadcast %cst_71 : f32 to vector<18x16x32xf32>
    %107 = arith.select %105, %106, %103 : vector<18x16x32xi1>, vector<18x16x32xf32>
    %108 = arith.truncf %100 : vector<18x16x32xf32> to vector<18x16x32xbf16>
    %109 = arith.truncf %92 : vector<18x16x32xf32> to vector<18x16x32xbf16>
    %110 = arith.truncf %107 : vector<18x16x32xf32> to vector<18x16x32xbf16>
    %cst_72 = arith.constant 0.000000e+00 : f32
    %111 = vector.broadcast %cst_72 : f32 to vector<256x32xf32>
    %112 = vector.extract_strided_slice %108 {offsets = [0, 0, 0], sizes = [16, 16, 32], strides = [1, 1, 1]} : vector<18x16x32xbf16> to vector<16x16x32xbf16>
    %113 = vector.shape_cast %112 : vector<16x16x32xbf16> to vector<256x32xbf16>
    %c0_73 = arith.constant 0 : index
    %c0_74 = arith.constant 0 : index
    %c0_75 = arith.constant 0 : index
    %114 = vector.load %arg4[%c0_73, %c0_74, %c0_75] : memref<9x32x32xbf16, #tpu.memory_space<vmem>>, vector<1x32x32xbf16>
    %115 = vector.shape_cast %114 : vector<1x32x32xbf16> to vector<32x32xbf16>
    %cst_76 = arith.constant dense<0.000000e+00> : vector<256x32xf32>
    %116 = tpu.matmul %113, %115, %cst_76 {dimension_numbers = #tpu.dot_dimension_numbers<[1], [0], [0], [1], [0, 0, 1, 1], [], []>} : vector<256x32xbf16>, vector<32x32xbf16>, vector<256x32xf32> -> vector<256x32xf32>
    %117 = arith.addf %111, %116 : vector<256x32xf32>
    %118 = vector.extract_strided_slice %109 {offsets = [0, 0, 0], sizes = [16, 16, 32], strides = [1, 1, 1]} : vector<18x16x32xbf16> to vector<16x16x32xbf16>
    %119 = vector.shape_cast %118 : vector<16x16x32xbf16> to vector<256x32xbf16>
    %c1_77 = arith.constant 1 : index
    %c0_78 = arith.constant 0 : index
    %c0_79 = arith.constant 0 : index
    %120 = vector.load %arg4[%c1_77, %c0_78, %c0_79] : memref<9x32x32xbf16, #tpu.memory_space<vmem>>, vector<1x32x32xbf16>
    %121 = vector.shape_cast %120 : vector<1x32x32xbf16> to vector<32x32xbf16>
    %cst_80 = arith.constant dense<0.000000e+00> : vector<256x32xf32>
    %122 = tpu.matmul %119, %121, %cst_80 {dimension_numbers = #tpu.dot_dimension_numbers<[1], [0], [0], [1], [0, 0, 1, 1], [], []>} : vector<256x32xbf16>, vector<32x32xbf16>, vector<256x32xf32> -> vector<256x32xf32>
    %123 = arith.addf %117, %122 : vector<256x32xf32>
    %124 = vector.extract_strided_slice %110 {offsets = [0, 0, 0], sizes = [16, 16, 32], strides = [1, 1, 1]} : vector<18x16x32xbf16> to vector<16x16x32xbf16>
    %125 = vector.shape_cast %124 : vector<16x16x32xbf16> to vector<256x32xbf16>
    %c2_81 = arith.constant 2 : index
    %c0_82 = arith.constant 0 : index
    %c0_83 = arith.constant 0 : index
    %126 = vector.load %arg4[%c2_81, %c0_82, %c0_83] : memref<9x32x32xbf16, #tpu.memory_space<vmem>>, vector<1x32x32xbf16>
    %127 = vector.shape_cast %126 : vector<1x32x32xbf16> to vector<32x32xbf16>
    %cst_84 = arith.constant dense<0.000000e+00> : vector<256x32xf32>
    %128 = tpu.matmul %125, %127, %cst_84 {dimension_numbers = #tpu.dot_dimension_numbers<[1], [0], [0], [1], [0, 0, 1, 1], [], []>} : vector<256x32xbf16>, vector<32x32xbf16>, vector<256x32xf32> -> vector<256x32xf32>
    %129 = arith.addf %123, %128 : vector<256x32xf32>
    %130 = vector.extract_strided_slice %108 {offsets = [1, 0, 0], sizes = [16, 16, 32], strides = [1, 1, 1]} : vector<18x16x32xbf16> to vector<16x16x32xbf16>
    %131 = vector.shape_cast %130 : vector<16x16x32xbf16> to vector<256x32xbf16>
    %c3_85 = arith.constant 3 : index
    %c0_86 = arith.constant 0 : index
    %c0_87 = arith.constant 0 : index
    %132 = vector.load %arg4[%c3_85, %c0_86, %c0_87] : memref<9x32x32xbf16, #tpu.memory_space<vmem>>, vector<1x32x32xbf16>
    %133 = vector.shape_cast %132 : vector<1x32x32xbf16> to vector<32x32xbf16>
    %cst_88 = arith.constant dense<0.000000e+00> : vector<256x32xf32>
    %134 = tpu.matmul %131, %133, %cst_88 {dimension_numbers = #tpu.dot_dimension_numbers<[1], [0], [0], [1], [0, 0, 1, 1], [], []>} : vector<256x32xbf16>, vector<32x32xbf16>, vector<256x32xf32> -> vector<256x32xf32>
    %135 = arith.addf %129, %134 : vector<256x32xf32>
    %136 = vector.extract_strided_slice %109 {offsets = [1, 0, 0], sizes = [16, 16, 32], strides = [1, 1, 1]} : vector<18x16x32xbf16> to vector<16x16x32xbf16>
    %137 = vector.shape_cast %136 : vector<16x16x32xbf16> to vector<256x32xbf16>
    %c4_89 = arith.constant 4 : index
    %c0_90 = arith.constant 0 : index
    %c0_91 = arith.constant 0 : index
    %138 = vector.load %arg4[%c4_89, %c0_90, %c0_91] : memref<9x32x32xbf16, #tpu.memory_space<vmem>>, vector<1x32x32xbf16>
    %139 = vector.shape_cast %138 : vector<1x32x32xbf16> to vector<32x32xbf16>
    %cst_92 = arith.constant dense<0.000000e+00> : vector<256x32xf32>
    %140 = tpu.matmul %137, %139, %cst_92 {dimension_numbers = #tpu.dot_dimension_numbers<[1], [0], [0], [1], [0, 0, 1, 1], [], []>} : vector<256x32xbf16>, vector<32x32xbf16>, vector<256x32xf32> -> vector<256x32xf32>
    %141 = arith.addf %135, %140 : vector<256x32xf32>
    %142 = vector.extract_strided_slice %110 {offsets = [1, 0, 0], sizes = [16, 16, 32], strides = [1, 1, 1]} : vector<18x16x32xbf16> to vector<16x16x32xbf16>
    %143 = vector.shape_cast %142 : vector<16x16x32xbf16> to vector<256x32xbf16>
    %c5_93 = arith.constant 5 : index
    %c0_94 = arith.constant 0 : index
    %c0_95 = arith.constant 0 : index
    %144 = vector.load %arg4[%c5_93, %c0_94, %c0_95] : memref<9x32x32xbf16, #tpu.memory_space<vmem>>, vector<1x32x32xbf16>
    %145 = vector.shape_cast %144 : vector<1x32x32xbf16> to vector<32x32xbf16>
    %cst_96 = arith.constant dense<0.000000e+00> : vector<256x32xf32>
    %146 = tpu.matmul %143, %145, %cst_96 {dimension_numbers = #tpu.dot_dimension_numbers<[1], [0], [0], [1], [0, 0, 1, 1], [], []>} : vector<256x32xbf16>, vector<32x32xbf16>, vector<256x32xf32> -> vector<256x32xf32>
    %147 = arith.addf %141, %146 : vector<256x32xf32>
    %148 = vector.extract_strided_slice %108 {offsets = [2, 0, 0], sizes = [16, 16, 32], strides = [1, 1, 1]} : vector<18x16x32xbf16> to vector<16x16x32xbf16>
    %149 = vector.shape_cast %148 : vector<16x16x32xbf16> to vector<256x32xbf16>
    %c6_97 = arith.constant 6 : index
    %c0_98 = arith.constant 0 : index
    %c0_99 = arith.constant 0 : index
    %150 = vector.load %arg4[%c6_97, %c0_98, %c0_99] : memref<9x32x32xbf16, #tpu.memory_space<vmem>>, vector<1x32x32xbf16>
    %151 = vector.shape_cast %150 : vector<1x32x32xbf16> to vector<32x32xbf16>
    %cst_100 = arith.constant dense<0.000000e+00> : vector<256x32xf32>
    %152 = tpu.matmul %149, %151, %cst_100 {dimension_numbers = #tpu.dot_dimension_numbers<[1], [0], [0], [1], [0, 0, 1, 1], [], []>} : vector<256x32xbf16>, vector<32x32xbf16>, vector<256x32xf32> -> vector<256x32xf32>
    %153 = arith.addf %147, %152 : vector<256x32xf32>
    %154 = vector.extract_strided_slice %109 {offsets = [2, 0, 0], sizes = [16, 16, 32], strides = [1, 1, 1]} : vector<18x16x32xbf16> to vector<16x16x32xbf16>
    %155 = vector.shape_cast %154 : vector<16x16x32xbf16> to vector<256x32xbf16>
    %c7_101 = arith.constant 7 : index
    %c0_102 = arith.constant 0 : index
    %c0_103 = arith.constant 0 : index
    %156 = vector.load %arg4[%c7_101, %c0_102, %c0_103] : memref<9x32x32xbf16, #tpu.memory_space<vmem>>, vector<1x32x32xbf16>
    %157 = vector.shape_cast %156 : vector<1x32x32xbf16> to vector<32x32xbf16>
    %cst_104 = arith.constant dense<0.000000e+00> : vector<256x32xf32>
    %158 = tpu.matmul %155, %157, %cst_104 {dimension_numbers = #tpu.dot_dimension_numbers<[1], [0], [0], [1], [0, 0, 1, 1], [], []>} : vector<256x32xbf16>, vector<32x32xbf16>, vector<256x32xf32> -> vector<256x32xf32>
    %159 = arith.addf %153, %158 : vector<256x32xf32>
    %160 = vector.extract_strided_slice %110 {offsets = [2, 0, 0], sizes = [16, 16, 32], strides = [1, 1, 1]} : vector<18x16x32xbf16> to vector<16x16x32xbf16>
    %161 = vector.shape_cast %160 : vector<16x16x32xbf16> to vector<256x32xbf16>
    %c8_105 = arith.constant 8 : index
    %c0_106 = arith.constant 0 : index
    %c0_107 = arith.constant 0 : index
    %162 = vector.load %arg4[%c8_105, %c0_106, %c0_107] : memref<9x32x32xbf16, #tpu.memory_space<vmem>>, vector<1x32x32xbf16>
    %163 = vector.shape_cast %162 : vector<1x32x32xbf16> to vector<32x32xbf16>
    %cst_108 = arith.constant dense<0.000000e+00> : vector<256x32xf32>
    %164 = tpu.matmul %161, %163, %cst_108 {dimension_numbers = #tpu.dot_dimension_numbers<[1], [0], [0], [1], [0, 0, 1, 1], [], []>} : vector<256x32xbf16>, vector<32x32xbf16>, vector<256x32xf32> -> vector<256x32xf32>
    %165 = arith.addf %159, %164 : vector<256x32xf32>
    %c0_109 = arith.constant 0 : index
    %c0_110 = arith.constant 0 : index
    %166 = vector.load %arg5[%c0_109, %c0_110] : memref<1x32xf32, #tpu.memory_space<vmem>>, vector<1x32xf32>
    %167 = vector.broadcast %166 : vector<1x32xf32> to vector<256x32xf32>
    %168 = arith.addf %165, %167 : vector<256x32xf32>
    %cst_111 = arith.constant 0.000000e+00 : f32
    %169 = vector.broadcast %cst_111 : f32 to vector<256x32xf32>
    %170 = arith.maximumf %168, %169 : vector<256x32xf32>
    %171 = vector.shape_cast %170 : vector<256x32xf32> to vector<16x16x32xf32>
    %c1_112 = arith.constant 1 : index
    %c0_113 = arith.constant 0 : index
    %c0_114 = arith.constant 0 : index
    %172 = vector.load %arg15[%c1_112, %c0_113, %c0_114] : memref<18x16x32xf32, #tpu.memory_space<vmem>>, vector<16x16x32xf32>
    tpu.vector_store %arg15[%c1_112, %c0_113, %c0_114], %171 {strides = array<i32>} : memref<18x16x32xf32, #tpu.memory_space<vmem>>, vector<16x16x32xf32>,
    %c0_115 = arith.constant 0 : index
    %c0_116 = arith.constant 0 : index
    %c0_117 = arith.constant 0 : index
    %173 = vector.load %arg15[%c0_115, %c0_116, %c0_117] : memref<18x16x32xf32, #tpu.memory_space<vmem>>, vector<18x16x32xf32>
    %174 = tpu.iota {dimensions = array<i32: 1>} : vector<18x16x1xi32>
    %c0_i32_118 = arith.constant 0 : i32
    %175 = vector.broadcast %c0_i32_118 : i32 to vector<18x16x1xi32>
    %176 = arith.cmpi eq, %174, %175 : vector<18x16x1xi32>
    %c1_i32_119 = arith.constant 1 : i32
    %177 = tpu.dynamic_rotate %173 by %c1_i32_119 dim 1 : vector<18x16x32xf32>, i32 -> vector<18x16x32xf32>
    %cst_120 = arith.constant 0.000000e+00 : f32
    %178 = vector.shape_cast %176 : vector<18x16x1xi1> to vector<18x16x1xi1>
    %179 = vector.broadcast %178 : vector<18x16x1xi1> to vector<18x16x32xi1>
    %180 = vector.broadcast %cst_120 : f32 to vector<18x16x32xf32>
    %181 = arith.select %179, %180, %177 : vector<18x16x32xi1>, vector<18x16x32xf32>
    %c15_i32_121 = arith.constant 15 : i32
    %182 = vector.broadcast %c15_i32_121 : i32 to vector<18x16x1xi32>
    %183 = arith.cmpi eq, %174, %182 : vector<18x16x1xi32>
    %c15_i32_122 = arith.constant 15 : i32
    %184 = tpu.dynamic_rotate %173 by %c15_i32_122 dim 1 : vector<18x16x32xf32>, i32 -> vector<18x16x32xf32>
    %cst_123 = arith.constant 0.000000e+00 : f32
    %185 = vector.shape_cast %183 : vector<18x16x1xi1> to vector<18x16x1xi1>
    %186 = vector.broadcast %185 : vector<18x16x1xi1> to vector<18x16x32xi1>
    %187 = vector.broadcast %cst_123 : f32 to vector<18x16x32xf32>
    %188 = arith.select %186, %187, %184 : vector<18x16x32xi1>, vector<18x16x32xf32>
    %189 = arith.truncf %181 : vector<18x16x32xf32> to vector<18x16x32xbf16>
    %190 = arith.truncf %173 : vector<18x16x32xf32> to vector<18x16x32xbf16>
    %191 = arith.truncf %188 : vector<18x16x32xf32> to vector<18x16x32xbf16>
    %cst_124 = arith.constant 0.000000e+00 : f32
    %192 = vector.broadcast %cst_124 : f32 to vector<256x32xf32>
    %193 = vector.extract_strided_slice %189 {offsets = [0, 0, 0], sizes = [16, 16, 32], strides = [1, 1, 1]} : vector<18x16x32xbf16> to vector<16x16x32xbf16>
    %194 = vector.shape_cast %193 : vector<16x16x32xbf16> to vector<256x32xbf16>
    %c0_125 = arith.constant 0 : index
    %c0_126 = arith.constant 0 : index
    %c0_127 = arith.constant 0 : index
    %195 = vector.load %arg6[%c0_125, %c0_126, %c0_127] : memref<9x32x32xbf16, #tpu.memory_space<vmem>>, vector<1x32x32xbf16>
    %196 = vector.shape_cast %195 : vector<1x32x32xbf16> to vector<32x32xbf16>
    %cst_128 = arith.constant dense<0.000000e+00> : vector<256x32xf32>
    %197 = tpu.matmul %194, %196, %cst_128 {dimension_numbers = #tpu.dot_dimension_numbers<[1], [0], [0], [1], [0, 0, 1, 1], [], []>} : vector<256x32xbf16>, vector<32x32xbf16>, vector<256x32xf32> -> vector<256x32xf32>
    %198 = arith.addf %192, %197 : vector<256x32xf32>
    %199 = vector.extract_strided_slice %190 {offsets = [0, 0, 0], sizes = [16, 16, 32], strides = [1, 1, 1]} : vector<18x16x32xbf16> to vector<16x16x32xbf16>
    %200 = vector.shape_cast %199 : vector<16x16x32xbf16> to vector<256x32xbf16>
    %c1_129 = arith.constant 1 : index
    %c0_130 = arith.constant 0 : index
    %c0_131 = arith.constant 0 : index
    %201 = vector.load %arg6[%c1_129, %c0_130, %c0_131] : memref<9x32x32xbf16, #tpu.memory_space<vmem>>, vector<1x32x32xbf16>
    %202 = vector.shape_cast %201 : vector<1x32x32xbf16> to vector<32x32xbf16>
    %cst_132 = arith.constant dense<0.000000e+00> : vector<256x32xf32>
    %203 = tpu.matmul %200, %202, %cst_132 {dimension_numbers = #tpu.dot_dimension_numbers<[1], [0], [0], [1], [0, 0, 1, 1], [], []>} : vector<256x32xbf16>, vector<32x32xbf16>, vector<256x32xf32> -> vector<256x32xf32>
    %204 = arith.addf %198, %203 : vector<256x32xf32>
    %205 = vector.extract_strided_slice %191 {offsets = [0, 0, 0], sizes = [16, 16, 32], strides = [1, 1, 1]} : vector<18x16x32xbf16> to vector<16x16x32xbf16>
    %206 = vector.shape_cast %205 : vector<16x16x32xbf16> to vector<256x32xbf16>
    %c2_133 = arith.constant 2 : index
    %c0_134 = arith.constant 0 : index
    %c0_135 = arith.constant 0 : index
    %207 = vector.load %arg6[%c2_133, %c0_134, %c0_135] : memref<9x32x32xbf16, #tpu.memory_space<vmem>>, vector<1x32x32xbf16>
    %208 = vector.shape_cast %207 : vector<1x32x32xbf16> to vector<32x32xbf16>
    %cst_136 = arith.constant dense<0.000000e+00> : vector<256x32xf32>
    %209 = tpu.matmul %206, %208, %cst_136 {dimension_numbers = #tpu.dot_dimension_numbers<[1], [0], [0], [1], [0, 0, 1, 1], [], []>} : vector<256x32xbf16>, vector<32x32xbf16>, vector<256x32xf32> -> vector<256x32xf32>
    %210 = arith.addf %204, %209 : vector<256x32xf32>
    %211 = vector.extract_strided_slice %189 {offsets = [1, 0, 0], sizes = [16, 16, 32], strides = [1, 1, 1]} : vector<18x16x32xbf16> to vector<16x16x32xbf16>
    %212 = vector.shape_cast %211 : vector<16x16x32xbf16> to vector<256x32xbf16>
    %c3_137 = arith.constant 3 : index
    %c0_138 = arith.constant 0 : index
    %c0_139 = arith.constant 0 : index
    %213 = vector.load %arg6[%c3_137, %c0_138, %c0_139] : memref<9x32x32xbf16, #tpu.memory_space<vmem>>, vector<1x32x32xbf16>
    %214 = vector.shape_cast %213 : vector<1x32x32xbf16> to vector<32x32xbf16>
    %cst_140 = arith.constant dense<0.000000e+00> : vector<256x32xf32>
    %215 = tpu.matmul %212, %214, %cst_140 {dimension_numbers = #tpu.dot_dimension_numbers<[1], [0], [0], [1], [0, 0, 1, 1], [], []>} : vector<256x32xbf16>, vector<32x32xbf16>, vector<256x32xf32> -> vector<256x32xf32>
    %216 = arith.addf %210, %215 : vector<256x32xf32>
    %217 = vector.extract_strided_slice %190 {offsets = [1, 0, 0], sizes = [16, 16, 32], strides = [1, 1, 1]} : vector<18x16x32xbf16> to vector<16x16x32xbf16>
    %218 = vector.shape_cast %217 : vector<16x16x32xbf16> to vector<256x32xbf16>
    %c4_141 = arith.constant 4 : index
    %c0_142 = arith.constant 0 : index
    %c0_143 = arith.constant 0 : index
    %219 = vector.load %arg6[%c4_141, %c0_142, %c0_143] : memref<9x32x32xbf16, #tpu.memory_space<vmem>>, vector<1x32x32xbf16>
    %220 = vector.shape_cast %219 : vector<1x32x32xbf16> to vector<32x32xbf16>
    %cst_144 = arith.constant dense<0.000000e+00> : vector<256x32xf32>
    %221 = tpu.matmul %218, %220, %cst_144 {dimension_numbers = #tpu.dot_dimension_numbers<[1], [0], [0], [1], [0, 0, 1, 1], [], []>} : vector<256x32xbf16>, vector<32x32xbf16>, vector<256x32xf32> -> vector<256x32xf32>
    %222 = arith.addf %216, %221 : vector<256x32xf32>
    %223 = vector.extract_strided_slice %191 {offsets = [1, 0, 0], sizes = [16, 16, 32], strides = [1, 1, 1]} : vector<18x16x32xbf16> to vector<16x16x32xbf16>
    %224 = vector.shape_cast %223 : vector<16x16x32xbf16> to vector<256x32xbf16>
    %c5_145 = arith.constant 5 : index
    %c0_146 = arith.constant 0 : index
    %c0_147 = arith.constant 0 : index
    %225 = vector.load %arg6[%c5_145, %c0_146, %c0_147] : memref<9x32x32xbf16, #tpu.memory_space<vmem>>, vector<1x32x32xbf16>
    %226 = vector.shape_cast %225 : vector<1x32x32xbf16> to vector<32x32xbf16>
    %cst_148 = arith.constant dense<0.000000e+00> : vector<256x32xf32>
    %227 = tpu.matmul %224, %226, %cst_148 {dimension_numbers = #tpu.dot_dimension_numbers<[1], [0], [0], [1], [0, 0, 1, 1], [], []>} : vector<256x32xbf16>, vector<32x32xbf16>, vector<256x32xf32> -> vector<256x32xf32>
    %228 = arith.addf %222, %227 : vector<256x32xf32>
    %229 = vector.extract_strided_slice %189 {offsets = [2, 0, 0], sizes = [16, 16, 32], strides = [1, 1, 1]} : vector<18x16x32xbf16> to vector<16x16x32xbf16>
    %230 = vector.shape_cast %229 : vector<16x16x32xbf16> to vector<256x32xbf16>
    %c6_149 = arith.constant 6 : index
    %c0_150 = arith.constant 0 : index
    %c0_151 = arith.constant 0 : index
    %231 = vector.load %arg6[%c6_149, %c0_150, %c0_151] : memref<9x32x32xbf16, #tpu.memory_space<vmem>>, vector<1x32x32xbf16>
    %232 = vector.shape_cast %231 : vector<1x32x32xbf16> to vector<32x32xbf16>
    %cst_152 = arith.constant dense<0.000000e+00> : vector<256x32xf32>
    %233 = tpu.matmul %230, %232, %cst_152 {dimension_numbers = #tpu.dot_dimension_numbers<[1], [0], [0], [1], [0, 0, 1, 1], [], []>} : vector<256x32xbf16>, vector<32x32xbf16>, vector<256x32xf32> -> vector<256x32xf32>
    %234 = arith.addf %228, %233 : vector<256x32xf32>
    %235 = vector.extract_strided_slice %190 {offsets = [2, 0, 0], sizes = [16, 16, 32], strides = [1, 1, 1]} : vector<18x16x32xbf16> to vector<16x16x32xbf16>
    %236 = vector.shape_cast %235 : vector<16x16x32xbf16> to vector<256x32xbf16>
    %c7_153 = arith.constant 7 : index
    %c0_154 = arith.constant 0 : index
    %c0_155 = arith.constant 0 : index
    %237 = vector.load %arg6[%c7_153, %c0_154, %c0_155] : memref<9x32x32xbf16, #tpu.memory_space<vmem>>, vector<1x32x32xbf16>
    %238 = vector.shape_cast %237 : vector<1x32x32xbf16> to vector<32x32xbf16>
    %cst_156 = arith.constant dense<0.000000e+00> : vector<256x32xf32>
    %239 = tpu.matmul %236, %238, %cst_156 {dimension_numbers = #tpu.dot_dimension_numbers<[1], [0], [0], [1], [0, 0, 1, 1], [], []>} : vector<256x32xbf16>, vector<32x32xbf16>, vector<256x32xf32> -> vector<256x32xf32>
    %240 = arith.addf %234, %239 : vector<256x32xf32>
    %241 = vector.extract_strided_slice %191 {offsets = [2, 0, 0], sizes = [16, 16, 32], strides = [1, 1, 1]} : vector<18x16x32xbf16> to vector<16x16x32xbf16>
    %242 = vector.shape_cast %241 : vector<16x16x32xbf16> to vector<256x32xbf16>
    %c8_157 = arith.constant 8 : index
    %c0_158 = arith.constant 0 : index
    %c0_159 = arith.constant 0 : index
    %243 = vector.load %arg6[%c8_157, %c0_158, %c0_159] : memref<9x32x32xbf16, #tpu.memory_space<vmem>>, vector<1x32x32xbf16>
    %244 = vector.shape_cast %243 : vector<1x32x32xbf16> to vector<32x32xbf16>
    %cst_160 = arith.constant dense<0.000000e+00> : vector<256x32xf32>
    %245 = tpu.matmul %242, %244, %cst_160 {dimension_numbers = #tpu.dot_dimension_numbers<[1], [0], [0], [1], [0, 0, 1, 1], [], []>} : vector<256x32xbf16>, vector<32x32xbf16>, vector<256x32xf32> -> vector<256x32xf32>
    %246 = arith.addf %240, %245 : vector<256x32xf32>
    %c0_161 = arith.constant 0 : index
    %c0_162 = arith.constant 0 : index
    %247 = vector.load %arg7[%c0_161, %c0_162] : memref<1x32xf32, #tpu.memory_space<vmem>>, vector<1x32xf32>
    %248 = vector.broadcast %247 : vector<1x32xf32> to vector<256x32xf32>
    %249 = arith.addf %246, %248 : vector<256x32xf32>
    %cst_163 = arith.constant 0.000000e+00 : f32
    %250 = vector.broadcast %cst_163 : f32 to vector<256x32xf32>
    %251 = arith.maximumf %249, %250 : vector<256x32xf32>
    %252 = vector.shape_cast %251 : vector<256x32xf32> to vector<16x16x32xf32>
    %c1_164 = arith.constant 1 : index
    %c0_165 = arith.constant 0 : index
    %c0_166 = arith.constant 0 : index
    %253 = vector.load %arg15[%c1_164, %c0_165, %c0_166] : memref<18x16x32xf32, #tpu.memory_space<vmem>>, vector<16x16x32xf32>
    tpu.vector_store %arg15[%c1_164, %c0_165, %c0_166], %252 {strides = array<i32>} : memref<18x16x32xf32, #tpu.memory_space<vmem>>, vector<16x16x32xf32>,
    %c0_167 = arith.constant 0 : index
    %c0_168 = arith.constant 0 : index
    %c0_169 = arith.constant 0 : index
    %254 = vector.load %arg15[%c0_167, %c0_168, %c0_169] : memref<18x16x32xf32, #tpu.memory_space<vmem>>, vector<18x16x32xf32>
    %255 = tpu.iota {dimensions = array<i32: 1>} : vector<18x16x1xi32>
    %c0_i32_170 = arith.constant 0 : i32
    %256 = vector.broadcast %c0_i32_170 : i32 to vector<18x16x1xi32>
    %257 = arith.cmpi eq, %255, %256 : vector<18x16x1xi32>
    %c1_i32_171 = arith.constant 1 : i32
    %258 = tpu.dynamic_rotate %254 by %c1_i32_171 dim 1 : vector<18x16x32xf32>, i32 -> vector<18x16x32xf32>
    %cst_172 = arith.constant 0.000000e+00 : f32
    %259 = vector.shape_cast %257 : vector<18x16x1xi1> to vector<18x16x1xi1>
    %260 = vector.broadcast %259 : vector<18x16x1xi1> to vector<18x16x32xi1>
    %261 = vector.broadcast %cst_172 : f32 to vector<18x16x32xf32>
    %262 = arith.select %260, %261, %258 : vector<18x16x32xi1>, vector<18x16x32xf32>
    %c15_i32_173 = arith.constant 15 : i32
    %263 = vector.broadcast %c15_i32_173 : i32 to vector<18x16x1xi32>
    %264 = arith.cmpi eq, %255, %263 : vector<18x16x1xi32>
    %c15_i32_174 = arith.constant 15 : i32
    %265 = tpu.dynamic_rotate %254 by %c15_i32_174 dim 1 : vector<18x16x32xf32>, i32 -> vector<18x16x32xf32>
    %cst_175 = arith.constant 0.000000e+00 : f32
    %266 = vector.shape_cast %264 : vector<18x16x1xi1> to vector<18x16x1xi1>
    %267 = vector.broadcast %266 : vector<18x16x1xi1> to vector<18x16x32xi1>
    %268 = vector.broadcast %cst_175 : f32 to vector<18x16x32xf32>
    %269 = arith.select %267, %268, %265 : vector<18x16x32xi1>, vector<18x16x32xf32>
    %270 = arith.truncf %262 : vector<18x16x32xf32> to vector<18x16x32xbf16>
    %271 = arith.truncf %254 : vector<18x16x32xf32> to vector<18x16x32xbf16>
    %272 = arith.truncf %269 : vector<18x16x32xf32> to vector<18x16x32xbf16>
    %cst_176 = arith.constant 0.000000e+00 : f32
    %273 = vector.broadcast %cst_176 : f32 to vector<256x32xf32>
    %274 = vector.extract_strided_slice %270 {offsets = [0, 0, 0], sizes = [16, 16, 32], strides = [1, 1, 1]} : vector<18x16x32xbf16> to vector<16x16x32xbf16>
    %275 = vector.shape_cast %274 : vector<16x16x32xbf16> to vector<256x32xbf16>
    %c0_177 = arith.constant 0 : index
    %c0_178 = arith.constant 0 : index
    %c0_179 = arith.constant 0 : index
    %276 = vector.load %arg8[%c0_177, %c0_178, %c0_179] : memref<9x32x32xbf16, #tpu.memory_space<vmem>>, vector<1x32x32xbf16>
    %277 = vector.shape_cast %276 : vector<1x32x32xbf16> to vector<32x32xbf16>
    %cst_180 = arith.constant dense<0.000000e+00> : vector<256x32xf32>
    %278 = tpu.matmul %275, %277, %cst_180 {dimension_numbers = #tpu.dot_dimension_numbers<[1], [0], [0], [1], [0, 0, 1, 1], [], []>} : vector<256x32xbf16>, vector<32x32xbf16>, vector<256x32xf32> -> vector<256x32xf32>
    %279 = arith.addf %273, %278 : vector<256x32xf32>
    %280 = vector.extract_strided_slice %271 {offsets = [0, 0, 0], sizes = [16, 16, 32], strides = [1, 1, 1]} : vector<18x16x32xbf16> to vector<16x16x32xbf16>
    %281 = vector.shape_cast %280 : vector<16x16x32xbf16> to vector<256x32xbf16>
    %c1_181 = arith.constant 1 : index
    %c0_182 = arith.constant 0 : index
    %c0_183 = arith.constant 0 : index
    %282 = vector.load %arg8[%c1_181, %c0_182, %c0_183] : memref<9x32x32xbf16, #tpu.memory_space<vmem>>, vector<1x32x32xbf16>
    %283 = vector.shape_cast %282 : vector<1x32x32xbf16> to vector<32x32xbf16>
    %cst_184 = arith.constant dense<0.000000e+00> : vector<256x32xf32>
    %284 = tpu.matmul %281, %283, %cst_184 {dimension_numbers = #tpu.dot_dimension_numbers<[1], [0], [0], [1], [0, 0, 1, 1], [], []>} : vector<256x32xbf16>, vector<32x32xbf16>, vector<256x32xf32> -> vector<256x32xf32>
    %285 = arith.addf %279, %284 : vector<256x32xf32>
    %286 = vector.extract_strided_slice %272 {offsets = [0, 0, 0], sizes = [16, 16, 32], strides = [1, 1, 1]} : vector<18x16x32xbf16> to vector<16x16x32xbf16>
    %287 = vector.shape_cast %286 : vector<16x16x32xbf16> to vector<256x32xbf16>
    %c2_185 = arith.constant 2 : index
    %c0_186 = arith.constant 0 : index
    %c0_187 = arith.constant 0 : index
    %288 = vector.load %arg8[%c2_185, %c0_186, %c0_187] : memref<9x32x32xbf16, #tpu.memory_space<vmem>>, vector<1x32x32xbf16>
    %289 = vector.shape_cast %288 : vector<1x32x32xbf16> to vector<32x32xbf16>
    %cst_188 = arith.constant dense<0.000000e+00> : vector<256x32xf32>
    %290 = tpu.matmul %287, %289, %cst_188 {dimension_numbers = #tpu.dot_dimension_numbers<[1], [0], [0], [1], [0, 0, 1, 1], [], []>} : vector<256x32xbf16>, vector<32x32xbf16>, vector<256x32xf32> -> vector<256x32xf32>
    %291 = arith.addf %285, %290 : vector<256x32xf32>
    %292 = vector.extract_strided_slice %270 {offsets = [1, 0, 0], sizes = [16, 16, 32], strides = [1, 1, 1]} : vector<18x16x32xbf16> to vector<16x16x32xbf16>
    %293 = vector.shape_cast %292 : vector<16x16x32xbf16> to vector<256x32xbf16>
    %c3_189 = arith.constant 3 : index
    %c0_190 = arith.constant 0 : index
    %c0_191 = arith.constant 0 : index
    %294 = vector.load %arg8[%c3_189, %c0_190, %c0_191] : memref<9x32x32xbf16, #tpu.memory_space<vmem>>, vector<1x32x32xbf16>
    %295 = vector.shape_cast %294 : vector<1x32x32xbf16> to vector<32x32xbf16>
    %cst_192 = arith.constant dense<0.000000e+00> : vector<256x32xf32>
    %296 = tpu.matmul %293, %295, %cst_192 {dimension_numbers = #tpu.dot_dimension_numbers<[1], [0], [0], [1], [0, 0, 1, 1], [], []>} : vector<256x32xbf16>, vector<32x32xbf16>, vector<256x32xf32> -> vector<256x32xf32>
    %297 = arith.addf %291, %296 : vector<256x32xf32>
    %298 = vector.extract_strided_slice %271 {offsets = [1, 0, 0], sizes = [16, 16, 32], strides = [1, 1, 1]} : vector<18x16x32xbf16> to vector<16x16x32xbf16>
    %299 = vector.shape_cast %298 : vector<16x16x32xbf16> to vector<256x32xbf16>
    %c4_193 = arith.constant 4 : index
    %c0_194 = arith.constant 0 : index
    %c0_195 = arith.constant 0 : index
    %300 = vector.load %arg8[%c4_193, %c0_194, %c0_195] : memref<9x32x32xbf16, #tpu.memory_space<vmem>>, vector<1x32x32xbf16>
    %301 = vector.shape_cast %300 : vector<1x32x32xbf16> to vector<32x32xbf16>
    %cst_196 = arith.constant dense<0.000000e+00> : vector<256x32xf32>
    %302 = tpu.matmul %299, %301, %cst_196 {dimension_numbers = #tpu.dot_dimension_numbers<[1], [0], [0], [1], [0, 0, 1, 1], [], []>} : vector<256x32xbf16>, vector<32x32xbf16>, vector<256x32xf32> -> vector<256x32xf32>
    %303 = arith.addf %297, %302 : vector<256x32xf32>
    %304 = vector.extract_strided_slice %272 {offsets = [1, 0, 0], sizes = [16, 16, 32], strides = [1, 1, 1]} : vector<18x16x32xbf16> to vector<16x16x32xbf16>
    %305 = vector.shape_cast %304 : vector<16x16x32xbf16> to vector<256x32xbf16>
    %c5_197 = arith.constant 5 : index
    %c0_198 = arith.constant 0 : index
    %c0_199 = arith.constant 0 : index
    %306 = vector.load %arg8[%c5_197, %c0_198, %c0_199] : memref<9x32x32xbf16, #tpu.memory_space<vmem>>, vector<1x32x32xbf16>
    %307 = vector.shape_cast %306 : vector<1x32x32xbf16> to vector<32x32xbf16>
    %cst_200 = arith.constant dense<0.000000e+00> : vector<256x32xf32>
    %308 = tpu.matmul %305, %307, %cst_200 {dimension_numbers = #tpu.dot_dimension_numbers<[1], [0], [0], [1], [0, 0, 1, 1], [], []>} : vector<256x32xbf16>, vector<32x32xbf16>, vector<256x32xf32> -> vector<256x32xf32>
    %309 = arith.addf %303, %308 : vector<256x32xf32>
    %310 = vector.extract_strided_slice %270 {offsets = [2, 0, 0], sizes = [16, 16, 32], strides = [1, 1, 1]} : vector<18x16x32xbf16> to vector<16x16x32xbf16>
    %311 = vector.shape_cast %310 : vector<16x16x32xbf16> to vector<256x32xbf16>
    %c6_201 = arith.constant 6 : index
    %c0_202 = arith.constant 0 : index
    %c0_203 = arith.constant 0 : index
    %312 = vector.load %arg8[%c6_201, %c0_202, %c0_203] : memref<9x32x32xbf16, #tpu.memory_space<vmem>>, vector<1x32x32xbf16>
    %313 = vector.shape_cast %312 : vector<1x32x32xbf16> to vector<32x32xbf16>
    %cst_204 = arith.constant dense<0.000000e+00> : vector<256x32xf32>
    %314 = tpu.matmul %311, %313, %cst_204 {dimension_numbers = #tpu.dot_dimension_numbers<[1], [0], [0], [1], [0, 0, 1, 1], [], []>} : vector<256x32xbf16>, vector<32x32xbf16>, vector<256x32xf32> -> vector<256x32xf32>
    %315 = arith.addf %309, %314 : vector<256x32xf32>
    %316 = vector.extract_strided_slice %271 {offsets = [2, 0, 0], sizes = [16, 16, 32], strides = [1, 1, 1]} : vector<18x16x32xbf16> to vector<16x16x32xbf16>
    %317 = vector.shape_cast %316 : vector<16x16x32xbf16> to vector<256x32xbf16>
    %c7_205 = arith.constant 7 : index
    %c0_206 = arith.constant 0 : index
    %c0_207 = arith.constant 0 : index
    %318 = vector.load %arg8[%c7_205, %c0_206, %c0_207] : memref<9x32x32xbf16, #tpu.memory_space<vmem>>, vector<1x32x32xbf16>
    %319 = vector.shape_cast %318 : vector<1x32x32xbf16> to vector<32x32xbf16>
    %cst_208 = arith.constant dense<0.000000e+00> : vector<256x32xf32>
    %320 = tpu.matmul %317, %319, %cst_208 {dimension_numbers = #tpu.dot_dimension_numbers<[1], [0], [0], [1], [0, 0, 1, 1], [], []>} : vector<256x32xbf16>, vector<32x32xbf16>, vector<256x32xf32> -> vector<256x32xf32>
    %321 = arith.addf %315, %320 : vector<256x32xf32>
    %322 = vector.extract_strided_slice %272 {offsets = [2, 0, 0], sizes = [16, 16, 32], strides = [1, 1, 1]} : vector<18x16x32xbf16> to vector<16x16x32xbf16>
    %323 = vector.shape_cast %322 : vector<16x16x32xbf16> to vector<256x32xbf16>
    %c8_209 = arith.constant 8 : index
    %c0_210 = arith.constant 0 : index
    %c0_211 = arith.constant 0 : index
    %324 = vector.load %arg8[%c8_209, %c0_210, %c0_211] : memref<9x32x32xbf16, #tpu.memory_space<vmem>>, vector<1x32x32xbf16>
    %325 = vector.shape_cast %324 : vector<1x32x32xbf16> to vector<32x32xbf16>
    %cst_212 = arith.constant dense<0.000000e+00> : vector<256x32xf32>
    %326 = tpu.matmul %323, %325, %cst_212 {dimension_numbers = #tpu.dot_dimension_numbers<[1], [0], [0], [1], [0, 0, 1, 1], [], []>} : vector<256x32xbf16>, vector<32x32xbf16>, vector<256x32xf32> -> vector<256x32xf32>
    %327 = arith.addf %321, %326 : vector<256x32xf32>
    %c0_213 = arith.constant 0 : index
    %c0_214 = arith.constant 0 : index
    %328 = vector.load %arg9[%c0_213, %c0_214] : memref<1x32xf32, #tpu.memory_space<vmem>>, vector<1x32xf32>
    %329 = vector.broadcast %328 : vector<1x32xf32> to vector<256x32xf32>
    %330 = arith.addf %327, %329 : vector<256x32xf32>
    %cst_215 = arith.constant 0.000000e+00 : f32
    %331 = vector.broadcast %cst_215 : f32 to vector<256x32xf32>
    %332 = arith.maximumf %330, %331 : vector<256x32xf32>
    %333 = vector.shape_cast %332 : vector<256x32xf32> to vector<16x16x32xf32>
    %c1_216 = arith.constant 1 : index
    %c0_217 = arith.constant 0 : index
    %c0_218 = arith.constant 0 : index
    %334 = vector.load %arg15[%c1_216, %c0_217, %c0_218] : memref<18x16x32xf32, #tpu.memory_space<vmem>>, vector<16x16x32xf32>
    tpu.vector_store %arg15[%c1_216, %c0_217, %c0_218], %333 {strides = array<i32>} : memref<18x16x32xf32, #tpu.memory_space<vmem>>, vector<16x16x32xf32>,
    %c0_219 = arith.constant 0 : index
    %c0_220 = arith.constant 0 : index
    %c0_221 = arith.constant 0 : index
    %335 = vector.load %arg15[%c0_219, %c0_220, %c0_221] : memref<18x16x32xf32, #tpu.memory_space<vmem>>, vector<18x16x32xf32>
    %336 = tpu.iota {dimensions = array<i32: 1>} : vector<18x16x1xi32>
    %c0_i32_222 = arith.constant 0 : i32
    %337 = vector.broadcast %c0_i32_222 : i32 to vector<18x16x1xi32>
    %338 = arith.cmpi eq, %336, %337 : vector<18x16x1xi32>
    %c1_i32_223 = arith.constant 1 : i32
    %339 = tpu.dynamic_rotate %335 by %c1_i32_223 dim 1 : vector<18x16x32xf32>, i32 -> vector<18x16x32xf32>
    %cst_224 = arith.constant 0.000000e+00 : f32
    %340 = vector.shape_cast %338 : vector<18x16x1xi1> to vector<18x16x1xi1>
    %341 = vector.broadcast %340 : vector<18x16x1xi1> to vector<18x16x32xi1>
    %342 = vector.broadcast %cst_224 : f32 to vector<18x16x32xf32>
    %343 = arith.select %341, %342, %339 : vector<18x16x32xi1>, vector<18x16x32xf32>
    %c15_i32_225 = arith.constant 15 : i32
    %344 = vector.broadcast %c15_i32_225 : i32 to vector<18x16x1xi32>
    %345 = arith.cmpi eq, %336, %344 : vector<18x16x1xi32>
    %c15_i32_226 = arith.constant 15 : i32
    %346 = tpu.dynamic_rotate %335 by %c15_i32_226 dim 1 : vector<18x16x32xf32>, i32 -> vector<18x16x32xf32>
    %cst_227 = arith.constant 0.000000e+00 : f32
    %347 = vector.shape_cast %345 : vector<18x16x1xi1> to vector<18x16x1xi1>
    %348 = vector.broadcast %347 : vector<18x16x1xi1> to vector<18x16x32xi1>
    %349 = vector.broadcast %cst_227 : f32 to vector<18x16x32xf32>
    %350 = arith.select %348, %349, %346 : vector<18x16x32xi1>, vector<18x16x32xf32>
    %351 = arith.truncf %343 : vector<18x16x32xf32> to vector<18x16x32xbf16>
    %352 = arith.truncf %335 : vector<18x16x32xf32> to vector<18x16x32xbf16>
    %353 = arith.truncf %350 : vector<18x16x32xf32> to vector<18x16x32xbf16>
    %cst_228 = arith.constant 0.000000e+00 : f32
    %354 = vector.broadcast %cst_228 : f32 to vector<256x128xf32>
    %355 = vector.extract_strided_slice %351 {offsets = [0, 0, 0], sizes = [16, 16, 32], strides = [1, 1, 1]} : vector<18x16x32xbf16> to vector<16x16x32xbf16>
    %356 = vector.shape_cast %355 : vector<16x16x32xbf16> to vector<256x32xbf16>
    %c0_229 = arith.constant 0 : index
    %c0_230 = arith.constant 0 : index
    %c0_231 = arith.constant 0 : index
    %357 = vector.load %arg10[%c0_229, %c0_230, %c0_231] : memref<9x32x128xbf16, #tpu.memory_space<vmem>>, vector<1x32x128xbf16>
    %358 = vector.shape_cast %357 : vector<1x32x128xbf16> to vector<32x128xbf16>
    %cst_232 = arith.constant dense<0.000000e+00> : vector<256x128xf32>
    %359 = tpu.matmul %356, %358, %cst_232 {dimension_numbers = #tpu.dot_dimension_numbers<[1], [0], [0], [1], [0, 0, 1, 1], [], []>} : vector<256x32xbf16>, vector<32x128xbf16>, vector<256x128xf32> -> vector<256x128xf32>
    %360 = arith.addf %354, %359 : vector<256x128xf32>
    %361 = vector.extract_strided_slice %352 {offsets = [0, 0, 0], sizes = [16, 16, 32], strides = [1, 1, 1]} : vector<18x16x32xbf16> to vector<16x16x32xbf16>
    %362 = vector.shape_cast %361 : vector<16x16x32xbf16> to vector<256x32xbf16>
    %c1_233 = arith.constant 1 : index
    %c0_234 = arith.constant 0 : index
    %c0_235 = arith.constant 0 : index
    %363 = vector.load %arg10[%c1_233, %c0_234, %c0_235] : memref<9x32x128xbf16, #tpu.memory_space<vmem>>, vector<1x32x128xbf16>
    %364 = vector.shape_cast %363 : vector<1x32x128xbf16> to vector<32x128xbf16>
    %cst_236 = arith.constant dense<0.000000e+00> : vector<256x128xf32>
    %365 = tpu.matmul %362, %364, %cst_236 {dimension_numbers = #tpu.dot_dimension_numbers<[1], [0], [0], [1], [0, 0, 1, 1], [], []>} : vector<256x32xbf16>, vector<32x128xbf16>, vector<256x128xf32> -> vector<256x128xf32>
    %366 = arith.addf %360, %365 : vector<256x128xf32>
    %367 = vector.extract_strided_slice %353 {offsets = [0, 0, 0], sizes = [16, 16, 32], strides = [1, 1, 1]} : vector<18x16x32xbf16> to vector<16x16x32xbf16>
    %368 = vector.shape_cast %367 : vector<16x16x32xbf16> to vector<256x32xbf16>
    %c2_237 = arith.constant 2 : index
    %c0_238 = arith.constant 0 : index
    %c0_239 = arith.constant 0 : index
    %369 = vector.load %arg10[%c2_237, %c0_238, %c0_239] : memref<9x32x128xbf16, #tpu.memory_space<vmem>>, vector<1x32x128xbf16>
    %370 = vector.shape_cast %369 : vector<1x32x128xbf16> to vector<32x128xbf16>
    %cst_240 = arith.constant dense<0.000000e+00> : vector<256x128xf32>
    %371 = tpu.matmul %368, %370, %cst_240 {dimension_numbers = #tpu.dot_dimension_numbers<[1], [0], [0], [1], [0, 0, 1, 1], [], []>} : vector<256x32xbf16>, vector<32x128xbf16>, vector<256x128xf32> -> vector<256x128xf32>
    %372 = arith.addf %366, %371 : vector<256x128xf32>
    %373 = vector.extract_strided_slice %351 {offsets = [1, 0, 0], sizes = [16, 16, 32], strides = [1, 1, 1]} : vector<18x16x32xbf16> to vector<16x16x32xbf16>
    %374 = vector.shape_cast %373 : vector<16x16x32xbf16> to vector<256x32xbf16>
    %c3_241 = arith.constant 3 : index
    %c0_242 = arith.constant 0 : index
    %c0_243 = arith.constant 0 : index
    %375 = vector.load %arg10[%c3_241, %c0_242, %c0_243] : memref<9x32x128xbf16, #tpu.memory_space<vmem>>, vector<1x32x128xbf16>
    %376 = vector.shape_cast %375 : vector<1x32x128xbf16> to vector<32x128xbf16>
    %cst_244 = arith.constant dense<0.000000e+00> : vector<256x128xf32>
    %377 = tpu.matmul %374, %376, %cst_244 {dimension_numbers = #tpu.dot_dimension_numbers<[1], [0], [0], [1], [0, 0, 1, 1], [], []>} : vector<256x32xbf16>, vector<32x128xbf16>, vector<256x128xf32> -> vector<256x128xf32>
    %378 = arith.addf %372, %377 : vector<256x128xf32>
    %379 = vector.extract_strided_slice %352 {offsets = [1, 0, 0], sizes = [16, 16, 32], strides = [1, 1, 1]} : vector<18x16x32xbf16> to vector<16x16x32xbf16>
    %380 = vector.shape_cast %379 : vector<16x16x32xbf16> to vector<256x32xbf16>
    %c4_245 = arith.constant 4 : index
    %c0_246 = arith.constant 0 : index
    %c0_247 = arith.constant 0 : index
    %381 = vector.load %arg10[%c4_245, %c0_246, %c0_247] : memref<9x32x128xbf16, #tpu.memory_space<vmem>>, vector<1x32x128xbf16>
    %382 = vector.shape_cast %381 : vector<1x32x128xbf16> to vector<32x128xbf16>
    %cst_248 = arith.constant dense<0.000000e+00> : vector<256x128xf32>
    %383 = tpu.matmul %380, %382, %cst_248 {dimension_numbers = #tpu.dot_dimension_numbers<[1], [0], [0], [1], [0, 0, 1, 1], [], []>} : vector<256x32xbf16>, vector<32x128xbf16>, vector<256x128xf32> -> vector<256x128xf32>
    %384 = arith.addf %378, %383 : vector<256x128xf32>
    %385 = vector.extract_strided_slice %353 {offsets = [1, 0, 0], sizes = [16, 16, 32], strides = [1, 1, 1]} : vector<18x16x32xbf16> to vector<16x16x32xbf16>
    %386 = vector.shape_cast %385 : vector<16x16x32xbf16> to vector<256x32xbf16>
    %c5_249 = arith.constant 5 : index
    %c0_250 = arith.constant 0 : index
    %c0_251 = arith.constant 0 : index
    %387 = vector.load %arg10[%c5_249, %c0_250, %c0_251] : memref<9x32x128xbf16, #tpu.memory_space<vmem>>, vector<1x32x128xbf16>
    %388 = vector.shape_cast %387 : vector<1x32x128xbf16> to vector<32x128xbf16>
    %cst_252 = arith.constant dense<0.000000e+00> : vector<256x128xf32>
    %389 = tpu.matmul %386, %388, %cst_252 {dimension_numbers = #tpu.dot_dimension_numbers<[1], [0], [0], [1], [0, 0, 1, 1], [], []>} : vector<256x32xbf16>, vector<32x128xbf16>, vector<256x128xf32> -> vector<256x128xf32>
    %390 = arith.addf %384, %389 : vector<256x128xf32>
    %391 = vector.extract_strided_slice %351 {offsets = [2, 0, 0], sizes = [16, 16, 32], strides = [1, 1, 1]} : vector<18x16x32xbf16> to vector<16x16x32xbf16>
    %392 = vector.shape_cast %391 : vector<16x16x32xbf16> to vector<256x32xbf16>
    %c6_253 = arith.constant 6 : index
    %c0_254 = arith.constant 0 : index
    %c0_255 = arith.constant 0 : index
    %393 = vector.load %arg10[%c6_253, %c0_254, %c0_255] : memref<9x32x128xbf16, #tpu.memory_space<vmem>>, vector<1x32x128xbf16>
    %394 = vector.shape_cast %393 : vector<1x32x128xbf16> to vector<32x128xbf16>
    %cst_256 = arith.constant dense<0.000000e+00> : vector<256x128xf32>
    %395 = tpu.matmul %392, %394, %cst_256 {dimension_numbers = #tpu.dot_dimension_numbers<[1], [0], [0], [1], [0, 0, 1, 1], [], []>} : vector<256x32xbf16>, vector<32x128xbf16>, vector<256x128xf32> -> vector<256x128xf32>
    %396 = arith.addf %390, %395 : vector<256x128xf32>
    %397 = vector.extract_strided_slice %352 {offsets = [2, 0, 0], sizes = [16, 16, 32], strides = [1, 1, 1]} : vector<18x16x32xbf16> to vector<16x16x32xbf16>
    %398 = vector.shape_cast %397 : vector<16x16x32xbf16> to vector<256x32xbf16>
    %c7_257 = arith.constant 7 : index
    %c0_258 = arith.constant 0 : index
    %c0_259 = arith.constant 0 : index
    %399 = vector.load %arg10[%c7_257, %c0_258, %c0_259] : memref<9x32x128xbf16, #tpu.memory_space<vmem>>, vector<1x32x128xbf16>
    %400 = vector.shape_cast %399 : vector<1x32x128xbf16> to vector<32x128xbf16>
    %cst_260 = arith.constant dense<0.000000e+00> : vector<256x128xf32>
    %401 = tpu.matmul %398, %400, %cst_260 {dimension_numbers = #tpu.dot_dimension_numbers<[1], [0], [0], [1], [0, 0, 1, 1], [], []>} : vector<256x32xbf16>, vector<32x128xbf16>, vector<256x128xf32> -> vector<256x128xf32>
    %402 = arith.addf %396, %401 : vector<256x128xf32>
    %403 = vector.extract_strided_slice %353 {offsets = [2, 0, 0], sizes = [16, 16, 32], strides = [1, 1, 1]} : vector<18x16x32xbf16> to vector<16x16x32xbf16>
    %404 = vector.shape_cast %403 : vector<16x16x32xbf16> to vector<256x32xbf16>
    %c8_261 = arith.constant 8 : index
    %c0_262 = arith.constant 0 : index
    %c0_263 = arith.constant 0 : index
    %405 = vector.load %arg10[%c8_261, %c0_262, %c0_263] : memref<9x32x128xbf16, #tpu.memory_space<vmem>>, vector<1x32x128xbf16>
    %406 = vector.shape_cast %405 : vector<1x32x128xbf16> to vector<32x128xbf16>
    %cst_264 = arith.constant dense<0.000000e+00> : vector<256x128xf32>
    %407 = tpu.matmul %404, %406, %cst_264 {dimension_numbers = #tpu.dot_dimension_numbers<[1], [0], [0], [1], [0, 0, 1, 1], [], []>} : vector<256x32xbf16>, vector<32x128xbf16>, vector<256x128xf32> -> vector<256x128xf32>
    %408 = arith.addf %402, %407 : vector<256x128xf32>
    %c0_265 = arith.constant 0 : index
    %c0_266 = arith.constant 0 : index
    %409 = vector.load %arg11[%c0_265, %c0_266] : memref<1x128xf32, #tpu.memory_space<vmem>>, vector<1x128xf32>
    %410 = vector.broadcast %409 : vector<1x128xf32> to vector<256x128xf32>
    %411 = arith.addf %408, %410 : vector<256x128xf32>
    %412 = vector.shape_cast %411 : vector<256x128xf32> to vector<1x256x128xf32>
    %c0_267 = arith.constant 0 : index
    %c0_268 = arith.constant 0 : index
    %c0_269 = arith.constant 0 : index
    %413 = vector.load %arg13[%c0_267, %c0_268, %c0_269] : memref<1x256x128xf32, #tpu.memory_space<vmem>>, vector<1x256x128xf32>
    tpu.vector_store %arg13[%c0_267, %c0_268, %c0_269], %412 {strides = array<i32>} : memref<1x256x128xf32, #tpu.memory_space<vmem>>, vector<1x256x128xf32>,
    return
  }
  func.func @transform_0(%arg0: i32) -> (i32, i32, i32, i32) {
    %c0_i32 = arith.constant 0 : i32
    %c0_i32_0 = arith.constant 0 : i32
    %c0_i32_1 = arith.constant 0 : i32
    %c0_i32_2 = arith.constant 0 : i32
    return %arg0, %c0_i32, %c0_i32_0, %c0_i32_1 : i32, i32, i32, i32
  }
  func.func @transform_1(%arg0: i32) -> (i32, i32, i32) {
    %c0_i32 = arith.constant 0 : i32
    %c0_i32_0 = arith.constant 0 : i32
    %c0_i32_1 = arith.constant 0 : i32
    %c0_i32_2 = arith.constant 0 : i32
    return %c0_i32, %c0_i32_0, %c0_i32_1 : i32, i32, i32
  }
  func.func @transform_2(%arg0: i32) -> (i32, i32) {
    %c0_i32 = arith.constant 0 : i32
    %c0_i32_0 = arith.constant 0 : i32
    %c0_i32_1 = arith.constant 0 : i32
    return %c0_i32, %c0_i32_0 : i32, i32
  }
  func.func @transform_3(%arg0: i32) -> (i32, i32, i32) {
    %c0_i32 = arith.constant 0 : i32
    %c0_i32_0 = arith.constant 0 : i32
    %c0_i32_1 = arith.constant 0 : i32
    %c0_i32_2 = arith.constant 0 : i32
    return %c0_i32, %c0_i32_0, %c0_i32_1 : i32, i32, i32
  }
  func.func @transform_4(%arg0: i32) -> (i32, i32) {
    %c0_i32 = arith.constant 0 : i32
    %c0_i32_0 = arith.constant 0 : i32
    %c0_i32_1 = arith.constant 0 : i32
    return %c0_i32, %c0_i32_0 : i32, i32
  }
  func.func @transform_5(%arg0: i32) -> (i32, i32, i32) {
    %c0_i32 = arith.constant 0 : i32
    %c0_i32_0 = arith.constant 0 : i32
    %c0_i32_1 = arith.constant 0 : i32
    %c0_i32_2 = arith.constant 0 : i32
    return %c0_i32, %c0_i32_0, %c0_i32_1 : i32, i32, i32
  }
  func.func @transform_6(%arg0: i32) -> (i32, i32) {
    %c0_i32 = arith.constant 0 : i32
    %c0_i32_0 = arith.constant 0 : i32
    %c0_i32_1 = arith.constant 0 : i32
    return %c0_i32, %c0_i32_0 : i32, i32
  }
  func.func @transform_7(%arg0: i32) -> (i32, i32, i32) {
    %c0_i32 = arith.constant 0 : i32
    %c0_i32_0 = arith.constant 0 : i32
    %c0_i32_1 = arith.constant 0 : i32
    %c0_i32_2 = arith.constant 0 : i32
    return %c0_i32, %c0_i32_0, %c0_i32_1 : i32, i32, i32
  }
  func.func @transform_8(%arg0: i32) -> (i32, i32) {
    %c0_i32 = arith.constant 0 : i32
    %c0_i32_0 = arith.constant 0 : i32
    %c0_i32_1 = arith.constant 0 : i32
    return %c0_i32, %c0_i32_0 : i32, i32
  }
  func.func @transform_9(%arg0: i32) -> (i32, i32, i32) {
    %c0_i32 = arith.constant 0 : i32
    %c0_i32_0 = arith.constant 0 : i32
    %c0_i32_1 = arith.constant 0 : i32
    %c0_i32_2 = arith.constant 0 : i32
    return %c0_i32, %c0_i32_0, %c0_i32_1 : i32, i32, i32
  }
  func.func @transform_10(%arg0: i32) -> (i32, i32) {
    %c0_i32 = arith.constant 0 : i32
    %c0_i32_0 = arith.constant 0 : i32
    %c0_i32_1 = arith.constant 0 : i32
    return %c0_i32, %c0_i32_0 : i32, i32
  }
  func.func @transform_11(%arg0: i32) -> (i32, i32, i32, i32) {
    %c0_i32 = arith.constant 0 : i32
    %c0_i32_0 = arith.constant 0 : i32
    %c0_i32_1 = arith.constant 0 : i32
    %c0_i32_2 = arith.constant 0 : i32
    return %arg0, %c0_i32, %c0_i32_0, %c0_i32_1 : i32, i32, i32, i32
  }
  func.func @transform_12(%arg0: i32) -> (i32, i32, i32) {
    %c0_i32 = arith.constant 0 : i32
    %c0_i32_0 = arith.constant 0 : i32
    %c0_i32_1 = arith.constant 0 : i32
    return %arg0, %c0_i32, %c0_i32_0 : i32, i32, i32
  }
}

</mosaic_0001>

<llo_original>
// kernel: regression_model_forward.1
$region0: #{regression_model_forward.1}
  #allocation0 [shape = 'u32[]', space=smem, size = 0x4, offset = 0x4, fixed_abs, tag = 'smem constant byte address 0x4 - core index']
  #allocation1 [shape = 'u32[72,128]{1,0:T(1,128)}', space=vmem, size = 0x9000, scoped, tag = 'internal scratch']
  #allocation2 [shape = 'f32[18,16,4]{2,1,0:T(8,128)}', space=vmem, size = 0x24000, scoped, tag = 'scratch operand']
  #allocation3 [shape = 'f32[18,16,32]{2,1,0:T(8,128)}', space=vmem, size = 0x24000, scoped, tag = 'scratch operand']
  %s0 = inlined_call_operand.vmem [shape: f32[2,16,16,4], index: 0, kind: input, shape index: {}]
  %s1 = inlined_call_operand.hbm [shape: bf16[9,4,32], index: 1, kind: input, shape index: {}]
  %s2 = inlined_call_operand.hbm [shape: f32[1,32], index: 2, kind: input, shape index: {}]
  %s3 = inlined_call_operand.hbm [shape: bf16[9,32,32], index: 3, kind: input, shape index: {}]
  %s4 = inlined_call_operand.hbm [shape: f32[1,32], index: 4, kind: input, shape index: {}]
  %s5 = inlined_call_operand.hbm [shape: bf16[9,32,32], index: 5, kind: input, shape index: {}]
  %s6 = inlined_call_operand.hbm [shape: f32[1,32], index: 6, kind: input, shape index: {}]
  %s7 = inlined_call_operand.hbm [shape: bf16[9,32,32], index: 7, kind: input, shape index: {}]
  %s8 = inlined_call_operand.hbm [shape: f32[1,32], index: 8, kind: input, shape index: {}]
  %s9 = inlined_call_operand.hbm [shape: bf16[9,32,128], index: 9, kind: input, shape index: {}]
  %s10 = inlined_call_operand.hbm [shape: f32[1,128], index: 10, kind: input, shape index: {}]
  %s11 = inlined_call_operand.hbm [shape: f32[2,16,16,32], index: 11, kind: output, shape index: {0}]
  %s12 = inlined_call_operand.vmem [shape: f32[2,256,128], index: 12, kind: output, shape index: {1}]
  %13 = xla_tuple %s11, %s12
  %s14 = sld [smem:[#allocation0]]
  $region125: #{regression_model_forward.1} parent=0
    _
  %s16 = ssub.s32 1, %s14
  %s17 = scalar_select 0, %s16, %s14
  $region1: #{regression_model_forward.1} parent=0
    #allocation4 [shape = 'u8[9216]{0}', space=vmem, size = 0x2400, scoped, tag = 'input window, operand 1, single buffered']
    #allocation5 [shape = 's32[2]{0}', space=sflag, size = 0x8, scoped, tag = 'scoped memory for regression_model_forward.1']
    #allocation6 [shape = 's32[2]{0}', space=sflag, size = 0x8, scoped, tag = 'scoped memory for regression_model_forward.1']
    #allocation7 [shape = 'u8[512]{0}', space=vmem, size = 0x400, scoped, tag = 'input window, operand 2, single buffered']
    #allocation8 [shape = 's32[1]{0}', space=sflag, size = 0x4, scoped, tag = 'scoped memory for regression_model_forward.1']
    #allocation9 [shape = 'u8[73728]{0}', space=vmem, size = 0x12000, scoped, tag = 'input window, operand 3, single buffered']
    #allocation10 [shape = 'u8[512]{0}', space=vmem, size = 0x400, scoped, tag = 'input window, operand 4, single buffered']
    #allocation11 [shape = 's32[1]{0}', space=sflag, size = 0x4, scoped, tag = 'scoped memory for regression_model_forward.1']
    #allocation12 [shape = 'u8[73728]{0}', space=vmem, size = 0x12000, scoped, tag = 'input window, operand 5, single buffered']
    #allocation13 [shape = 'u8[512]{0}', space=vmem, size = 0x400, scoped, tag = 'input window, operand 6, single buffered']
    #allocation14 [shape = 's32[1]{0}', space=sflag, size = 0x4, scoped, tag = 'scoped memory for regression_model_forward.1']
    #allocation15 [shape = 'u8[73728]{0}', space=vmem, size = 0x12000, scoped, tag = 'input window, operand 7, single buffered']
    #allocation16 [shape = 'u8[512]{0}', space=vmem, size = 0x400, scoped, tag = 'input window, operand 8, single buffered']
    #allocation17 [shape = 's32[1]{0}', space=sflag, size = 0x4, scoped, tag = 'scoped memory for regression_model_forward.1']
    #allocation18 [shape = 'u8[73728]{0}', space=vmem, size = 0x12000, scoped, tag = 'input window, operand 9, single buffered']
    #allocation19 [shape = 'u8[512]{0}', space=vmem, size = 0x400, scoped, tag = 'input window, operand 10, single buffered']
    #allocation20 [shape = 's32[1]{0}', space=sflag, size = 0x4, scoped, tag = 'scoped memory for regression_model_forward.1']
    #allocation21 [shape = 'u8[262144]{0}', space=vmem, size = 0x40000, scoped, tag = 'output window, operand 0']
    %18 = vsyncpa [#allocation5], 0
    %19 = vsyncpa [#allocation8], 0
    %20 = vsyncpa [#allocation11], 0
    %21 = vsyncpa [#allocation14], 0
    %22 = vsyncpa [#allocation17], 0
    %23 = vsyncpa [#allocation20], 0
    %24 = vsyncpa [#allocation6], 0
    %s25 = scalar_lea.sflag [#allocation6], 1
    %26 = vsyncpa %s25, 0
    loop: start=0, step=1, limit=4
    $region2: #{regression_model_forward.1} parent=1 // loop_pre_header
      _
    $region3: #{regression_model_forward.1} parent=1 // loop_header
      %s28 = sphi 0, %s32
      %p29 = scmp.ge.s32.totalorder %s28, 4
      %s38 = sphi 0, %s40
      %s41 = sphi 0, %s38
      %s42 = sphi 0, %s41
      %s58 = sphi 0, %s42
      %s62 = sphi 0, %s62
      %s64 = sphi 0, %s62
      %s65 = sphi 0, %s64
      %s79 = sphi 0, %s65
      %s83 = sphi 0, %s83
      %s85 = sphi 0, %s83
      %s86 = sphi 0, %s85
      %s100 = sphi 0, %s86
      %s104 = sphi 0, %s104
      %s106 = sphi 0, %s104
      %s107 = sphi 0, %s106
      %s121 = sphi 0, %s107
      %s125 = sphi 0, %s125
      %s127 = sphi 0, %s125
      %s128 = sphi 0, %s127
      %s142 = sphi 0, %s128
      %s146 = sphi 0, %s146
      %s148 = sphi 0, %s146
      %s149 = sphi 0, %s148
      %s163 = sphi 0, %s149
      %s167 = sphi 0, %s167
      %s169 = sphi 0, %s167
      %s170 = sphi 0, %s169
      %s184 = sphi 0, %s170
      %s188 = sphi 0, %s188
      %s190 = sphi 0, %s188
      %s191 = sphi 0, %s190
      %s205 = sphi 0, %s191
      %s209 = sphi 0, %s209
      %s211 = sphi 0, %s209
      %s212 = sphi 0, %s211
      %s226 = sphi 0, %s212
      %s230 = sphi 0, %s230
      %s232 = sphi 0, %s230
      %s233 = sphi 0, %s232
      %s247 = sphi 0, %s233
      %s251 = sphi 0, %s251
      %s253 = sphi 0, %s251
      %s254 = sphi 0, %s253
      %s268 = sphi 0, %s254
      %s274 = sphi 0, %s276
      %s277 = sphi 0, %s274
      %s278 = sphi 0, %s277
      %s294 = sphi 0, %s278
      %s300 = sphi 0, %s302
      %s303 = sphi 0, %s300
      %s304 = sphi 0, %s303
      %s320 = sphi 0, %s304
    $region4: #{regression_model_forward.1} parent=1 // loop_header_branch
      %31 = sbr.rel (%p29) target = $region8
    $region5: #{regression_model_forward.1} parent=1 // loop_body
      %s33 = ssub.s32 %s28, 1
      %s34 = ssub.s32 %s28, 2
      %s35 = sadd.s32 %s28, 1
      %s36 = ssub.s32 %s28, %s35
      %p37 = scmp.eq.s32.totalorder %s36, 0
      %s39 = sadd.s32 %s38, 1
      %s40 = scalar_select %p37, %s38, %s39
      %p43 = pneg %p37
      %p44 = scmp.eq.s32.totalorder %s28, 1
      %p45 = por %p43, %p44
      %p46 = scmp.ne.s32.totalorder %s38, %s41
      %p47 = scmp.eq.s32.totalorder %s28, 0
      %p48 = por %p46, %p47
      %p49 = scmp.ne.s32.totalorder %s38, %s41
      %p50 = scmp.eq.s32.totalorder %s33, 1
      %p51 = por %p49, %p50
      %p52 = scmp.ne.s32.totalorder %s41, %s42
      %p53 = scmp.eq.s32.totalorder %s33, 0
      %p54 = por %p52, %p53
      %p55 = scmp.ne.s32.totalorder %s41, %s42
      %p56 = scmp.eq.s32.totalorder %s34, 1
      %p57 = por %p55, %p56
      %p59 = scmp.ne.s32.totalorder %s42, %s58
      %p60 = scmp.eq.s32.totalorder %s34, 0
      %p61 = por %p59, %p60
      %s63 = sadd.s32 %s62, 1
      %p66 = scmp.eq.s32.totalorder %s28, 1
      %p67 = scmp.ne.s32.totalorder %s62, %s64
      %p68 = scmp.eq.s32.totalorder %s28, 0
      %p69 = por %p67, %p68
      %p70 = scmp.ne.s32.totalorder %s62, %s64
      %p71 = scmp.eq.s32.totalorder %s33, 1
      %p72 = por %p70, %p71
      %p73 = scmp.ne.s32.totalorder %s64, %s65
      %p74 = scmp.eq.s32.totalorder %s33, 0
      %p75 = por %p73, %p74
      %p76 = scmp.ne.s32.totalorder %s64, %s65
      %p77 = scmp.eq.s32.totalorder %s34, 1
      %p78 = por %p76, %p77
      %p80 = scmp.ne.s32.totalorder %s65, %s79
      %p81 = scmp.eq.s32.totalorder %s34, 0
      %p82 = por %p80, %p81
      %s84 = sadd.s32 %s83, 1
      %p87 = scmp.eq.s32.totalorder %s28, 1
      %p88 = scmp.ne.s32.totalorder %s83, %s85
      %p89 = scmp.eq.s32.totalorder %s28, 0
      %p90 = por %p88, %p89
      %p91 = scmp.ne.s32.totalorder %s83, %s85
      %p92 = scmp.eq.s32.totalorder %s33, 1
      %p93 = por %p91, %p92
      %p94 = scmp.ne.s32.totalorder %s85, %s86
      %p95 = scmp.eq.s32.totalorder %s33, 0
      %p96 = por %p94, %p95
      %p97 = scmp.ne.s32.totalorder %s85, %s86
      %p98 = scmp.eq.s32.totalorder %s34, 1
      %p99 = por %p97, %p98
      %p101 = scmp.ne.s32.totalorder %s86, %s100
      %p102 = scmp.eq.s32.totalorder %s34, 0
      %p103 = por %p101, %p102
      %s105 = sadd.s32 %s104, 1
      %p108 = scmp.eq.s32.totalorder %s28, 1
      %p109 = scmp.ne.s32.totalorder %s104, %s106
      %p110 = scmp.eq.s32.totalorder %s28, 0
      %p111 = por %p109, %p110
      %p112 = scmp.ne.s32.totalorder %s104, %s106
      %p113 = scmp.eq.s32.totalorder %s33, 1
      %p114 = por %p112, %p113
      %p115 = scmp.ne.s32.totalorder %s106, %s107
      %p116 = scmp.eq.s32.totalorder %s33, 0
      %p117 = por %p115, %p116
      %p118 = scmp.ne.s32.totalorder %s106, %s107
      %p119 = scmp.eq.s32.totalorder %s34, 1
      %p120 = por %p118, %p119
      %p122 = scmp.ne.s32.totalorder %s107, %s121
      %p123 = scmp.eq.s32.totalorder %s34, 0
      %p124 = por %p122, %p123
      %s126 = sadd.s32 %s125, 1
      %p129 = scmp.eq.s32.totalorder %s28, 1
      %p130 = scmp.ne.s32.totalorder %s125, %s127
      %p131 = scmp.eq.s32.totalorder %s28, 0
      %p132 = por %p130, %p131
      %p133 = scmp.ne.s32.totalorder %s125, %s127
      %p134 = scmp.eq.s32.totalorder %s33, 1
      %p135 = por %p133, %p134
      %p136 = scmp.ne.s32.totalorder %s127, %s128
      %p137 = scmp.eq.s32.totalorder %s33, 0
      %p138 = por %p136, %p137
      %p139 = scmp.ne.s32.totalorder %s127, %s128
      %p140 = scmp.eq.s32.totalorder %s34, 1
      %p141 = por %p139, %p140
      %p143 = scmp.ne.s32.totalorder %s128, %s142
      %p144 = scmp.eq.s32.totalorder %s34, 0
      %p145 = por %p143, %p144
      %s147 = sadd.s32 %s146, 1
      %p150 = scmp.eq.s32.totalorder %s28, 1
      %p151 = scmp.ne.s32.totalorder %s146, %s148
      %p152 = scmp.eq.s32.totalorder %s28, 0
      %p153 = por %p151, %p152
      %p154 = scmp.ne.s32.totalorder %s146, %s148
      %p155 = scmp.eq.s32.totalorder %s33, 1
      %p156 = por %p154, %p155
      %p157 = scmp.ne.s32.totalorder %s148, %s149
      %p158 = scmp.eq.s32.totalorder %s33, 0
      %p159 = por %p157, %p158
      %p160 = scmp.ne.s32.totalorder %s148, %s149
      %p161 = scmp.eq.s32.totalorder %s34, 1
      %p162 = por %p160, %p161
      %p164 = scmp.ne.s32.totalorder %s149, %s163
      %p165 = scmp.eq.s32.totalorder %s34, 0
      %p166 = por %p164, %p165
      %s168 = sadd.s32 %s167, 1
      %p171 = scmp.eq.s32.totalorder %s28, 1
      %p172 = scmp.ne.s32.totalorder %s167, %s169
      %p173 = scmp.eq.s32.totalorder %s28, 0
      %p174 = por %p172, %p173
      %p175 = scmp.ne.s32.totalorder %s167, %s169
      %p176 = scmp.eq.s32.totalorder %s33, 1
      %p177 = por %p175, %p176
      %p178 = scmp.ne.s32.totalorder %s169, %s170
      %p179 = scmp.eq.s32.totalorder %s33, 0
      %p180 = por %p178, %p179
      %p181 = scmp.ne.s32.totalorder %s169, %s170
      %p182 = scmp.eq.s32.totalorder %s34, 1
      %p183 = por %p181, %p182
      %p185 = scmp.ne.s32.totalorder %s170, %s184
      %p186 = scmp.eq.s32.totalorder %s34, 0
      %p187 = por %p185, %p186
      %s189 = sadd.s32 %s188, 1
      %p192 = scmp.eq.s32.totalorder %s28, 1
      %p193 = scmp.ne.s32.totalorder %s188, %s190
      %p194 = scmp.eq.s32.totalorder %s28, 0
      %p195 = por %p193, %p194
      %p196 = scmp.ne.s32.totalorder %s188, %s190
      %p197 = scmp.eq.s32.totalorder %s33, 1
      %p198 = por %p196, %p197
      %p199 = scmp.ne.s32.totalorder %s190, %s191
      %p200 = scmp.eq.s32.totalorder %s33, 0
      %p201 = por %p199, %p200
      %p202 = scmp.ne.s32.totalorder %s190, %s191
      %p203 = scmp.eq.s32.totalorder %s34, 1
      %p204 = por %p202, %p203
      %p206 = scmp.ne.s32.totalorder %s191, %s205
      %p207 = scmp.eq.s32.totalorder %s34, 0
      %p208 = por %p206, %p207
      %s210 = sadd.s32 %s209, 1
      %p213 = scmp.eq.s32.totalorder %s28, 1
      %p214 = scmp.ne.s32.totalorder %s209, %s211
      %p215 = scmp.eq.s32.totalorder %s28, 0
      %p216 = por %p214, %p215
      %p217 = scmp.ne.s32.totalorder %s209, %s211
      %p218 = scmp.eq.s32.totalorder %s33, 1
      %p219 = por %p217, %p218
      %p220 = scmp.ne.s32.totalorder %s211, %s212
      %p221 = scmp.eq.s32.totalorder %s33, 0
      %p222 = por %p220, %p221
      %p223 = scmp.ne.s32.totalorder %s211, %s212
      %p224 = scmp.eq.s32.totalorder %s34, 1
      %p225 = por %p223, %p224
      %p227 = scmp.ne.s32.totalorder %s212, %s226
      %p228 = scmp.eq.s32.totalorder %s34, 0
      %p229 = por %p227, %p228
      %s231 = sadd.s32 %s230, 1
      %p234 = scmp.eq.s32.totalorder %s28, 1
      %p235 = scmp.ne.s32.totalorder %s230, %s232
      %p236 = scmp.eq.s32.totalorder %s28, 0
      %p237 = por %p235, %p236
      %p238 = scmp.ne.s32.totalorder %s230, %s232
      %p239 = scmp.eq.s32.totalorder %s33, 1
      %p240 = por %p238, %p239
      %p241 = scmp.ne.s32.totalorder %s232, %s233
      %p242 = scmp.eq.s32.totalorder %s33, 0
      %p243 = por %p241, %p242
      %p244 = scmp.ne.s32.totalorder %s232, %s233
      %p245 = scmp.eq.s32.totalorder %s34, 1
      %p246 = por %p244, %p245
      %p248 = scmp.ne.s32.totalorder %s233, %s247
      %p249 = scmp.eq.s32.totalorder %s34, 0
      %p250 = por %p248, %p249
      %s252 = sadd.s32 %s251, 1
      %p255 = scmp.eq.s32.totalorder %s28, 1
      %p256 = scmp.ne.s32.totalorder %s251, %s253
      %p257 = scmp.eq.s32.totalorder %s28, 0
      %p258 = por %p256, %p257
      %p259 = scmp.ne.s32.totalorder %s251, %s253
      %p260 = scmp.eq.s32.totalorder %s33, 1
      %p261 = por %p259, %p260
      %p262 = scmp.ne.s32.totalorder %s253, %s254
      %p263 = scmp.eq.s32.totalorder %s33, 0
      %p264 = por %p262, %p263
      %p265 = scmp.ne.s32.totalorder %s253, %s254
      %p266 = scmp.eq.s32.totalorder %s34, 1
      %p267 = por %p265, %p266
      %p269 = scmp.ne.s32.totalorder %s254, %s268
      %p270 = scmp.eq.s32.totalorder %s34, 0
      %p271 = por %p269, %p270
      %s272 = ssub.s32 %s28, %s35
      %p273 = scmp.eq.s32.totalorder %s272, 0
      %s275 = sadd.s32 %s274, 1
      %s276 = scalar_select %p273, %s274, %s275
      %p279 = pneg %p273
      %p280 = scmp.eq.s32.totalorder %s28, 1
      %p281 = por %p279, %p280
      %p282 = scmp.ne.s32.totalorder %s274, %s277
      %p283 = scmp.eq.s32.totalorder %s28, 0
      %p284 = por %p282, %p283
      %p285 = scmp.ne.s32.totalorder %s274, %s277
      %p286 = scmp.eq.s32.totalorder %s33, 1
      %p287 = por %p285, %p286
      %p288 = scmp.ne.s32.totalorder %s277, %s278
      %p289 = scmp.eq.s32.totalorder %s33, 0
      %p290 = por %p288, %p289
      %p291 = scmp.ne.s32.totalorder %s277, %s278
      %p292 = scmp.eq.s32.totalorder %s34, 1
      %p293 = por %p291, %p292
      %p295 = scmp.ne.s32.totalorder %s278, %s294
      %p296 = scmp.eq.s32.totalorder %s34, 0
      %p297 = por %p295, %p296
      %s298 = ssub.s32 %s28, %s35
      %p299 = scmp.eq.s32.totalorder %s298, 0
      %s301 = sadd.s32 %s300, 1
      %s302 = scalar_select %p299, %s300, %s301
      %p305 = pneg %p299
      %p306 = scmp.eq.s32.totalorder %s28, 1
      %p307 = por %p305, %p306
      %p308 = scmp.ne.s32.totalorder %s300, %s303
      %p309 = scmp.eq.s32.totalorder %s28, 0
      %p310 = por %p308, %p309
      %p311 = scmp.ne.s32.totalorder %s300, %s303
      %p312 = scmp.eq.s32.totalorder %s33, 1
      %p313 = por %p311, %p312
      %p314 = scmp.ne.s32.totalorder %s303, %s304
      %p315 = scmp.eq.s32.totalorder %s33, 0
      %p316 = por %p314, %p315
      %p317 = scmp.ne.s32.totalorder %s303, %s304
      %p318 = scmp.eq.s32.totalorder %s34, 1
      %p319 = por %p317, %p318
      %p321 = scmp.ne.s32.totalorder %s304, %s320
      %p322 = scmp.eq.s32.totalorder %s34, 0
      %p323 = por %p321, %p322
      %p324 = scmp.le.s32.totalorder 1, %s28
      %p325 = scmp.lt.s32.totalorder %s28, 3
      %p326 = pnand %p324, %p325
      %p327 = pneg %p326
      // Predicated region
      $region9: #{regression_model_forward.1} parent=5 // pred_check
        _
      $region10: #{regression_model_forward.1} parent=5 // pred_check_branch
        %329 = sbr.rel (%p326) target = $region12
      $region11: #{regression_model_forward.1} parent=5 // pred_region
        %s330 = ssub.s32 %s28, 1
        // Predicated region
        $region13: #{regression_model_forward.1} parent=11 // pred_check
          %p331 = pneg %p75
        $region14: #{regression_model_forward.1} parent=11 // pred_check_branch
          %333 = sbr.rel (%p331) target = $region16
        $region15: #{regression_model_forward.1} parent=11 // pred_region
          %335 = vsyncadd [#allocation5], 0
          %s336 = sshll.u32 %s1, 4
          %s337 = int_to_ptr.hbm [resolvable:$true] %s336
          %s338 = sshll.u32 [#allocation4], 4
          %s339 = int_to_ptr.vmem [resolvable:$true] %s338
          %344 = dma.hbm_to_vmem [thread:$0]  %s337, 288, %s339, [#allocation5], 32, 32, 2
        $region16: #{regression_model_forward.1} parent=11 // pred_fallthru
          _
        // Predicated region
        $region17: #{regression_model_forward.1} parent=11 // pred_check
          %p345 = pneg %p96
        $region18: #{regression_model_forward.1} parent=11 // pred_check_branch
          %347 = sbr.rel (%p345) target = $region20
        $region19: #{regression_model_forward.1} parent=11 // pred_region
          %349 = vsyncadd [#allocation8], 0
          %s351 = sshll.u32 %s2, 4
          %s352 = int_to_ptr.hbm [resolvable:$true] %s351
          %s353 = sshll.u32 [#allocation7], 4
          %s354 = int_to_ptr.vmem [resolvable:$true] %s353
          %356 = dma.hbm_to_vmem [thread:$0]  %s352, 16, %s354, [#allocation8]
        $region20: #{regression_model_forward.1} parent=11 // pred_fallthru
          _
        // Predicated region
        $region21: #{regression_model_forward.1} parent=11 // pred_check
          %p357 = pneg %p117
        $region22: #{regression_model_forward.1} parent=11 // pred_check_branch
          %359 = sbr.rel (%p357) target = $region24
        $region23: #{regression_model_forward.1} parent=11 // pred_region
          %361 = vsyncadd [#allocation8], 0
          %s362 = sshll.u32 %s3, 4
          %s363 = int_to_ptr.hbm [resolvable:$true] %s362
          %s364 = sshll.u32 [#allocation9], 4
          %s365 = int_to_ptr.vmem [resolvable:$true] %s364
          %370 = dma.hbm_to_vmem [thread:$0]  %s363, 2304, %s365, [#allocation8], 64, 64, 4
        $region24: #{regression_model_forward.1} parent=11 // pred_fallthru
          _
        // Predicated region
        $region25: #{regression_model_forward.1} parent=11 // pred_check
          %p371 = pneg %p138
        $region26: #{regression_model_forward.1} parent=11 // pred_check_branch
          %373 = sbr.rel (%p371) target = $region28
        $region27: #{regression_model_forward.1} parent=11 // pred_region
          %375 = vsyncadd [#allocation11], 0
          %s377 = sshll.u32 %s4, 4
          %s378 = int_to_ptr.hbm [resolvable:$true] %s377
          %s379 = sshll.u32 [#allocation10], 4
          %s380 = int_to_ptr.vmem [resolvable:$true] %s379
          %382 = dma.hbm_to_vmem [thread:$0]  %s378, 16, %s380, [#allocation11]
        $region28: #{regression_model_forward.1} parent=11 // pred_fallthru
          _
        // Predicated region
        $region29: #{regression_model_forward.1} parent=11 // pred_check
          %p383 = pneg %p159
        $region30: #{regression_model_forward.1} parent=11 // pred_check_branch
          %385 = sbr.rel (%p383) target = $region32
        $region31: #{regression_model_forward.1} parent=11 // pred_region
          %387 = vsyncadd [#allocation11], 0
          %s388 = sshll.u32 %s5, 4
          %s389 = int_to_ptr.hbm [resolvable:$true] %s388
          %s390 = sshll.u32 [#allocation12], 4
          %s391 = int_to_ptr.vmem [resolvable:$true] %s390
          %396 = dma.hbm_to_vmem [thread:$0]  %s389, 2304, %s391, [#allocation11], 64, 64, 4
        $region32: #{regression_model_forward.1} parent=11 // pred_fallthru
          _
        // Predicated region
        $region33: #{regression_model_forward.1} parent=11 // pred_check
          %p397 = pneg %p180
        $region34: #{regression_model_forward.1} parent=11 // pred_check_branch
          %399 = sbr.rel (%p397) target = $region36
        $region35: #{regression_model_forward.1} parent=11 // pred_region
          %401 = vsyncadd [#allocation14], 0
          %s403 = sshll.u32 %s6, 4
          %s404 = int_to_ptr.hbm [resolvable:$true] %s403
          %s405 = sshll.u32 [#allocation13], 4
          %s406 = int_to_ptr.vmem [resolvable:$true] %s405
          %408 = dma.hbm_to_vmem [thread:$0]  %s404, 16, %s406, [#allocation14]
        $region36: #{regression_model_forward.1} parent=11 // pred_fallthru
          _
        // Predicated region
        $region37: #{regression_model_forward.1} parent=11 // pred_check
          %p409 = pneg %p201
        $region38: #{regression_model_forward.1} parent=11 // pred_check_branch
          %411 = sbr.rel (%p409) target = $region40
        $region39: #{regression_model_forward.1} parent=11 // pred_region
          %413 = vsyncadd [#allocation14], 0
          %s414 = sshll.u32 %s7, 4
          %s415 = int_to_ptr.hbm [resolvable:$true] %s414
          %s416 = sshll.u32 [#allocation15], 4
          %s417 = int_to_ptr.vmem [resolvable:$true] %s416
          %422 = dma.hbm_to_vmem [thread:$0]  %s415, 2304, %s417, [#allocation14], 64, 64, 4
        $region40: #{regression_model_forward.1} parent=11 // pred_fallthru
          _
        // Predicated region
        $region41: #{regression_model_forward.1} parent=11 // pred_check
          %p423 = pneg %p222
        $region42: #{regression_model_forward.1} parent=11 // pred_check_branch
          %425 = sbr.rel (%p423) target = $region44
        $region43: #{regression_model_forward.1} parent=11 // pred_region
          %427 = vsyncadd [#allocation17], 0
          %s429 = sshll.u32 %s8, 4
          %s430 = int_to_ptr.hbm [resolvable:$true] %s429
          %s431 = sshll.u32 [#allocation16], 4
          %s432 = int_to_ptr.vmem [resolvable:$true] %s431
          %434 = dma.hbm_to_vmem [thread:$0]  %s430, 16, %s432, [#allocation17]
        $region44: #{regression_model_forward.1} parent=11 // pred_fallthru
          _
        // Predicated region
        $region45: #{regression_model_forward.1} parent=11 // pred_check
          %p435 = pneg %p243
        $region46: #{regression_model_forward.1} parent=11 // pred_check_branch
          %437 = sbr.rel (%p435) target = $region48
        $region47: #{regression_model_forward.1} parent=11 // pred_region
          %439 = vsyncadd [#allocation17], 0
          %s440 = sshll.u32 %s9, 4
          %s441 = int_to_ptr.hbm [resolvable:$true] %s440
          %s442 = sshll.u32 [#allocation18], 4
          %s443 = int_to_ptr.vmem [resolvable:$true] %s442
          %448 = dma.hbm_to_vmem [thread:$0]  %s441, 2304, %s443, [#allocation17], 64, 64, 4
        $region48: #{regression_model_forward.1} parent=11 // pred_fallthru
          _
        // Predicated region
        $region49: #{regression_model_forward.1} parent=11 // pred_check
          %p449 = pneg %p264
        $region50: #{regression_model_forward.1} parent=11 // pred_check_branch
          %451 = sbr.rel (%p449) target = $region52
        $region51: #{regression_model_forward.1} parent=11 // pred_region
          %453 = vsyncadd [#allocation20], 0
          %s455 = sshll.u32 %s10, 4
          %s456 = int_to_ptr.hbm [resolvable:$true] %s455
          %s457 = sshll.u32 [#allocation19], 4
          %s458 = int_to_ptr.vmem [resolvable:$true] %s457
          %460 = dma.hbm_to_vmem [thread:$0]  %s456, 16, %s458, [#allocation20]
        $region52: #{regression_model_forward.1} parent=11 // pred_fallthru
          _
      $region12: #{regression_model_forward.1} parent=5 // pred_fallthru
        _
      %p461 = scmp.lt.s32.totalorder %s28, 2
      // Predicated region
      $region53: #{regression_model_forward.1} parent=5 // pred_check
        %p462 = pneg %p461
      $region54: #{regression_model_forward.1} parent=5 // pred_check_branch
        %464 = sbr.rel (%p462) target = $region56
      $region55: #{regression_model_forward.1} parent=5 // pred_region
        // Predicated region
        $region57: #{regression_model_forward.1} parent=55 // pred_check
          %p465 = pneg %p48
        $region58: #{regression_model_forward.1} parent=55 // pred_check_branch
          %467 = sbr.rel (%p465) target = $region60
        $region59: #{regression_model_forward.1} parent=55 // pred_region
          %p468 = scmp.lt.s32.totalorder %s28, 1
          %s469 = scalar_select %p468, %s28, 1
          %s470 = smul.addr %s469, 32
          %s471 = smul.addr %s470, 8
          %s472 = scalar_lea.vmem %s0, %s471
        $region60: #{regression_model_forward.1} parent=55 // pred_fallthru
          _
      $region56: #{regression_model_forward.1} parent=5 // pred_fallthru
        _
      %p473 = scmp.le.s32.totalorder 1, %s28
      %p474 = scmp.lt.s32.totalorder %s28, 3
      %p475 = pnand %p473, %p474
      %p476 = pneg %p475
      // Predicated region
      $region61: #{regression_model_forward.1} parent=5 // pred_check
        _
      $region62: #{regression_model_forward.1} parent=5 // pred_check_branch
        %478 = sbr.rel (%p475) target = $region64
      $region63: #{regression_model_forward.1} parent=5 // pred_region
        %s479 = ssub.s32 %s28, 1
        // Predicated region
        $region65: #{regression_model_forward.1} parent=63 // pred_check
          %p480 = pneg %p75
        $region66: #{regression_model_forward.1} parent=63 // pred_check_branch
          %482 = sbr.rel (%p480) target = $region68
        $region67: #{regression_model_forward.1} parent=63 // pred_region
          %484 = dma.done [#allocation5], 288
        $region68: #{regression_model_forward.1} parent=63 // pred_fallthru
          _
        // Predicated region
        $region69: #{regression_model_forward.1} parent=63 // pred_check
          %p485 = pneg %p96
        $region70: #{regression_model_forward.1} parent=63 // pred_check_branch
          %487 = sbr.rel (%p485) target = $region72
        $region71: #{regression_model_forward.1} parent=63 // pred_region
          %489 = dma.done [#allocation8], 16
        $region72: #{regression_model_forward.1} parent=63 // pred_fallthru
          _
        // Predicated region
        $region73: #{regression_model_forward.1} parent=63 // pred_check
          %p490 = pneg %p117
        $region74: #{regression_model_forward.1} parent=63 // pred_check_branch
          %492 = sbr.rel (%p490) target = $region76
        $region75: #{regression_model_forward.1} parent=63 // pred_region
          %494 = dma.done [#allocation8], 2304
        $region76: #{regression_model_forward.1} parent=63 // pred_fallthru
          _
        // Predicated region
        $region77: #{regression_model_forward.1} parent=63 // pred_check
          %p495 = pneg %p138
        $region78: #{regression_model_forward.1} parent=63 // pred_check_branch
          %497 = sbr.rel (%p495) target = $region80
        $region79: #{regression_model_forward.1} parent=63 // pred_region
          %499 = dma.done [#allocation11], 16
        $region80: #{regression_model_forward.1} parent=63 // pred_fallthru
          _
        // Predicated region
        $region81: #{regression_model_forward.1} parent=63 // pred_check
          %p500 = pneg %p159
        $region82: #{regression_model_forward.1} parent=63 // pred_check_branch
          %502 = sbr.rel (%p500) target = $region84
        $region83: #{regression_model_forward.1} parent=63 // pred_region
          %504 = dma.done [#allocation11], 2304
        $region84: #{regression_model_forward.1} parent=63 // pred_fallthru
          _
        // Predicated region
        $region85: #{regression_model_forward.1} parent=63 // pred_check
          %p505 = pneg %p180
        $region86: #{regression_model_forward.1} parent=63 // pred_check_branch
          %507 = sbr.rel (%p505) target = $region88
        $region87: #{regression_model_forward.1} parent=63 // pred_region
          %509 = dma.done [#allocation14], 16
        $region88: #{regression_model_forward.1} parent=63 // pred_fallthru
          _
        // Predicated region
        $region89: #{regression_model_forward.1} parent=63 // pred_check
          %p510 = pneg %p201
        $region90: #{regression_model_forward.1} parent=63 // pred_check_branch
          %512 = sbr.rel (%p510) target = $region92
        $region91: #{regression_model_forward.1} parent=63 // pred_region
          %514 = dma.done [#allocation14], 2304
        $region92: #{regression_model_forward.1} parent=63 // pred_fallthru
          _
        // Predicated region
        $region93: #{regression_model_forward.1} parent=63 // pred_check
          %p515 = pneg %p222
        $region94: #{regression_model_forward.1} parent=63 // pred_check_branch
          %517 = sbr.rel (%p515) target = $region96
        $region95: #{regression_model_forward.1} parent=63 // pred_region
          %519 = dma.done [#allocation17], 16
        $region96: #{regression_model_forward.1} parent=63 // pred_fallthru
          _
        // Predicated region
        $region97: #{regression_model_forward.1} parent=63 // pred_check
          %p520 = pneg %p243
        $region98: #{regression_model_forward.1} parent=63 // pred_check_branch
          %522 = sbr.rel (%p520) target = $region100
        $region99: #{regression_model_forward.1} parent=63 // pred_region
          %524 = dma.done [#allocation17], 2304
        $region100: #{regression_model_forward.1} parent=63 // pred_fallthru
          _
        // Predicated region
        $region101: #{regression_model_forward.1} parent=63 // pred_check
          %p525 = pneg %p264
        $region102: #{regression_model_forward.1} parent=63 // pred_check_branch
          %527 = sbr.rel (%p525) target = $region104
        $region103: #{regression_model_forward.1} parent=63 // pred_region
          %529 = dma.done [#allocation20], 16
        $region104: #{regression_model_forward.1} parent=63 // pred_fallthru
          _
        %p530 = scmp.lt.s32.totalorder %s33, 1
        %s531 = scalar_select %p530, %s33, 1
        %s532 = smul.addr %s531, 32
        %s533 = smul.addr %s532, 8
        %s534 = scalar_lea.vmem %s0, %s533
        %p535 = pneg %p54
        %p536 = pneg %p51
        %p537 = pneg %p75
        %p538 = pneg %p72
        %p539 = pneg %p96
        %p540 = pneg %p93
        %p541 = pneg %p117
        %p542 = pneg %p114
        %p543 = pneg %p138
        %p544 = pneg %p135
        %p545 = pneg %p159
        %p546 = pneg %p156
        %p547 = pneg %p180
        %p548 = pneg %p177
        %p549 = pneg %p201
        %p550 = pneg %p198
        %p551 = pneg %p222
        %p552 = pneg %p219
        %p553 = pneg %p243
        %p554 = pneg %p240
        %p555 = pneg %p264
        %p556 = pneg %p261
        %p557 = pneg %p290
        %p558 = pneg %p287
        %s559 = sand.u32 %s277, 1
        %s560 = scalar_lea.sflag [#allocation6], %s559
        %s561 = sand.u32 %s277, 1
        %s562 = smul.addr %s561, 256
        %s563 = scalar_lea.vmem [#allocation21], %s562
        %p564 = pneg %p316
        %p565 = pneg %p313
        %p566 = scmp.lt.s32.totalorder %s33, 1
        %s567 = scalar_select %p566, %s33, 1
        %s568 = smul.addr %s567, 32
        %s569 = smul.addr %s568, 8
        %s570 = scalar_lea.vmem %s12, %s569
        %p571 = scmp.lt.s32.totalorder %s33, 1
        %s572 = scalar_select %p571, %s33, 1
        %s573 = smul.addr %s572, 32
        %s574 = smul.addr %s573, 8
        %s575 = scalar_lea.vmem %s0, %s574
        %p576 = scmp.lt.s32.totalorder %s33, 1
        %s577 = scalar_select %p576, %s33, 1
        %s578 = smul.addr %s577, 32
        %s579 = smul.addr %s578, 8
        %s580 = scalar_lea.vmem %s12, %s579
        %vm582 = vcmask 31744
        %583 = vst.msk [vmem:[#allocation2] sm:$0xff] %vm582, 0.0
        %584 = vst.msk [vmem:[#allocation2 + $0x8] sm:$0xff] %vm582, 0.0
        %s585 = scalar_lea.vmem [#allocation2], 272
        %586 = vst.msk [vmem:[%s585] sm:$0xff] %vm582, 0.0
        %587 = vst.msk [vmem:[%s585 + $0x8] sm:$0xff] %vm582, 0.0
        %vm588 = vcmask 261120
        %589 = vst.msk [vmem:[#allocation3] sm:$0xff] %vm588, 0.0
        %590 = vst.msk [vmem:[#allocation3 + $0x8] sm:$0xff] %vm588, 0.0
        %s591 = scalar_lea.vmem [#allocation3], 272
        %592 = vst.msk [vmem:[%s591] sm:$0xff] %vm588, 0.0
        %593 = vst.msk [vmem:[%s591 + $0x8] sm:$0xff] %vm588, 0.0
        %v594 = vld [vmem:[%s575] sm:$0xff]
        %v595 = vld [vmem:[%s575 + $0x8] sm:$0xff]
        %v596 = vld [vmem:[%s575 + $0x10] sm:$0xff]
        %v597 = vld [vmem:[%s575 + $0x18] sm:$0xff]
        %v598 = vld [vmem:[%s575 + $0x20] sm:$0xff]
        %v599 = vld [vmem:[%s575 + $0x28] sm:$0xff]
        %v600 = vld [vmem:[%s575 + $0x30] sm:$0xff]
        %v601 = vld [vmem:[%s575 + $0x38] sm:$0xff]
        %v602 = vld [vmem:[%s575 + $0x40] sm:$0xff]
        %v603 = vld [vmem:[%s575 + $0x48] sm:$0xff]
        %v604 = vld [vmem:[%s575 + $0x50] sm:$0xff]
        %v605 = vld [vmem:[%s575 + $0x58] sm:$0xff]
        %v606 = vld [vmem:[%s575 + $0x60] sm:$0xff]
        %v607 = vld [vmem:[%s575 + $0x68] sm:$0xff]
        %v608 = vld [vmem:[%s575 + $0x70] sm:$0xff]
        %v609 = vld [vmem:[%s575 + $0x78] sm:$0xff]
        %v610 = vld [vmem:[%s575 + $0x80] sm:$0xff]
        %v611 = vld [vmem:[%s575 + $0x88] sm:$0xff]
        %v612 = vld [vmem:[%s575 + $0x90] sm:$0xff]
        %v613 = vld [vmem:[%s575 + $0x98] sm:$0xff]
        %v614 = vld [vmem:[%s575 + $0xa0] sm:$0xff]
        %v615 = vld [vmem:[%s575 + $0xa8] sm:$0xff]
        %v616 = vld [vmem:[%s575 + $0xb0] sm:$0xff]
        %v617 = vld [vmem:[%s575 + $0xb8] sm:$0xff]
        %v618 = vld [vmem:[%s575 + $0xc0] sm:$0xff]
        %v619 = vld [vmem:[%s575 + $0xc8] sm:$0xff]
        %v620 = vld [vmem:[%s575 + $0xd0] sm:$0xff]
        %v621 = vld [vmem:[%s575 + $0xd8] sm:$0xff]
        %v622 = vld [vmem:[%s575 + $0xe0] sm:$0xff]
        %v623 = vld [vmem:[%s575 + $0xe8] sm:$0xff]
        %v624 = vld [vmem:[%s575 + $0xf0] sm:$0xff]
        %v625 = vld [vmem:[%s575 + $0xf8] sm:$0xff]
        %s626 = scalar_lea.vmem [#allocation2], 16
        %627 = vst.msk [vmem:[%s626] sm:$0xff] %vm582, %v594
        %628 = vst.msk [vmem:[%s626 + $0x8] sm:$0xff] %vm582, %v595
        %629 = vst.msk [vmem:[%s626 + $0x10] sm:$0xff] %vm582, %v596
        %630 = vst.msk [vmem:[%s626 + $0x18] sm:$0xff] %vm582, %v597
        %631 = vst.msk [vmem:[%s626 + $0x20] sm:$0xff] %vm582, %v598
        %632 = vst.msk [vmem:[%s626 + $0x28] sm:$0xff] %vm582, %v599
        %633 = vst.msk [vmem:[%s626 + $0x30] sm:$0xff] %vm582, %v600
        %634 = vst.msk [vmem:[%s626 + $0x38] sm:$0xff] %vm582, %v601
        %635 = vst.msk [vmem:[%s626 + $0x40] sm:$0xff] %vm582, %v602
        %636 = vst.msk [vmem:[%s626 + $0x48] sm:$0xff] %vm582, %v603
        %637 = vst.msk [vmem:[%s626 + $0x50] sm:$0xff] %vm582, %v604
        %638 = vst.msk [vmem:[%s626 + $0x58] sm:$0xff] %vm582, %v605
        %639 = vst.msk [vmem:[%s626 + $0x60] sm:$0xff] %vm582, %v606
        %640 = vst.msk [vmem:[%s626 + $0x68] sm:$0xff] %vm582, %v607
        %641 = vst.msk [vmem:[%s626 + $0x70] sm:$0xff] %vm582, %v608
        %642 = vst.msk [vmem:[%s626 + $0x78] sm:$0xff] %vm582, %v609
        %643 = vst.msk [vmem:[%s626 + $0x80] sm:$0xff] %vm582, %v610
        %644 = vst.msk [vmem:[%s626 + $0x88] sm:$0xff] %vm582, %v611
        %645 = vst.msk [vmem:[%s626 + $0x90] sm:$0xff] %vm582, %v612
        %646 = vst.msk [vmem:[%s626 + $0x98] sm:$0xff] %vm582, %v613
        %647 = vst.msk [vmem:[%s626 + $0xa0] sm:$0xff] %vm582, %v614
        %648 = vst.msk [vmem:[%s626 + $0xa8] sm:$0xff] %vm582, %v615
        %649 = vst.msk [vmem:[%s626 + $0xb0] sm:$0xff] %vm582, %v616
        %650 = vst.msk [vmem:[%s626 + $0xb8] sm:$0xff] %vm582, %v617
        %651 = vst.msk [vmem:[%s626 + $0xc0] sm:$0xff] %vm582, %v618
        %652 = vst.msk [vmem:[%s626 + $0xc8] sm:$0xff] %vm582, %v619
        %653 = vst.msk [vmem:[%s626 + $0xd0] sm:$0xff] %vm582, %v620
        %654 = vst.msk [vmem:[%s626 + $0xd8] sm:$0xff] %vm582, %v621
        %655 = vst.msk [vmem:[%s626 + $0xe0] sm:$0xff] %vm582, %v622
        %656 = vst.msk [vmem:[%s626 + $0xe8] sm:$0xff] %vm582, %v623
        %657 = vst.msk [vmem:[%s626 + $0xf0] sm:$0xff] %vm582, %v624
        %658 = vst.msk [vmem:[%s626 + $0xf8] sm:$0xff] %vm582, %v625
        %v659 = vld [vmem:[#allocation2] sm:$0xff]
        %v660 = vld [vmem:[#allocation2 + $0x8] sm:$0xff]
        %v661 = vld [vmem:[#allocation2 + $0x10] sm:$0xff]
        %v662 = vld [vmem:[#allocation2 + $0x18] sm:$0xff]
        %v663 = vld [vmem:[#allocation2 + $0x20] sm:$0xff]
        %v664 = vld [vmem:[#allocation2 + $0x28] sm:$0xff]
        %v665 = vld [vmem:[#allocation2 + $0x30] sm:$0xff]
        %v666 = vld [vmem:[#allocation2 + $0x38] sm:$0xff]
        %v667 = vld [vmem:[#allocation2 + $0x40] sm:$0xff]
        %v668 = vld [vmem:[#allocation2 + $0x48] sm:$0xff]
        %v669 = vld [vmem:[#allocation2 + $0x50] sm:$0xff]
        %v670 = vld [vmem:[#allocation2 + $0x58] sm:$0xff]
        %v671 = vld [vmem:[#allocation2 + $0x60] sm:$0xff]
        %v672 = vld [vmem:[#allocation2 + $0x68] sm:$0xff]
        %v673 = vld [vmem:[#allocation2 + $0x70] sm:$0xff]
        %v674 = vld [vmem:[#allocation2 + $0x78] sm:$0xff]
        %v675 = vld [vmem:[#allocation2 + $0x80] sm:$0xff]
        %v676 = vld [vmem:[#allocation2 + $0x88] sm:$0xff]
        %v677 = vld [vmem:[#allocation2 + $0x90] sm:$0xff]
        %v678 = vld [vmem:[#allocation2 + $0x98] sm:$0xff]
        %v679 = vld [vmem:[#allocation2 + $0xa0] sm:$0xff]
        %v680 = vld [vmem:[#allocation2 + $0xa8] sm:$0xff]
        %v681 = vld [vmem:[#allocation2 + $0xb0] sm:$0xff]
        %v682 = vld [vmem:[#allocation2 + $0xb8] sm:$0xff]
        %v683 = vld [vmem:[#allocation2 + $0xc0] sm:$0xff]
        %v684 = vld [vmem:[#allocation2 + $0xc8] sm:$0xff]
        %v685 = vld [vmem:[#allocation2 + $0xd0] sm:$0xff]
        %v686 = vld [vmem:[#allocation2 + $0xd8] sm:$0xff]
        %v687 = vld [vmem:[#allocation2 + $0xe0] sm:$0xff]
        %v688 = vld [vmem:[#allocation2 + $0xe8] sm:$0xff]
        %v689 = vld [vmem:[#allocation2 + $0xf0] sm:$0xff]
        %v690 = vld [vmem:[#allocation2 + $0xf8] sm:$0xff]
        %v691 = vld [vmem:[#allocation2 + $0x100] sm:$0xff]
        %v692 = vld [vmem:[#allocation2 + $0x108] sm:$0xff]
        %v693 = vld [vmem:[#allocation2 + $0x110] sm:$0xff]
        %v694 = vld [vmem:[#allocation2 + $0x118] sm:$0xff]
        %v695 = vlaneseq
        %v696 = vshrl.u32 %v695, 7
        %v697 = vadd.s32 %v696, 8
        %vm698 = vcmp.eq.s32.totalorder %v696, 0
        %vm699 = vcmp.eq.s32.totalorder %v697, 0
        %v700 = vrot.slane %v659, 7
        %v701 = vrot.slane %v661, 7
        %v702 = vrot.slane %v663, 7
        %v703 = vrot.slane %v665, 7
        %v704 = vrot.slane %v667, 7
        %v705 = vrot.slane %v669, 7
        %v706 = vrot.slane %v671, 7
        %v707 = vrot.slane %v673, 7
        %v708 = vrot.slane %v675, 7
        %v709 = vrot.slane %v677, 7
        %v710 = vrot.slane %v679, 7
        %v711 = vrot.slane %v681, 7
        %v712 = vrot.slane %v683, 7
        %v713 = vrot.slane %v685, 7
        %v714 = vrot.slane %v687, 7
        %v715 = vrot.slane %v689, 7
        %v716 = vrot.slane %v691, 7
        %v717 = vrot.slane %v693, 7
        %v718 = vrot.slane %v660, 7
        %v719 = vrot.slane %v662, 7
        %v720 = vrot.slane %v664, 7
        %v721 = vrot.slane %v666, 7
        %v722 = vrot.slane %v668, 7
        %v723 = vrot.slane %v670, 7
        %v724 = vrot.slane %v672, 7
        %v725 = vrot.slane %v674, 7
        %v726 = vrot.slane %v676, 7
        %v727 = vrot.slane %v678, 7
        %v728 = vrot.slane %v680, 7
        %v729 = vrot.slane %v682, 7
        %v730 = vrot.slane %v684, 7
        %v731 = vrot.slane %v686, 7
        %v732 = vrot.slane %v688, 7
        %v733 = vrot.slane %v690, 7
        %v734 = vrot.slane %v692, 7
        %v735 = vrot.slane %v694, 7
        %vm736 = vcmp.lt.s32.totalorder %v696, 1
        %v737 = vsel %vm736, %v700, %v718
        %v738 = vsel %vm736, %v701, %v719
        %v739 = vsel %vm736, %v702, %v720
        %v740 = vsel %vm736, %v703, %v721
        %v741 = vsel %vm736, %v704, %v722
        %v742 = vsel %vm736, %v705, %v723
        %v743 = vsel %vm736, %v706, %v724
        %v744 = vsel %vm736, %v707, %v725
        %v745 = vsel %vm736, %v708, %v726
        %v746 = vsel %vm736, %v709, %v727
        %v747 = vsel %vm736, %v710, %v728
        %v748 = vsel %vm736, %v711, %v729
        %v749 = vsel %vm736, %v712, %v730
        %v750 = vsel %vm736, %v713, %v731
        %v751 = vsel %vm736, %v714, %v732
        %v752 = vsel %vm736, %v715, %v733
        %v753 = vsel %vm736, %v716, %v734
        %v754 = vsel %vm736, %v717, %v735
        %v755 = vsel %vm736, %v718, %v700
        %v756 = vsel %vm736, %v719, %v701
        %v757 = vsel %vm736, %v720, %v702
        %v758 = vsel %vm736, %v721, %v703
        %v759 = vsel %vm736, %v722, %v704
        %v760 = vsel %vm736, %v723, %v705
        %v761 = vsel %vm736, %v724, %v706
        %v762 = vsel %vm736, %v725, %v707
        %v763 = vsel %vm736, %v726, %v708
        %v764 = vsel %vm736, %v727, %v709
        %v765 = vsel %vm736, %v728, %v710
        %v766 = vsel %vm736, %v729, %v711
        %v767 = vsel %vm736, %v730, %v712
        %v768 = vsel %vm736, %v731, %v713
        %v769 = vsel %vm736, %v732, %v714
        %v770 = vsel %vm736, %v733, %v715
        %v771 = vsel %vm736, %v734, %v716
        %v772 = vsel %vm736, %v735, %v717
        %v773 = vsel %vm698, 1, 0
        %v774 = vsel %vm699, 1, 0
        %vm775 = vcmp.eq.s32.totalorder %v773, 1
        %vm776 = vcmp.eq.s32.totalorder %v774, 1
        %v777 = vsel %vm775, 0.0, %v755
        %v778 = vsel %vm776, 0.0, %v737
        %v779 = vsel %vm775, 0.0, %v756
        %v780 = vsel %vm776, 0.0, %v738
        %v781 = vsel %vm775, 0.0, %v757
        %v782 = vsel %vm776, 0.0, %v739
        %v783 = vsel %vm775, 0.0, %v758
        %v784 = vsel %vm776, 0.0, %v740
        %v785 = vsel %vm775, 0.0, %v759
        %v786 = vsel %vm776, 0.0, %v741
        %v787 = vsel %vm775, 0.0, %v760
        %v788 = vsel %vm776, 0.0, %v742
        %v789 = vsel %vm775, 0.0, %v761
        %v790 = vsel %vm776, 0.0, %v743
        %v791 = vsel %vm775, 0.0, %v762
        %v792 = vsel %vm776, 0.0, %v744
        %v793 = vsel %vm775, 0.0, %v763
        %v794 = vsel %vm776, 0.0, %v745
        %v795 = vsel %vm775, 0.0, %v764
        %v796 = vsel %vm776, 0.0, %v746
        %v797 = vsel %vm775, 0.0, %v765
        %v798 = vsel %vm776, 0.0, %v747
        %v799 = vsel %vm775, 0.0, %v766
        %v800 = vsel %vm776, 0.0, %v748
        %v801 = vsel %vm775, 0.0, %v767
        %v802 = vsel %vm776, 0.0, %v749
        %v803 = vsel %vm775, 0.0, %v768
        %v804 = vsel %vm776, 0.0, %v750
        %v805 = vsel %vm775, 0.0, %v769
        %v806 = vsel %vm776, 0.0, %v751
        %v807 = vsel %vm775, 0.0, %v770
        %v808 = vsel %vm776, 0.0, %v752
        %v809 = vsel %vm775, 0.0, %v771
        %v810 = vsel %vm776, 0.0, %v753
        %v811 = vsel %vm775, 0.0, %v772
        %v812 = vsel %vm776, 0.0, %v754
        %vm813 = vcmp.eq.s32.totalorder %v696, 15
        %vm814 = vcmp.eq.s32.totalorder %v697, 15
        %v815 = vrot.slane %v659, 1
        %v816 = vrot.slane %v661, 1
        %v817 = vrot.slane %v663, 1
        %v818 = vrot.slane %v665, 1
        %v819 = vrot.slane %v667, 1
        %v820 = vrot.slane %v669, 1
        %v821 = vrot.slane %v671, 1
        %v822 = vrot.slane %v673, 1
        %v823 = vrot.slane %v675, 1
        %v824 = vrot.slane %v677, 1
        %v825 = vrot.slane %v679, 1
        %v826 = vrot.slane %v681, 1
        %v827 = vrot.slane %v683, 1
        %v828 = vrot.slane %v685, 1
        %v829 = vrot.slane %v687, 1
        %v830 = vrot.slane %v689, 1
        %v831 = vrot.slane %v691, 1
        %v832 = vrot.slane %v693, 1
        %v833 = vrot.slane %v660, 1
        %v834 = vrot.slane %v662, 1
        %v835 = vrot.slane %v664, 1
        %v836 = vrot.slane %v666, 1
        %v837 = vrot.slane %v668, 1
        %v838 = vrot.slane %v670, 1
        %v839 = vrot.slane %v672, 1
        %v840 = vrot.slane %v674, 1
        %v841 = vrot.slane %v676, 1
        %v842 = vrot.slane %v678, 1
        %v843 = vrot.slane %v680, 1
        %v844 = vrot.slane %v682, 1
        %v845 = vrot.slane %v684, 1
        %v846 = vrot.slane %v686, 1
        %v847 = vrot.slane %v688, 1
        %v848 = vrot.slane %v690, 1
        %v849 = vrot.slane %v692, 1
        %v850 = vrot.slane %v694, 1
        %vm851 = vcmp.lt.s32.totalorder %v696, 7
        %v852 = vsel %vm851, %v815, %v833
        %v853 = vsel %vm851, %v816, %v834
        %v854 = vsel %vm851, %v817, %v835
        %v855 = vsel %vm851, %v818, %v836
        %v856 = vsel %vm851, %v819, %v837
        %v857 = vsel %vm851, %v820, %v838
        %v858 = vsel %vm851, %v821, %v839
        %v859 = vsel %vm851, %v822, %v840
        %v860 = vsel %vm851, %v823, %v841
        %v861 = vsel %vm851, %v824, %v842
        %v862 = vsel %vm851, %v825, %v843
        %v863 = vsel %vm851, %v826, %v844
        %v864 = vsel %vm851, %v827, %v845
        %v865 = vsel %vm851, %v828, %v846
        %v866 = vsel %vm851, %v829, %v847
        %v867 = vsel %vm851, %v830, %v848
        %v868 = vsel %vm851, %v831, %v849
        %v869 = vsel %vm851, %v832, %v850
        %v870 = vsel %vm851, %v833, %v815
        %v871 = vsel %vm851, %v834, %v816
        %v872 = vsel %vm851, %v835, %v817
        %v873 = vsel %vm851, %v836, %v818
        %v874 = vsel %vm851, %v837, %v819
        %v875 = vsel %vm851, %v838, %v820
        %v876 = vsel %vm851, %v839, %v821
        %v877 = vsel %vm851, %v840, %v822
        %v878 = vsel %vm851, %v841, %v823
        %v879 = vsel %vm851, %v842, %v824
        %v880 = vsel %vm851, %v843, %v825
        %v881 = vsel %vm851, %v844, %v826
        %v882 = vsel %vm851, %v845, %v827
        %v883 = vsel %vm851, %v846, %v828
        %v884 = vsel %vm851, %v847, %v829
        %v885 = vsel %vm851, %v848, %v830
        %v886 = vsel %vm851, %v849, %v831
        %v887 = vsel %vm851, %v850, %v832
        %v888 = vsel %vm813, 1, 0
        %v889 = vsel %vm814, 1, 0
        %vm890 = vcmp.eq.s32.totalorder %v888, 1
        %vm891 = vcmp.eq.s32.totalorder %v889, 1
        %v892 = vsel %vm890, 0.0, %v852
        %v893 = vsel %vm891, 0.0, %v870
        %v894 = vsel %vm890, 0.0, %v853
        %v895 = vsel %vm891, 0.0, %v871
        %v896 = vsel %vm890, 0.0, %v854
        %v897 = vsel %vm891, 0.0, %v872
        %v898 = vsel %vm890, 0.0, %v855
        %v899 = vsel %vm891, 0.0, %v873
        %v900 = vsel %vm890, 0.0, %v856
        %v901 = vsel %vm891, 0.0, %v874
        %v902 = vsel %vm890, 0.0, %v857
        %v903 = vsel %vm891, 0.0, %v875
        %v904 = vsel %vm890, 0.0, %v858
        %v905 = vsel %vm891, 0.0, %v876
        %v906 = vsel %vm890, 0.0, %v859
        %v907 = vsel %vm891, 0.0, %v877
        %v908 = vsel %vm890, 0.0, %v860
        %v909 = vsel %vm891, 0.0, %v878
        %v910 = vsel %vm890, 0.0, %v861
        %v911 = vsel %vm891, 0.0, %v879
        %v912 = vsel %vm890, 0.0, %v862
        %v913 = vsel %vm891, 0.0, %v880
        %v914 = vsel %vm890, 0.0, %v863
        %v915 = vsel %vm891, 0.0, %v881
        %v916 = vsel %vm890, 0.0, %v864
        %v917 = vsel %vm891, 0.0, %v882
        %v918 = vsel %vm890, 0.0, %v865
        %v919 = vsel %vm891, 0.0, %v883
        %v920 = vsel %vm890, 0.0, %v866
        %v921 = vsel %vm891, 0.0, %v884
        %v922 = vsel %vm890, 0.0, %v867
        %v923 = vsel %vm891, 0.0, %v885
        %v924 = vsel %vm890, 0.0, %v868
        %v925 = vsel %vm891, 0.0, %v886
        %v926 = vsel %vm890, 0.0, %v869
        %v927 = vsel %vm891, 0.0, %v887
        %v928 = vpack.c.bf16 %v777, %v777
        %v929 = vpack.c.bf16 %v778, %v778
        %v930 = vpack.c.bf16 %v779, %v779
        %v931 = vpack.c.bf16 %v780, %v780
        %v932 = vpack.c.bf16 %v781, %v781
        %v933 = vpack.c.bf16 %v782, %v782
        %v934 = vpack.c.bf16 %v783, %v783
        %v935 = vpack.c.bf16 %v784, %v784
        %v936 = vpack.c.bf16 %v785, %v785
        %v937 = vpack.c.bf16 %v786, %v786
        %v938 = vpack.c.bf16 %v787, %v787
        %v939 = vpack.c.bf16 %v788, %v788
        %v940 = vpack.c.bf16 %v789, %v789
        %v941 = vpack.c.bf16 %v790, %v790
        %v942 = vpack.c.bf16 %v791, %v791
        %v943 = vpack.c.bf16 %v792, %v792
        %v944 = vpack.c.bf16 %v793, %v793
        %v945 = vpack.c.bf16 %v794, %v794
        %v946 = vpack.c.bf16 %v795, %v795
        %v947 = vpack.c.bf16 %v796, %v796
        %v948 = vpack.c.bf16 %v797, %v797
        %v949 = vpack.c.bf16 %v798, %v798
        %v950 = vpack.c.bf16 %v799, %v799
        %v951 = vpack.c.bf16 %v800, %v800
        %v952 = vpack.c.bf16 %v801, %v801
        %v953 = vpack.c.bf16 %v802, %v802
        %v954 = vpack.c.bf16 %v803, %v803
        %v955 = vpack.c.bf16 %v804, %v804
        %v956 = vpack.c.bf16 %v805, %v805
        %v957 = vpack.c.bf16 %v806, %v806
        %v958 = vpack.c.bf16 %v807, %v807
        %v959 = vpack.c.bf16 %v808, %v808
        %v960 = vpack.c.bf16 %v809, %v809
        %v961 = vpack.c.bf16 %v810, %v810
        %v962 = vpack.c.bf16 %v811, %v811
        %v963 = vpack.c.bf16 %v812, %v812
        %v964 = vpack.c.bf16 %v659, %v659
        %v965 = vpack.c.bf16 %v660, %v660
        %v966 = vpack.c.bf16 %v661, %v661
        %v967 = vpack.c.bf16 %v662, %v662
        %v968 = vpack.c.bf16 %v663, %v663
        %v969 = vpack.c.bf16 %v664, %v664
        %v970 = vpack.c.bf16 %v665, %v665
        %v971 = vpack.c.bf16 %v666, %v666
        %v972 = vpack.c.bf16 %v667, %v667
        %v973 = vpack.c.bf16 %v668, %v668
        %v974 = vpack.c.bf16 %v669, %v669
        %v975 = vpack.c.bf16 %v670, %v670
        %v976 = vpack.c.bf16 %v671, %v671
        %v977 = vpack.c.bf16 %v672, %v672
        %v978 = vpack.c.bf16 %v673, %v673
        %v979 = vpack.c.bf16 %v674, %v674
        %v980 = vpack.c.bf16 %v675, %v675
        %v981 = vpack.c.bf16 %v676, %v676
        %v982 = vpack.c.bf16 %v677, %v677
        %v983 = vpack.c.bf16 %v678, %v678
        %v984 = vpack.c.bf16 %v679, %v679
        %v985 = vpack.c.bf16 %v680, %v680
        %v986 = vpack.c.bf16 %v681, %v681
        %v987 = vpack.c.bf16 %v682, %v682
        %v988 = vpack.c.bf16 %v683, %v683
        %v989 = vpack.c.bf16 %v684, %v684
        %v990 = vpack.c.bf16 %v685, %v685
        %v991 = vpack.c.bf16 %v686, %v686
        %v992 = vpack.c.bf16 %v687, %v687
        %v993 = vpack.c.bf16 %v688, %v688
        %v994 = vpack.c.bf16 %v689, %v689
        %v995 = vpack.c.bf16 %v690, %v690
        %v996 = vpack.c.bf16 %v691, %v691
        %v997 = vpack.c.bf16 %v692, %v692
        %v998 = vpack.c.bf16 %v693, %v693
        %v999 = vpack.c.bf16 %v694, %v694
        %v1000 = vpack.c.bf16 %v892, %v892
        %v1001 = vpack.c.bf16 %v893, %v893
        %v1002 = vpack.c.bf16 %v894, %v894
        %v1003 = vpack.c.bf16 %v895, %v895
        %v1004 = vpack.c.bf16 %v896, %v896
        %v1005 = vpack.c.bf16 %v897, %v897
        %v1006 = vpack.c.bf16 %v898, %v898
        %v1007 = vpack.c.bf16 %v899, %v899
        %v1008 = vpack.c.bf16 %v900, %v900
        %v1009 = vpack.c.bf16 %v901, %v901
        %v1010 = vpack.c.bf16 %v902, %v902
        %v1011 = vpack.c.bf16 %v903, %v903
        %v1012 = vpack.c.bf16 %v904, %v904
        %v1013 = vpack.c.bf16 %v905, %v905
        %v1014 = vpack.c.bf16 %v906, %v906
        %v1015 = vpack.c.bf16 %v907, %v907
        %v1016 = vpack.c.bf16 %v908, %v908
        %v1017 = vpack.c.bf16 %v909, %v909
        %v1018 = vpack.c.bf16 %v910, %v910
        %v1019 = vpack.c.bf16 %v911, %v911
        %v1020 = vpack.c.bf16 %v912, %v912
        %v1021 = vpack.c.bf16 %v913, %v913
        %v1022 = vpack.c.bf16 %v914, %v914
        %v1023 = vpack.c.bf16 %v915, %v915
        %v1024 = vpack.c.bf16 %v916, %v916
        %v1025 = vpack.c.bf16 %v917, %v917
        %v1026 = vpack.c.bf16 %v918, %v918
        %v1027 = vpack.c.bf16 %v919, %v919
        %v1028 = vpack.c.bf16 %v920, %v920
        %v1029 = vpack.c.bf16 %v921, %v921
        %v1030 = vpack.c.bf16 %v922, %v922
        %v1031 = vpack.c.bf16 %v923, %v923
        %v1032 = vpack.c.bf16 %v924, %v924
        %v1033 = vpack.c.bf16 %v925, %v925
        %v1034 = vpack.c.bf16 %v926, %v926
        %v1035 = vpack.c.bf16 %v927, %v927
        %v1036 = vld [vmem:[#allocation4] sm:$0x3]
        %s1037 = scalar_lea.vmem [#allocation4], 2
        %v1038 = vld [vmem:[%s1037] sm:$0x3]
        %v1071 = vunpack.c.l.b16 %v964
        %v1072 = vunpack.c.l.b16 %v965
        %v1073 = vunpack.c.l.b16 %v966
        %v1074 = vunpack.c.l.b16 %v967
        %v1075 = vunpack.c.l.b16 %v968
        %v1076 = vunpack.c.l.b16 %v969
        %v1077 = vunpack.c.l.b16 %v970
        %v1078 = vunpack.c.l.b16 %v971
        %v1079 = vunpack.c.l.b16 %v972
        %v1080 = vunpack.c.l.b16 %v973
        %v1081 = vunpack.c.l.b16 %v974
        %v1082 = vunpack.c.l.b16 %v975
        %v1083 = vunpack.c.l.b16 %v976
        %v1084 = vunpack.c.l.b16 %v977
        %v1085 = vunpack.c.l.b16 %v978
        %v1086 = vunpack.c.l.b16 %v979
        %v1087 = vunpack.c.l.b16 %v980
        %v1088 = vunpack.c.l.b16 %v981
        %v1089 = vunpack.c.l.b16 %v982
        %v1090 = vunpack.c.l.b16 %v983
        %v1091 = vunpack.c.l.b16 %v984
        %v1092 = vunpack.c.l.b16 %v985
        %v1093 = vunpack.c.l.b16 %v986
        %v1094 = vunpack.c.l.b16 %v987
        %v1095 = vunpack.c.l.b16 %v988
        %v1096 = vunpack.c.l.b16 %v989
        %v1097 = vunpack.c.l.b16 %v990
        %v1098 = vunpack.c.l.b16 %v991
        %v1099 = vunpack.c.l.b16 %v992
        %v1100 = vunpack.c.l.b16 %v993
        %v1101 = vunpack.c.l.b16 %v994
        %v1102 = vunpack.c.l.b16 %v995
        %v1103 = vpack.c.b16 %v1072, %v1071
        %v1104 = vpack.c.b16 %v1074, %v1073
        %v1105 = vpack.c.b16 %v1076, %v1075
        %v1106 = vpack.c.b16 %v1078, %v1077
        %v1107 = vpack.c.b16 %v1080, %v1079
        %v1108 = vpack.c.b16 %v1082, %v1081
        %v1109 = vpack.c.b16 %v1084, %v1083
        %v1110 = vpack.c.b16 %v1086, %v1085
        %v1111 = vpack.c.b16 %v1088, %v1087
        %v1112 = vpack.c.b16 %v1090, %v1089
        %v1113 = vpack.c.b16 %v1092, %v1091
        %v1114 = vpack.c.b16 %v1094, %v1093
        %v1115 = vpack.c.b16 %v1096, %v1095
        %v1116 = vpack.c.b16 %v1098, %v1097
        %v1117 = vpack.c.b16 %v1100, %v1099
        %v1118 = vpack.c.b16 %v1102, %v1101
        %v1120 = vsel %vm582, %v1103, 0
        %v1123 = vsel %vm582, %v1104, 0
        %v1126 = vsel %vm582, %v1105, 0
        %v1129 = vsel %vm582, %v1106, 0
        %v1132 = vsel %vm582, %v1107, 0
        %v1135 = vsel %vm582, %v1108, 0
        %v1138 = vsel %vm582, %v1109, 0
        %v1141 = vsel %vm582, %v1110, 0
        %v1144 = vsel %vm582, %v1111, 0
        %v1147 = vsel %vm582, %v1112, 0
        %v1150 = vsel %vm582, %v1113, 0
        %v1153 = vsel %vm582, %v1114, 0
        %v1156 = vsel %vm582, %v1115, 0
        %v1159 = vsel %vm582, %v1116, 0
        %v1162 = vsel %vm582, %v1117, 0
        %v1165 = vsel %vm582, %v1118, 0
        %vm1167 = vcmask 1041408
        %v1169 = vsel %vm1167, %v1038, 0
        %1171 = vmatpush.bf16.msra.mxu0 0
        %1172 = vmatpush.bf16.msra.mxu0 0
        %1173 = vmatpush.bf16.msra.mxu0 0
        %1174 = vmatpush.bf16.msra.mxu0 0
        %1175 = vmatpush.bf16.msra.mxu0 0
        %1176 = vmatpush.bf16.msra.mxu0 0
        %1177 = vmatpush.bf16.msra.mxu0 0
        %1178 = vmatpush.bf16.msra.mxu0 %v1169
        %1179 = vmatmul.bf16.gmra.mxu0 %v1120
        %v1180 = vpop.f32.mrf.mxu0
        %v1181 = vadd.f32 0.0, %v1180
        %v1182 = vpop.f32.mrf.mxu0
        %v1183 = vadd.f32 0.0, %v1182
        %1184 = vmatmul.bf16.gmra.mxu0 %v1123
        %v1185 = vpop.f32.mrf.mxu0
        %v1186 = vadd.f32 0.0, %v1185
        %v1187 = vpop.f32.mrf.mxu0
        %v1188 = vadd.f32 0.0, %v1187
        %1189 = vmatmul.bf16.gmra.mxu0 %v1126
        %v1190 = vpop.f32.mrf.mxu0
        %v1191 = vadd.f32 0.0, %v1190
        %v1192 = vpop.f32.mrf.mxu0
        %v1193 = vadd.f32 0.0, %v1192
        %1194 = vmatmul.bf16.gmra.mxu0 %v1129
        %v1195 = vpop.f32.mrf.mxu0
        %v1196 = vadd.f32 0.0, %v1195
        %v1197 = vpop.f32.mrf.mxu0
        %v1198 = vadd.f32 0.0, %v1197
        %1199 = vmatmul.bf16.gmra.mxu0 %v1132
        %v1200 = vpop.f32.mrf.mxu0
        %v1201 = vadd.f32 0.0, %v1200
        %v1202 = vpop.f32.mrf.mxu0
        %v1203 = vadd.f32 0.0, %v1202
        %1204 = vmatmul.bf16.gmra.mxu0 %v1135
        %v1205 = vpop.f32.mrf.mxu0
        %v1206 = vadd.f32 0.0, %v1205
        %v1207 = vpop.f32.mrf.mxu0
        %v1208 = vadd.f32 0.0, %v1207
        %1209 = vmatmul.bf16.gmra.mxu0 %v1138
        %v1210 = vpop.f32.mrf.mxu0
        %v1211 = vadd.f32 0.0, %v1210
        %v1212 = vpop.f32.mrf.mxu0
        %v1213 = vadd.f32 0.0, %v1212
        %1214 = vmatmul.bf16.gmra.mxu0 %v1141
        %v1215 = vpop.f32.mrf.mxu0
        %v1216 = vadd.f32 0.0, %v1215
        %v1217 = vpop.f32.mrf.mxu0
        %v1218 = vadd.f32 0.0, %v1217
        %1219 = vmatmul.bf16.gmra.mxu0 %v1144
        %v1220 = vpop.f32.mrf.mxu0
        %v1221 = vadd.f32 0.0, %v1220
        %v1222 = vpop.f32.mrf.mxu0
        %v1223 = vadd.f32 0.0, %v1222
        %1224 = vmatmul.bf16.gmra.mxu0 %v1147
        %v1225 = vpop.f32.mrf.mxu0
        %v1226 = vadd.f32 0.0, %v1225
        %v1227 = vpop.f32.mrf.mxu0
        %v1228 = vadd.f32 0.0, %v1227
        %1229 = vmatmul.bf16.gmra.mxu0 %v1150
        %v1230 = vpop.f32.mrf.mxu0
        %v1231 = vadd.f32 0.0, %v1230
        %v1232 = vpop.f32.mrf.mxu0
        %v1233 = vadd.f32 0.0, %v1232
        %1234 = vmatmul.bf16.gmra.mxu0 %v1153
        %v1235 = vpop.f32.mrf.mxu0
        %v1236 = vadd.f32 0.0, %v1235
        %v1237 = vpop.f32.mrf.mxu0
        %v1238 = vadd.f32 0.0, %v1237
        %1239 = vmatmul.bf16.gmra.mxu0 %v1156
        %v1240 = vpop.f32.mrf.mxu0
        %v1241 = vadd.f32 0.0, %v1240
        %v1242 = vpop.f32.mrf.mxu0
        %v1243 = vadd.f32 0.0, %v1242
        %1244 = vmatmul.bf16.gmra.mxu0 %v1159
        %v1245 = vpop.f32.mrf.mxu0
        %v1246 = vadd.f32 0.0, %v1245
        %v1247 = vpop.f32.mrf.mxu0
        %v1248 = vadd.f32 0.0, %v1247
        %1249 = vmatmul.bf16.gmra.mxu0 %v1162
        %v1250 = vpop.f32.mrf.mxu0
        %v1251 = vadd.f32 0.0, %v1250
        %v1252 = vpop.f32.mrf.mxu0
        %v1253 = vadd.f32 0.0, %v1252
        %1254 = vmatmul.bf16.gmra.mxu0 %v1165
        %v1255 = vpop.f32.mrf.mxu0
        %v1256 = vadd.f32 0.0, %v1255
        %v1257 = vpop.f32.mrf.mxu0
        %v1258 = vadd.f32 0.0, %v1257
        %1259 = vdwg.mxu0
        %v1292 = vunpack.c.l.b16 %v928
        %v1293 = vunpack.c.l.b16 %v929
        %v1294 = vunpack.c.l.b16 %v930
        %v1295 = vunpack.c.l.b16 %v931
        %v1296 = vunpack.c.l.b16 %v932
        %v1297 = vunpack.c.l.b16 %v933
        %v1298 = vunpack.c.l.b16 %v934
        %v1299 = vunpack.c.l.b16 %v935
        %v1300 = vunpack.c.l.b16 %v936
        %v1301 = vunpack.c.l.b16 %v937
        %v1302 = vunpack.c.l.b16 %v938
        %v1303 = vunpack.c.l.b16 %v939
        %v1304 = vunpack.c.l.b16 %v940
        %v1305 = vunpack.c.l.b16 %v941
        %v1306 = vunpack.c.l.b16 %v942
        %v1307 = vunpack.c.l.b16 %v943
        %v1308 = vunpack.c.l.b16 %v944
        %v1309 = vunpack.c.l.b16 %v945
        %v1310 = vunpack.c.l.b16 %v946
        %v1311 = vunpack.c.l.b16 %v947
        %v1312 = vunpack.c.l.b16 %v948
        %v1313 = vunpack.c.l.b16 %v949
        %v1314 = vunpack.c.l.b16 %v950
        %v1315 = vunpack.c.l.b16 %v951
        %v1316 = vunpack.c.l.b16 %v952
        %v1317 = vunpack.c.l.b16 %v953
        %v1318 = vunpack.c.l.b16 %v954
        %v1319 = vunpack.c.l.b16 %v955
        %v1320 = vunpack.c.l.b16 %v956
        %v1321 = vunpack.c.l.b16 %v957
        %v1322 = vunpack.c.l.b16 %v958
        %v1323 = vunpack.c.l.b16 %v959
        %v1324 = vpack.c.b16 %v1293, %v1292
        %v1325 = vpack.c.b16 %v1295, %v1294
        %v1326 = vpack.c.b16 %v1297, %v1296
        %v1327 = vpack.c.b16 %v1299, %v1298
        %v1328 = vpack.c.b16 %v1301, %v1300
        %v1329 = vpack.c.b16 %v1303, %v1302
        %v1330 = vpack.c.b16 %v1305, %v1304
        %v1331 = vpack.c.b16 %v1307, %v1306
        %v1332 = vpack.c.b16 %v1309, %v1308
        %v1333 = vpack.c.b16 %v1311, %v1310
        %v1334 = vpack.c.b16 %v1313, %v1312
        %v1335 = vpack.c.b16 %v1315, %v1314
        %v1336 = vpack.c.b16 %v1317, %v1316
        %v1337 = vpack.c.b16 %v1319, %v1318
        %v1338 = vpack.c.b16 %v1321, %v1320
        %v1339 = vpack.c.b16 %v1323, %v1322
        %v1341 = vsel %vm582, %v1324, 0
        %v1344 = vsel %vm582, %v1325, 0
        %v1347 = vsel %vm582, %v1326, 0
        %v1350 = vsel %vm582, %v1327, 0
        %v1353 = vsel %vm582, %v1328, 0
        %v1356 = vsel %vm582, %v1329, 0
        %v1359 = vsel %vm582, %v1330, 0
        %v1362 = vsel %vm582, %v1331, 0
        %v1365 = vsel %vm582, %v1332, 0
        %v1368 = vsel %vm582, %v1333, 0
        %v1371 = vsel %vm582, %v1334, 0
        %v1374 = vsel %vm582, %v1335, 0
        %v1377 = vsel %vm582, %v1336, 0
        %v1380 = vsel %vm582, %v1337, 0
        %v1383 = vsel %vm582, %v1338, 0
        %v1386 = vsel %vm582, %v1339, 0
        %v1389 = vsel %vm1167, %v1036, 0
        %1391 = vmatpush.bf16.msra.mxu0 0
        %1392 = vmatpush.bf16.msra.mxu0 0
        %1393 = vmatpush.bf16.msra.mxu0 0
        %1394 = vmatpush.bf16.msra.mxu0 0
        %1395 = vmatpush.bf16.msra.mxu0 0
        %1396 = vmatpush.bf16.msra.mxu0 0
        %1397 = vmatpush.bf16.msra.mxu0 0
        %1398 = vmatpush.bf16.msra.mxu0 %v1389
        %1399 = vmatmul.bf16.gmra.mxu0 %v1341
        %v1400 = vpop.f32.mrf.mxu0
        %v1401 = vadd.f32 %v1181, %v1400
        %v1402 = vpop.f32.mrf.mxu0
        %v1403 = vadd.f32 %v1183, %v1402
        %1404 = vmatmul.bf16.gmra.mxu0 %v1344
        %v1405 = vpop.f32.mrf.mxu0
        %v1406 = vadd.f32 %v1186, %v1405
        %v1407 = vpop.f32.mrf.mxu0
        %v1408 = vadd.f32 %v1188, %v1407
        %1409 = vmatmul.bf16.gmra.mxu0 %v1347
        %v1410 = vpop.f32.mrf.mxu0
        %v1411 = vadd.f32 %v1191, %v1410
        %v1412 = vpop.f32.mrf.mxu0
        %v1413 = vadd.f32 %v1193, %v1412
        %1414 = vmatmul.bf16.gmra.mxu0 %v1350
        %v1415 = vpop.f32.mrf.mxu0
        %v1416 = vadd.f32 %v1196, %v1415
        %v1417 = vpop.f32.mrf.mxu0
        %v1418 = vadd.f32 %v1198, %v1417
        %1419 = vmatmul.bf16.gmra.mxu0 %v1353
        %v1420 = vpop.f32.mrf.mxu0
        %v1421 = vadd.f32 %v1201, %v1420
        %v1422 = vpop.f32.mrf.mxu0
        %v1423 = vadd.f32 %v1203, %v1422
        %1424 = vmatmul.bf16.gmra.mxu0 %v1356
        %v1425 = vpop.f32.mrf.mxu0
        %v1426 = vadd.f32 %v1206, %v1425
        %v1427 = vpop.f32.mrf.mxu0
        %v1428 = vadd.f32 %v1208, %v1427
        %1429 = vmatmul.bf16.gmra.mxu0 %v1359
        %v1430 = vpop.f32.mrf.mxu0
        %v1431 = vadd.f32 %v1211, %v1430
        %v1432 = vpop.f32.mrf.mxu0
        %v1433 = vadd.f32 %v1213, %v1432
        %1434 = vmatmul.bf16.gmra.mxu0 %v1362
        %v1435 = vpop.f32.mrf.mxu0
        %v1436 = vadd.f32 %v1216, %v1435
        %v1437 = vpop.f32.mrf.mxu0
        %v1438 = vadd.f32 %v1218, %v1437
        %1439 = vmatmul.bf16.gmra.mxu0 %v1365
        %v1440 = vpop.f32.mrf.mxu0
        %v1441 = vadd.f32 %v1221, %v1440
        %v1442 = vpop.f32.mrf.mxu0
        %v1443 = vadd.f32 %v1223, %v1442
        %1444 = vmatmul.bf16.gmra.mxu0 %v1368
        %v1445 = vpop.f32.mrf.mxu0
        %v1446 = vadd.f32 %v1226, %v1445
        %v1447 = vpop.f32.mrf.mxu0
        %v1448 = vadd.f32 %v1228, %v1447
        %1449 = vmatmul.bf16.gmra.mxu0 %v1371
        %v1450 = vpop.f32.mrf.mxu0
        %v1451 = vadd.f32 %v1231, %v1450
        %v1452 = vpop.f32.mrf.mxu0
        %v1453 = vadd.f32 %v1233, %v1452
        %1454 = vmatmul.bf16.gmra.mxu0 %v1374
        %v1455 = vpop.f32.mrf.mxu0
        %v1456 = vadd.f32 %v1236, %v1455
        %v1457 = vpop.f32.mrf.mxu0
        %v1458 = vadd.f32 %v1238, %v1457
        %1459 = vmatmul.bf16.gmra.mxu0 %v1377
        %v1460 = vpop.f32.mrf.mxu0
        %v1461 = vadd.f32 %v1241, %v1460
        %v1462 = vpop.f32.mrf.mxu0
        %v1463 = vadd.f32 %v1243, %v1462
        %1464 = vmatmul.bf16.gmra.mxu0 %v1380
        %v1465 = vpop.f32.mrf.mxu0
        %v1466 = vadd.f32 %v1246, %v1465
        %v1467 = vpop.f32.mrf.mxu0
        %v1468 = vadd.f32 %v1248, %v1467
        %1469 = vmatmul.bf16.gmra.mxu0 %v1383
        %v1470 = vpop.f32.mrf.mxu0
        %v1471 = vadd.f32 %v1251, %v1470
        %v1472 = vpop.f32.mrf.mxu0
        %v1473 = vadd.f32 %v1253, %v1472
        %1474 = vmatmul.bf16.gmra.mxu0 %v1386
        %v1475 = vpop.f32.mrf.mxu0
        %v1476 = vadd.f32 %v1256, %v1475
        %v1477 = vpop.f32.mrf.mxu0
        %v1478 = vadd.f32 %v1258, %v1477
        %1479 = vdwg.mxu0
        %s1480 = scalar_lea.vmem [#allocation4], 4
        %v1481 = vld [vmem:[%s1480] sm:$0x3]
        %v1514 = vunpack.c.l.b16 %v1000
        %v1515 = vunpack.c.l.b16 %v1001
        %v1516 = vunpack.c.l.b16 %v1002
        %v1517 = vunpack.c.l.b16 %v1003
        %v1518 = vunpack.c.l.b16 %v1004
        %v1519 = vunpack.c.l.b16 %v1005
        %v1520 = vunpack.c.l.b16 %v1006
        %v1521 = vunpack.c.l.b16 %v1007
        %v1522 = vunpack.c.l.b16 %v1008
        %v1523 = vunpack.c.l.b16 %v1009
        %v1524 = vunpack.c.l.b16 %v1010
        %v1525 = vunpack.c.l.b16 %v1011
        %v1526 = vunpack.c.l.b16 %v1012
        %v1527 = vunpack.c.l.b16 %v1013
        %v1528 = vunpack.c.l.b16 %v1014
        %v1529 = vunpack.c.l.b16 %v1015
        %v1530 = vunpack.c.l.b16 %v1016
        %v1531 = vunpack.c.l.b16 %v1017
        %v1532 = vunpack.c.l.b16 %v1018
        %v1533 = vunpack.c.l.b16 %v1019
        %v1534 = vunpack.c.l.b16 %v1020
        %v1535 = vunpack.c.l.b16 %v1021
        %v1536 = vunpack.c.l.b16 %v1022
        %v1537 = vunpack.c.l.b16 %v1023
        %v1538 = vunpack.c.l.b16 %v1024
        %v1539 = vunpack.c.l.b16 %v1025
        %v1540 = vunpack.c.l.b16 %v1026
        %v1541 = vunpack.c.l.b16 %v1027
        %v1542 = vunpack.c.l.b16 %v1028
        %v1543 = vunpack.c.l.b16 %v1029
        %v1544 = vunpack.c.l.b16 %v1030
        %v1545 = vunpack.c.l.b16 %v1031
        %v1546 = vpack.c.b16 %v1515, %v1514
        %v1547 = vpack.c.b16 %v1517, %v1516
        %v1548 = vpack.c.b16 %v1519, %v1518
        %v1549 = vpack.c.b16 %v1521, %v1520
        %v1550 = vpack.c.b16 %v1523, %v1522
        %v1551 = vpack.c.b16 %v1525, %v1524
        %v1552 = vpack.c.b16 %v1527, %v1526
        %v1553 = vpack.c.b16 %v1529, %v1528
        %v1554 = vpack.c.b16 %v1531, %v1530
        %v1555 = vpack.c.b16 %v1533, %v1532
        %v1556 = vpack.c.b16 %v1535, %v1534
        %v1557 = vpack.c.b16 %v1537, %v1536
        %v1558 = vpack.c.b16 %v1539, %v1538
        %v1559 = vpack.c.b16 %v1541, %v1540
        %v1560 = vpack.c.b16 %v1543, %v1542
        %v1561 = vpack.c.b16 %v1545, %v1544
        %v1563 = vsel %vm582, %v1546, 0
        %v1566 = vsel %vm582, %v1547, 0
        %v1569 = vsel %vm582, %v1548, 0
        %v1572 = vsel %vm582, %v1549, 0
        %v1575 = vsel %vm582, %v1550, 0
        %v1578 = vsel %vm582, %v1551, 0
        %v1581 = vsel %vm582, %v1552, 0
        %v1584 = vsel %vm582, %v1553, 0
        %v1587 = vsel %vm582, %v1554, 0
        %v1590 = vsel %vm582, %v1555, 0
        %v1593 = vsel %vm582, %v1556, 0
        %v1596 = vsel %vm582, %v1557, 0
        %v1599 = vsel %vm582, %v1558, 0
        %v1602 = vsel %vm582, %v1559, 0
        %v1605 = vsel %vm582, %v1560, 0
        %v1608 = vsel %vm582, %v1561, 0
        %v1611 = vsel %vm1167, %v1481, 0
        %1613 = vmatpush.bf16.msra.mxu0 0
        %1614 = vmatpush.bf16.msra.mxu0 0
        %1615 = vmatpush.bf16.msra.mxu0 0
        %1616 = vmatpush.bf16.msra.mxu0 0
        %1617 = vmatpush.bf16.msra.mxu0 0
        %1618 = vmatpush.bf16.msra.mxu0 0
        %1619 = vmatpush.bf16.msra.mxu0 0
        %1620 = vmatpush.bf16.msra.mxu0 %v1611
        %1621 = vmatmul.bf16.gmra.mxu0 %v1563
        %v1622 = vpop.f32.mrf.mxu0
        %v1623 = vadd.f32 0.0, %v1622
        %v1624 = vpop.f32.mrf.mxu0
        %v1625 = vadd.f32 0.0, %v1624
        %1626 = vmatmul.bf16.gmra.mxu0 %v1566
        %v1627 = vpop.f32.mrf.mxu0
        %v1628 = vadd.f32 0.0, %v1627
        %v1629 = vpop.f32.mrf.mxu0
        %v1630 = vadd.f32 0.0, %v1629
        %1631 = vmatmul.bf16.gmra.mxu0 %v1569
        %v1632 = vpop.f32.mrf.mxu0
        %v1633 = vadd.f32 0.0, %v1632
        %v1634 = vpop.f32.mrf.mxu0
        %v1635 = vadd.f32 0.0, %v1634
        %1636 = vmatmul.bf16.gmra.mxu0 %v1572
        %v1637 = vpop.f32.mrf.mxu0
        %v1638 = vadd.f32 0.0, %v1637
        %v1639 = vpop.f32.mrf.mxu0
        %v1640 = vadd.f32 0.0, %v1639
        %1641 = vmatmul.bf16.gmra.mxu0 %v1575
        %v1642 = vpop.f32.mrf.mxu0
        %v1643 = vadd.f32 0.0, %v1642
        %v1644 = vpop.f32.mrf.mxu0
        %v1645 = vadd.f32 0.0, %v1644
        %1646 = vmatmul.bf16.gmra.mxu0 %v1578
        %v1647 = vpop.f32.mrf.mxu0
        %v1648 = vadd.f32 0.0, %v1647
        %v1649 = vpop.f32.mrf.mxu0
        %v1650 = vadd.f32 0.0, %v1649
        %1651 = vmatmul.bf16.gmra.mxu0 %v1581
        %v1652 = vpop.f32.mrf.mxu0
        %v1653 = vadd.f32 0.0, %v1652
        %v1654 = vpop.f32.mrf.mxu0
        %v1655 = vadd.f32 0.0, %v1654
        %1656 = vmatmul.bf16.gmra.mxu0 %v1584
        %v1657 = vpop.f32.mrf.mxu0
        %v1658 = vadd.f32 0.0, %v1657
        %v1659 = vpop.f32.mrf.mxu0
        %v1660 = vadd.f32 0.0, %v1659
        %1661 = vmatmul.bf16.gmra.mxu0 %v1587
        %v1662 = vpop.f32.mrf.mxu0
        %v1663 = vadd.f32 0.0, %v1662
        %v1664 = vpop.f32.mrf.mxu0
        %v1665 = vadd.f32 0.0, %v1664
        %1666 = vmatmul.bf16.gmra.mxu0 %v1590
        %v1667 = vpop.f32.mrf.mxu0
        %v1668 = vadd.f32 0.0, %v1667
        %v1669 = vpop.f32.mrf.mxu0
        %v1670 = vadd.f32 0.0, %v1669
        %1671 = vmatmul.bf16.gmra.mxu0 %v1593
        %v1672 = vpop.f32.mrf.mxu0
        %v1673 = vadd.f32 0.0, %v1672
        %v1674 = vpop.f32.mrf.mxu0
        %v1675 = vadd.f32 0.0, %v1674
        %1676 = vmatmul.bf16.gmra.mxu0 %v1596
        %v1677 = vpop.f32.mrf.mxu0
        %v1678 = vadd.f32 0.0, %v1677
        %v1679 = vpop.f32.mrf.mxu0
        %v1680 = vadd.f32 0.0, %v1679
        %1681 = vmatmul.bf16.gmra.mxu0 %v1599
        %v1682 = vpop.f32.mrf.mxu0
        %v1683 = vadd.f32 0.0, %v1682
        %v1684 = vpop.f32.mrf.mxu0
        %v1685 = vadd.f32 0.0, %v1684
        %1686 = vmatmul.bf16.gmra.mxu0 %v1602
        %v1687 = vpop.f32.mrf.mxu0
        %v1688 = vadd.f32 0.0, %v1687
        %v1689 = vpop.f32.mrf.mxu0
        %v1690 = vadd.f32 0.0, %v1689
        %1691 = vmatmul.bf16.gmra.mxu0 %v1605
        %v1692 = vpop.f32.mrf.mxu0
        %v1693 = vadd.f32 0.0, %v1692
        %v1694 = vpop.f32.mrf.mxu0
        %v1695 = vadd.f32 0.0, %v1694
        %1696 = vmatmul.bf16.gmra.mxu0 %v1608
        %v1697 = vpop.f32.mrf.mxu0
        %v1698 = vadd.f32 0.0, %v1697
        %v1699 = vpop.f32.mrf.mxu0
        %v1700 = vadd.f32 0.0, %v1699
        %1701 = vdwg.mxu0
        %v1702 = vadd.f32 %v1401, %v1623
        %v1703 = vadd.f32 %v1403, %v1625
        %v1704 = vadd.f32 %v1406, %v1628
        %v1705 = vadd.f32 %v1408, %v1630
        %v1706 = vadd.f32 %v1411, %v1633
        %v1707 = vadd.f32 %v1413, %v1635
        %v1708 = vadd.f32 %v1416, %v1638
        %v1709 = vadd.f32 %v1418, %v1640
        %v1710 = vadd.f32 %v1421, %v1643
        %v1711 = vadd.f32 %v1423, %v1645
        %v1712 = vadd.f32 %v1426, %v1648
        %v1713 = vadd.f32 %v1428, %v1650
        %v1714 = vadd.f32 %v1431, %v1653
        %v1715 = vadd.f32 %v1433, %v1655
        %v1716 = vadd.f32 %v1436, %v1658
        %v1717 = vadd.f32 %v1438, %v1660
        %v1718 = vadd.f32 %v1441, %v1663
        %v1719 = vadd.f32 %v1443, %v1665
        %v1720 = vadd.f32 %v1446, %v1668
        %v1721 = vadd.f32 %v1448, %v1670
        %v1722 = vadd.f32 %v1451, %v1673
        %v1723 = vadd.f32 %v1453, %v1675
        %v1724 = vadd.f32 %v1456, %v1678
        %v1725 = vadd.f32 %v1458, %v1680
        %v1726 = vadd.f32 %v1461, %v1683
        %v1727 = vadd.f32 %v1463, %v1685
        %v1728 = vadd.f32 %v1466, %v1688
        %v1729 = vadd.f32 %v1468, %v1690
        %v1730 = vadd.f32 %v1471, %v1693
        %v1731 = vadd.f32 %v1473, %v1695
        %v1732 = vadd.f32 %v1476, %v1698
        %v1733 = vadd.f32 %v1478, %v1700
        %s1734 = scalar_lea.vmem [#allocation4], 6
        %v1735 = vld [vmem:[%s1734] sm:$0x3]
        %v1738 = vunpack.c.l.b16 %v960
        %v1739 = vunpack.c.l.b16 %v961
        %v1740 = vpack.c.b16 %v1739, %v1738
        %v1742 = vsel %vm582, %v1740, 0
        %v1745 = vsel %vm1167, %v1735, 0
        %1747 = vmatpush.bf16.msra.mxu0 0
        %1748 = vmatpush.bf16.msra.mxu0 0
        %1749 = vmatpush.bf16.msra.mxu0 0
        %1750 = vmatpush.bf16.msra.mxu0 0
        %1751 = vmatpush.bf16.msra.mxu0 0
        %1752 = vmatpush.bf16.msra.mxu0 0
        %1753 = vmatpush.bf16.msra.mxu0 0
        %1754 = vmatpush.bf16.msra.mxu0 %v1745
        %1755 = vmatmul.bf16.gmra.mxu0 %v1344
        %v1756 = vpop.f32.mrf.mxu0
        %v1757 = vadd.f32 0.0, %v1756
        %v1758 = vpop.f32.mrf.mxu0
        %v1759 = vadd.f32 0.0, %v1758
        %1760 = vmatmul.bf16.gmra.mxu0 %v1347
        %v1761 = vpop.f32.mrf.mxu0
        %v1762 = vadd.f32 0.0, %v1761
        %v1763 = vpop.f32.mrf.mxu0
        %v1764 = vadd.f32 0.0, %v1763
        %1765 = vmatmul.bf16.gmra.mxu0 %v1350
        %v1766 = vpop.f32.mrf.mxu0
        %v1767 = vadd.f32 0.0, %v1766
        %v1768 = vpop.f32.mrf.mxu0
        %v1769 = vadd.f32 0.0, %v1768
        %1770 = vmatmul.bf16.gmra.mxu0 %v1353
        %v1771 = vpop.f32.mrf.mxu0
        %v1772 = vadd.f32 0.0, %v1771
        %v1773 = vpop.f32.mrf.mxu0
        %v1774 = vadd.f32 0.0, %v1773
        %1775 = vmatmul.bf16.gmra.mxu0 %v1356
        %v1776 = vpop.f32.mrf.mxu0
        %v1777 = vadd.f32 0.0, %v1776
        %v1778 = vpop.f32.mrf.mxu0
        %v1779 = vadd.f32 0.0, %v1778
        %1780 = vmatmul.bf16.gmra.mxu0 %v1359
        %v1781 = vpop.f32.mrf.mxu0
        %v1782 = vadd.f32 0.0, %v1781
        %v1783 = vpop.f32.mrf.mxu0
        %v1784 = vadd.f32 0.0, %v1783
        %1785 = vmatmul.bf16.gmra.mxu0 %v1362
        %v1786 = vpop.f32.mrf.mxu0
        %v1787 = vadd.f32 0.0, %v1786
        %v1788 = vpop.f32.mrf.mxu0
        %v1789 = vadd.f32 0.0, %v1788
        %1790 = vmatmul.bf16.gmra.mxu0 %v1365
        %v1791 = vpop.f32.mrf.mxu0
        %v1792 = vadd.f32 0.0, %v1791
        %v1793 = vpop.f32.mrf.mxu0
        %v1794 = vadd.f32 0.0, %v1793
        %1795 = vmatmul.bf16.gmra.mxu0 %v1368
        %v1796 = vpop.f32.mrf.mxu0
        %v1797 = vadd.f32 0.0, %v1796
        %v1798 = vpop.f32.mrf.mxu0
        %v1799 = vadd.f32 0.0, %v1798
        %1800 = vmatmul.bf16.gmra.mxu0 %v1371
        %v1801 = vpop.f32.mrf.mxu0
        %v1802 = vadd.f32 0.0, %v1801
        %v1803 = vpop.f32.mrf.mxu0
        %v1804 = vadd.f32 0.0, %v1803
        %1805 = vmatmul.bf16.gmra.mxu0 %v1374
        %v1806 = vpop.f32.mrf.mxu0
        %v1807 = vadd.f32 0.0, %v1806
        %v1808 = vpop.f32.mrf.mxu0
        %v1809 = vadd.f32 0.0, %v1808
        %1810 = vmatmul.bf16.gmra.mxu0 %v1377
        %v1811 = vpop.f32.mrf.mxu0
        %v1812 = vadd.f32 0.0, %v1811
        %v1813 = vpop.f32.mrf.mxu0
        %v1814 = vadd.f32 0.0, %v1813
        %1815 = vmatmul.bf16.gmra.mxu0 %v1380
        %v1816 = vpop.f32.mrf.mxu0
        %v1817 = vadd.f32 0.0, %v1816
        %v1818 = vpop.f32.mrf.mxu0
        %v1819 = vadd.f32 0.0, %v1818
        %1820 = vmatmul.bf16.gmra.mxu0 %v1383
        %v1821 = vpop.f32.mrf.mxu0
        %v1822 = vadd.f32 0.0, %v1821
        %v1823 = vpop.f32.mrf.mxu0
        %v1824 = vadd.f32 0.0, %v1823
        %1825 = vmatmul.bf16.gmra.mxu0 %v1386
        %v1826 = vpop.f32.mrf.mxu0
        %v1827 = vadd.f32 0.0, %v1826
        %v1828 = vpop.f32.mrf.mxu0
        %v1829 = vadd.f32 0.0, %v1828
        %1830 = vmatmul.bf16.gmra.mxu0 %v1742
        %v1831 = vpop.f32.mrf.mxu0
        %v1832 = vadd.f32 0.0, %v1831
        %v1833 = vpop.f32.mrf.mxu0
        %v1834 = vadd.f32 0.0, %v1833
        %1835 = vdwg.mxu0
        %v1836 = vadd.f32 %v1702, %v1757
        %v1837 = vadd.f32 %v1703, %v1759
        %v1838 = vadd.f32 %v1704, %v1762
        %v1839 = vadd.f32 %v1705, %v1764
        %v1840 = vadd.f32 %v1706, %v1767
        %v1841 = vadd.f32 %v1707, %v1769
        %v1842 = vadd.f32 %v1708, %v1772
        %v1843 = vadd.f32 %v1709, %v1774
        %v1844 = vadd.f32 %v1710, %v1777
        %v1845 = vadd.f32 %v1711, %v1779
        %v1846 = vadd.f32 %v1712, %v1782
        %v1847 = vadd.f32 %v1713, %v1784
        %v1848 = vadd.f32 %v1714, %v1787
        %v1849 = vadd.f32 %v1715, %v1789
        %v1850 = vadd.f32 %v1716, %v1792
        %v1851 = vadd.f32 %v1717, %v1794
        %v1852 = vadd.f32 %v1718, %v1797
        %v1853 = vadd.f32 %v1719, %v1799
        %v1854 = vadd.f32 %v1720, %v1802
        %v1855 = vadd.f32 %v1721, %v1804
        %v1856 = vadd.f32 %v1722, %v1807
        %v1857 = vadd.f32 %v1723, %v1809
        %v1858 = vadd.f32 %v1724, %v1812
        %v1859 = vadd.f32 %v1725, %v1814
        %v1860 = vadd.f32 %v1726, %v1817
        %v1861 = vadd.f32 %v1727, %v1819
        %v1862 = vadd.f32 %v1728, %v1822
        %v1863 = vadd.f32 %v1729, %v1824
        %v1864 = vadd.f32 %v1730, %v1827
        %v1865 = vadd.f32 %v1731, %v1829
        %v1866 = vadd.f32 %v1732, %v1832
        %v1867 = vadd.f32 %v1733, %v1834
        %s1868 = scalar_lea.vmem [#allocation4], 8
        %v1869 = vld [vmem:[%s1868] sm:$0x3]
        %v1872 = vunpack.c.l.b16 %v996
        %v1873 = vunpack.c.l.b16 %v997
        %v1874 = vpack.c.b16 %v1873, %v1872
        %v1876 = vsel %vm582, %v1874, 0
        %v1879 = vsel %vm1167, %v1869, 0
        %1881 = vmatpush.bf16.msra.mxu0 0
        %1882 = vmatpush.bf16.msra.mxu0 0
        %1883 = vmatpush.bf16.msra.mxu0 0
        %1884 = vmatpush.bf16.msra.mxu0 0
        %1885 = vmatpush.bf16.msra.mxu0 0
        %1886 = vmatpush.bf16.msra.mxu0 0
        %1887 = vmatpush.bf16.msra.mxu0 0
        %1888 = vmatpush.bf16.msra.mxu0 %v1879
        %1889 = vmatmul.bf16.gmra.mxu0 %v1123
        %v1890 = vpop.f32.mrf.mxu0
        %v1891 = vadd.f32 0.0, %v1890
        %v1892 = vpop.f32.mrf.mxu0
        %v1893 = vadd.f32 0.0, %v1892
        %1894 = vmatmul.bf16.gmra.mxu0 %v1126
        %v1895 = vpop.f32.mrf.mxu0
        %v1896 = vadd.f32 0.0, %v1895
        %v1897 = vpop.f32.mrf.mxu0
        %v1898 = vadd.f32 0.0, %v1897
        %1899 = vmatmul.bf16.gmra.mxu0 %v1129
        %v1900 = vpop.f32.mrf.mxu0
        %v1901 = vadd.f32 0.0, %v1900
        %v1902 = vpop.f32.mrf.mxu0
        %v1903 = vadd.f32 0.0, %v1902
        %1904 = vmatmul.bf16.gmra.mxu0 %v1132
        %v1905 = vpop.f32.mrf.mxu0
        %v1906 = vadd.f32 0.0, %v1905
        %v1907 = vpop.f32.mrf.mxu0
        %v1908 = vadd.f32 0.0, %v1907
        %1909 = vmatmul.bf16.gmra.mxu0 %v1135
        %v1910 = vpop.f32.mrf.mxu0
        %v1911 = vadd.f32 0.0, %v1910
        %v1912 = vpop.f32.mrf.mxu0
        %v1913 = vadd.f32 0.0, %v1912
        %1914 = vmatmul.bf16.gmra.mxu0 %v1138
        %v1915 = vpop.f32.mrf.mxu0
        %v1916 = vadd.f32 0.0, %v1915
        %v1917 = vpop.f32.mrf.mxu0
        %v1918 = vadd.f32 0.0, %v1917
        %1919 = vmatmul.bf16.gmra.mxu0 %v1141
        %v1920 = vpop.f32.mrf.mxu0
        %v1921 = vadd.f32 0.0, %v1920
        %v1922 = vpop.f32.mrf.mxu0
        %v1923 = vadd.f32 0.0, %v1922
        %1924 = vmatmul.bf16.gmra.mxu0 %v1144
        %v1925 = vpop.f32.mrf.mxu0
        %v1926 = vadd.f32 0.0, %v1925
        %v1927 = vpop.f32.mrf.mxu0
        %v1928 = vadd.f32 0.0, %v1927
        %1929 = vmatmul.bf16.gmra.mxu0 %v1147
        %v1930 = vpop.f32.mrf.mxu0
        %v1931 = vadd.f32 0.0, %v1930
        %v1932 = vpop.f32.mrf.mxu0
        %v1933 = vadd.f32 0.0, %v1932
        %1934 = vmatmul.bf16.gmra.mxu0 %v1150
        %v1935 = vpop.f32.mrf.mxu0
        %v1936 = vadd.f32 0.0, %v1935
        %v1937 = vpop.f32.mrf.mxu0
        %v1938 = vadd.f32 0.0, %v1937
        %1939 = vmatmul.bf16.gmra.mxu0 %v1153
        %v1940 = vpop.f32.mrf.mxu0
        %v1941 = vadd.f32 0.0, %v1940
        %v1942 = vpop.f32.mrf.mxu0
        %v1943 = vadd.f32 0.0, %v1942
        %1944 = vmatmul.bf16.gmra.mxu0 %v1156
        %v1945 = vpop.f32.mrf.mxu0
        %v1946 = vadd.f32 0.0, %v1945
        %v1947 = vpop.f32.mrf.mxu0
        %v1948 = vadd.f32 0.0, %v1947
        %1949 = vmatmul.bf16.gmra.mxu0 %v1159
        %v1950 = vpop.f32.mrf.mxu0
        %v1951 = vadd.f32 0.0, %v1950
        %v1952 = vpop.f32.mrf.mxu0
        %v1953 = vadd.f32 0.0, %v1952
        %1954 = vmatmul.bf16.gmra.mxu0 %v1162
        %v1955 = vpop.f32.mrf.mxu0
        %v1956 = vadd.f32 0.0, %v1955
        %v1957 = vpop.f32.mrf.mxu0
        %v1958 = vadd.f32 0.0, %v1957
        %1959 = vmatmul.bf16.gmra.mxu0 %v1165
        %v1960 = vpop.f32.mrf.mxu0
        %v1961 = vadd.f32 0.0, %v1960
        %v1962 = vpop.f32.mrf.mxu0
        %v1963 = vadd.f32 0.0, %v1962
        %1964 = vmatmul.bf16.gmra.mxu0 %v1876
        %v1965 = vpop.f32.mrf.mxu0
        %v1966 = vadd.f32 0.0, %v1965
        %v1967 = vpop.f32.mrf.mxu0
        %v1968 = vadd.f32 0.0, %v1967
        %1969 = vdwg.mxu0
        %v1970 = vadd.f32 %v1836, %v1891
        %v1971 = vadd.f32 %v1837, %v1893
        %v1972 = vadd.f32 %v1838, %v1896
        %v1973 = vadd.f32 %v1839, %v1898
        %v1974 = vadd.f32 %v1840, %v1901
        %v1975 = vadd.f32 %v1841, %v1903
        %v1976 = vadd.f32 %v1842, %v1906
        %v1977 = vadd.f32 %v1843, %v1908
        %v1978 = vadd.f32 %v1844, %v1911
        %v1979 = vadd.f32 %v1845, %v1913
        %v1980 = vadd.f32 %v1846, %v1916
        %v1981 = vadd.f32 %v1847, %v1918
        %v1982 = vadd.f32 %v1848, %v1921
        %v1983 = vadd.f32 %v1849, %v1923
        %v1984 = vadd.f32 %v1850, %v1926
        %v1985 = vadd.f32 %v1851, %v1928
        %v1986 = vadd.f32 %v1852, %v1931
        %v1987 = vadd.f32 %v1853, %v1933
        %v1988 = vadd.f32 %v1854, %v1936
        %v1989 = vadd.f32 %v1855, %v1938
        %v1990 = vadd.f32 %v1856, %v1941
        %v1991 = vadd.f32 %v1857, %v1943
        %v1992 = vadd.f32 %v1858, %v1946
        %v1993 = vadd.f32 %v1859, %v1948
        %v1994 = vadd.f32 %v1860, %v1951
        %v1995 = vadd.f32 %v1861, %v1953
        %v1996 = vadd.f32 %v1862, %v1956
        %v1997 = vadd.f32 %v1863, %v1958
        %v1998 = vadd.f32 %v1864, %v1961
        %v1999 = vadd.f32 %v1865, %v1963
        %v2000 = vadd.f32 %v1866, %v1966
        %v2001 = vadd.f32 %v1867, %v1968
        %s2002 = scalar_lea.vmem [#allocation4], 10
        %v2003 = vld [vmem:[%s2002] sm:$0x3]
        %v2006 = vunpack.c.l.b16 %v1032
        %v2007 = vunpack.c.l.b16 %v1033
        %v2008 = vpack.c.b16 %v2007, %v2006
        %v2010 = vsel %vm582, %v2008, 0
        %v2013 = vsel %vm1167, %v2003, 0
        %2015 = vmatpush.bf16.msra.mxu0 0
        %2016 = vmatpush.bf16.msra.mxu0 0
        %2017 = vmatpush.bf16.msra.mxu0 0
        %2018 = vmatpush.bf16.msra.mxu0 0
        %2019 = vmatpush.bf16.msra.mxu0 0
        %2020 = vmatpush.bf16.msra.mxu0 0
        %2021 = vmatpush.bf16.msra.mxu0 0
        %2022 = vmatpush.bf16.msra.mxu0 %v2013
        %2023 = vmatmul.bf16.gmra.mxu0 %v1566
        %v2024 = vpop.f32.mrf.mxu0
        %v2025 = vadd.f32 0.0, %v2024
        %v2026 = vpop.f32.mrf.mxu0
        %v2027 = vadd.f32 0.0, %v2026
        %2028 = vmatmul.bf16.gmra.mxu0 %v1569
        %v2029 = vpop.f32.mrf.mxu0
        %v2030 = vadd.f32 0.0, %v2029
        %v2031 = vpop.f32.mrf.mxu0
        %v2032 = vadd.f32 0.0, %v2031
        %2033 = vmatmul.bf16.gmra.mxu0 %v1572
        %v2034 = vpop.f32.mrf.mxu0
        %v2035 = vadd.f32 0.0, %v2034
        %v2036 = vpop.f32.mrf.mxu0
        %v2037 = vadd.f32 0.0, %v2036
        %2038 = vmatmul.bf16.gmra.mxu0 %v1575
        %v2039 = vpop.f32.mrf.mxu0
        %v2040 = vadd.f32 0.0, %v2039
        %v2041 = vpop.f32.mrf.mxu0
        %v2042 = vadd.f32 0.0, %v2041
        %2043 = vmatmul.bf16.gmra.mxu0 %v1578
        %v2044 = vpop.f32.mrf.mxu0
        %v2045 = vadd.f32 0.0, %v2044
        %v2046 = vpop.f32.mrf.mxu0
        %v2047 = vadd.f32 0.0, %v2046
        %2048 = vmatmul.bf16.gmra.mxu0 %v1581
        %v2049 = vpop.f32.mrf.mxu0
        %v2050 = vadd.f32 0.0, %v2049
        %v2051 = vpop.f32.mrf.mxu0
        %v2052 = vadd.f32 0.0, %v2051
        %2053 = vmatmul.bf16.gmra.mxu0 %v1584
        %v2054 = vpop.f32.mrf.mxu0
        %v2055 = vadd.f32 0.0, %v2054
        %v2056 = vpop.f32.mrf.mxu0
        %v2057 = vadd.f32 0.0, %v2056
        %2058 = vmatmul.bf16.gmra.mxu0 %v1587
        %v2059 = vpop.f32.mrf.mxu0
        %v2060 = vadd.f32 0.0, %v2059
        %v2061 = vpop.f32.mrf.mxu0
        %v2062 = vadd.f32 0.0, %v2061
        %2063 = vmatmul.bf16.gmra.mxu0 %v1590
        %v2064 = vpop.f32.mrf.mxu0
        %v2065 = vadd.f32 0.0, %v2064
        %v2066 = vpop.f32.mrf.mxu0
        %v2067 = vadd.f32 0.0, %v2066
        %2068 = vmatmul.bf16.gmra.mxu0 %v1593
        %v2069 = vpop.f32.mrf.mxu0
        %v2070 = vadd.f32 0.0, %v2069
        %v2071 = vpop.f32.mrf.mxu0
        %v2072 = vadd.f32 0.0, %v2071
        %2073 = vmatmul.bf16.gmra.mxu0 %v1596
        %v2074 = vpop.f32.mrf.mxu0
        %v2075 = vadd.f32 0.0, %v2074
        %v2076 = vpop.f32.mrf.mxu0
        %v2077 = vadd.f32 0.0, %v2076
        %2078 = vmatmul.bf16.gmra.mxu0 %v1599
        %v2079 = vpop.f32.mrf.mxu0
        %v2080 = vadd.f32 0.0, %v2079
        %v2081 = vpop.f32.mrf.mxu0
        %v2082 = vadd.f32 0.0, %v2081
        %2083 = vmatmul.bf16.gmra.mxu0 %v1602
        %v2084 = vpop.f32.mrf.mxu0
        %v2085 = vadd.f32 0.0, %v2084
        %v2086 = vpop.f32.mrf.mxu0
        %v2087 = vadd.f32 0.0, %v2086
        %2088 = vmatmul.bf16.gmra.mxu0 %v1605
        %v2089 = vpop.f32.mrf.mxu0
        %v2090 = vadd.f32 0.0, %v2089
        %v2091 = vpop.f32.mrf.mxu0
        %v2092 = vadd.f32 0.0, %v2091
        %2093 = vmatmul.bf16.gmra.mxu0 %v1608
        %v2094 = vpop.f32.mrf.mxu0
        %v2095 = vadd.f32 0.0, %v2094
        %v2096 = vpop.f32.mrf.mxu0
        %v2097 = vadd.f32 0.0, %v2096
        %2098 = vmatmul.bf16.gmra.mxu0 %v2010
        %v2099 = vpop.f32.mrf.mxu0
        %v2100 = vadd.f32 0.0, %v2099
        %v2101 = vpop.f32.mrf.mxu0
        %v2102 = vadd.f32 0.0, %v2101
        %2103 = vdwg.mxu0
        %v2104 = vadd.f32 %v1970, %v2025
        %v2105 = vadd.f32 %v1971, %v2027
        %v2106 = vadd.f32 %v1972, %v2030
        %v2107 = vadd.f32 %v1973, %v2032
        %v2108 = vadd.f32 %v1974, %v2035
        %v2109 = vadd.f32 %v1975, %v2037
        %v2110 = vadd.f32 %v1976, %v2040
        %v2111 = vadd.f32 %v1977, %v2042
        %v2112 = vadd.f32 %v1978, %v2045
        %v2113 = vadd.f32 %v1979, %v2047
        %v2114 = vadd.f32 %v1980, %v2050
        %v2115 = vadd.f32 %v1981, %v2052
        %v2116 = vadd.f32 %v1982, %v2055
        %v2117 = vadd.f32 %v1983, %v2057
        %v2118 = vadd.f32 %v1984, %v2060
        %v2119 = vadd.f32 %v1985, %v2062
        %v2120 = vadd.f32 %v1986, %v2065
        %v2121 = vadd.f32 %v1987, %v2067
        %v2122 = vadd.f32 %v1988, %v2070
        %v2123 = vadd.f32 %v1989, %v2072
        %v2124 = vadd.f32 %v1990, %v2075
        %v2125 = vadd.f32 %v1991, %v2077
        %v2126 = vadd.f32 %v1992, %v2080
        %v2127 = vadd.f32 %v1993, %v2082
        %v2128 = vadd.f32 %v1994, %v2085
        %v2129 = vadd.f32 %v1995, %v2087
        %v2130 = vadd.f32 %v1996, %v2090
        %v2131 = vadd.f32 %v1997, %v2092
        %v2132 = vadd.f32 %v1998, %v2095
        %v2133 = vadd.f32 %v1999, %v2097
        %v2134 = vadd.f32 %v2000, %v2100
        %v2135 = vadd.f32 %v2001, %v2102
        %s2136 = scalar_lea.vmem [#allocation4], 12
        %v2137 = vld [vmem:[%s2136] sm:$0x3]
        %v2140 = vunpack.c.l.b16 %v962
        %v2141 = vunpack.c.l.b16 %v963
        %v2142 = vpack.c.b16 %v2141, %v2140
        %v2144 = vsel %vm582, %v2142, 0
        %v2147 = vsel %vm1167, %v2137, 0
        %2149 = vmatpush.bf16.msra.mxu0 0
        %2150 = vmatpush.bf16.msra.mxu0 0
        %2151 = vmatpush.bf16.msra.mxu0 0
        %2152 = vmatpush.bf16.msra.mxu0 0
        %2153 = vmatpush.bf16.msra.mxu0 0
        %2154 = vmatpush.bf16.msra.mxu0 0
        %2155 = vmatpush.bf16.msra.mxu0 0
        %2156 = vmatpush.bf16.msra.mxu0 %v2147
        %2157 = vmatmul.bf16.gmra.mxu0 %v1347
        %v2158 = vpop.f32.mrf.mxu0
        %v2159 = vadd.f32 0.0, %v2158
        %v2160 = vpop.f32.mrf.mxu0
        %v2161 = vadd.f32 0.0, %v2160
        %2162 = vmatmul.bf16.gmra.mxu0 %v1350
        %v2163 = vpop.f32.mrf.mxu0
        %v2164 = vadd.f32 0.0, %v2163
        %v2165 = vpop.f32.mrf.mxu0
        %v2166 = vadd.f32 0.0, %v2165
        %2167 = vmatmul.bf16.gmra.mxu0 %v1353
        %v2168 = vpop.f32.mrf.mxu0
        %v2169 = vadd.f32 0.0, %v2168
        %v2170 = vpop.f32.mrf.mxu0
        %v2171 = vadd.f32 0.0, %v2170
        %2172 = vmatmul.bf16.gmra.mxu0 %v1356
        %v2173 = vpop.f32.mrf.mxu0
        %v2174 = vadd.f32 0.0, %v2173
        %v2175 = vpop.f32.mrf.mxu0
        %v2176 = vadd.f32 0.0, %v2175
        %2177 = vmatmul.bf16.gmra.mxu0 %v1359
        %v2178 = vpop.f32.mrf.mxu0
        %v2179 = vadd.f32 0.0, %v2178
        %v2180 = vpop.f32.mrf.mxu0
        %v2181 = vadd.f32 0.0, %v2180
        %2182 = vmatmul.bf16.gmra.mxu0 %v1362
        %v2183 = vpop.f32.mrf.mxu0
        %v2184 = vadd.f32 0.0, %v2183
        %v2185 = vpop.f32.mrf.mxu0
        %v2186 = vadd.f32 0.0, %v2185
        %2187 = vmatmul.bf16.gmra.mxu0 %v1365
        %v2188 = vpop.f32.mrf.mxu0
        %v2189 = vadd.f32 0.0, %v2188
        %v2190 = vpop.f32.mrf.mxu0
        %v2191 = vadd.f32 0.0, %v2190
        %2192 = vmatmul.bf16.gmra.mxu0 %v1368
        %v2193 = vpop.f32.mrf.mxu0
        %v2194 = vadd.f32 0.0, %v2193
        %v2195 = vpop.f32.mrf.mxu0
        %v2196 = vadd.f32 0.0, %v2195
        %2197 = vmatmul.bf16.gmra.mxu0 %v1371
        %v2198 = vpop.f32.mrf.mxu0
        %v2199 = vadd.f32 0.0, %v2198
        %v2200 = vpop.f32.mrf.mxu0
        %v2201 = vadd.f32 0.0, %v2200
        %2202 = vmatmul.bf16.gmra.mxu0 %v1374
        %v2203 = vpop.f32.mrf.mxu0
        %v2204 = vadd.f32 0.0, %v2203
        %v2205 = vpop.f32.mrf.mxu0
        %v2206 = vadd.f32 0.0, %v2205
        %2207 = vmatmul.bf16.gmra.mxu0 %v1377
        %v2208 = vpop.f32.mrf.mxu0
        %v2209 = vadd.f32 0.0, %v2208
        %v2210 = vpop.f32.mrf.mxu0
        %v2211 = vadd.f32 0.0, %v2210
        %2212 = vmatmul.bf16.gmra.mxu0 %v1380
        %v2213 = vpop.f32.mrf.mxu0
        %v2214 = vadd.f32 0.0, %v2213
        %v2215 = vpop.f32.mrf.mxu0
        %v2216 = vadd.f32 0.0, %v2215
        %2217 = vmatmul.bf16.gmra.mxu0 %v1383
        %v2218 = vpop.f32.mrf.mxu0
        %v2219 = vadd.f32 0.0, %v2218
        %v2220 = vpop.f32.mrf.mxu0
        %v2221 = vadd.f32 0.0, %v2220
        %2222 = vmatmul.bf16.gmra.mxu0 %v1386
        %v2223 = vpop.f32.mrf.mxu0
        %v2224 = vadd.f32 0.0, %v2223
        %v2225 = vpop.f32.mrf.mxu0
        %v2226 = vadd.f32 0.0, %v2225
        %2227 = vmatmul.bf16.gmra.mxu0 %v1742
        %v2228 = vpop.f32.mrf.mxu0
        %v2229 = vadd.f32 0.0, %v2228
        %v2230 = vpop.f32.mrf.mxu0
        %v2231 = vadd.f32 0.0, %v2230
        %2232 = vmatmul.bf16.gmra.mxu0 %v2144
        %v2233 = vpop.f32.mrf.mxu0
        %v2234 = vadd.f32 0.0, %v2233
        %v2235 = vpop.f32.mrf.mxu0
        %v2236 = vadd.f32 0.0, %v2235
        %2237 = vdwg.mxu0
        %v2238 = vadd.f32 %v2104, %v2159
        %v2239 = vadd.f32 %v2105, %v2161
        %v2240 = vadd.f32 %v2106, %v2164
        %v2241 = vadd.f32 %v2107, %v2166
        %v2242 = vadd.f32 %v2108, %v2169
        %v2243 = vadd.f32 %v2109, %v2171
        %v2244 = vadd.f32 %v2110, %v2174
        %v2245 = vadd.f32 %v2111, %v2176
        %v2246 = vadd.f32 %v2112, %v2179
        %v2247 = vadd.f32 %v2113, %v2181
        %v2248 = vadd.f32 %v2114, %v2184
        %v2249 = vadd.f32 %v2115, %v2186
        %v2250 = vadd.f32 %v2116, %v2189
        %v2251 = vadd.f32 %v2117, %v2191
        %v2252 = vadd.f32 %v2118, %v2194
        %v2253 = vadd.f32 %v2119, %v2196
        %v2254 = vadd.f32 %v2120, %v2199
        %v2255 = vadd.f32 %v2121, %v2201
        %v2256 = vadd.f32 %v2122, %v2204
        %v2257 = vadd.f32 %v2123, %v2206
        %v2258 = vadd.f32 %v2124, %v2209
        %v2259 = vadd.f32 %v2125, %v2211
        %v2260 = vadd.f32 %v2126, %v2214
        %v2261 = vadd.f32 %v2127, %v2216
        %v2262 = vadd.f32 %v2128, %v2219
        %v2263 = vadd.f32 %v2129, %v2221
        %v2264 = vadd.f32 %v2130, %v2224
        %v2265 = vadd.f32 %v2131, %v2226
        %v2266 = vadd.f32 %v2132, %v2229
        %v2267 = vadd.f32 %v2133, %v2231
        %v2268 = vadd.f32 %v2134, %v2234
        %v2269 = vadd.f32 %v2135, %v2236
        %s2270 = scalar_lea.vmem [#allocation4], 14
        %v2271 = vld [vmem:[%s2270] sm:$0x3]
        %v2274 = vunpack.c.l.b16 %v998
        %v2275 = vunpack.c.l.b16 %v999
        %v2276 = vpack.c.b16 %v2275, %v2274
        %v2278 = vsel %vm582, %v2276, 0
        %v2281 = vsel %vm1167, %v2271, 0
        %2283 = vmatpush.bf16.msra.mxu0 0
        %2284 = vmatpush.bf16.msra.mxu0 0
        %2285 = vmatpush.bf16.msra.mxu0 0
        %2286 = vmatpush.bf16.msra.mxu0 0
        %2287 = vmatpush.bf16.msra.mxu0 0
        %2288 = vmatpush.bf16.msra.mxu0 0
        %2289 = vmatpush.bf16.msra.mxu0 0
        %2290 = vmatpush.bf16.msra.mxu0 %v2281
        %2291 = vmatmul.bf16.gmra.mxu0 %v1126
        %v2292 = vpop.f32.mrf.mxu0
        %v2293 = vadd.f32 0.0, %v2292
        %v2294 = vpop.f32.mrf.mxu0
        %v2295 = vadd.f32 0.0, %v2294
        %2296 = vmatmul.bf16.gmra.mxu0 %v1129
        %v2297 = vpop.f32.mrf.mxu0
        %v2298 = vadd.f32 0.0, %v2297
        %v2299 = vpop.f32.mrf.mxu0
        %v2300 = vadd.f32 0.0, %v2299
        %2301 = vmatmul.bf16.gmra.mxu0 %v1132
        %v2302 = vpop.f32.mrf.mxu0
        %v2303 = vadd.f32 0.0, %v2302
        %v2304 = vpop.f32.mrf.mxu0
        %v2305 = vadd.f32 0.0, %v2304
        %2306 = vmatmul.bf16.gmra.mxu0 %v1135
        %v2307 = vpop.f32.mrf.mxu0
        %v2308 = vadd.f32 0.0, %v2307
        %v2309 = vpop.f32.mrf.mxu0
        %v2310 = vadd.f32 0.0, %v2309
        %2311 = vmatmul.bf16.gmra.mxu0 %v1138
        %v2312 = vpop.f32.mrf.mxu0
        %v2313 = vadd.f32 0.0, %v2312
        %v2314 = vpop.f32.mrf.mxu0
        %v2315 = vadd.f32 0.0, %v2314
        %2316 = vmatmul.bf16.gmra.mxu0 %v1141
        %v2317 = vpop.f32.mrf.mxu0
        %v2318 = vadd.f32 0.0, %v2317
        %v2319 = vpop.f32.mrf.mxu0
        %v2320 = vadd.f32 0.0, %v2319
        %2321 = vmatmul.bf16.gmra.mxu0 %v1144
        %v2322 = vpop.f32.mrf.mxu0
        %v2323 = vadd.f32 0.0, %v2322
        %v2324 = vpop.f32.mrf.mxu0
        %v2325 = vadd.f32 0.0, %v2324
        %2326 = vmatmul.bf16.gmra.mxu0 %v1147
        %v2327 = vpop.f32.mrf.mxu0
        %v2328 = vadd.f32 0.0, %v2327
        %v2329 = vpop.f32.mrf.mxu0
        %v2330 = vadd.f32 0.0, %v2329
        %2331 = vmatmul.bf16.gmra.mxu0 %v1150
        %v2332 = vpop.f32.mrf.mxu0
        %v2333 = vadd.f32 0.0, %v2332
        %v2334 = vpop.f32.mrf.mxu0
        %v2335 = vadd.f32 0.0, %v2334
        %2336 = vmatmul.bf16.gmra.mxu0 %v1153
        %v2337 = vpop.f32.mrf.mxu0
        %v2338 = vadd.f32 0.0, %v2337
        %v2339 = vpop.f32.mrf.mxu0
        %v2340 = vadd.f32 0.0, %v2339
        %2341 = vmatmul.bf16.gmra.mxu0 %v1156
        %v2342 = vpop.f32.mrf.mxu0
        %v2343 = vadd.f32 0.0, %v2342
        %v2344 = vpop.f32.mrf.mxu0
        %v2345 = vadd.f32 0.0, %v2344
        %2346 = vmatmul.bf16.gmra.mxu0 %v1159
        %v2347 = vpop.f32.mrf.mxu0
        %v2348 = vadd.f32 0.0, %v2347
        %v2349 = vpop.f32.mrf.mxu0
        %v2350 = vadd.f32 0.0, %v2349
        %2351 = vmatmul.bf16.gmra.mxu0 %v1162
        %v2352 = vpop.f32.mrf.mxu0
        %v2353 = vadd.f32 0.0, %v2352
        %v2354 = vpop.f32.mrf.mxu0
        %v2355 = vadd.f32 0.0, %v2354
        %2356 = vmatmul.bf16.gmra.mxu0 %v1165
        %v2357 = vpop.f32.mrf.mxu0
        %v2358 = vadd.f32 0.0, %v2357
        %v2359 = vpop.f32.mrf.mxu0
        %v2360 = vadd.f32 0.0, %v2359
        %2361 = vmatmul.bf16.gmra.mxu0 %v1876
        %v2362 = vpop.f32.mrf.mxu0
        %v2363 = vadd.f32 0.0, %v2362
        %v2364 = vpop.f32.mrf.mxu0
        %v2365 = vadd.f32 0.0, %v2364
        %2366 = vmatmul.bf16.gmra.mxu0 %v2278
        %v2367 = vpop.f32.mrf.mxu0
        %v2368 = vadd.f32 0.0, %v2367
        %v2369 = vpop.f32.mrf.mxu0
        %v2370 = vadd.f32 0.0, %v2369
        %2371 = vdwg.mxu0
        %v2372 = vadd.f32 %v2238, %v2293
        %v2373 = vadd.f32 %v2239, %v2295
        %v2374 = vadd.f32 %v2240, %v2298
        %v2375 = vadd.f32 %v2241, %v2300
        %v2376 = vadd.f32 %v2242, %v2303
        %v2377 = vadd.f32 %v2243, %v2305
        %v2378 = vadd.f32 %v2244, %v2308
        %v2379 = vadd.f32 %v2245, %v2310
        %v2380 = vadd.f32 %v2246, %v2313
        %v2381 = vadd.f32 %v2247, %v2315
        %v2382 = vadd.f32 %v2248, %v2318
        %v2383 = vadd.f32 %v2249, %v2320
        %v2384 = vadd.f32 %v2250, %v2323
        %v2385 = vadd.f32 %v2251, %v2325
        %v2386 = vadd.f32 %v2252, %v2328
        %v2387 = vadd.f32 %v2253, %v2330
        %v2388 = vadd.f32 %v2254, %v2333
        %v2389 = vadd.f32 %v2255, %v2335
        %v2390 = vadd.f32 %v2256, %v2338
        %v2391 = vadd.f32 %v2257, %v2340
        %v2392 = vadd.f32 %v2258, %v2343
        %v2393 = vadd.f32 %v2259, %v2345
        %v2394 = vadd.f32 %v2260, %v2348
        %v2395 = vadd.f32 %v2261, %v2350
        %v2396 = vadd.f32 %v2262, %v2353
        %v2397 = vadd.f32 %v2263, %v2355
        %v2398 = vadd.f32 %v2264, %v2358
        %v2399 = vadd.f32 %v2265, %v2360
        %v2400 = vadd.f32 %v2266, %v2363
        %v2401 = vadd.f32 %v2267, %v2365
        %v2402 = vadd.f32 %v2268, %v2368
        %v2403 = vadd.f32 %v2269, %v2370
        %s2404 = scalar_lea.vmem [#allocation4], 16
        %v2405 = vld [vmem:[%s2404] sm:$0x3]
        %v2408 = vunpack.c.l.b16 %v1034
        %v2409 = vunpack.c.l.b16 %v1035
        %v2410 = vpack.c.b16 %v2409, %v2408
        %v2412 = vsel %vm582, %v2410, 0
        %v2415 = vsel %vm1167, %v2405, 0
        %2417 = vmatpush.bf16.msra.mxu0 0
        %2418 = vmatpush.bf16.msra.mxu0 0
        %2419 = vmatpush.bf16.msra.mxu0 0
        %2420 = vmatpush.bf16.msra.mxu0 0
        %2421 = vmatpush.bf16.msra.mxu0 0
        %2422 = vmatpush.bf16.msra.mxu0 0
        %2423 = vmatpush.bf16.msra.mxu0 0
        %2424 = vmatpush.bf16.msra.mxu0 %v2415
        %2425 = vmatmul.bf16.gmra.mxu0 %v1569
        %v2426 = vpop.f32.mrf.mxu0
        %v2427 = vadd.f32 0.0, %v2426
        %v2428 = vpop.f32.mrf.mxu0
        %v2429 = vadd.f32 0.0, %v2428
        %2430 = vmatmul.bf16.gmra.mxu0 %v1572
        %v2431 = vpop.f32.mrf.mxu0
        %v2432 = vadd.f32 0.0, %v2431
        %v2433 = vpop.f32.mrf.mxu0
        %v2434 = vadd.f32 0.0, %v2433
        %2435 = vmatmul.bf16.gmra.mxu0 %v1575
        %v2436 = vpop.f32.mrf.mxu0
        %v2437 = vadd.f32 0.0, %v2436
        %v2438 = vpop.f32.mrf.mxu0
        %v2439 = vadd.f32 0.0, %v2438
        %2440 = vmatmul.bf16.gmra.mxu0 %v1578
        %v2441 = vpop.f32.mrf.mxu0
        %v2442 = vadd.f32 0.0, %v2441
        %v2443 = vpop.f32.mrf.mxu0
        %v2444 = vadd.f32 0.0, %v2443
        %2445 = vmatmul.bf16.gmra.mxu0 %v1581
        %v2446 = vpop.f32.mrf.mxu0
        %v2447 = vadd.f32 0.0, %v2446
        %v2448 = vpop.f32.mrf.mxu0
        %v2449 = vadd.f32 0.0, %v2448
        %2450 = vmatmul.bf16.gmra.mxu0 %v1584
        %v2451 = vpop.f32.mrf.mxu0
        %v2452 = vadd.f32 0.0, %v2451
        %v2453 = vpop.f32.mrf.mxu0
        %v2454 = vadd.f32 0.0, %v2453
        %2455 = vmatmul.bf16.gmra.mxu0 %v1587
        %v2456 = vpop.f32.mrf.mxu0
        %v2457 = vadd.f32 0.0, %v2456
        %v2458 = vpop.f32.mrf.mxu0
        %v2459 = vadd.f32 0.0, %v2458
        %2460 = vmatmul.bf16.gmra.mxu0 %v1590
        %v2461 = vpop.f32.mrf.mxu0
        %v2462 = vadd.f32 0.0, %v2461
        %v2463 = vpop.f32.mrf.mxu0
        %v2464 = vadd.f32 0.0, %v2463
        %2465 = vmatmul.bf16.gmra.mxu0 %v1593
        %v2466 = vpop.f32.mrf.mxu0
        %v2467 = vadd.f32 0.0, %v2466
        %v2468 = vpop.f32.mrf.mxu0
        %v2469 = vadd.f32 0.0, %v2468
        %2470 = vmatmul.bf16.gmra.mxu0 %v1596
        %v2471 = vpop.f32.mrf.mxu0
        %v2472 = vadd.f32 0.0, %v2471
        %v2473 = vpop.f32.mrf.mxu0
        %v2474 = vadd.f32 0.0, %v2473
        %2475 = vmatmul.bf16.gmra.mxu0 %v1599
        %v2476 = vpop.f32.mrf.mxu0
        %v2477 = vadd.f32 0.0, %v2476
        %v2478 = vpop.f32.mrf.mxu0
        %v2479 = vadd.f32 0.0, %v2478
        %2480 = vmatmul.bf16.gmra.mxu0 %v1602
        %v2481 = vpop.f32.mrf.mxu0
        %v2482 = vadd.f32 0.0, %v2481
        %v2483 = vpop.f32.mrf.mxu0
        %v2484 = vadd.f32 0.0, %v2483
        %2485 = vmatmul.bf16.gmra.mxu0 %v1605
        %v2486 = vpop.f32.mrf.mxu0
        %v2487 = vadd.f32 0.0, %v2486
        %v2488 = vpop.f32.mrf.mxu0
        %v2489 = vadd.f32 0.0, %v2488
        %2490 = vmatmul.bf16.gmra.mxu0 %v1608
        %v2491 = vpop.f32.mrf.mxu0
        %v2492 = vadd.f32 0.0, %v2491
        %v2493 = vpop.f32.mrf.mxu0
        %v2494 = vadd.f32 0.0, %v2493
        %2495 = vmatmul.bf16.gmra.mxu0 %v2010
        %v2496 = vpop.f32.mrf.mxu0
        %v2497 = vadd.f32 0.0, %v2496
        %v2498 = vpop.f32.mrf.mxu0
        %v2499 = vadd.f32 0.0, %v2498
        %2500 = vmatmul.bf16.gmra.mxu0 %v2412
        %v2501 = vpop.f32.mrf.mxu0
        %v2502 = vadd.f32 0.0, %v2501
        %v2503 = vpop.f32.mrf.mxu0
        %v2504 = vadd.f32 0.0, %v2503
        %2505 = vdwg.mxu0
        %v2506 = vadd.f32 %v2372, %v2427
        %v2507 = vadd.f32 %v2373, %v2429
        %v2508 = vadd.f32 %v2374, %v2432
        %v2509 = vadd.f32 %v2375, %v2434
        %v2510 = vadd.f32 %v2376, %v2437
        %v2511 = vadd.f32 %v2377, %v2439
        %v2512 = vadd.f32 %v2378, %v2442
        %v2513 = vadd.f32 %v2379, %v2444
        %v2514 = vadd.f32 %v2380, %v2447
        %v2515 = vadd.f32 %v2381, %v2449
        %v2516 = vadd.f32 %v2382, %v2452
        %v2517 = vadd.f32 %v2383, %v2454
        %v2518 = vadd.f32 %v2384, %v2457
        %v2519 = vadd.f32 %v2385, %v2459
        %v2520 = vadd.f32 %v2386, %v2462
        %v2521 = vadd.f32 %v2387, %v2464
        %v2522 = vadd.f32 %v2388, %v2467
        %v2523 = vadd.f32 %v2389, %v2469
        %v2524 = vadd.f32 %v2390, %v2472
        %v2525 = vadd.f32 %v2391, %v2474
        %v2526 = vadd.f32 %v2392, %v2477
        %v2527 = vadd.f32 %v2393, %v2479
        %v2528 = vadd.f32 %v2394, %v2482
        %v2529 = vadd.f32 %v2395, %v2484
        %v2530 = vadd.f32 %v2396, %v2487
        %v2531 = vadd.f32 %v2397, %v2489
        %v2532 = vadd.f32 %v2398, %v2492
        %v2533 = vadd.f32 %v2399, %v2494
        %v2534 = vadd.f32 %v2400, %v2497
        %v2535 = vadd.f32 %v2401, %v2499
        %v2536 = vadd.f32 %v2402, %v2502
        %v2537 = vadd.f32 %v2403, %v2504
        %v2538 = vld [vmem:[#allocation7] sm:$0x1]
        %v2540 = vperm.slane %v2538, 0
        %v2542 = vadd.f32 %v2506, %v2540
        %v2543 = vadd.f32 %v2507, %v2540
        %v2544 = vadd.f32 %v2508, %v2540
        %v2545 = vadd.f32 %v2509, %v2540
        %v2546 = vadd.f32 %v2510, %v2540
        %v2547 = vadd.f32 %v2511, %v2540
        %v2548 = vadd.f32 %v2512, %v2540
        %v2549 = vadd.f32 %v2513, %v2540
        %v2550 = vadd.f32 %v2514, %v2540
        %v2551 = vadd.f32 %v2515, %v2540
        %v2552 = vadd.f32 %v2516, %v2540
        %v2553 = vadd.f32 %v2517, %v2540
        %v2554 = vadd.f32 %v2518, %v2540
        %v2555 = vadd.f32 %v2519, %v2540
        %v2556 = vadd.f32 %v2520, %v2540
        %v2557 = vadd.f32 %v2521, %v2540
        %v2558 = vadd.f32 %v2522, %v2540
        %v2559 = vadd.f32 %v2523, %v2540
        %v2560 = vadd.f32 %v2524, %v2540
        %v2561 = vadd.f32 %v2525, %v2540
        %v2562 = vadd.f32 %v2526, %v2540
        %v2563 = vadd.f32 %v2527, %v2540
        %v2564 = vadd.f32 %v2528, %v2540
        %v2565 = vadd.f32 %v2529, %v2540
        %v2566 = vadd.f32 %v2530, %v2540
        %v2567 = vadd.f32 %v2531, %v2540
        %v2568 = vadd.f32 %v2532, %v2540
        %v2569 = vadd.f32 %v2533, %v2540
        %v2570 = vadd.f32 %v2534, %v2540
        %v2571 = vadd.f32 %v2535, %v2540
        %v2572 = vadd.f32 %v2536, %v2540
        %v2573 = vadd.f32 %v2537, %v2540
        %v2574 = vmax.f32 %v2542, 0.0
        %v2575 = vmax.f32 %v2543, 0.0
        %v2576 = vmax.f32 %v2544, 0.0
        %v2577 = vmax.f32 %v2545, 0.0
        %v2578 = vmax.f32 %v2546, 0.0
        %v2579 = vmax.f32 %v2547, 0.0
        %v2580 = vmax.f32 %v2548, 0.0
        %v2581 = vmax.f32 %v2549, 0.0
        %v2582 = vmax.f32 %v2550, 0.0
        %v2583 = vmax.f32 %v2551, 0.0
        %v2584 = vmax.f32 %v2552, 0.0
        %v2585 = vmax.f32 %v2553, 0.0
        %v2586 = vmax.f32 %v2554, 0.0
        %v2587 = vmax.f32 %v2555, 0.0
        %v2588 = vmax.f32 %v2556, 0.0
        %v2589 = vmax.f32 %v2557, 0.0
        %v2590 = vmax.f32 %v2558, 0.0
        %v2591 = vmax.f32 %v2559, 0.0
        %v2592 = vmax.f32 %v2560, 0.0
        %v2593 = vmax.f32 %v2561, 0.0
        %v2594 = vmax.f32 %v2562, 0.0
        %v2595 = vmax.f32 %v2563, 0.0
        %v2596 = vmax.f32 %v2564, 0.0
        %v2597 = vmax.f32 %v2565, 0.0
        %v2598 = vmax.f32 %v2566, 0.0
        %v2599 = vmax.f32 %v2567, 0.0
        %v2600 = vmax.f32 %v2568, 0.0
        %v2601 = vmax.f32 %v2569, 0.0
        %v2602 = vmax.f32 %v2570, 0.0
        %v2603 = vmax.f32 %v2571, 0.0
        %v2604 = vmax.f32 %v2572, 0.0
        %v2605 = vmax.f32 %v2573, 0.0
        %2606 = vst.msk [vmem:[%s563] sm:$0xff] %vm588, %v2574
        %2607 = vst.msk [vmem:[%s563 + $0x8] sm:$0xff] %vm588, %v2575
        %2608 = vst.msk [vmem:[%s563 + $0x10] sm:$0xff] %vm588, %v2576
        %2609 = vst.msk [vmem:[%s563 + $0x18] sm:$0xff] %vm588, %v2577
        %2610 = vst.msk [vmem:[%s563 + $0x20] sm:$0xff] %vm588, %v2578
        %2611 = vst.msk [vmem:[%s563 + $0x28] sm:$0xff] %vm588, %v2579
        %2612 = vst.msk [vmem:[%s563 + $0x30] sm:$0xff] %vm588, %v2580
        %2613 = vst.msk [vmem:[%s563 + $0x38] sm:$0xff] %vm588, %v2581
        %2614 = vst.msk [vmem:[%s563 + $0x40] sm:$0xff] %vm588, %v2582
        %2615 = vst.msk [vmem:[%s563 + $0x48] sm:$0xff] %vm588, %v2583
        %2616 = vst.msk [vmem:[%s563 + $0x50] sm:$0xff] %vm588, %v2584
        %2617 = vst.msk [vmem:[%s563 + $0x58] sm:$0xff] %vm588, %v2585
        %2618 = vst.msk [vmem:[%s563 + $0x60] sm:$0xff] %vm588, %v2586
        %2619 = vst.msk [vmem:[%s563 + $0x68] sm:$0xff] %vm588, %v2587
        %2620 = vst.msk [vmem:[%s563 + $0x70] sm:$0xff] %vm588, %v2588
        %2621 = vst.msk [vmem:[%s563 + $0x78] sm:$0xff] %vm588, %v2589
        %2622 = vst.msk [vmem:[%s563 + $0x80] sm:$0xff] %vm588, %v2590
        %2623 = vst.msk [vmem:[%s563 + $0x88] sm:$0xff] %vm588, %v2591
        %2624 = vst.msk [vmem:[%s563 + $0x90] sm:$0xff] %vm588, %v2592
        %2625 = vst.msk [vmem:[%s563 + $0x98] sm:$0xff] %vm588, %v2593
        %2626 = vst.msk [vmem:[%s563 + $0xa0] sm:$0xff] %vm588, %v2594
        %2627 = vst.msk [vmem:[%s563 + $0xa8] sm:$0xff] %vm588, %v2595
        %2628 = vst.msk [vmem:[%s563 + $0xb0] sm:$0xff] %vm588, %v2596
        %2629 = vst.msk [vmem:[%s563 + $0xb8] sm:$0xff] %vm588, %v2597
        %2630 = vst.msk [vmem:[%s563 + $0xc0] sm:$0xff] %vm588, %v2598
        %2631 = vst.msk [vmem:[%s563 + $0xc8] sm:$0xff] %vm588, %v2599
        %2632 = vst.msk [vmem:[%s563 + $0xd0] sm:$0xff] %vm588, %v2600
        %2633 = vst.msk [vmem:[%s563 + $0xd8] sm:$0xff] %vm588, %v2601
        %2634 = vst.msk [vmem:[%s563 + $0xe0] sm:$0xff] %vm588, %v2602
        %2635 = vst.msk [vmem:[%s563 + $0xe8] sm:$0xff] %vm588, %v2603
        %2636 = vst.msk [vmem:[%s563 + $0xf0] sm:$0xff] %vm588, %v2604
        %2637 = vst.msk [vmem:[%s563 + $0xf8] sm:$0xff] %vm588, %v2605
        %s2638 = scalar_lea.vmem [#allocation3], 16
        %2639 = vst.msk [vmem:[%s2638] sm:$0xff] %vm588, %v2574
        %2640 = vst.msk [vmem:[%s2638 + $0x8] sm:$0xff] %vm588, %v2575
        %2641 = vst.msk [vmem:[%s2638 + $0x10] sm:$0xff] %vm588, %v2576
        %2642 = vst.msk [vmem:[%s2638 + $0x18] sm:$0xff] %vm588, %v2577
        %2643 = vst.msk [vmem:[%s2638 + $0x20] sm:$0xff] %vm588, %v2578
        %2644 = vst.msk [vmem:[%s2638 + $0x28] sm:$0xff] %vm588, %v2579
        %2645 = vst.msk [vmem:[%s2638 + $0x30] sm:$0xff] %vm588, %v2580
        %2646 = vst.msk [vmem:[%s2638 + $0x38] sm:$0xff] %vm588, %v2581
        %2647 = vst.msk [vmem:[%s2638 + $0x40] sm:$0xff] %vm588, %v2582
        %2648 = vst.msk [vmem:[%s2638 + $0x48] sm:$0xff] %vm588, %v2583
        %2649 = vst.msk [vmem:[%s2638 + $0x50] sm:$0xff] %vm588, %v2584
        %2650 = vst.msk [vmem:[%s2638 + $0x58] sm:$0xff] %vm588, %v2585
        %2651 = vst.msk [vmem:[%s2638 + $0x60] sm:$0xff] %vm588, %v2586
        %2652 = vst.msk [vmem:[%s2638 + $0x68] sm:$0xff] %vm588, %v2587
        %2653 = vst.msk [vmem:[%s2638 + $0x70] sm:$0xff] %vm588, %v2588
        %2654 = vst.msk [vmem:[%s2638 + $0x78] sm:$0xff] %vm588, %v2589
        %2655 = vst.msk [vmem:[%s2638 + $0x80] sm:$0xff] %vm588, %v2590
        %2656 = vst.msk [vmem:[%s2638 + $0x88] sm:$0xff] %vm588, %v2591
        %2657 = vst.msk [vmem:[%s2638 + $0x90] sm:$0xff] %vm588, %v2592
        %2658 = vst.msk [vmem:[%s2638 + $0x98] sm:$0xff] %vm588, %v2593
        %2659 = vst.msk [vmem:[%s2638 + $0xa0] sm:$0xff] %vm588, %v2594
        %2660 = vst.msk [vmem:[%s2638 + $0xa8] sm:$0xff] %vm588, %v2595
        %2661 = vst.msk [vmem:[%s2638 + $0xb0] sm:$0xff] %vm588, %v2596
        %2662 = vst.msk [vmem:[%s2638 + $0xb8] sm:$0xff] %vm588, %v2597
        %2663 = vst.msk [vmem:[%s2638 + $0xc0] sm:$0xff] %vm588, %v2598
        %2664 = vst.msk [vmem:[%s2638 + $0xc8] sm:$0xff] %vm588, %v2599
        %2665 = vst.msk [vmem:[%s2638 + $0xd0] sm:$0xff] %vm588, %v2600
        %2666 = vst.msk [vmem:[%s2638 + $0xd8] sm:$0xff] %vm588, %v2601
        %2667 = vst.msk [vmem:[%s2638 + $0xe0] sm:$0xff] %vm588, %v2602
        %2668 = vst.msk [vmem:[%s2638 + $0xe8] sm:$0xff] %vm588, %v2603
        %2669 = vst.msk [vmem:[%s2638 + $0xf0] sm:$0xff] %vm588, %v2604
        %2670 = vst.msk [vmem:[%s2638 + $0xf8] sm:$0xff] %vm588, %v2605
        %v2671 = vld [vmem:[#allocation3] sm:$0xff]
        %v2672 = vld [vmem:[#allocation3 + $0x8] sm:$0xff]
        %v2673 = vld [vmem:[#allocation3 + $0x10] sm:$0xff]
        %v2674 = vld [vmem:[#allocation3 + $0x18] sm:$0xff]
        %v2675 = vld [vmem:[#allocation3 + $0x20] sm:$0xff]
        %v2676 = vld [vmem:[#allocation3 + $0x28] sm:$0xff]
        %v2677 = vld [vmem:[#allocation3 + $0x30] sm:$0xff]
        %v2678 = vld [vmem:[#allocation3 + $0x38] sm:$0xff]
        %v2679 = vld [vmem:[#allocation3 + $0x40] sm:$0xff]
        %v2680 = vld [vmem:[#allocation3 + $0x48] sm:$0xff]
        %v2681 = vld [vmem:[#allocation3 + $0x50] sm:$0xff]
        %v2682 = vld [vmem:[#allocation3 + $0x58] sm:$0xff]
        %v2683 = vld [vmem:[#allocation3 + $0x60] sm:$0xff]
        %v2684 = vld [vmem:[#allocation3 + $0x68] sm:$0xff]
        %v2685 = vld [vmem:[#allocation3 + $0x70] sm:$0xff]
        %v2686 = vld [vmem:[#allocation3 + $0x78] sm:$0xff]
        %v2687 = vld [vmem:[#allocation3 + $0x80] sm:$0xff]
        %v2688 = vld [vmem:[#allocation3 + $0x88] sm:$0xff]
        %v2689 = vld [vmem:[#allocation3 + $0x90] sm:$0xff]
        %v2690 = vld [vmem:[#allocation3 + $0x98] sm:$0xff]
        %v2691 = vld [vmem:[#allocation3 + $0xa0] sm:$0xff]
        %v2692 = vld [vmem:[#allocation3 + $0xa8] sm:$0xff]
        %v2693 = vld [vmem:[#allocation3 + $0xb0] sm:$0xff]
        %v2694 = vld [vmem:[#allocation3 + $0xb8] sm:$0xff]
        %v2695 = vld [vmem:[#allocation3 + $0xc0] sm:$0xff]
        %v2696 = vld [vmem:[#allocation3 + $0xc8] sm:$0xff]
        %v2697 = vld [vmem:[#allocation3 + $0xd0] sm:$0xff]
        %v2698 = vld [vmem:[#allocation3 + $0xd8] sm:$0xff]
        %v2699 = vld [vmem:[#allocation3 + $0xe0] sm:$0xff]
        %v2700 = vld [vmem:[#allocation3 + $0xe8] sm:$0xff]
        %v2701 = vld [vmem:[#allocation3 + $0xf0] sm:$0xff]
        %v2702 = vld [vmem:[#allocation3 + $0xf8] sm:$0xff]
        %v2703 = vld [vmem:[#allocation3 + $0x100] sm:$0xff]
        %v2704 = vld [vmem:[#allocation3 + $0x108] sm:$0xff]
        %v2705 = vld [vmem:[#allocation3 + $0x110] sm:$0xff]
        %v2706 = vld [vmem:[#allocation3 + $0x118] sm:$0xff]
        %v2707 = vrot.slane %v2671, 7
        %v2708 = vrot.slane %v2673, 7
        %v2709 = vrot.slane %v2675, 7
        %v2710 = vrot.slane %v2677, 7
        %v2711 = vrot.slane %v2679, 7
        %v2712 = vrot.slane %v2681, 7
        %v2713 = vrot.slane %v2683, 7
        %v2714 = vrot.slane %v2685, 7
        %v2715 = vrot.slane %v2687, 7
        %v2716 = vrot.slane %v2689, 7
        %v2717 = vrot.slane %v2691, 7
        %v2718 = vrot.slane %v2693, 7
        %v2719 = vrot.slane %v2695, 7
        %v2720 = vrot.slane %v2697, 7
        %v2721 = vrot.slane %v2699, 7
        %v2722 = vrot.slane %v2701, 7
        %v2723 = vrot.slane %v2703, 7
        %v2724 = vrot.slane %v2705, 7
        %v2725 = vrot.slane %v2672, 7
        %v2726 = vrot.slane %v2674, 7
        %v2727 = vrot.slane %v2676, 7
        %v2728 = vrot.slane %v2678, 7
        %v2729 = vrot.slane %v2680, 7
        %v2730 = vrot.slane %v2682, 7
        %v2731 = vrot.slane %v2684, 7
        %v2732 = vrot.slane %v2686, 7
        %v2733 = vrot.slane %v2688, 7
        %v2734 = vrot.slane %v2690, 7
        %v2735 = vrot.slane %v2692, 7
        %v2736 = vrot.slane %v2694, 7
        %v2737 = vrot.slane %v2696, 7
        %v2738 = vrot.slane %v2698, 7
        %v2739 = vrot.slane %v2700, 7
        %v2740 = vrot.slane %v2702, 7
        %v2741 = vrot.slane %v2704, 7
        %v2742 = vrot.slane %v2706, 7
        %v2743 = vsel %vm736, %v2707, %v2725
        %v2744 = vsel %vm736, %v2708, %v2726
        %v2745 = vsel %vm736, %v2709, %v2727
        %v2746 = vsel %vm736, %v2710, %v2728
        %v2747 = vsel %vm736, %v2711, %v2729
        %v2748 = vsel %vm736, %v2712, %v2730
        %v2749 = vsel %vm736, %v2713, %v2731
        %v2750 = vsel %vm736, %v2714, %v2732
        %v2751 = vsel %vm736, %v2715, %v2733
        %v2752 = vsel %vm736, %v2716, %v2734
        %v2753 = vsel %vm736, %v2717, %v2735
        %v2754 = vsel %vm736, %v2718, %v2736
        %v2755 = vsel %vm736, %v2719, %v2737
        %v2756 = vsel %vm736, %v2720, %v2738
        %v2757 = vsel %vm736, %v2721, %v2739
        %v2758 = vsel %vm736, %v2722, %v2740
        %v2759 = vsel %vm736, %v2723, %v2741
        %v2760 = vsel %vm736, %v2724, %v2742
        %v2761 = vsel %vm736, %v2725, %v2707
        %v2762 = vsel %vm736, %v2726, %v2708
        %v2763 = vsel %vm736, %v2727, %v2709
        %v2764 = vsel %vm736, %v2728, %v2710
        %v2765 = vsel %vm736, %v2729, %v2711
        %v2766 = vsel %vm736, %v2730, %v2712
        %v2767 = vsel %vm736, %v2731, %v2713
        %v2768 = vsel %vm736, %v2732, %v2714
        %v2769 = vsel %vm736, %v2733, %v2715
        %v2770 = vsel %vm736, %v2734, %v2716
        %v2771 = vsel %vm736, %v2735, %v2717
        %v2772 = vsel %vm736, %v2736, %v2718
        %v2773 = vsel %vm736, %v2737, %v2719
        %v2774 = vsel %vm736, %v2738, %v2720
        %v2775 = vsel %vm736, %v2739, %v2721
        %v2776 = vsel %vm736, %v2740, %v2722
        %v2777 = vsel %vm736, %v2741, %v2723
        %v2778 = vsel %vm736, %v2742, %v2724
        %v2779 = vsel %vm775, 0.0, %v2761
        %v2780 = vsel %vm776, 0.0, %v2743
        %v2781 = vsel %vm775, 0.0, %v2762
        %v2782 = vsel %vm776, 0.0, %v2744
        %v2783 = vsel %vm775, 0.0, %v2763
        %v2784 = vsel %vm776, 0.0, %v2745
        %v2785 = vsel %vm775, 0.0, %v2764
        %v2786 = vsel %vm776, 0.0, %v2746
        %v2787 = vsel %vm775, 0.0, %v2765
        %v2788 = vsel %vm776, 0.0, %v2747
        %v2789 = vsel %vm775, 0.0, %v2766
        %v2790 = vsel %vm776, 0.0, %v2748
        %v2791 = vsel %vm775, 0.0, %v2767
        %v2792 = vsel %vm776, 0.0, %v2749
        %v2793 = vsel %vm775, 0.0, %v2768
        %v2794 = vsel %vm776, 0.0, %v2750
        %v2795 = vsel %vm775, 0.0, %v2769
        %v2796 = vsel %vm776, 0.0, %v2751
        %v2797 = vsel %vm775, 0.0, %v2770
        %v2798 = vsel %vm776, 0.0, %v2752
        %v2799 = vsel %vm775, 0.0, %v2771
        %v2800 = vsel %vm776, 0.0, %v2753
        %v2801 = vsel %vm775, 0.0, %v2772
        %v2802 = vsel %vm776, 0.0, %v2754
        %v2803 = vsel %vm775, 0.0, %v2773
        %v2804 = vsel %vm776, 0.0, %v2755
        %v2805 = vsel %vm775, 0.0, %v2774
        %v2806 = vsel %vm776, 0.0, %v2756
        %v2807 = vsel %vm775, 0.0, %v2775
        %v2808 = vsel %vm776, 0.0, %v2757
        %v2809 = vsel %vm775, 0.0, %v2776
        %v2810 = vsel %vm776, 0.0, %v2758
        %v2811 = vsel %vm775, 0.0, %v2777
        %v2812 = vsel %vm776, 0.0, %v2759
        %v2813 = vsel %vm775, 0.0, %v2778
        %v2814 = vsel %vm776, 0.0, %v2760
        %v2815 = vrot.slane %v2671, 1
        %v2816 = vrot.slane %v2673, 1
        %v2817 = vrot.slane %v2675, 1
        %v2818 = vrot.slane %v2677, 1
        %v2819 = vrot.slane %v2679, 1
        %v2820 = vrot.slane %v2681, 1
        %v2821 = vrot.slane %v2683, 1
        %v2822 = vrot.slane %v2685, 1
        %v2823 = vrot.slane %v2687, 1
        %v2824 = vrot.slane %v2689, 1
        %v2825 = vrot.slane %v2691, 1
        %v2826 = vrot.slane %v2693, 1
        %v2827 = vrot.slane %v2695, 1
        %v2828 = vrot.slane %v2697, 1
        %v2829 = vrot.slane %v2699, 1
        %v2830 = vrot.slane %v2701, 1
        %v2831 = vrot.slane %v2703, 1
        %v2832 = vrot.slane %v2705, 1
        %v2833 = vrot.slane %v2672, 1
        %v2834 = vrot.slane %v2674, 1
        %v2835 = vrot.slane %v2676, 1
        %v2836 = vrot.slane %v2678, 1
        %v2837 = vrot.slane %v2680, 1
        %v2838 = vrot.slane %v2682, 1
        %v2839 = vrot.slane %v2684, 1
        %v2840 = vrot.slane %v2686, 1
        %v2841 = vrot.slane %v2688, 1
        %v2842 = vrot.slane %v2690, 1
        %v2843 = vrot.slane %v2692, 1
        %v2844 = vrot.slane %v2694, 1
        %v2845 = vrot.slane %v2696, 1
        %v2846 = vrot.slane %v2698, 1
        %v2847 = vrot.slane %v2700, 1
        %v2848 = vrot.slane %v2702, 1
        %v2849 = vrot.slane %v2704, 1
        %v2850 = vrot.slane %v2706, 1
        %v2851 = vsel %vm851, %v2815, %v2833
        %v2852 = vsel %vm851, %v2816, %v2834
        %v2853 = vsel %vm851, %v2817, %v2835
        %v2854 = vsel %vm851, %v2818, %v2836
        %v2855 = vsel %vm851, %v2819, %v2837
        %v2856 = vsel %vm851, %v2820, %v2838
        %v2857 = vsel %vm851, %v2821, %v2839
        %v2858 = vsel %vm851, %v2822, %v2840
        %v2859 = vsel %vm851, %v2823, %v2841
        %v2860 = vsel %vm851, %v2824, %v2842
        %v2861 = vsel %vm851, %v2825, %v2843
        %v2862 = vsel %vm851, %v2826, %v2844
        %v2863 = vsel %vm851, %v2827, %v2845
        %v2864 = vsel %vm851, %v2828, %v2846
        %v2865 = vsel %vm851, %v2829, %v2847
        %v2866 = vsel %vm851, %v2830, %v2848
        %v2867 = vsel %vm851, %v2831, %v2849
        %v2868 = vsel %vm851, %v2832, %v2850
        %v2869 = vsel %vm851, %v2833, %v2815
        %v2870 = vsel %vm851, %v2834, %v2816
        %v2871 = vsel %vm851, %v2835, %v2817
        %v2872 = vsel %vm851, %v2836, %v2818
        %v2873 = vsel %vm851, %v2837, %v2819
        %v2874 = vsel %vm851, %v2838, %v2820
        %v2875 = vsel %vm851, %v2839, %v2821
        %v2876 = vsel %vm851, %v2840, %v2822
        %v2877 = vsel %vm851, %v2841, %v2823
        %v2878 = vsel %vm851, %v2842, %v2824
        %v2879 = vsel %vm851, %v2843, %v2825
        %v2880 = vsel %vm851, %v2844, %v2826
        %v2881 = vsel %vm851, %v2845, %v2827
        %v2882 = vsel %vm851, %v2846, %v2828
        %v2883 = vsel %vm851, %v2847, %v2829
        %v2884 = vsel %vm851, %v2848, %v2830
        %v2885 = vsel %vm851, %v2849, %v2831
        %v2886 = vsel %vm851, %v2850, %v2832
        %v2887 = vsel %vm890, 0.0, %v2851
        %v2888 = vsel %vm891, 0.0, %v2869
        %v2889 = vsel %vm890, 0.0, %v2852
        %v2890 = vsel %vm891, 0.0, %v2870
        %v2891 = vsel %vm890, 0.0, %v2853
        %v2892 = vsel %vm891, 0.0, %v2871
        %v2893 = vsel %vm890, 0.0, %v2854
        %v2894 = vsel %vm891, 0.0, %v2872
        %v2895 = vsel %vm890, 0.0, %v2855
        %v2896 = vsel %vm891, 0.0, %v2873
        %v2897 = vsel %vm890, 0.0, %v2856
        %v2898 = vsel %vm891, 0.0, %v2874
        %v2899 = vsel %vm890, 0.0, %v2857
        %v2900 = vsel %vm891, 0.0, %v2875
        %v2901 = vsel %vm890, 0.0, %v2858
        %v2902 = vsel %vm891, 0.0, %v2876
        %v2903 = vsel %vm890, 0.0, %v2859
        %v2904 = vsel %vm891, 0.0, %v2877
        %v2905 = vsel %vm890, 0.0, %v2860
        %v2906 = vsel %vm891, 0.0, %v2878
        %v2907 = vsel %vm890, 0.0, %v2861
        %v2908 = vsel %vm891, 0.0, %v2879
        %v2909 = vsel %vm890, 0.0, %v2862
        %v2910 = vsel %vm891, 0.0, %v2880
        %v2911 = vsel %vm890, 0.0, %v2863
        %v2912 = vsel %vm891, 0.0, %v2881
        %v2913 = vsel %vm890, 0.0, %v2864
        %v2914 = vsel %vm891, 0.0, %v2882
        %v2915 = vsel %vm890, 0.0, %v2865
        %v2916 = vsel %vm891, 0.0, %v2883
        %v2917 = vsel %vm890, 0.0, %v2866
        %v2918 = vsel %vm891, 0.0, %v2884
        %v2919 = vsel %vm890, 0.0, %v2867
        %v2920 = vsel %vm891, 0.0, %v2885
        %v2921 = vsel %vm890, 0.0, %v2868
        %v2922 = vsel %vm891, 0.0, %v2886
        %v2923 = vpack.c.bf16 %v2779, %v2779
        %v2924 = vpack.c.bf16 %v2780, %v2780
        %v2925 = vpack.c.bf16 %v2781, %v2781
        %v2926 = vpack.c.bf16 %v2782, %v2782
        %v2927 = vpack.c.bf16 %v2783, %v2783
        %v2928 = vpack.c.bf16 %v2784, %v2784
        %v2929 = vpack.c.bf16 %v2785, %v2785
        %v2930 = vpack.c.bf16 %v2786, %v2786
        %v2931 = vpack.c.bf16 %v2787, %v2787
        %v2932 = vpack.c.bf16 %v2788, %v2788
        %v2933 = vpack.c.bf16 %v2789, %v2789
        %v2934 = vpack.c.bf16 %v2790, %v2790
        %v2935 = vpack.c.bf16 %v2791, %v2791
        %v2936 = vpack.c.bf16 %v2792, %v2792
        %v2937 = vpack.c.bf16 %v2793, %v2793
        %v2938 = vpack.c.bf16 %v2794, %v2794
        %v2939 = vpack.c.bf16 %v2795, %v2795
        %v2940 = vpack.c.bf16 %v2796, %v2796
        %v2941 = vpack.c.bf16 %v2797, %v2797
        %v2942 = vpack.c.bf16 %v2798, %v2798
        %v2943 = vpack.c.bf16 %v2799, %v2799
        %v2944 = vpack.c.bf16 %v2800, %v2800
        %v2945 = vpack.c.bf16 %v2801, %v2801
        %v2946 = vpack.c.bf16 %v2802, %v2802
        %v2947 = vpack.c.bf16 %v2803, %v2803
        %v2948 = vpack.c.bf16 %v2804, %v2804
        %v2949 = vpack.c.bf16 %v2805, %v2805
        %v2950 = vpack.c.bf16 %v2806, %v2806
        %v2951 = vpack.c.bf16 %v2807, %v2807
        %v2952 = vpack.c.bf16 %v2808, %v2808
        %v2953 = vpack.c.bf16 %v2809, %v2809
        %v2954 = vpack.c.bf16 %v2810, %v2810
        %v2955 = vpack.c.bf16 %v2811, %v2811
        %v2956 = vpack.c.bf16 %v2812, %v2812
        %v2957 = vpack.c.bf16 %v2813, %v2813
        %v2958 = vpack.c.bf16 %v2814, %v2814
        %v2959 = vpack.c.bf16 %v2671, %v2671
        %v2960 = vpack.c.bf16 %v2672, %v2672
        %v2961 = vpack.c.bf16 %v2673, %v2673
        %v2962 = vpack.c.bf16 %v2674, %v2674
        %v2963 = vpack.c.bf16 %v2675, %v2675
        %v2964 = vpack.c.bf16 %v2676, %v2676
        %v2965 = vpack.c.bf16 %v2677, %v2677
        %v2966 = vpack.c.bf16 %v2678, %v2678
        %v2967 = vpack.c.bf16 %v2679, %v2679
        %v2968 = vpack.c.bf16 %v2680, %v2680
        %v2969 = vpack.c.bf16 %v2681, %v2681
        %v2970 = vpack.c.bf16 %v2682, %v2682
        %v2971 = vpack.c.bf16 %v2683, %v2683
        %v2972 = vpack.c.bf16 %v2684, %v2684
        %v2973 = vpack.c.bf16 %v2685, %v2685
        %v2974 = vpack.c.bf16 %v2686, %v2686
        %v2975 = vpack.c.bf16 %v2687, %v2687
        %v2976 = vpack.c.bf16 %v2688, %v2688
        %v2977 = vpack.c.bf16 %v2689, %v2689
        %v2978 = vpack.c.bf16 %v2690, %v2690
        %v2979 = vpack.c.bf16 %v2691, %v2691
        %v2980 = vpack.c.bf16 %v2692, %v2692
        %v2981 = vpack.c.bf16 %v2693, %v2693
        %v2982 = vpack.c.bf16 %v2694, %v2694
        %v2983 = vpack.c.bf16 %v2695, %v2695
        %v2984 = vpack.c.bf16 %v2696, %v2696
        %v2985 = vpack.c.bf16 %v2697, %v2697
        %v2986 = vpack.c.bf16 %v2698, %v2698
        %v2987 = vpack.c.bf16 %v2699, %v2699
        %v2988 = vpack.c.bf16 %v2700, %v2700
        %v2989 = vpack.c.bf16 %v2701, %v2701
        %v2990 = vpack.c.bf16 %v2702, %v2702
        %v2991 = vpack.c.bf16 %v2703, %v2703
        %v2992 = vpack.c.bf16 %v2704, %v2704
        %v2993 = vpack.c.bf16 %v2705, %v2705
        %v2994 = vpack.c.bf16 %v2706, %v2706
        %v2995 = vpack.c.bf16 %v2887, %v2887
        %v2996 = vpack.c.bf16 %v2888, %v2888
        %v2997 = vpack.c.bf16 %v2889, %v2889
        %v2998 = vpack.c.bf16 %v2890, %v2890
        %v2999 = vpack.c.bf16 %v2891, %v2891
        %v3000 = vpack.c.bf16 %v2892, %v2892
        %v3001 = vpack.c.bf16 %v2893, %v2893
        %v3002 = vpack.c.bf16 %v2894, %v2894
        %v3003 = vpack.c.bf16 %v2895, %v2895
        %v3004 = vpack.c.bf16 %v2896, %v2896
        %v3005 = vpack.c.bf16 %v2897, %v2897
        %v3006 = vpack.c.bf16 %v2898, %v2898
        %v3007 = vpack.c.bf16 %v2899, %v2899
        %v3008 = vpack.c.bf16 %v2900, %v2900
        %v3009 = vpack.c.bf16 %v2901, %v2901
        %v3010 = vpack.c.bf16 %v2902, %v2902
        %v3011 = vpack.c.bf16 %v2903, %v2903
        %v3012 = vpack.c.bf16 %v2904, %v2904
        %v3013 = vpack.c.bf16 %v2905, %v2905
        %v3014 = vpack.c.bf16 %v2906, %v2906
        %v3015 = vpack.c.bf16 %v2907, %v2907
        %v3016 = vpack.c.bf16 %v2908, %v2908
        %v3017 = vpack.c.bf16 %v2909, %v2909
        %v3018 = vpack.c.bf16 %v2910, %v2910
        %v3019 = vpack.c.bf16 %v2911, %v2911
        %v3020 = vpack.c.bf16 %v2912, %v2912
        %v3021 = vpack.c.bf16 %v2913, %v2913
        %v3022 = vpack.c.bf16 %v2914, %v2914
        %v3023 = vpack.c.bf16 %v2915, %v2915
        %v3024 = vpack.c.bf16 %v2916, %v2916
        %v3025 = vpack.c.bf16 %v2917, %v2917
        %v3026 = vpack.c.bf16 %v2918, %v2918
        %v3027 = vpack.c.bf16 %v2919, %v2919
        %v3028 = vpack.c.bf16 %v2920, %v2920
        %v3029 = vpack.c.bf16 %v2921, %v2921
        %v3030 = vpack.c.bf16 %v2922, %v2922
        %v3031 = vld [vmem:[#allocation9] sm:$0xf]
        %v3032 = vld [vmem:[#allocation9 + $0x4] sm:$0xf]
        %v3033 = vld [vmem:[#allocation9 + $0x8] sm:$0xf]
        %v3034 = vld [vmem:[#allocation9 + $0xc] sm:$0xf]
        %s3035 = scalar_lea.vmem [#allocation9], 16
        %v3036 = vld [vmem:[%s3035] sm:$0xf]
        %v3037 = vld [vmem:[%s3035 + $0x4] sm:$0xf]
        %v3038 = vld [vmem:[%s3035 + $0x8] sm:$0xf]
        %v3039 = vld [vmem:[%s3035 + $0xc] sm:$0xf]
        %v3072 = vunpack.c.l.b16 %v2959
        %v3073 = vunpack.c.l.b16 %v2960
        %v3074 = vunpack.c.l.b16 %v2961
        %v3075 = vunpack.c.l.b16 %v2962
        %v3076 = vunpack.c.l.b16 %v2963
        %v3077 = vunpack.c.l.b16 %v2964
        %v3078 = vunpack.c.l.b16 %v2965
        %v3079 = vunpack.c.l.b16 %v2966
        %v3080 = vunpack.c.l.b16 %v2967
        %v3081 = vunpack.c.l.b16 %v2968
        %v3082 = vunpack.c.l.b16 %v2969
        %v3083 = vunpack.c.l.b16 %v2970
        %v3084 = vunpack.c.l.b16 %v2971
        %v3085 = vunpack.c.l.b16 %v2972
        %v3086 = vunpack.c.l.b16 %v2973
        %v3087 = vunpack.c.l.b16 %v2974
        %v3088 = vunpack.c.l.b16 %v2975
        %v3089 = vunpack.c.l.b16 %v2976
        %v3090 = vunpack.c.l.b16 %v2977
        %v3091 = vunpack.c.l.b16 %v2978
        %v3092 = vunpack.c.l.b16 %v2979
        %v3093 = vunpack.c.l.b16 %v2980
        %v3094 = vunpack.c.l.b16 %v2981
        %v3095 = vunpack.c.l.b16 %v2982
        %v3096 = vunpack.c.l.b16 %v2983
        %v3097 = vunpack.c.l.b16 %v2984
        %v3098 = vunpack.c.l.b16 %v2985
        %v3099 = vunpack.c.l.b16 %v2986
        %v3100 = vunpack.c.l.b16 %v2987
        %v3101 = vunpack.c.l.b16 %v2988
        %v3102 = vunpack.c.l.b16 %v2989
        %v3103 = vunpack.c.l.b16 %v2990
        %v3104 = vpack.c.b16 %v3073, %v3072
        %v3105 = vpack.c.b16 %v3075, %v3074
        %v3106 = vpack.c.b16 %v3077, %v3076
        %v3107 = vpack.c.b16 %v3079, %v3078
        %v3108 = vpack.c.b16 %v3081, %v3080
        %v3109 = vpack.c.b16 %v3083, %v3082
        %v3110 = vpack.c.b16 %v3085, %v3084
        %v3111 = vpack.c.b16 %v3087, %v3086
        %v3112 = vpack.c.b16 %v3089, %v3088
        %v3113 = vpack.c.b16 %v3091, %v3090
        %v3114 = vpack.c.b16 %v3093, %v3092
        %v3115 = vpack.c.b16 %v3095, %v3094
        %v3116 = vpack.c.b16 %v3097, %v3096
        %v3117 = vpack.c.b16 %v3099, %v3098
        %v3118 = vpack.c.b16 %v3101, %v3100
        %v3119 = vpack.c.b16 %v3103, %v3102
        %v3124 = vunpack.c.l.b16 %v3036
        %v3125 = vunpack.c.l.b16 %v3037
        %v3126 = vunpack.c.l.b16 %v3038
        %v3127 = vunpack.c.l.b16 %v3039
        %v3128 = vpack.c.b16 %v3125, %v3124
        %v3129 = vpack.c.b16 %v3127, %v3126
        %v3133 = vsel %vm588, %v3104, 0
        %v3136 = vsel %vm588, %v3105, 0
        %v3139 = vsel %vm588, %v3106, 0
        %v3142 = vsel %vm588, %v3107, 0
        %v3145 = vsel %vm588, %v3108, 0
        %v3148 = vsel %vm588, %v3109, 0
        %v3151 = vsel %vm588, %v3110, 0
        %v3154 = vsel %vm588, %v3111, 0
        %v3157 = vsel %vm588, %v3112, 0
        %v3160 = vsel %vm588, %v3113, 0
        %v3163 = vsel %vm588, %v3114, 0
        %v3166 = vsel %vm588, %v3115, 0
        %v3169 = vsel %vm588, %v3116, 0
        %v3172 = vsel %vm588, %v3117, 0
        %v3175 = vsel %vm588, %v3118, 0
        %v3178 = vsel %vm588, %v3119, 0
        %3180 = vmatpush.bf16.msra.mxu0 0
        %3181 = vmatpush.bf16.msra.mxu0 0
        %3182 = vmatpush.bf16.msra.mxu0 0
        %3183 = vmatpush.bf16.msra.mxu0 0
        %3184 = vmatpush.bf16.msra.mxu0 0
        %3185 = vmatpush.bf16.msra.mxu0 0
        %3186 = vmatpush.bf16.msra.mxu0 %v3129
        %3187 = vmatpush.bf16.msra.mxu0 %v3128
        %3188 = vmatmul.bf16.gmra.mxu0 %v3133
        %v3189 = vpop.f32.mrf.mxu0
        %v3190 = vadd.f32 0.0, %v3189
        %v3191 = vpop.f32.mrf.mxu0
        %v3192 = vadd.f32 0.0, %v3191
        %3193 = vmatmul.bf16.gmra.mxu0 %v3136
        %v3194 = vpop.f32.mrf.mxu0
        %v3195 = vadd.f32 0.0, %v3194
        %v3196 = vpop.f32.mrf.mxu0
        %v3197 = vadd.f32 0.0, %v3196
        %3198 = vmatmul.bf16.gmra.mxu0 %v3139
        %v3199 = vpop.f32.mrf.mxu0
        %v3200 = vadd.f32 0.0, %v3199
        %v3201 = vpop.f32.mrf.mxu0
        %v3202 = vadd.f32 0.0, %v3201
        %3203 = vmatmul.bf16.gmra.mxu0 %v3142
        %v3204 = vpop.f32.mrf.mxu0
        %v3205 = vadd.f32 0.0, %v3204
        %v3206 = vpop.f32.mrf.mxu0
        %v3207 = vadd.f32 0.0, %v3206
        %3208 = vmatmul.bf16.gmra.mxu0 %v3145
        %v3209 = vpop.f32.mrf.mxu0
        %v3210 = vadd.f32 0.0, %v3209
        %v3211 = vpop.f32.mrf.mxu0
        %v3212 = vadd.f32 0.0, %v3211
        %3213 = vmatmul.bf16.gmra.mxu0 %v3148
        %v3214 = vpop.f32.mrf.mxu0
        %v3215 = vadd.f32 0.0, %v3214
        %v3216 = vpop.f32.mrf.mxu0
        %v3217 = vadd.f32 0.0, %v3216
        %3218 = vmatmul.bf16.gmra.mxu0 %v3151
        %v3219 = vpop.f32.mrf.mxu0
        %v3220 = vadd.f32 0.0, %v3219
        %v3221 = vpop.f32.mrf.mxu0
        %v3222 = vadd.f32 0.0, %v3221
        %3223 = vmatmul.bf16.gmra.mxu0 %v3154
        %v3224 = vpop.f32.mrf.mxu0
        %v3225 = vadd.f32 0.0, %v3224
        %v3226 = vpop.f32.mrf.mxu0
        %v3227 = vadd.f32 0.0, %v3226
        %3228 = vmatmul.bf16.gmra.mxu0 %v3157
        %v3229 = vpop.f32.mrf.mxu0
        %v3230 = vadd.f32 0.0, %v3229
        %v3231 = vpop.f32.mrf.mxu0
        %v3232 = vadd.f32 0.0, %v3231
        %3233 = vmatmul.bf16.gmra.mxu0 %v3160
        %v3234 = vpop.f32.mrf.mxu0
        %v3235 = vadd.f32 0.0, %v3234
        %v3236 = vpop.f32.mrf.mxu0
        %v3237 = vadd.f32 0.0, %v3236
        %3238 = vmatmul.bf16.gmra.mxu0 %v3163
        %v3239 = vpop.f32.mrf.mxu0
        %v3240 = vadd.f32 0.0, %v3239
        %v3241 = vpop.f32.mrf.mxu0
        %v3242 = vadd.f32 0.0, %v3241
        %3243 = vmatmul.bf16.gmra.mxu0 %v3166
        %v3244 = vpop.f32.mrf.mxu0
        %v3245 = vadd.f32 0.0, %v3244
        %v3246 = vpop.f32.mrf.mxu0
        %v3247 = vadd.f32 0.0, %v3246
        %3248 = vmatmul.bf16.gmra.mxu0 %v3169
        %v3249 = vpop.f32.mrf.mxu0
        %v3250 = vadd.f32 0.0, %v3249
        %v3251 = vpop.f32.mrf.mxu0
        %v3252 = vadd.f32 0.0, %v3251
        %3253 = vmatmul.bf16.gmra.mxu0 %v3172
        %v3254 = vpop.f32.mrf.mxu0
        %v3255 = vadd.f32 0.0, %v3254
        %v3256 = vpop.f32.mrf.mxu0
        %v3257 = vadd.f32 0.0, %v3256
        %3258 = vmatmul.bf16.gmra.mxu0 %v3175
        %v3259 = vpop.f32.mrf.mxu0
        %v3260 = vadd.f32 0.0, %v3259
        %v3261 = vpop.f32.mrf.mxu0
        %v3262 = vadd.f32 0.0, %v3261
        %3263 = vmatmul.bf16.gmra.mxu0 %v3178
        %v3264 = vpop.f32.mrf.mxu0
        %v3265 = vadd.f32 0.0, %v3264
        %v3266 = vpop.f32.mrf.mxu0
        %v3267 = vadd.f32 0.0, %v3266
        %3268 = vdwg.mxu0
        %v3301 = vunpack.c.l.b16 %v2923
        %v3302 = vunpack.c.l.b16 %v2924
        %v3303 = vunpack.c.l.b16 %v2925
        %v3304 = vunpack.c.l.b16 %v2926
        %v3305 = vunpack.c.l.b16 %v2927
        %v3306 = vunpack.c.l.b16 %v2928
        %v3307 = vunpack.c.l.b16 %v2929
        %v3308 = vunpack.c.l.b16 %v2930
        %v3309 = vunpack.c.l.b16 %v2931
        %v3310 = vunpack.c.l.b16 %v2932
        %v3311 = vunpack.c.l.b16 %v2933
        %v3312 = vunpack.c.l.b16 %v2934
        %v3313 = vunpack.c.l.b16 %v2935
        %v3314 = vunpack.c.l.b16 %v2936
        %v3315 = vunpack.c.l.b16 %v2937
        %v3316 = vunpack.c.l.b16 %v2938
        %v3317 = vunpack.c.l.b16 %v2939
        %v3318 = vunpack.c.l.b16 %v2940
        %v3319 = vunpack.c.l.b16 %v2941
        %v3320 = vunpack.c.l.b16 %v2942
        %v3321 = vunpack.c.l.b16 %v2943
        %v3322 = vunpack.c.l.b16 %v2944
        %v3323 = vunpack.c.l.b16 %v2945
        %v3324 = vunpack.c.l.b16 %v2946
        %v3325 = vunpack.c.l.b16 %v2947
        %v3326 = vunpack.c.l.b16 %v2948
        %v3327 = vunpack.c.l.b16 %v2949
        %v3328 = vunpack.c.l.b16 %v2950
        %v3329 = vunpack.c.l.b16 %v2951
        %v3330 = vunpack.c.l.b16 %v2952
        %v3331 = vunpack.c.l.b16 %v2953
        %v3332 = vunpack.c.l.b16 %v2954
        %v3333 = vpack.c.b16 %v3302, %v3301
        %v3334 = vpack.c.b16 %v3304, %v3303
        %v3335 = vpack.c.b16 %v3306, %v3305
        %v3336 = vpack.c.b16 %v3308, %v3307
        %v3337 = vpack.c.b16 %v3310, %v3309
        %v3338 = vpack.c.b16 %v3312, %v3311
        %v3339 = vpack.c.b16 %v3314, %v3313
        %v3340 = vpack.c.b16 %v3316, %v3315
        %v3341 = vpack.c.b16 %v3318, %v3317
        %v3342 = vpack.c.b16 %v3320, %v3319
        %v3343 = vpack.c.b16 %v3322, %v3321
        %v3344 = vpack.c.b16 %v3324, %v3323
        %v3345 = vpack.c.b16 %v3326, %v3325
        %v3346 = vpack.c.b16 %v3328, %v3327
        %v3347 = vpack.c.b16 %v3330, %v3329
        %v3348 = vpack.c.b16 %v3332, %v3331
        %v3353 = vunpack.c.l.b16 %v3031
        %v3354 = vunpack.c.l.b16 %v3032
        %v3355 = vunpack.c.l.b16 %v3033
        %v3356 = vunpack.c.l.b16 %v3034
        %v3357 = vpack.c.b16 %v3354, %v3353
        %v3358 = vpack.c.b16 %v3356, %v3355
        %v3362 = vsel %vm588, %v3333, 0
        %v3365 = vsel %vm588, %v3334, 0
        %v3368 = vsel %vm588, %v3335, 0
        %v3371 = vsel %vm588, %v3336, 0
        %v3374 = vsel %vm588, %v3337, 0
        %v3377 = vsel %vm588, %v3338, 0
        %v3380 = vsel %vm588, %v3339, 0
        %v3383 = vsel %vm588, %v3340, 0
        %v3386 = vsel %vm588, %v3341, 0
        %v3389 = vsel %vm588, %v3342, 0
        %v3392 = vsel %vm588, %v3343, 0
        %v3395 = vsel %vm588, %v3344, 0
        %v3398 = vsel %vm588, %v3345, 0
        %v3401 = vsel %vm588, %v3346, 0
        %v3404 = vsel %vm588, %v3347, 0
        %v3407 = vsel %vm588, %v3348, 0
        %3409 = vmatpush.bf16.msra.mxu0 0
        %3410 = vmatpush.bf16.msra.mxu0 0
        %3411 = vmatpush.bf16.msra.mxu0 0
        %3412 = vmatpush.bf16.msra.mxu0 0
        %3413 = vmatpush.bf16.msra.mxu0 0
        %3414 = vmatpush.bf16.msra.mxu0 0
        %3415 = vmatpush.bf16.msra.mxu0 %v3358
        %3416 = vmatpush.bf16.msra.mxu0 %v3357
        %3417 = vmatmul.bf16.gmra.mxu0 %v3362
        %v3418 = vpop.f32.mrf.mxu0
        %v3419 = vadd.f32 %v3190, %v3418
        %v3420 = vpop.f32.mrf.mxu0
        %v3421 = vadd.f32 %v3192, %v3420
        %3422 = vmatmul.bf16.gmra.mxu0 %v3365
        %v3423 = vpop.f32.mrf.mxu0
        %v3424 = vadd.f32 %v3195, %v3423
        %v3425 = vpop.f32.mrf.mxu0
        %v3426 = vadd.f32 %v3197, %v3425
        %3427 = vmatmul.bf16.gmra.mxu0 %v3368
        %v3428 = vpop.f32.mrf.mxu0
        %v3429 = vadd.f32 %v3200, %v3428
        %v3430 = vpop.f32.mrf.mxu0
        %v3431 = vadd.f32 %v3202, %v3430
        %3432 = vmatmul.bf16.gmra.mxu0 %v3371
        %v3433 = vpop.f32.mrf.mxu0
        %v3434 = vadd.f32 %v3205, %v3433
        %v3435 = vpop.f32.mrf.mxu0
        %v3436 = vadd.f32 %v3207, %v3435
        %3437 = vmatmul.bf16.gmra.mxu0 %v3374
        %v3438 = vpop.f32.mrf.mxu0
        %v3439 = vadd.f32 %v3210, %v3438
        %v3440 = vpop.f32.mrf.mxu0
        %v3441 = vadd.f32 %v3212, %v3440
        %3442 = vmatmul.bf16.gmra.mxu0 %v3377
        %v3443 = vpop.f32.mrf.mxu0
        %v3444 = vadd.f32 %v3215, %v3443
        %v3445 = vpop.f32.mrf.mxu0
        %v3446 = vadd.f32 %v3217, %v3445
        %3447 = vmatmul.bf16.gmra.mxu0 %v3380
        %v3448 = vpop.f32.mrf.mxu0
        %v3449 = vadd.f32 %v3220, %v3448
        %v3450 = vpop.f32.mrf.mxu0
        %v3451 = vadd.f32 %v3222, %v3450
        %3452 = vmatmul.bf16.gmra.mxu0 %v3383
        %v3453 = vpop.f32.mrf.mxu0
        %v3454 = vadd.f32 %v3225, %v3453
        %v3455 = vpop.f32.mrf.mxu0
        %v3456 = vadd.f32 %v3227, %v3455
        %3457 = vmatmul.bf16.gmra.mxu0 %v3386
        %v3458 = vpop.f32.mrf.mxu0
        %v3459 = vadd.f32 %v3230, %v3458
        %v3460 = vpop.f32.mrf.mxu0
        %v3461 = vadd.f32 %v3232, %v3460
        %3462 = vmatmul.bf16.gmra.mxu0 %v3389
        %v3463 = vpop.f32.mrf.mxu0
        %v3464 = vadd.f32 %v3235, %v3463
        %v3465 = vpop.f32.mrf.mxu0
        %v3466 = vadd.f32 %v3237, %v3465
        %3467 = vmatmul.bf16.gmra.mxu0 %v3392
        %v3468 = vpop.f32.mrf.mxu0
        %v3469 = vadd.f32 %v3240, %v3468
        %v3470 = vpop.f32.mrf.mxu0
        %v3471 = vadd.f32 %v3242, %v3470
        %3472 = vmatmul.bf16.gmra.mxu0 %v3395
        %v3473 = vpop.f32.mrf.mxu0
        %v3474 = vadd.f32 %v3245, %v3473
        %v3475 = vpop.f32.mrf.mxu0
        %v3476 = vadd.f32 %v3247, %v3475
        %3477 = vmatmul.bf16.gmra.mxu0 %v3398
        %v3478 = vpop.f32.mrf.mxu0
        %v3479 = vadd.f32 %v3250, %v3478
        %v3480 = vpop.f32.mrf.mxu0
        %v3481 = vadd.f32 %v3252, %v3480
        %3482 = vmatmul.bf16.gmra.mxu0 %v3401
        %v3483 = vpop.f32.mrf.mxu0
        %v3484 = vadd.f32 %v3255, %v3483
        %v3485 = vpop.f32.mrf.mxu0
        %v3486 = vadd.f32 %v3257, %v3485
        %3487 = vmatmul.bf16.gmra.mxu0 %v3404
        %v3488 = vpop.f32.mrf.mxu0
        %v3489 = vadd.f32 %v3260, %v3488
        %v3490 = vpop.f32.mrf.mxu0
        %v3491 = vadd.f32 %v3262, %v3490
        %3492 = vmatmul.bf16.gmra.mxu0 %v3407
        %v3493 = vpop.f32.mrf.mxu0
        %v3494 = vadd.f32 %v3265, %v3493
        %v3495 = vpop.f32.mrf.mxu0
        %v3496 = vadd.f32 %v3267, %v3495
        %3497 = vdwg.mxu0
        %s3498 = scalar_lea.vmem [#allocation9], 32
        %v3499 = vld [vmem:[%s3498] sm:$0xf]
        %v3500 = vld [vmem:[%s3498 + $0x4] sm:$0xf]
        %v3501 = vld [vmem:[%s3498 + $0x8] sm:$0xf]
        %v3502 = vld [vmem:[%s3498 + $0xc] sm:$0xf]
        %v3535 = vunpack.c.l.b16 %v2995
        %v3536 = vunpack.c.l.b16 %v2996
        %v3537 = vunpack.c.l.b16 %v2997
        %v3538 = vunpack.c.l.b16 %v2998
        %v3539 = vunpack.c.l.b16 %v2999
        %v3540 = vunpack.c.l.b16 %v3000
        %v3541 = vunpack.c.l.b16 %v3001
        %v3542 = vunpack.c.l.b16 %v3002
        %v3543 = vunpack.c.l.b16 %v3003
        %v3544 = vunpack.c.l.b16 %v3004
        %v3545 = vunpack.c.l.b16 %v3005
        %v3546 = vunpack.c.l.b16 %v3006
        %v3547 = vunpack.c.l.b16 %v3007
        %v3548 = vunpack.c.l.b16 %v3008
        %v3549 = vunpack.c.l.b16 %v3009
        %v3550 = vunpack.c.l.b16 %v3010
        %v3551 = vunpack.c.l.b16 %v3011
        %v3552 = vunpack.c.l.b16 %v3012
        %v3553 = vunpack.c.l.b16 %v3013
        %v3554 = vunpack.c.l.b16 %v3014
        %v3555 = vunpack.c.l.b16 %v3015
        %v3556 = vunpack.c.l.b16 %v3016
        %v3557 = vunpack.c.l.b16 %v3017
        %v3558 = vunpack.c.l.b16 %v3018
        %v3559 = vunpack.c.l.b16 %v3019
        %v3560 = vunpack.c.l.b16 %v3020
        %v3561 = vunpack.c.l.b16 %v3021
        %v3562 = vunpack.c.l.b16 %v3022
        %v3563 = vunpack.c.l.b16 %v3023
        %v3564 = vunpack.c.l.b16 %v3024
        %v3565 = vunpack.c.l.b16 %v3025
        %v3566 = vunpack.c.l.b16 %v3026
        %v3567 = vpack.c.b16 %v3536, %v3535
        %v3568 = vpack.c.b16 %v3538, %v3537
        %v3569 = vpack.c.b16 %v3540, %v3539
        %v3570 = vpack.c.b16 %v3542, %v3541
        %v3571 = vpack.c.b16 %v3544, %v3543
        %v3572 = vpack.c.b16 %v3546, %v3545
        %v3573 = vpack.c.b16 %v3548, %v3547
        %v3574 = vpack.c.b16 %v3550, %v3549
        %v3575 = vpack.c.b16 %v3552, %v3551
        %v3576 = vpack.c.b16 %v3554, %v3553
        %v3577 = vpack.c.b16 %v3556, %v3555
        %v3578 = vpack.c.b16 %v3558, %v3557
        %v3579 = vpack.c.b16 %v3560, %v3559
        %v3580 = vpack.c.b16 %v3562, %v3561
        %v3581 = vpack.c.b16 %v3564, %v3563
        %v3582 = vpack.c.b16 %v3566, %v3565
        %v3587 = vunpack.c.l.b16 %v3499
        %v3588 = vunpack.c.l.b16 %v3500
        %v3589 = vunpack.c.l.b16 %v3501
        %v3590 = vunpack.c.l.b16 %v3502
        %v3591 = vpack.c.b16 %v3588, %v3587
        %v3592 = vpack.c.b16 %v3590, %v3589
        %v3596 = vsel %vm588, %v3567, 0
        %v3599 = vsel %vm588, %v3568, 0
        %v3602 = vsel %vm588, %v3569, 0
        %v3605 = vsel %vm588, %v3570, 0
        %v3608 = vsel %vm588, %v3571, 0
        %v3611 = vsel %vm588, %v3572, 0
        %v3614 = vsel %vm588, %v3573, 0
        %v3617 = vsel %vm588, %v3574, 0
        %v3620 = vsel %vm588, %v3575, 0
        %v3623 = vsel %vm588, %v3576, 0
        %v3626 = vsel %vm588, %v3577, 0
        %v3629 = vsel %vm588, %v3578, 0
        %v3632 = vsel %vm588, %v3579, 0
        %v3635 = vsel %vm588, %v3580, 0
        %v3638 = vsel %vm588, %v3581, 0
        %v3641 = vsel %vm588, %v3582, 0
        %3643 = vmatpush.bf16.msra.mxu0 0
        %3644 = vmatpush.bf16.msra.mxu0 0
        %3645 = vmatpush.bf16.msra.mxu0 0
        %3646 = vmatpush.bf16.msra.mxu0 0
        %3647 = vmatpush.bf16.msra.mxu0 0
        %3648 = vmatpush.bf16.msra.mxu0 0
        %3649 = vmatpush.bf16.msra.mxu0 %v3592
        %3650 = vmatpush.bf16.msra.mxu0 %v3591
        %3651 = vmatmul.bf16.gmra.mxu0 %v3596
        %v3652 = vpop.f32.mrf.mxu0
        %v3653 = vadd.f32 0.0, %v3652
        %v3654 = vpop.f32.mrf.mxu0
        %v3655 = vadd.f32 0.0, %v3654
        %3656 = vmatmul.bf16.gmra.mxu0 %v3599
        %v3657 = vpop.f32.mrf.mxu0
        %v3658 = vadd.f32 0.0, %v3657
        %v3659 = vpop.f32.mrf.mxu0
        %v3660 = vadd.f32 0.0, %v3659
        %3661 = vmatmul.bf16.gmra.mxu0 %v3602
        %v3662 = vpop.f32.mrf.mxu0
        %v3663 = vadd.f32 0.0, %v3662
        %v3664 = vpop.f32.mrf.mxu0
        %v3665 = vadd.f32 0.0, %v3664
        %3666 = vmatmul.bf16.gmra.mxu0 %v3605
        %v3667 = vpop.f32.mrf.mxu0
        %v3668 = vadd.f32 0.0, %v3667
        %v3669 = vpop.f32.mrf.mxu0
        %v3670 = vadd.f32 0.0, %v3669
        %3671 = vmatmul.bf16.gmra.mxu0 %v3608
        %v3672 = vpop.f32.mrf.mxu0
        %v3673 = vadd.f32 0.0, %v3672
        %v3674 = vpop.f32.mrf.mxu0
        %v3675 = vadd.f32 0.0, %v3674
        %3676 = vmatmul.bf16.gmra.mxu0 %v3611
        %v3677 = vpop.f32.mrf.mxu0
        %v3678 = vadd.f32 0.0, %v3677
        %v3679 = vpop.f32.mrf.mxu0
        %v3680 = vadd.f32 0.0, %v3679
        %3681 = vmatmul.bf16.gmra.mxu0 %v3614
        %v3682 = vpop.f32.mrf.mxu0
        %v3683 = vadd.f32 0.0, %v3682
        %v3684 = vpop.f32.mrf.mxu0
        %v3685 = vadd.f32 0.0, %v3684
        %3686 = vmatmul.bf16.gmra.mxu0 %v3617
        %v3687 = vpop.f32.mrf.mxu0
        %v3688 = vadd.f32 0.0, %v3687
        %v3689 = vpop.f32.mrf.mxu0
        %v3690 = vadd.f32 0.0, %v3689
        %3691 = vmatmul.bf16.gmra.mxu0 %v3620
        %v3692 = vpop.f32.mrf.mxu0
        %v3693 = vadd.f32 0.0, %v3692
        %v3694 = vpop.f32.mrf.mxu0
        %v3695 = vadd.f32 0.0, %v3694
        %3696 = vmatmul.bf16.gmra.mxu0 %v3623
        %v3697 = vpop.f32.mrf.mxu0
        %v3698 = vadd.f32 0.0, %v3697
        %v3699 = vpop.f32.mrf.mxu0
        %v3700 = vadd.f32 0.0, %v3699
        %3701 = vmatmul.bf16.gmra.mxu0 %v3626
        %v3702 = vpop.f32.mrf.mxu0
        %v3703 = vadd.f32 0.0, %v3702
        %v3704 = vpop.f32.mrf.mxu0
        %v3705 = vadd.f32 0.0, %v3704
        %3706 = vmatmul.bf16.gmra.mxu0 %v3629
        %v3707 = vpop.f32.mrf.mxu0
        %v3708 = vadd.f32 0.0, %v3707
        %v3709 = vpop.f32.mrf.mxu0
        %v3710 = vadd.f32 0.0, %v3709
        %3711 = vmatmul.bf16.gmra.mxu0 %v3632
        %v3712 = vpop.f32.mrf.mxu0
        %v3713 = vadd.f32 0.0, %v3712
        %v3714 = vpop.f32.mrf.mxu0
        %v3715 = vadd.f32 0.0, %v3714
        %3716 = vmatmul.bf16.gmra.mxu0 %v3635
        %v3717 = vpop.f32.mrf.mxu0
        %v3718 = vadd.f32 0.0, %v3717
        %v3719 = vpop.f32.mrf.mxu0
        %v3720 = vadd.f32 0.0, %v3719
        %3721 = vmatmul.bf16.gmra.mxu0 %v3638
        %v3722 = vpop.f32.mrf.mxu0
        %v3723 = vadd.f32 0.0, %v3722
        %v3724 = vpop.f32.mrf.mxu0
        %v3725 = vadd.f32 0.0, %v3724
        %3726 = vmatmul.bf16.gmra.mxu0 %v3641
        %v3727 = vpop.f32.mrf.mxu0
        %v3728 = vadd.f32 0.0, %v3727
        %v3729 = vpop.f32.mrf.mxu0
        %v3730 = vadd.f32 0.0, %v3729
        %3731 = vdwg.mxu0
        %v3732 = vadd.f32 %v3419, %v3653
        %v3733 = vadd.f32 %v3421, %v3655
        %v3734 = vadd.f32 %v3424, %v3658
        %v3735 = vadd.f32 %v3426, %v3660
        %v3736 = vadd.f32 %v3429, %v3663
        %v3737 = vadd.f32 %v3431, %v3665
        %v3738 = vadd.f32 %v3434, %v3668
        %v3739 = vadd.f32 %v3436, %v3670
        %v3740 = vadd.f32 %v3439, %v3673
        %v3741 = vadd.f32 %v3441, %v3675
        %v3742 = vadd.f32 %v3444, %v3678
        %v3743 = vadd.f32 %v3446, %v3680
        %v3744 = vadd.f32 %v3449, %v3683
        %v3745 = vadd.f32 %v3451, %v3685
        %v3746 = vadd.f32 %v3454, %v3688
        %v3747 = vadd.f32 %v3456, %v3690
        %v3748 = vadd.f32 %v3459, %v3693
        %v3749 = vadd.f32 %v3461, %v3695
        %v3750 = vadd.f32 %v3464, %v3698
        %v3751 = vadd.f32 %v3466, %v3700
        %v3752 = vadd.f32 %v3469, %v3703
        %v3753 = vadd.f32 %v3471, %v3705
        %v3754 = vadd.f32 %v3474, %v3708
        %v3755 = vadd.f32 %v3476, %v3710
        %v3756 = vadd.f32 %v3479, %v3713
        %v3757 = vadd.f32 %v3481, %v3715
        %v3758 = vadd.f32 %v3484, %v3718
        %v3759 = vadd.f32 %v3486, %v3720
        %v3760 = vadd.f32 %v3489, %v3723
        %v3761 = vadd.f32 %v3491, %v3725
        %v3762 = vadd.f32 %v3494, %v3728
        %v3763 = vadd.f32 %v3496, %v3730
        %s3764 = scalar_lea.vmem [#allocation9], 48
        %v3765 = vld [vmem:[%s3764] sm:$0xf]
        %v3766 = vld [vmem:[%s3764 + $0x4] sm:$0xf]
        %v3767 = vld [vmem:[%s3764 + $0x8] sm:$0xf]
        %v3768 = vld [vmem:[%s3764 + $0xc] sm:$0xf]
        %v3771 = vunpack.c.l.b16 %v2955
        %v3772 = vunpack.c.l.b16 %v2956
        %v3773 = vpack.c.b16 %v3772, %v3771
        %v3778 = vunpack.c.l.b16 %v3765
        %v3779 = vunpack.c.l.b16 %v3766
        %v3780 = vunpack.c.l.b16 %v3767
        %v3781 = vunpack.c.l.b16 %v3768
        %v3782 = vpack.c.b16 %v3779, %v3778
        %v3783 = vpack.c.b16 %v3781, %v3780
        %v3787 = vsel %vm588, %v3773, 0
        %3789 = vmatpush.bf16.msra.mxu0 0
        %3790 = vmatpush.bf16.msra.mxu0 0
        %3791 = vmatpush.bf16.msra.mxu0 0
        %3792 = vmatpush.bf16.msra.mxu0 0
        %3793 = vmatpush.bf16.msra.mxu0 0
        %3794 = vmatpush.bf16.msra.mxu0 0
        %3795 = vmatpush.bf16.msra.mxu0 %v3783
        %3796 = vmatpush.bf16.msra.mxu0 %v3782
        %3797 = vmatmul.bf16.gmra.mxu0 %v3365
        %v3798 = vpop.f32.mrf.mxu0
        %v3799 = vadd.f32 0.0, %v3798
        %v3800 = vpop.f32.mrf.mxu0
        %v3801 = vadd.f32 0.0, %v3800
        %3802 = vmatmul.bf16.gmra.mxu0 %v3368
        %v3803 = vpop.f32.mrf.mxu0
        %v3804 = vadd.f32 0.0, %v3803
        %v3805 = vpop.f32.mrf.mxu0
        %v3806 = vadd.f32 0.0, %v3805
        %3807 = vmatmul.bf16.gmra.mxu0 %v3371
        %v3808 = vpop.f32.mrf.mxu0
        %v3809 = vadd.f32 0.0, %v3808
        %v3810 = vpop.f32.mrf.mxu0
        %v3811 = vadd.f32 0.0, %v3810
        %3812 = vmatmul.bf16.gmra.mxu0 %v3374
        %v3813 = vpop.f32.mrf.mxu0
        %v3814 = vadd.f32 0.0, %v3813
        %v3815 = vpop.f32.mrf.mxu0
        %v3816 = vadd.f32 0.0, %v3815
        %3817 = vmatmul.bf16.gmra.mxu0 %v3377
        %v3818 = vpop.f32.mrf.mxu0
        %v3819 = vadd.f32 0.0, %v3818
        %v3820 = vpop.f32.mrf.mxu0
        %v3821 = vadd.f32 0.0, %v3820
        %3822 = vmatmul.bf16.gmra.mxu0 %v3380
        %v3823 = vpop.f32.mrf.mxu0
        %v3824 = vadd.f32 0.0, %v3823
        %v3825 = vpop.f32.mrf.mxu0
        %v3826 = vadd.f32 0.0, %v3825
        %3827 = vmatmul.bf16.gmra.mxu0 %v3383
        %v3828 = vpop.f32.mrf.mxu0
        %v3829 = vadd.f32 0.0, %v3828
        %v3830 = vpop.f32.mrf.mxu0
        %v3831 = vadd.f32 0.0, %v3830
        %3832 = vmatmul.bf16.gmra.mxu0 %v3386
        %v3833 = vpop.f32.mrf.mxu0
        %v3834 = vadd.f32 0.0, %v3833
        %v3835 = vpop.f32.mrf.mxu0
        %v3836 = vadd.f32 0.0, %v3835
        %3837 = vmatmul.bf16.gmra.mxu0 %v3389
        %v3838 = vpop.f32.mrf.mxu0
        %v3839 = vadd.f32 0.0, %v3838
        %v3840 = vpop.f32.mrf.mxu0
        %v3841 = vadd.f32 0.0, %v3840
        %3842 = vmatmul.bf16.gmra.mxu0 %v3392
        %v3843 = vpop.f32.mrf.mxu0
        %v3844 = vadd.f32 0.0, %v3843
        %v3845 = vpop.f32.mrf.mxu0
        %v3846 = vadd.f32 0.0, %v3845
        %3847 = vmatmul.bf16.gmra.mxu0 %v3395
        %v3848 = vpop.f32.mrf.mxu0
        %v3849 = vadd.f32 0.0, %v3848
        %v3850 = vpop.f32.mrf.mxu0
        %v3851 = vadd.f32 0.0, %v3850
        %3852 = vmatmul.bf16.gmra.mxu0 %v3398
        %v3853 = vpop.f32.mrf.mxu0
        %v3854 = vadd.f32 0.0, %v3853
        %v3855 = vpop.f32.mrf.mxu0
        %v3856 = vadd.f32 0.0, %v3855
        %3857 = vmatmul.bf16.gmra.mxu0 %v3401
        %v3858 = vpop.f32.mrf.mxu0
        %v3859 = vadd.f32 0.0, %v3858
        %v3860 = vpop.f32.mrf.mxu0
        %v3861 = vadd.f32 0.0, %v3860
        %3862 = vmatmul.bf16.gmra.mxu0 %v3404
        %v3863 = vpop.f32.mrf.mxu0
        %v3864 = vadd.f32 0.0, %v3863
        %v3865 = vpop.f32.mrf.mxu0
        %v3866 = vadd.f32 0.0, %v3865
        %3867 = vmatmul.bf16.gmra.mxu0 %v3407
        %v3868 = vpop.f32.mrf.mxu0
        %v3869 = vadd.f32 0.0, %v3868
        %v3870 = vpop.f32.mrf.mxu0
        %v3871 = vadd.f32 0.0, %v3870
        %3872 = vmatmul.bf16.gmra.mxu0 %v3787
        %v3873 = vpop.f32.mrf.mxu0
        %v3874 = vadd.f32 0.0, %v3873
        %v3875 = vpop.f32.mrf.mxu0
        %v3876 = vadd.f32 0.0, %v3875
        %3877 = vdwg.mxu0
        %v3878 = vadd.f32 %v3732, %v3799
        %v3879 = vadd.f32 %v3733, %v3801
        %v3880 = vadd.f32 %v3734, %v3804
        %v3881 = vadd.f32 %v3735, %v3806
        %v3882 = vadd.f32 %v3736, %v3809
        %v3883 = vadd.f32 %v3737, %v3811
        %v3884 = vadd.f32 %v3738, %v3814
        %v3885 = vadd.f32 %v3739, %v3816
        %v3886 = vadd.f32 %v3740, %v3819
        %v3887 = vadd.f32 %v3741, %v3821
        %v3888 = vadd.f32 %v3742, %v3824
        %v3889 = vadd.f32 %v3743, %v3826
        %v3890 = vadd.f32 %v3744, %v3829
        %v3891 = vadd.f32 %v3745, %v3831
        %v3892 = vadd.f32 %v3746, %v3834
        %v3893 = vadd.f32 %v3747, %v3836
        %v3894 = vadd.f32 %v3748, %v3839
        %v3895 = vadd.f32 %v3749, %v3841
        %v3896 = vadd.f32 %v3750, %v3844
        %v3897 = vadd.f32 %v3751, %v3846
        %v3898 = vadd.f32 %v3752, %v3849
        %v3899 = vadd.f32 %v3753, %v3851
        %v3900 = vadd.f32 %v3754, %v3854
        %v3901 = vadd.f32 %v3755, %v3856
        %v3902 = vadd.f32 %v3756, %v3859
        %v3903 = vadd.f32 %v3757, %v3861
        %v3904 = vadd.f32 %v3758, %v3864
        %v3905 = vadd.f32 %v3759, %v3866
        %v3906 = vadd.f32 %v3760, %v3869
        %v3907 = vadd.f32 %v3761, %v3871
        %v3908 = vadd.f32 %v3762, %v3874
        %v3909 = vadd.f32 %v3763, %v3876
        %s3910 = scalar_lea.vmem [#allocation9], 64
        %v3911 = vld [vmem:[%s3910] sm:$0xf]
        %v3912 = vld [vmem:[%s3910 + $0x4] sm:$0xf]
        %v3913 = vld [vmem:[%s3910 + $0x8] sm:$0xf]
        %v3914 = vld [vmem:[%s3910 + $0xc] sm:$0xf]
        %v3917 = vunpack.c.l.b16 %v2991
        %v3918 = vunpack.c.l.b16 %v2992
        %v3919 = vpack.c.b16 %v3918, %v3917
        %v3924 = vunpack.c.l.b16 %v3911
        %v3925 = vunpack.c.l.b16 %v3912
        %v3926 = vunpack.c.l.b16 %v3913
        %v3927 = vunpack.c.l.b16 %v3914
        %v3928 = vpack.c.b16 %v3925, %v3924
        %v3929 = vpack.c.b16 %v3927, %v3926
        %v3933 = vsel %vm588, %v3919, 0
        %3935 = vmatpush.bf16.msra.mxu0 0
        %3936 = vmatpush.bf16.msra.mxu0 0
        %3937 = vmatpush.bf16.msra.mxu0 0
        %3938 = vmatpush.bf16.msra.mxu0 0
        %3939 = vmatpush.bf16.msra.mxu0 0
        %3940 = vmatpush.bf16.msra.mxu0 0
        %3941 = vmatpush.bf16.msra.mxu0 %v3929
        %3942 = vmatpush.bf16.msra.mxu0 %v3928
        %3943 = vmatmul.bf16.gmra.mxu0 %v3136
        %v3944 = vpop.f32.mrf.mxu0
        %v3945 = vadd.f32 0.0, %v3944
        %v3946 = vpop.f32.mrf.mxu0
        %v3947 = vadd.f32 0.0, %v3946
        %3948 = vmatmul.bf16.gmra.mxu0 %v3139
        %v3949 = vpop.f32.mrf.mxu0
        %v3950 = vadd.f32 0.0, %v3949
        %v3951 = vpop.f32.mrf.mxu0
        %v3952 = vadd.f32 0.0, %v3951
        %3953 = vmatmul.bf16.gmra.mxu0 %v3142
        %v3954 = vpop.f32.mrf.mxu0
        %v3955 = vadd.f32 0.0, %v3954
        %v3956 = vpop.f32.mrf.mxu0
        %v3957 = vadd.f32 0.0, %v3956
        %3958 = vmatmul.bf16.gmra.mxu0 %v3145
        %v3959 = vpop.f32.mrf.mxu0
        %v3960 = vadd.f32 0.0, %v3959
        %v3961 = vpop.f32.mrf.mxu0
        %v3962 = vadd.f32 0.0, %v3961
        %3963 = vmatmul.bf16.gmra.mxu0 %v3148
        %v3964 = vpop.f32.mrf.mxu0
        %v3965 = vadd.f32 0.0, %v3964
        %v3966 = vpop.f32.mrf.mxu0
        %v3967 = vadd.f32 0.0, %v3966
        %3968 = vmatmul.bf16.gmra.mxu0 %v3151
        %v3969 = vpop.f32.mrf.mxu0
        %v3970 = vadd.f32 0.0, %v3969
        %v3971 = vpop.f32.mrf.mxu0
        %v3972 = vadd.f32 0.0, %v3971
        %3973 = vmatmul.bf16.gmra.mxu0 %v3154
        %v3974 = vpop.f32.mrf.mxu0
        %v3975 = vadd.f32 0.0, %v3974
        %v3976 = vpop.f32.mrf.mxu0
        %v3977 = vadd.f32 0.0, %v3976
        %3978 = vmatmul.bf16.gmra.mxu0 %v3157
        %v3979 = vpop.f32.mrf.mxu0
        %v3980 = vadd.f32 0.0, %v3979
        %v3981 = vpop.f32.mrf.mxu0
        %v3982 = vadd.f32 0.0, %v3981
        %3983 = vmatmul.bf16.gmra.mxu0 %v3160
        %v3984 = vpop.f32.mrf.mxu0
        %v3985 = vadd.f32 0.0, %v3984
        %v3986 = vpop.f32.mrf.mxu0
        %v3987 = vadd.f32 0.0, %v3986
        %3988 = vmatmul.bf16.gmra.mxu0 %v3163
        %v3989 = vpop.f32.mrf.mxu0
        %v3990 = vadd.f32 0.0, %v3989
        %v3991 = vpop.f32.mrf.mxu0
        %v3992 = vadd.f32 0.0, %v3991
        %3993 = vmatmul.bf16.gmra.mxu0 %v3166
        %v3994 = vpop.f32.mrf.mxu0
        %v3995 = vadd.f32 0.0, %v3994
        %v3996 = vpop.f32.mrf.mxu0
        %v3997 = vadd.f32 0.0, %v3996
        %3998 = vmatmul.bf16.gmra.mxu0 %v3169
        %v3999 = vpop.f32.mrf.mxu0
        %v4000 = vadd.f32 0.0, %v3999
        %v4001 = vpop.f32.mrf.mxu0
        %v4002 = vadd.f32 0.0, %v4001
        %4003 = vmatmul.bf16.gmra.mxu0 %v3172
        %v4004 = vpop.f32.mrf.mxu0
        %v4005 = vadd.f32 0.0, %v4004
        %v4006 = vpop.f32.mrf.mxu0
        %v4007 = vadd.f32 0.0, %v4006
        %4008 = vmatmul.bf16.gmra.mxu0 %v3175
        %v4009 = vpop.f32.mrf.mxu0
        %v4010 = vadd.f32 0.0, %v4009
        %v4011 = vpop.f32.mrf.mxu0
        %v4012 = vadd.f32 0.0, %v4011
        %4013 = vmatmul.bf16.gmra.mxu0 %v3178
        %v4014 = vpop.f32.mrf.mxu0
        %v4015 = vadd.f32 0.0, %v4014
        %v4016 = vpop.f32.mrf.mxu0
        %v4017 = vadd.f32 0.0, %v4016
        %4018 = vmatmul.bf16.gmra.mxu0 %v3933
        %v4019 = vpop.f32.mrf.mxu0
        %v4020 = vadd.f32 0.0, %v4019
        %v4021 = vpop.f32.mrf.mxu0
        %v4022 = vadd.f32 0.0, %v4021
        %4023 = vdwg.mxu0
        %v4024 = vadd.f32 %v3878, %v3945
        %v4025 = vadd.f32 %v3879, %v3947
        %v4026 = vadd.f32 %v3880, %v3950
        %v4027 = vadd.f32 %v3881, %v3952
        %v4028 = vadd.f32 %v3882, %v3955
        %v4029 = vadd.f32 %v3883, %v3957
        %v4030 = vadd.f32 %v3884, %v3960
        %v4031 = vadd.f32 %v3885, %v3962
        %v4032 = vadd.f32 %v3886, %v3965
        %v4033 = vadd.f32 %v3887, %v3967
        %v4034 = vadd.f32 %v3888, %v3970
        %v4035 = vadd.f32 %v3889, %v3972
        %v4036 = vadd.f32 %v3890, %v3975
        %v4037 = vadd.f32 %v3891, %v3977
        %v4038 = vadd.f32 %v3892, %v3980
        %v4039 = vadd.f32 %v3893, %v3982
        %v4040 = vadd.f32 %v3894, %v3985
        %v4041 = vadd.f32 %v3895, %v3987
        %v4042 = vadd.f32 %v3896, %v3990
        %v4043 = vadd.f32 %v3897, %v3992
        %v4044 = vadd.f32 %v3898, %v3995
        %v4045 = vadd.f32 %v3899, %v3997
        %v4046 = vadd.f32 %v3900, %v4000
        %v4047 = vadd.f32 %v3901, %v4002
        %v4048 = vadd.f32 %v3902, %v4005
        %v4049 = vadd.f32 %v3903, %v4007
        %v4050 = vadd.f32 %v3904, %v4010
        %v4051 = vadd.f32 %v3905, %v4012
        %v4052 = vadd.f32 %v3906, %v4015
        %v4053 = vadd.f32 %v3907, %v4017
        %v4054 = vadd.f32 %v3908, %v4020
        %v4055 = vadd.f32 %v3909, %v4022
        %s4056 = scalar_lea.vmem [#allocation9], 80
        %v4057 = vld [vmem:[%s4056] sm:$0xf]
        %v4058 = vld [vmem:[%s4056 + $0x4] sm:$0xf]
        %v4059 = vld [vmem:[%s4056 + $0x8] sm:$0xf]
        %v4060 = vld [vmem:[%s4056 + $0xc] sm:$0xf]
        %v4063 = vunpack.c.l.b16 %v3027
        %v4064 = vunpack.c.l.b16 %v3028
        %v4065 = vpack.c.b16 %v4064, %v4063
        %v4070 = vunpack.c.l.b16 %v4057
        %v4071 = vunpack.c.l.b16 %v4058
        %v4072 = vunpack.c.l.b16 %v4059
        %v4073 = vunpack.c.l.b16 %v4060
        %v4074 = vpack.c.b16 %v4071, %v4070
        %v4075 = vpack.c.b16 %v4073, %v4072
        %v4079 = vsel %vm588, %v4065, 0
        %4081 = vmatpush.bf16.msra.mxu0 0
        %4082 = vmatpush.bf16.msra.mxu0 0
        %4083 = vmatpush.bf16.msra.mxu0 0
        %4084 = vmatpush.bf16.msra.mxu0 0
        %4085 = vmatpush.bf16.msra.mxu0 0
        %4086 = vmatpush.bf16.msra.mxu0 0
        %4087 = vmatpush.bf16.msra.mxu0 %v4075
        %4088 = vmatpush.bf16.msra.mxu0 %v4074
        %4089 = vmatmul.bf16.gmra.mxu0 %v3599
        %v4090 = vpop.f32.mrf.mxu0
        %v4091 = vadd.f32 0.0, %v4090
        %v4092 = vpop.f32.mrf.mxu0
        %v4093 = vadd.f32 0.0, %v4092
        %4094 = vmatmul.bf16.gmra.mxu0 %v3602
        %v4095 = vpop.f32.mrf.mxu0
        %v4096 = vadd.f32 0.0, %v4095
        %v4097 = vpop.f32.mrf.mxu0
        %v4098 = vadd.f32 0.0, %v4097
        %4099 = vmatmul.bf16.gmra.mxu0 %v3605
        %v4100 = vpop.f32.mrf.mxu0
        %v4101 = vadd.f32 0.0, %v4100
        %v4102 = vpop.f32.mrf.mxu0
        %v4103 = vadd.f32 0.0, %v4102
        %4104 = vmatmul.bf16.gmra.mxu0 %v3608
        %v4105 = vpop.f32.mrf.mxu0
        %v4106 = vadd.f32 0.0, %v4105
        %v4107 = vpop.f32.mrf.mxu0
        %v4108 = vadd.f32 0.0, %v4107
        %4109 = vmatmul.bf16.gmra.mxu0 %v3611
        %v4110 = vpop.f32.mrf.mxu0
        %v4111 = vadd.f32 0.0, %v4110
        %v4112 = vpop.f32.mrf.mxu0
        %v4113 = vadd.f32 0.0, %v4112
        %4114 = vmatmul.bf16.gmra.mxu0 %v3614
        %v4115 = vpop.f32.mrf.mxu0
        %v4116 = vadd.f32 0.0, %v4115
        %v4117 = vpop.f32.mrf.mxu0
        %v4118 = vadd.f32 0.0, %v4117
        %4119 = vmatmul.bf16.gmra.mxu0 %v3617
        %v4120 = vpop.f32.mrf.mxu0
        %v4121 = vadd.f32 0.0, %v4120
        %v4122 = vpop.f32.mrf.mxu0
        %v4123 = vadd.f32 0.0, %v4122
        %4124 = vmatmul.bf16.gmra.mxu0 %v3620
        %v4125 = vpop.f32.mrf.mxu0
        %v4126 = vadd.f32 0.0, %v4125
        %v4127 = vpop.f32.mrf.mxu0
        %v4128 = vadd.f32 0.0, %v4127
        %4129 = vmatmul.bf16.gmra.mxu0 %v3623
        %v4130 = vpop.f32.mrf.mxu0
        %v4131 = vadd.f32 0.0, %v4130
        %v4132 = vpop.f32.mrf.mxu0
        %v4133 = vadd.f32 0.0, %v4132
        %4134 = vmatmul.bf16.gmra.mxu0 %v3626
        %v4135 = vpop.f32.mrf.mxu0
        %v4136 = vadd.f32 0.0, %v4135
        %v4137 = vpop.f32.mrf.mxu0
        %v4138 = vadd.f32 0.0, %v4137
        %4139 = vmatmul.bf16.gmra.mxu0 %v3629
        %v4140 = vpop.f32.mrf.mxu0
        %v4141 = vadd.f32 0.0, %v4140
        %v4142 = vpop.f32.mrf.mxu0
        %v4143 = vadd.f32 0.0, %v4142
        %4144 = vmatmul.bf16.gmra.mxu0 %v3632
        %v4145 = vpop.f32.mrf.mxu0
        %v4146 = vadd.f32 0.0, %v4145
        %v4147 = vpop.f32.mrf.mxu0
        %v4148 = vadd.f32 0.0, %v4147
        %4149 = vmatmul.bf16.gmra.mxu0 %v3635
        %v4150 = vpop.f32.mrf.mxu0
        %v4151 = vadd.f32 0.0, %v4150
        %v4152 = vpop.f32.mrf.mxu0
        %v4153 = vadd.f32 0.0, %v4152
        %4154 = vmatmul.bf16.gmra.mxu0 %v3638
        %v4155 = vpop.f32.mrf.mxu0
        %v4156 = vadd.f32 0.0, %v4155
        %v4157 = vpop.f32.mrf.mxu0
        %v4158 = vadd.f32 0.0, %v4157
        %4159 = vmatmul.bf16.gmra.mxu0 %v3641
        %v4160 = vpop.f32.mrf.mxu0
        %v4161 = vadd.f32 0.0, %v4160
        %v4162 = vpop.f32.mrf.mxu0
        %v4163 = vadd.f32 0.0, %v4162
        %4164 = vmatmul.bf16.gmra.mxu0 %v4079
        %v4165 = vpop.f32.mrf.mxu0
        %v4166 = vadd.f32 0.0, %v4165
        %v4167 = vpop.f32.mrf.mxu0
        %v4168 = vadd.f32 0.0, %v4167
        %4169 = vdwg.mxu0
        %v4170 = vadd.f32 %v4024, %v4091
        %v4171 = vadd.f32 %v4025, %v4093
        %v4172 = vadd.f32 %v4026, %v4096
        %v4173 = vadd.f32 %v4027, %v4098
        %v4174 = vadd.f32 %v4028, %v4101
        %v4175 = vadd.f32 %v4029, %v4103
        %v4176 = vadd.f32 %v4030, %v4106
        %v4177 = vadd.f32 %v4031, %v4108
        %v4178 = vadd.f32 %v4032, %v4111
        %v4179 = vadd.f32 %v4033, %v4113
        %v4180 = vadd.f32 %v4034, %v4116
        %v4181 = vadd.f32 %v4035, %v4118
        %v4182 = vadd.f32 %v4036, %v4121
        %v4183 = vadd.f32 %v4037, %v4123
        %v4184 = vadd.f32 %v4038, %v4126
        %v4185 = vadd.f32 %v4039, %v4128
        %v4186 = vadd.f32 %v4040, %v4131
        %v4187 = vadd.f32 %v4041, %v4133
        %v4188 = vadd.f32 %v4042, %v4136
        %v4189 = vadd.f32 %v4043, %v4138
        %v4190 = vadd.f32 %v4044, %v4141
        %v4191 = vadd.f32 %v4045, %v4143
        %v4192 = vadd.f32 %v4046, %v4146
        %v4193 = vadd.f32 %v4047, %v4148
        %v4194 = vadd.f32 %v4048, %v4151
        %v4195 = vadd.f32 %v4049, %v4153
        %v4196 = vadd.f32 %v4050, %v4156
        %v4197 = vadd.f32 %v4051, %v4158
        %v4198 = vadd.f32 %v4052, %v4161
        %v4199 = vadd.f32 %v4053, %v4163
        %v4200 = vadd.f32 %v4054, %v4166
        %v4201 = vadd.f32 %v4055, %v4168
        %s4202 = scalar_lea.vmem [#allocation9], 96
        %v4203 = vld [vmem:[%s4202] sm:$0xf]
        %v4204 = vld [vmem:[%s4202 + $0x4] sm:$0xf]
        %v4205 = vld [vmem:[%s4202 + $0x8] sm:$0xf]
        %v4206 = vld [vmem:[%s4202 + $0xc] sm:$0xf]
        %v4209 = vunpack.c.l.b16 %v2957
        %v4210 = vunpack.c.l.b16 %v2958
        %v4211 = vpack.c.b16 %v4210, %v4209
        %v4216 = vunpack.c.l.b16 %v4203
        %v4217 = vunpack.c.l.b16 %v4204
        %v4218 = vunpack.c.l.b16 %v4205
        %v4219 = vunpack.c.l.b16 %v4206
        %v4220 = vpack.c.b16 %v4217, %v4216
        %v4221 = vpack.c.b16 %v4219, %v4218
        %v4225 = vsel %vm588, %v4211, 0
        %4227 = vmatpush.bf16.msra.mxu0 0
        %4228 = vmatpush.bf16.msra.mxu0 0
        %4229 = vmatpush.bf16.msra.mxu0 0
        %4230 = vmatpush.bf16.msra.mxu0 0
        %4231 = vmatpush.bf16.msra.mxu0 0
        %4232 = vmatpush.bf16.msra.mxu0 0
        %4233 = vmatpush.bf16.msra.mxu0 %v4221
        %4234 = vmatpush.bf16.msra.mxu0 %v4220
        %4235 = vmatmul.bf16.gmra.mxu0 %v3368
        %v4236 = vpop.f32.mrf.mxu0
        %v4237 = vadd.f32 0.0, %v4236
        %v4238 = vpop.f32.mrf.mxu0
        %v4239 = vadd.f32 0.0, %v4238
        %4240 = vmatmul.bf16.gmra.mxu0 %v3371
        %v4241 = vpop.f32.mrf.mxu0
        %v4242 = vadd.f32 0.0, %v4241
        %v4243 = vpop.f32.mrf.mxu0
        %v4244 = vadd.f32 0.0, %v4243
        %4245 = vmatmul.bf16.gmra.mxu0 %v3374
        %v4246 = vpop.f32.mrf.mxu0
        %v4247 = vadd.f32 0.0, %v4246
        %v4248 = vpop.f32.mrf.mxu0
        %v4249 = vadd.f32 0.0, %v4248
        %4250 = vmatmul.bf16.gmra.mxu0 %v3377
        %v4251 = vpop.f32.mrf.mxu0
        %v4252 = vadd.f32 0.0, %v4251
        %v4253 = vpop.f32.mrf.mxu0
        %v4254 = vadd.f32 0.0, %v4253
        %4255 = vmatmul.bf16.gmra.mxu0 %v3380
        %v4256 = vpop.f32.mrf.mxu0
        %v4257 = vadd.f32 0.0, %v4256
        %v4258 = vpop.f32.mrf.mxu0
        %v4259 = vadd.f32 0.0, %v4258
        %4260 = vmatmul.bf16.gmra.mxu0 %v3383
        %v4261 = vpop.f32.mrf.mxu0
        %v4262 = vadd.f32 0.0, %v4261
        %v4263 = vpop.f32.mrf.mxu0
        %v4264 = vadd.f32 0.0, %v4263
        %4265 = vmatmul.bf16.gmra.mxu0 %v3386
        %v4266 = vpop.f32.mrf.mxu0
        %v4267 = vadd.f32 0.0, %v4266
        %v4268 = vpop.f32.mrf.mxu0
        %v4269 = vadd.f32 0.0, %v4268
        %4270 = vmatmul.bf16.gmra.mxu0 %v3389
        %v4271 = vpop.f32.mrf.mxu0
        %v4272 = vadd.f32 0.0, %v4271
        %v4273 = vpop.f32.mrf.mxu0
        %v4274 = vadd.f32 0.0, %v4273
        %4275 = vmatmul.bf16.gmra.mxu0 %v3392
        %v4276 = vpop.f32.mrf.mxu0
        %v4277 = vadd.f32 0.0, %v4276
        %v4278 = vpop.f32.mrf.mxu0
        %v4279 = vadd.f32 0.0, %v4278
        %4280 = vmatmul.bf16.gmra.mxu0 %v3395
        %v4281 = vpop.f32.mrf.mxu0
        %v4282 = vadd.f32 0.0, %v4281
        %v4283 = vpop.f32.mrf.mxu0
        %v4284 = vadd.f32 0.0, %v4283
        %4285 = vmatmul.bf16.gmra.mxu0 %v3398
        %v4286 = vpop.f32.mrf.mxu0
        %v4287 = vadd.f32 0.0, %v4286
        %v4288 = vpop.f32.mrf.mxu0
        %v4289 = vadd.f32 0.0, %v4288
        %4290 = vmatmul.bf16.gmra.mxu0 %v3401
        %v4291 = vpop.f32.mrf.mxu0
        %v4292 = vadd.f32 0.0, %v4291
        %v4293 = vpop.f32.mrf.mxu0
        %v4294 = vadd.f32 0.0, %v4293
        %4295 = vmatmul.bf16.gmra.mxu0 %v3404
        %v4296 = vpop.f32.mrf.mxu0
        %v4297 = vadd.f32 0.0, %v4296
        %v4298 = vpop.f32.mrf.mxu0
        %v4299 = vadd.f32 0.0, %v4298
        %4300 = vmatmul.bf16.gmra.mxu0 %v3407
        %v4301 = vpop.f32.mrf.mxu0
        %v4302 = vadd.f32 0.0, %v4301
        %v4303 = vpop.f32.mrf.mxu0
        %v4304 = vadd.f32 0.0, %v4303
        %4305 = vmatmul.bf16.gmra.mxu0 %v3787
        %v4306 = vpop.f32.mrf.mxu0
        %v4307 = vadd.f32 0.0, %v4306
        %v4308 = vpop.f32.mrf.mxu0
        %v4309 = vadd.f32 0.0, %v4308
        %4310 = vmatmul.bf16.gmra.mxu0 %v4225
        %v4311 = vpop.f32.mrf.mxu0
        %v4312 = vadd.f32 0.0, %v4311
        %v4313 = vpop.f32.mrf.mxu0
        %v4314 = vadd.f32 0.0, %v4313
        %4315 = vdwg.mxu0
        %v4316 = vadd.f32 %v4170, %v4237
        %v4317 = vadd.f32 %v4171, %v4239
        %v4318 = vadd.f32 %v4172, %v4242
        %v4319 = vadd.f32 %v4173, %v4244
        %v4320 = vadd.f32 %v4174, %v4247
        %v4321 = vadd.f32 %v4175, %v4249
        %v4322 = vadd.f32 %v4176, %v4252
        %v4323 = vadd.f32 %v4177, %v4254
        %v4324 = vadd.f32 %v4178, %v4257
        %v4325 = vadd.f32 %v4179, %v4259
        %v4326 = vadd.f32 %v4180, %v4262
        %v4327 = vadd.f32 %v4181, %v4264
        %v4328 = vadd.f32 %v4182, %v4267
        %v4329 = vadd.f32 %v4183, %v4269
        %v4330 = vadd.f32 %v4184, %v4272
        %v4331 = vadd.f32 %v4185, %v4274
        %v4332 = vadd.f32 %v4186, %v4277
        %v4333 = vadd.f32 %v4187, %v4279
        %v4334 = vadd.f32 %v4188, %v4282
        %v4335 = vadd.f32 %v4189, %v4284
        %v4336 = vadd.f32 %v4190, %v4287
        %v4337 = vadd.f32 %v4191, %v4289
        %v4338 = vadd.f32 %v4192, %v4292
        %v4339 = vadd.f32 %v4193, %v4294
        %v4340 = vadd.f32 %v4194, %v4297
        %v4341 = vadd.f32 %v4195, %v4299
        %v4342 = vadd.f32 %v4196, %v4302
        %v4343 = vadd.f32 %v4197, %v4304
        %v4344 = vadd.f32 %v4198, %v4307
        %v4345 = vadd.f32 %v4199, %v4309
        %v4346 = vadd.f32 %v4200, %v4312
        %v4347 = vadd.f32 %v4201, %v4314
        %s4348 = scalar_lea.vmem [#allocation9], 112
        %v4349 = vld [vmem:[%s4348] sm:$0xf]
        %v4350 = vld [vmem:[%s4348 + $0x4] sm:$0xf]
        %v4351 = vld [vmem:[%s4348 + $0x8] sm:$0xf]
        %v4352 = vld [vmem:[%s4348 + $0xc] sm:$0xf]
        %v4355 = vunpack.c.l.b16 %v2993
        %v4356 = vunpack.c.l.b16 %v2994
        %v4357 = vpack.c.b16 %v4356, %v4355
        %v4362 = vunpack.c.l.b16 %v4349
        %v4363 = vunpack.c.l.b16 %v4350
        %v4364 = vunpack.c.l.b16 %v4351
        %v4365 = vunpack.c.l.b16 %v4352
        %v4366 = vpack.c.b16 %v4363, %v4362
        %v4367 = vpack.c.b16 %v4365, %v4364
        %v4371 = vsel %vm588, %v4357, 0
        %4373 = vmatpush.bf16.msra.mxu0 0
        %4374 = vmatpush.bf16.msra.mxu0 0
        %4375 = vmatpush.bf16.msra.mxu0 0
        %4376 = vmatpush.bf16.msra.mxu0 0
        %4377 = vmatpush.bf16.msra.mxu0 0
        %4378 = vmatpush.bf16.msra.mxu0 0
        %4379 = vmatpush.bf16.msra.mxu0 %v4367
        %4380 = vmatpush.bf16.msra.mxu0 %v4366
        %4381 = vmatmul.bf16.gmra.mxu0 %v3139
        %v4382 = vpop.f32.mrf.mxu0
        %v4383 = vadd.f32 0.0, %v4382
        %v4384 = vpop.f32.mrf.mxu0
        %v4385 = vadd.f32 0.0, %v4384
        %4386 = vmatmul.bf16.gmra.mxu0 %v3142
        %v4387 = vpop.f32.mrf.mxu0
        %v4388 = vadd.f32 0.0, %v4387
        %v4389 = vpop.f32.mrf.mxu0
        %v4390 = vadd.f32 0.0, %v4389
        %4391 = vmatmul.bf16.gmra.mxu0 %v3145
        %v4392 = vpop.f32.mrf.mxu0
        %v4393 = vadd.f32 0.0, %v4392
        %v4394 = vpop.f32.mrf.mxu0
        %v4395 = vadd.f32 0.0, %v4394
        %4396 = vmatmul.bf16.gmra.mxu0 %v3148
        %v4397 = vpop.f32.mrf.mxu0
        %v4398 = vadd.f32 0.0, %v4397
        %v4399 = vpop.f32.mrf.mxu0
        %v4400 = vadd.f32 0.0, %v4399
        %4401 = vmatmul.bf16.gmra.mxu0 %v3151
        %v4402 = vpop.f32.mrf.mxu0
        %v4403 = vadd.f32 0.0, %v4402
        %v4404 = vpop.f32.mrf.mxu0
        %v4405 = vadd.f32 0.0, %v4404
        %4406 = vmatmul.bf16.gmra.mxu0 %v3154
        %v4407 = vpop.f32.mrf.mxu0
        %v4408 = vadd.f32 0.0, %v4407
        %v4409 = vpop.f32.mrf.mxu0
        %v4410 = vadd.f32 0.0, %v4409
        %4411 = vmatmul.bf16.gmra.mxu0 %v3157
        %v4412 = vpop.f32.mrf.mxu0
        %v4413 = vadd.f32 0.0, %v4412
        %v4414 = vpop.f32.mrf.mxu0
        %v4415 = vadd.f32 0.0, %v4414
        %4416 = vmatmul.bf16.gmra.mxu0 %v3160
        %v4417 = vpop.f32.mrf.mxu0
        %v4418 = vadd.f32 0.0, %v4417
        %v4419 = vpop.f32.mrf.mxu0
        %v4420 = vadd.f32 0.0, %v4419
        %4421 = vmatmul.bf16.gmra.mxu0 %v3163
        %v4422 = vpop.f32.mrf.mxu0
        %v4423 = vadd.f32 0.0, %v4422
        %v4424 = vpop.f32.mrf.mxu0
        %v4425 = vadd.f32 0.0, %v4424
        %4426 = vmatmul.bf16.gmra.mxu0 %v3166
        %v4427 = vpop.f32.mrf.mxu0
        %v4428 = vadd.f32 0.0, %v4427
        %v4429 = vpop.f32.mrf.mxu0
        %v4430 = vadd.f32 0.0, %v4429
        %4431 = vmatmul.bf16.gmra.mxu0 %v3169
        %v4432 = vpop.f32.mrf.mxu0
        %v4433 = vadd.f32 0.0, %v4432
        %v4434 = vpop.f32.mrf.mxu0
        %v4435 = vadd.f32 0.0, %v4434
        %4436 = vmatmul.bf16.gmra.mxu0 %v3172
        %v4437 = vpop.f32.mrf.mxu0
        %v4438 = vadd.f32 0.0, %v4437
        %v4439 = vpop.f32.mrf.mxu0
        %v4440 = vadd.f32 0.0, %v4439
        %4441 = vmatmul.bf16.gmra.mxu0 %v3175
        %v4442 = vpop.f32.mrf.mxu0
        %v4443 = vadd.f32 0.0, %v4442
        %v4444 = vpop.f32.mrf.mxu0
        %v4445 = vadd.f32 0.0, %v4444
        %4446 = vmatmul.bf16.gmra.mxu0 %v3178
        %v4447 = vpop.f32.mrf.mxu0
        %v4448 = vadd.f32 0.0, %v4447
        %v4449 = vpop.f32.mrf.mxu0
        %v4450 = vadd.f32 0.0, %v4449
        %4451 = vmatmul.bf16.gmra.mxu0 %v3933
        %v4452 = vpop.f32.mrf.mxu0
        %v4453 = vadd.f32 0.0, %v4452
        %v4454 = vpop.f32.mrf.mxu0
        %v4455 = vadd.f32 0.0, %v4454
        %4456 = vmatmul.bf16.gmra.mxu0 %v4371
        %v4457 = vpop.f32.mrf.mxu0
        %v4458 = vadd.f32 0.0, %v4457
        %v4459 = vpop.f32.mrf.mxu0
        %v4460 = vadd.f32 0.0, %v4459
        %4461 = vdwg.mxu0
        %v4462 = vadd.f32 %v4316, %v4383
        %v4463 = vadd.f32 %v4317, %v4385
        %v4464 = vadd.f32 %v4318, %v4388
        %v4465 = vadd.f32 %v4319, %v4390
        %v4466 = vadd.f32 %v4320, %v4393
        %v4467 = vadd.f32 %v4321, %v4395
        %v4468 = vadd.f32 %v4322, %v4398
        %v4469 = vadd.f32 %v4323, %v4400
        %v4470 = vadd.f32 %v4324, %v4403
        %v4471 = vadd.f32 %v4325, %v4405
        %v4472 = vadd.f32 %v4326, %v4408
        %v4473 = vadd.f32 %v4327, %v4410
        %v4474 = vadd.f32 %v4328, %v4413
        %v4475 = vadd.f32 %v4329, %v4415
        %v4476 = vadd.f32 %v4330, %v4418
        %v4477 = vadd.f32 %v4331, %v4420
        %v4478 = vadd.f32 %v4332, %v4423
        %v4479 = vadd.f32 %v4333, %v4425
        %v4480 = vadd.f32 %v4334, %v4428
        %v4481 = vadd.f32 %v4335, %v4430
        %v4482 = vadd.f32 %v4336, %v4433
        %v4483 = vadd.f32 %v4337, %v4435
        %v4484 = vadd.f32 %v4338, %v4438
        %v4485 = vadd.f32 %v4339, %v4440
        %v4486 = vadd.f32 %v4340, %v4443
        %v4487 = vadd.f32 %v4341, %v4445
        %v4488 = vadd.f32 %v4342, %v4448
        %v4489 = vadd.f32 %v4343, %v4450
        %v4490 = vadd.f32 %v4344, %v4453
        %v4491 = vadd.f32 %v4345, %v4455
        %v4492 = vadd.f32 %v4346, %v4458
        %v4493 = vadd.f32 %v4347, %v4460
        %s4494 = scalar_lea.vmem [#allocation9], 128
        %v4495 = vld [vmem:[%s4494] sm:$0xf]
        %v4496 = vld [vmem:[%s4494 + $0x4] sm:$0xf]
        %v4497 = vld [vmem:[%s4494 + $0x8] sm:$0xf]
        %v4498 = vld [vmem:[%s4494 + $0xc] sm:$0xf]
        %v4501 = vunpack.c.l.b16 %v3029
        %v4502 = vunpack.c.l.b16 %v3030
        %v4503 = vpack.c.b16 %v4502, %v4501
        %v4508 = vunpack.c.l.b16 %v4495
        %v4509 = vunpack.c.l.b16 %v4496
        %v4510 = vunpack.c.l.b16 %v4497
        %v4511 = vunpack.c.l.b16 %v4498
        %v4512 = vpack.c.b16 %v4509, %v4508
        %v4513 = vpack.c.b16 %v4511, %v4510
        %v4517 = vsel %vm588, %v4503, 0
        %4519 = vmatpush.bf16.msra.mxu0 0
        %4520 = vmatpush.bf16.msra.mxu0 0
        %4521 = vmatpush.bf16.msra.mxu0 0
        %4522 = vmatpush.bf16.msra.mxu0 0
        %4523 = vmatpush.bf16.msra.mxu0 0
        %4524 = vmatpush.bf16.msra.mxu0 0
        %4525 = vmatpush.bf16.msra.mxu0 %v4513
        %4526 = vmatpush.bf16.msra.mxu0 %v4512
        %4527 = vmatmul.bf16.gmra.mxu0 %v3602
        %v4528 = vpop.f32.mrf.mxu0
        %v4529 = vadd.f32 0.0, %v4528
        %v4530 = vpop.f32.mrf.mxu0
        %v4531 = vadd.f32 0.0, %v4530
        %4532 = vmatmul.bf16.gmra.mxu0 %v3605
        %v4533 = vpop.f32.mrf.mxu0
        %v4534 = vadd.f32 0.0, %v4533
        %v4535 = vpop.f32.mrf.mxu0
        %v4536 = vadd.f32 0.0, %v4535
        %4537 = vmatmul.bf16.gmra.mxu0 %v3608
        %v4538 = vpop.f32.mrf.mxu0
        %v4539 = vadd.f32 0.0, %v4538
        %v4540 = vpop.f32.mrf.mxu0
        %v4541 = vadd.f32 0.0, %v4540
        %4542 = vmatmul.bf16.gmra.mxu0 %v3611
        %v4543 = vpop.f32.mrf.mxu0
        %v4544 = vadd.f32 0.0, %v4543
        %v4545 = vpop.f32.mrf.mxu0
        %v4546 = vadd.f32 0.0, %v4545
        %4547 = vmatmul.bf16.gmra.mxu0 %v3614
        %v4548 = vpop.f32.mrf.mxu0
        %v4549 = vadd.f32 0.0, %v4548
        %v4550 = vpop.f32.mrf.mxu0
        %v4551 = vadd.f32 0.0, %v4550
        %4552 = vmatmul.bf16.gmra.mxu0 %v3617
        %v4553 = vpop.f32.mrf.mxu0
        %v4554 = vadd.f32 0.0, %v4553
        %v4555 = vpop.f32.mrf.mxu0
        %v4556 = vadd.f32 0.0, %v4555
        %4557 = vmatmul.bf16.gmra.mxu0 %v3620
        %v4558 = vpop.f32.mrf.mxu0
        %v4559 = vadd.f32 0.0, %v4558
        %v4560 = vpop.f32.mrf.mxu0
        %v4561 = vadd.f32 0.0, %v4560
        %4562 = vmatmul.bf16.gmra.mxu0 %v3623
        %v4563 = vpop.f32.mrf.mxu0
        %v4564 = vadd.f32 0.0, %v4563
        %v4565 = vpop.f32.mrf.mxu0
        %v4566 = vadd.f32 0.0, %v4565
        %4567 = vmatmul.bf16.gmra.mxu0 %v3626
        %v4568 = vpop.f32.mrf.mxu0
        %v4569 = vadd.f32 0.0, %v4568
        %v4570 = vpop.f32.mrf.mxu0
        %v4571 = vadd.f32 0.0, %v4570
        %4572 = vmatmul.bf16.gmra.mxu0 %v3629
        %v4573 = vpop.f32.mrf.mxu0
        %v4574 = vadd.f32 0.0, %v4573
        %v4575 = vpop.f32.mrf.mxu0
        %v4576 = vadd.f32 0.0, %v4575
        %4577 = vmatmul.bf16.gmra.mxu0 %v3632
        %v4578 = vpop.f32.mrf.mxu0
        %v4579 = vadd.f32 0.0, %v4578
        %v4580 = vpop.f32.mrf.mxu0
        %v4581 = vadd.f32 0.0, %v4580
        %4582 = vmatmul.bf16.gmra.mxu0 %v3635
        %v4583 = vpop.f32.mrf.mxu0
        %v4584 = vadd.f32 0.0, %v4583
        %v4585 = vpop.f32.mrf.mxu0
        %v4586 = vadd.f32 0.0, %v4585
        %4587 = vmatmul.bf16.gmra.mxu0 %v3638
        %v4588 = vpop.f32.mrf.mxu0
        %v4589 = vadd.f32 0.0, %v4588
        %v4590 = vpop.f32.mrf.mxu0
        %v4591 = vadd.f32 0.0, %v4590
        %4592 = vmatmul.bf16.gmra.mxu0 %v3641
        %v4593 = vpop.f32.mrf.mxu0
        %v4594 = vadd.f32 0.0, %v4593
        %v4595 = vpop.f32.mrf.mxu0
        %v4596 = vadd.f32 0.0, %v4595
        %4597 = vmatmul.bf16.gmra.mxu0 %v4079
        %v4598 = vpop.f32.mrf.mxu0
        %v4599 = vadd.f32 0.0, %v4598
        %v4600 = vpop.f32.mrf.mxu0
        %v4601 = vadd.f32 0.0, %v4600
        %4602 = vmatmul.bf16.gmra.mxu0 %v4517
        %v4603 = vpop.f32.mrf.mxu0
        %v4604 = vadd.f32 0.0, %v4603
        %v4605 = vpop.f32.mrf.mxu0
        %v4606 = vadd.f32 0.0, %v4605
        %4607 = vdwg.mxu0
        %v4608 = vadd.f32 %v4462, %v4529
        %v4609 = vadd.f32 %v4463, %v4531
        %v4610 = vadd.f32 %v4464, %v4534
        %v4611 = vadd.f32 %v4465, %v4536
        %v4612 = vadd.f32 %v4466, %v4539
        %v4613 = vadd.f32 %v4467, %v4541
        %v4614 = vadd.f32 %v4468, %v4544
        %v4615 = vadd.f32 %v4469, %v4546
        %v4616 = vadd.f32 %v4470, %v4549
        %v4617 = vadd.f32 %v4471, %v4551
        %v4618 = vadd.f32 %v4472, %v4554
        %v4619 = vadd.f32 %v4473, %v4556
        %v4620 = vadd.f32 %v4474, %v4559
        %v4621 = vadd.f32 %v4475, %v4561
        %v4622 = vadd.f32 %v4476, %v4564
        %v4623 = vadd.f32 %v4477, %v4566
        %v4624 = vadd.f32 %v4478, %v4569
        %v4625 = vadd.f32 %v4479, %v4571
        %v4626 = vadd.f32 %v4480, %v4574
        %v4627 = vadd.f32 %v4481, %v4576
        %v4628 = vadd.f32 %v4482, %v4579
        %v4629 = vadd.f32 %v4483, %v4581
        %v4630 = vadd.f32 %v4484, %v4584
        %v4631 = vadd.f32 %v4485, %v4586
        %v4632 = vadd.f32 %v4486, %v4589
        %v4633 = vadd.f32 %v4487, %v4591
        %v4634 = vadd.f32 %v4488, %v4594
        %v4635 = vadd.f32 %v4489, %v4596
        %v4636 = vadd.f32 %v4490, %v4599
        %v4637 = vadd.f32 %v4491, %v4601
        %v4638 = vadd.f32 %v4492, %v4604
        %v4639 = vadd.f32 %v4493, %v4606
        %v4640 = vld [vmem:[#allocation10] sm:$0x1]
        %v4642 = vperm.slane %v4640, 0
        %v4644 = vadd.f32 %v4608, %v4642
        %v4645 = vadd.f32 %v4609, %v4642
        %v4646 = vadd.f32 %v4610, %v4642
        %v4647 = vadd.f32 %v4611, %v4642
        %v4648 = vadd.f32 %v4612, %v4642
        %v4649 = vadd.f32 %v4613, %v4642
        %v4650 = vadd.f32 %v4614, %v4642
        %v4651 = vadd.f32 %v4615, %v4642
        %v4652 = vadd.f32 %v4616, %v4642
        %v4653 = vadd.f32 %v4617, %v4642
        %v4654 = vadd.f32 %v4618, %v4642
        %v4655 = vadd.f32 %v4619, %v4642
        %v4656 = vadd.f32 %v4620, %v4642
        %v4657 = vadd.f32 %v4621, %v4642
        %v4658 = vadd.f32 %v4622, %v4642
        %v4659 = vadd.f32 %v4623, %v4642
        %v4660 = vadd.f32 %v4624, %v4642
        %v4661 = vadd.f32 %v4625, %v4642
        %v4662 = vadd.f32 %v4626, %v4642
        %v4663 = vadd.f32 %v4627, %v4642
        %v4664 = vadd.f32 %v4628, %v4642
        %v4665 = vadd.f32 %v4629, %v4642
        %v4666 = vadd.f32 %v4630, %v4642
        %v4667 = vadd.f32 %v4631, %v4642
        %v4668 = vadd.f32 %v4632, %v4642
        %v4669 = vadd.f32 %v4633, %v4642
        %v4670 = vadd.f32 %v4634, %v4642
        %v4671 = vadd.f32 %v4635, %v4642
        %v4672 = vadd.f32 %v4636, %v4642
        %v4673 = vadd.f32 %v4637, %v4642
        %v4674 = vadd.f32 %v4638, %v4642
        %v4675 = vadd.f32 %v4639, %v4642
        %v4676 = vmax.f32 %v4644, 0.0
        %v4677 = vmax.f32 %v4645, 0.0
        %v4678 = vmax.f32 %v4646, 0.0
        %v4679 = vmax.f32 %v4647, 0.0
        %v4680 = vmax.f32 %v4648, 0.0
        %v4681 = vmax.f32 %v4649, 0.0
        %v4682 = vmax.f32 %v4650, 0.0
        %v4683 = vmax.f32 %v4651, 0.0
        %v4684 = vmax.f32 %v4652, 0.0
        %v4685 = vmax.f32 %v4653, 0.0
        %v4686 = vmax.f32 %v4654, 0.0
        %v4687 = vmax.f32 %v4655, 0.0
        %v4688 = vmax.f32 %v4656, 0.0
        %v4689 = vmax.f32 %v4657, 0.0
        %v4690 = vmax.f32 %v4658, 0.0
        %v4691 = vmax.f32 %v4659, 0.0
        %v4692 = vmax.f32 %v4660, 0.0
        %v4693 = vmax.f32 %v4661, 0.0
        %v4694 = vmax.f32 %v4662, 0.0
        %v4695 = vmax.f32 %v4663, 0.0
        %v4696 = vmax.f32 %v4664, 0.0
        %v4697 = vmax.f32 %v4665, 0.0
        %v4698 = vmax.f32 %v4666, 0.0
        %v4699 = vmax.f32 %v4667, 0.0
        %v4700 = vmax.f32 %v4668, 0.0
        %v4701 = vmax.f32 %v4669, 0.0
        %v4702 = vmax.f32 %v4670, 0.0
        %v4703 = vmax.f32 %v4671, 0.0
        %v4704 = vmax.f32 %v4672, 0.0
        %v4705 = vmax.f32 %v4673, 0.0
        %v4706 = vmax.f32 %v4674, 0.0
        %v4707 = vmax.f32 %v4675, 0.0
        %4708 = vst.msk [vmem:[%s2638] sm:$0xff] %vm588, %v4676
        %4709 = vst.msk [vmem:[%s2638 + $0x8] sm:$0xff] %vm588, %v4677
        %4710 = vst.msk [vmem:[%s2638 + $0x10] sm:$0xff] %vm588, %v4678
        %4711 = vst.msk [vmem:[%s2638 + $0x18] sm:$0xff] %vm588, %v4679
        %4712 = vst.msk [vmem:[%s2638 + $0x20] sm:$0xff] %vm588, %v4680
        %4713 = vst.msk [vmem:[%s2638 + $0x28] sm:$0xff] %vm588, %v4681
        %4714 = vst.msk [vmem:[%s2638 + $0x30] sm:$0xff] %vm588, %v4682
        %4715 = vst.msk [vmem:[%s2638 + $0x38] sm:$0xff] %vm588, %v4683
        %4716 = vst.msk [vmem:[%s2638 + $0x40] sm:$0xff] %vm588, %v4684
        %4717 = vst.msk [vmem:[%s2638 + $0x48] sm:$0xff] %vm588, %v4685
        %4718 = vst.msk [vmem:[%s2638 + $0x50] sm:$0xff] %vm588, %v4686
        %4719 = vst.msk [vmem:[%s2638 + $0x58] sm:$0xff] %vm588, %v4687
        %4720 = vst.msk [vmem:[%s2638 + $0x60] sm:$0xff] %vm588, %v4688
        %4721 = vst.msk [vmem:[%s2638 + $0x68] sm:$0xff] %vm588, %v4689
        %4722 = vst.msk [vmem:[%s2638 + $0x70] sm:$0xff] %vm588, %v4690
        %4723 = vst.msk [vmem:[%s2638 + $0x78] sm:$0xff] %vm588, %v4691
        %4724 = vst.msk [vmem:[%s2638 + $0x80] sm:$0xff] %vm588, %v4692
        %4725 = vst.msk [vmem:[%s2638 + $0x88] sm:$0xff] %vm588, %v4693
        %4726 = vst.msk [vmem:[%s2638 + $0x90] sm:$0xff] %vm588, %v4694
        %4727 = vst.msk [vmem:[%s2638 + $0x98] sm:$0xff] %vm588, %v4695
        %4728 = vst.msk [vmem:[%s2638 + $0xa0] sm:$0xff] %vm588, %v4696
        %4729 = vst.msk [vmem:[%s2638 + $0xa8] sm:$0xff] %vm588, %v4697
        %4730 = vst.msk [vmem:[%s2638 + $0xb0] sm:$0xff] %vm588, %v4698
        %4731 = vst.msk [vmem:[%s2638 + $0xb8] sm:$0xff] %vm588, %v4699
        %4732 = vst.msk [vmem:[%s2638 + $0xc0] sm:$0xff] %vm588, %v4700
        %4733 = vst.msk [vmem:[%s2638 + $0xc8] sm:$0xff] %vm588, %v4701
        %4734 = vst.msk [vmem:[%s2638 + $0xd0] sm:$0xff] %vm588, %v4702
        %4735 = vst.msk [vmem:[%s2638 + $0xd8] sm:$0xff] %vm588, %v4703
        %4736 = vst.msk [vmem:[%s2638 + $0xe0] sm:$0xff] %vm588, %v4704
        %4737 = vst.msk [vmem:[%s2638 + $0xe8] sm:$0xff] %vm588, %v4705
        %4738 = vst.msk [vmem:[%s2638 + $0xf0] sm:$0xff] %vm588, %v4706
        %4739 = vst.msk [vmem:[%s2638 + $0xf8] sm:$0xff] %vm588, %v4707
        %v4740 = vld [vmem:[#allocation3] sm:$0xff]
        %v4741 = vld [vmem:[#allocation3 + $0x8] sm:$0xff]
        %v4742 = vld [vmem:[#allocation3 + $0x10] sm:$0xff]
        %v4743 = vld [vmem:[#allocation3 + $0x18] sm:$0xff]
        %v4744 = vld [vmem:[#allocation3 + $0x20] sm:$0xff]
        %v4745 = vld [vmem:[#allocation3 + $0x28] sm:$0xff]
        %v4746 = vld [vmem:[#allocation3 + $0x30] sm:$0xff]
        %v4747 = vld [vmem:[#allocation3 + $0x38] sm:$0xff]
        %v4748 = vld [vmem:[#allocation3 + $0x40] sm:$0xff]
        %v4749 = vld [vmem:[#allocation3 + $0x48] sm:$0xff]
        %v4750 = vld [vmem:[#allocation3 + $0x50] sm:$0xff]
        %v4751 = vld [vmem:[#allocation3 + $0x58] sm:$0xff]
        %v4752 = vld [vmem:[#allocation3 + $0x60] sm:$0xff]
        %v4753 = vld [vmem:[#allocation3 + $0x68] sm:$0xff]
        %v4754 = vld [vmem:[#allocation3 + $0x70] sm:$0xff]
        %v4755 = vld [vmem:[#allocation3 + $0x78] sm:$0xff]
        %v4756 = vld [vmem:[#allocation3 + $0x80] sm:$0xff]
        %v4757 = vld [vmem:[#allocation3 + $0x88] sm:$0xff]
        %v4758 = vld [vmem:[#allocation3 + $0x90] sm:$0xff]
        %v4759 = vld [vmem:[#allocation3 + $0x98] sm:$0xff]
        %v4760 = vld [vmem:[#allocation3 + $0xa0] sm:$0xff]
        %v4761 = vld [vmem:[#allocation3 + $0xa8] sm:$0xff]
        %v4762 = vld [vmem:[#allocation3 + $0xb0] sm:$0xff]
        %v4763 = vld [vmem:[#allocation3 + $0xb8] sm:$0xff]
        %v4764 = vld [vmem:[#allocation3 + $0xc0] sm:$0xff]
        %v4765 = vld [vmem:[#allocation3 + $0xc8] sm:$0xff]
        %v4766 = vld [vmem:[#allocation3 + $0xd0] sm:$0xff]
        %v4767 = vld [vmem:[#allocation3 + $0xd8] sm:$0xff]
        %v4768 = vld [vmem:[#allocation3 + $0xe0] sm:$0xff]
        %v4769 = vld [vmem:[#allocation3 + $0xe8] sm:$0xff]
        %v4770 = vld [vmem:[#allocation3 + $0xf0] sm:$0xff]
        %v4771 = vld [vmem:[#allocation3 + $0xf8] sm:$0xff]
        %v4772 = vld [vmem:[#allocation3 + $0x100] sm:$0xff]
        %v4773 = vld [vmem:[#allocation3 + $0x108] sm:$0xff]
        %v4774 = vld [vmem:[#allocation3 + $0x110] sm:$0xff]
        %v4775 = vld [vmem:[#allocation3 + $0x118] sm:$0xff]
        %v4776 = vrot.slane %v4740, 7
        %v4777 = vrot.slane %v4742, 7
        %v4778 = vrot.slane %v4744, 7
        %v4779 = vrot.slane %v4746, 7
        %v4780 = vrot.slane %v4748, 7
        %v4781 = vrot.slane %v4750, 7
        %v4782 = vrot.slane %v4752, 7
        %v4783 = vrot.slane %v4754, 7
        %v4784 = vrot.slane %v4756, 7
        %v4785 = vrot.slane %v4758, 7
        %v4786 = vrot.slane %v4760, 7
        %v4787 = vrot.slane %v4762, 7
        %v4788 = vrot.slane %v4764, 7
        %v4789 = vrot.slane %v4766, 7
        %v4790 = vrot.slane %v4768, 7
        %v4791 = vrot.slane %v4770, 7
        %v4792 = vrot.slane %v4772, 7
        %v4793 = vrot.slane %v4774, 7
        %v4794 = vrot.slane %v4741, 7
        %v4795 = vrot.slane %v4743, 7
        %v4796 = vrot.slane %v4745, 7
        %v4797 = vrot.slane %v4747, 7
        %v4798 = vrot.slane %v4749, 7
        %v4799 = vrot.slane %v4751, 7
        %v4800 = vrot.slane %v4753, 7
        %v4801 = vrot.slane %v4755, 7
        %v4802 = vrot.slane %v4757, 7
        %v4803 = vrot.slane %v4759, 7
        %v4804 = vrot.slane %v4761, 7
        %v4805 = vrot.slane %v4763, 7
        %v4806 = vrot.slane %v4765, 7
        %v4807 = vrot.slane %v4767, 7
        %v4808 = vrot.slane %v4769, 7
        %v4809 = vrot.slane %v4771, 7
        %v4810 = vrot.slane %v4773, 7
        %v4811 = vrot.slane %v4775, 7
        %v4812 = vsel %vm736, %v4776, %v4794
        %v4813 = vsel %vm736, %v4777, %v4795
        %v4814 = vsel %vm736, %v4778, %v4796
        %v4815 = vsel %vm736, %v4779, %v4797
        %v4816 = vsel %vm736, %v4780, %v4798
        %v4817 = vsel %vm736, %v4781, %v4799
        %v4818 = vsel %vm736, %v4782, %v4800
        %v4819 = vsel %vm736, %v4783, %v4801
        %v4820 = vsel %vm736, %v4784, %v4802
        %v4821 = vsel %vm736, %v4785, %v4803
        %v4822 = vsel %vm736, %v4786, %v4804
        %v4823 = vsel %vm736, %v4787, %v4805
        %v4824 = vsel %vm736, %v4788, %v4806
        %v4825 = vsel %vm736, %v4789, %v4807
        %v4826 = vsel %vm736, %v4790, %v4808
        %v4827 = vsel %vm736, %v4791, %v4809
        %v4828 = vsel %vm736, %v4792, %v4810
        %v4829 = vsel %vm736, %v4793, %v4811
        %v4830 = vsel %vm736, %v4794, %v4776
        %v4831 = vsel %vm736, %v4795, %v4777
        %v4832 = vsel %vm736, %v4796, %v4778
        %v4833 = vsel %vm736, %v4797, %v4779
        %v4834 = vsel %vm736, %v4798, %v4780
        %v4835 = vsel %vm736, %v4799, %v4781
        %v4836 = vsel %vm736, %v4800, %v4782
        %v4837 = vsel %vm736, %v4801, %v4783
        %v4838 = vsel %vm736, %v4802, %v4784
        %v4839 = vsel %vm736, %v4803, %v4785
        %v4840 = vsel %vm736, %v4804, %v4786
        %v4841 = vsel %vm736, %v4805, %v4787
        %v4842 = vsel %vm736, %v4806, %v4788
        %v4843 = vsel %vm736, %v4807, %v4789
        %v4844 = vsel %vm736, %v4808, %v4790
        %v4845 = vsel %vm736, %v4809, %v4791
        %v4846 = vsel %vm736, %v4810, %v4792
        %v4847 = vsel %vm736, %v4811, %v4793
        %v4848 = vsel %vm775, 0.0, %v4830
        %v4849 = vsel %vm776, 0.0, %v4812
        %v4850 = vsel %vm775, 0.0, %v4831
        %v4851 = vsel %vm776, 0.0, %v4813
        %v4852 = vsel %vm775, 0.0, %v4832
        %v4853 = vsel %vm776, 0.0, %v4814
        %v4854 = vsel %vm775, 0.0, %v4833
        %v4855 = vsel %vm776, 0.0, %v4815
        %v4856 = vsel %vm775, 0.0, %v4834
        %v4857 = vsel %vm776, 0.0, %v4816
        %v4858 = vsel %vm775, 0.0, %v4835
        %v4859 = vsel %vm776, 0.0, %v4817
        %v4860 = vsel %vm775, 0.0, %v4836
        %v4861 = vsel %vm776, 0.0, %v4818
        %v4862 = vsel %vm775, 0.0, %v4837
        %v4863 = vsel %vm776, 0.0, %v4819
        %v4864 = vsel %vm775, 0.0, %v4838
        %v4865 = vsel %vm776, 0.0, %v4820
        %v4866 = vsel %vm775, 0.0, %v4839
        %v4867 = vsel %vm776, 0.0, %v4821
        %v4868 = vsel %vm775, 0.0, %v4840
        %v4869 = vsel %vm776, 0.0, %v4822
        %v4870 = vsel %vm775, 0.0, %v4841
        %v4871 = vsel %vm776, 0.0, %v4823
        %v4872 = vsel %vm775, 0.0, %v4842
        %v4873 = vsel %vm776, 0.0, %v4824
        %v4874 = vsel %vm775, 0.0, %v4843
        %v4875 = vsel %vm776, 0.0, %v4825
        %v4876 = vsel %vm775, 0.0, %v4844
        %v4877 = vsel %vm776, 0.0, %v4826
        %v4878 = vsel %vm775, 0.0, %v4845
        %v4879 = vsel %vm776, 0.0, %v4827
        %v4880 = vsel %vm775, 0.0, %v4846
        %v4881 = vsel %vm776, 0.0, %v4828
        %v4882 = vsel %vm775, 0.0, %v4847
        %v4883 = vsel %vm776, 0.0, %v4829
        %v4884 = vrot.slane %v4740, 1
        %v4885 = vrot.slane %v4742, 1
        %v4886 = vrot.slane %v4744, 1
        %v4887 = vrot.slane %v4746, 1
        %v4888 = vrot.slane %v4748, 1
        %v4889 = vrot.slane %v4750, 1
        %v4890 = vrot.slane %v4752, 1
        %v4891 = vrot.slane %v4754, 1
        %v4892 = vrot.slane %v4756, 1
        %v4893 = vrot.slane %v4758, 1
        %v4894 = vrot.slane %v4760, 1
        %v4895 = vrot.slane %v4762, 1
        %v4896 = vrot.slane %v4764, 1
        %v4897 = vrot.slane %v4766, 1
        %v4898 = vrot.slane %v4768, 1
        %v4899 = vrot.slane %v4770, 1
        %v4900 = vrot.slane %v4772, 1
        %v4901 = vrot.slane %v4774, 1
        %v4902 = vrot.slane %v4741, 1
        %v4903 = vrot.slane %v4743, 1
        %v4904 = vrot.slane %v4745, 1
        %v4905 = vrot.slane %v4747, 1
        %v4906 = vrot.slane %v4749, 1
        %v4907 = vrot.slane %v4751, 1
        %v4908 = vrot.slane %v4753, 1
        %v4909 = vrot.slane %v4755, 1
        %v4910 = vrot.slane %v4757, 1
        %v4911 = vrot.slane %v4759, 1
        %v4912 = vrot.slane %v4761, 1
        %v4913 = vrot.slane %v4763, 1
        %v4914 = vrot.slane %v4765, 1
        %v4915 = vrot.slane %v4767, 1
        %v4916 = vrot.slane %v4769, 1
        %v4917 = vrot.slane %v4771, 1
        %v4918 = vrot.slane %v4773, 1
        %v4919 = vrot.slane %v4775, 1
        %v4920 = vsel %vm851, %v4884, %v4902
        %v4921 = vsel %vm851, %v4885, %v4903
        %v4922 = vsel %vm851, %v4886, %v4904
        %v4923 = vsel %vm851, %v4887, %v4905
        %v4924 = vsel %vm851, %v4888, %v4906
        %v4925 = vsel %vm851, %v4889, %v4907
        %v4926 = vsel %vm851, %v4890, %v4908
        %v4927 = vsel %vm851, %v4891, %v4909
        %v4928 = vsel %vm851, %v4892, %v4910
        %v4929 = vsel %vm851, %v4893, %v4911
        %v4930 = vsel %vm851, %v4894, %v4912
        %v4931 = vsel %vm851, %v4895, %v4913
        %v4932 = vsel %vm851, %v4896, %v4914
        %v4933 = vsel %vm851, %v4897, %v4915
        %v4934 = vsel %vm851, %v4898, %v4916
        %v4935 = vsel %vm851, %v4899, %v4917
        %v4936 = vsel %vm851, %v4900, %v4918
        %v4937 = vsel %vm851, %v4901, %v4919
        %v4938 = vsel %vm851, %v4902, %v4884
        %v4939 = vsel %vm851, %v4903, %v4885
        %v4940 = vsel %vm851, %v4904, %v4886
        %v4941 = vsel %vm851, %v4905, %v4887
        %v4942 = vsel %vm851, %v4906, %v4888
        %v4943 = vsel %vm851, %v4907, %v4889
        %v4944 = vsel %vm851, %v4908, %v4890
        %v4945 = vsel %vm851, %v4909, %v4891
        %v4946 = vsel %vm851, %v4910, %v4892
        %v4947 = vsel %vm851, %v4911, %v4893
        %v4948 = vsel %vm851, %v4912, %v4894
        %v4949 = vsel %vm851, %v4913, %v4895
        %v4950 = vsel %vm851, %v4914, %v4896
        %v4951 = vsel %vm851, %v4915, %v4897
        %v4952 = vsel %vm851, %v4916, %v4898
        %v4953 = vsel %vm851, %v4917, %v4899
        %v4954 = vsel %vm851, %v4918, %v4900
        %v4955 = vsel %vm851, %v4919, %v4901
        %v4956 = vsel %vm890, 0.0, %v4920
        %v4957 = vsel %vm891, 0.0, %v4938
        %v4958 = vsel %vm890, 0.0, %v4921
        %v4959 = vsel %vm891, 0.0, %v4939
        %v4960 = vsel %vm890, 0.0, %v4922
        %v4961 = vsel %vm891, 0.0, %v4940
        %v4962 = vsel %vm890, 0.0, %v4923
        %v4963 = vsel %vm891, 0.0, %v4941
        %v4964 = vsel %vm890, 0.0, %v4924
        %v4965 = vsel %vm891, 0.0, %v4942
        %v4966 = vsel %vm890, 0.0, %v4925
        %v4967 = vsel %vm891, 0.0, %v4943
        %v4968 = vsel %vm890, 0.0, %v4926
        %v4969 = vsel %vm891, 0.0, %v4944
        %v4970 = vsel %vm890, 0.0, %v4927
        %v4971 = vsel %vm891, 0.0, %v4945
        %v4972 = vsel %vm890, 0.0, %v4928
        %v4973 = vsel %vm891, 0.0, %v4946
        %v4974 = vsel %vm890, 0.0, %v4929
        %v4975 = vsel %vm891, 0.0, %v4947
        %v4976 = vsel %vm890, 0.0, %v4930
        %v4977 = vsel %vm891, 0.0, %v4948
        %v4978 = vsel %vm890, 0.0, %v4931
        %v4979 = vsel %vm891, 0.0, %v4949
        %v4980 = vsel %vm890, 0.0, %v4932
        %v4981 = vsel %vm891, 0.0, %v4950
        %v4982 = vsel %vm890, 0.0, %v4933
        %v4983 = vsel %vm891, 0.0, %v4951
        %v4984 = vsel %vm890, 0.0, %v4934
        %v4985 = vsel %vm891, 0.0, %v4952
        %v4986 = vsel %vm890, 0.0, %v4935
        %v4987 = vsel %vm891, 0.0, %v4953
        %v4988 = vsel %vm890, 0.0, %v4936
        %v4989 = vsel %vm891, 0.0, %v4954
        %v4990 = vsel %vm890, 0.0, %v4937
        %v4991 = vsel %vm891, 0.0, %v4955
        %v4992 = vpack.c.bf16 %v4848, %v4848
        %v4993 = vpack.c.bf16 %v4849, %v4849
        %v4994 = vpack.c.bf16 %v4850, %v4850
        %v4995 = vpack.c.bf16 %v4851, %v4851
        %v4996 = vpack.c.bf16 %v4852, %v4852
        %v4997 = vpack.c.bf16 %v4853, %v4853
        %v4998 = vpack.c.bf16 %v4854, %v4854
        %v4999 = vpack.c.bf16 %v4855, %v4855
        %v5000 = vpack.c.bf16 %v4856, %v4856
        %v5001 = vpack.c.bf16 %v4857, %v4857
        %v5002 = vpack.c.bf16 %v4858, %v4858
        %v5003 = vpack.c.bf16 %v4859, %v4859
        %v5004 = vpack.c.bf16 %v4860, %v4860
        %v5005 = vpack.c.bf16 %v4861, %v4861
        %v5006 = vpack.c.bf16 %v4862, %v4862
        %v5007 = vpack.c.bf16 %v4863, %v4863
        %v5008 = vpack.c.bf16 %v4864, %v4864
        %v5009 = vpack.c.bf16 %v4865, %v4865
        %v5010 = vpack.c.bf16 %v4866, %v4866
        %v5011 = vpack.c.bf16 %v4867, %v4867
        %v5012 = vpack.c.bf16 %v4868, %v4868
        %v5013 = vpack.c.bf16 %v4869, %v4869
        %v5014 = vpack.c.bf16 %v4870, %v4870
        %v5015 = vpack.c.bf16 %v4871, %v4871
        %v5016 = vpack.c.bf16 %v4872, %v4872
        %v5017 = vpack.c.bf16 %v4873, %v4873
        %v5018 = vpack.c.bf16 %v4874, %v4874
        %v5019 = vpack.c.bf16 %v4875, %v4875
        %v5020 = vpack.c.bf16 %v4876, %v4876
        %v5021 = vpack.c.bf16 %v4877, %v4877
        %v5022 = vpack.c.bf16 %v4878, %v4878
        %v5023 = vpack.c.bf16 %v4879, %v4879
        %v5024 = vpack.c.bf16 %v4880, %v4880
        %v5025 = vpack.c.bf16 %v4881, %v4881
        %v5026 = vpack.c.bf16 %v4882, %v4882
        %v5027 = vpack.c.bf16 %v4883, %v4883
        %v5028 = vpack.c.bf16 %v4740, %v4740
        %v5029 = vpack.c.bf16 %v4741, %v4741
        %v5030 = vpack.c.bf16 %v4742, %v4742
        %v5031 = vpack.c.bf16 %v4743, %v4743
        %v5032 = vpack.c.bf16 %v4744, %v4744
        %v5033 = vpack.c.bf16 %v4745, %v4745
        %v5034 = vpack.c.bf16 %v4746, %v4746
        %v5035 = vpack.c.bf16 %v4747, %v4747
        %v5036 = vpack.c.bf16 %v4748, %v4748
        %v5037 = vpack.c.bf16 %v4749, %v4749
        %v5038 = vpack.c.bf16 %v4750, %v4750
        %v5039 = vpack.c.bf16 %v4751, %v4751
        %v5040 = vpack.c.bf16 %v4752, %v4752
        %v5041 = vpack.c.bf16 %v4753, %v4753
        %v5042 = vpack.c.bf16 %v4754, %v4754
        %v5043 = vpack.c.bf16 %v4755, %v4755
        %v5044 = vpack.c.bf16 %v4756, %v4756
        %v5045 = vpack.c.bf16 %v4757, %v4757
        %v5046 = vpack.c.bf16 %v4758, %v4758
        %v5047 = vpack.c.bf16 %v4759, %v4759
        %v5048 = vpack.c.bf16 %v4760, %v4760
        %v5049 = vpack.c.bf16 %v4761, %v4761
        %v5050 = vpack.c.bf16 %v4762, %v4762
        %v5051 = vpack.c.bf16 %v4763, %v4763
        %v5052 = vpack.c.bf16 %v4764, %v4764
        %v5053 = vpack.c.bf16 %v4765, %v4765
        %v5054 = vpack.c.bf16 %v4766, %v4766
        %v5055 = vpack.c.bf16 %v4767, %v4767
        %v5056 = vpack.c.bf16 %v4768, %v4768
        %v5057 = vpack.c.bf16 %v4769, %v4769
        %v5058 = vpack.c.bf16 %v4770, %v4770
        %v5059 = vpack.c.bf16 %v4771, %v4771
        %v5060 = vpack.c.bf16 %v4772, %v4772
        %v5061 = vpack.c.bf16 %v4773, %v4773
        %v5062 = vpack.c.bf16 %v4774, %v4774
        %v5063 = vpack.c.bf16 %v4775, %v4775
        %v5064 = vpack.c.bf16 %v4956, %v4956
        %v5065 = vpack.c.bf16 %v4957, %v4957
        %v5066 = vpack.c.bf16 %v4958, %v4958
        %v5067 = vpack.c.bf16 %v4959, %v4959
        %v5068 = vpack.c.bf16 %v4960, %v4960
        %v5069 = vpack.c.bf16 %v4961, %v4961
        %v5070 = vpack.c.bf16 %v4962, %v4962
        %v5071 = vpack.c.bf16 %v4963, %v4963
        %v5072 = vpack.c.bf16 %v4964, %v4964
        %v5073 = vpack.c.bf16 %v4965, %v4965
        %v5074 = vpack.c.bf16 %v4966, %v4966
        %v5075 = vpack.c.bf16 %v4967, %v4967
        %v5076 = vpack.c.bf16 %v4968, %v4968
        %v5077 = vpack.c.bf16 %v4969, %v4969
        %v5078 = vpack.c.bf16 %v4970, %v4970
        %v5079 = vpack.c.bf16 %v4971, %v4971
        %v5080 = vpack.c.bf16 %v4972, %v4972
        %v5081 = vpack.c.bf16 %v4973, %v4973
        %v5082 = vpack.c.bf16 %v4974, %v4974
        %v5083 = vpack.c.bf16 %v4975, %v4975
        %v5084 = vpack.c.bf16 %v4976, %v4976
        %v5085 = vpack.c.bf16 %v4977, %v4977
        %v5086 = vpack.c.bf16 %v4978, %v4978
        %v5087 = vpack.c.bf16 %v4979, %v4979
        %v5088 = vpack.c.bf16 %v4980, %v4980
        %v5089 = vpack.c.bf16 %v4981, %v4981
        %v5090 = vpack.c.bf16 %v4982, %v4982
        %v5091 = vpack.c.bf16 %v4983, %v4983
        %v5092 = vpack.c.bf16 %v4984, %v4984
        %v5093 = vpack.c.bf16 %v4985, %v4985
        %v5094 = vpack.c.bf16 %v4986, %v4986
        %v5095 = vpack.c.bf16 %v4987, %v4987
        %v5096 = vpack.c.bf16 %v4988, %v4988
        %v5097 = vpack.c.bf16 %v4989, %v4989
        %v5098 = vpack.c.bf16 %v4990, %v4990
        %v5099 = vpack.c.bf16 %v4991, %v4991
        %v5100 = vld [vmem:[#allocation12] sm:$0xf]
        %v5101 = vld [vmem:[#allocation12 + $0x4] sm:$0xf]
        %v5102 = vld [vmem:[#allocation12 + $0x8] sm:$0xf]
        %v5103 = vld [vmem:[#allocation12 + $0xc] sm:$0xf]
        %s5104 = scalar_lea.vmem [#allocation12], 16
        %v5105 = vld [vmem:[%s5104] sm:$0xf]
        %v5106 = vld [vmem:[%s5104 + $0x4] sm:$0xf]
        %v5107 = vld [vmem:[%s5104 + $0x8] sm:$0xf]
        %v5108 = vld [vmem:[%s5104 + $0xc] sm:$0xf]
        %v5141 = vunpack.c.l.b16 %v5028
        %v5142 = vunpack.c.l.b16 %v5029
        %v5143 = vunpack.c.l.b16 %v5030
        %v5144 = vunpack.c.l.b16 %v5031
        %v5145 = vunpack.c.l.b16 %v5032
        %v5146 = vunpack.c.l.b16 %v5033
        %v5147 = vunpack.c.l.b16 %v5034
        %v5148 = vunpack.c.l.b16 %v5035
        %v5149 = vunpack.c.l.b16 %v5036
        %v5150 = vunpack.c.l.b16 %v5037
        %v5151 = vunpack.c.l.b16 %v5038
        %v5152 = vunpack.c.l.b16 %v5039
        %v5153 = vunpack.c.l.b16 %v5040
        %v5154 = vunpack.c.l.b16 %v5041
        %v5155 = vunpack.c.l.b16 %v5042
        %v5156 = vunpack.c.l.b16 %v5043
        %v5157 = vunpack.c.l.b16 %v5044
        %v5158 = vunpack.c.l.b16 %v5045
        %v5159 = vunpack.c.l.b16 %v5046
        %v5160 = vunpack.c.l.b16 %v5047
        %v5161 = vunpack.c.l.b16 %v5048
        %v5162 = vunpack.c.l.b16 %v5049
        %v5163 = vunpack.c.l.b16 %v5050
        %v5164 = vunpack.c.l.b16 %v5051
        %v5165 = vunpack.c.l.b16 %v5052
        %v5166 = vunpack.c.l.b16 %v5053
        %v5167 = vunpack.c.l.b16 %v5054
        %v5168 = vunpack.c.l.b16 %v5055
        %v5169 = vunpack.c.l.b16 %v5056
        %v5170 = vunpack.c.l.b16 %v5057
        %v5171 = vunpack.c.l.b16 %v5058
        %v5172 = vunpack.c.l.b16 %v5059
        %v5173 = vpack.c.b16 %v5142, %v5141
        %v5174 = vpack.c.b16 %v5144, %v5143
        %v5175 = vpack.c.b16 %v5146, %v5145
        %v5176 = vpack.c.b16 %v5148, %v5147
        %v5177 = vpack.c.b16 %v5150, %v5149
        %v5178 = vpack.c.b16 %v5152, %v5151
        %v5179 = vpack.c.b16 %v5154, %v5153
        %v5180 = vpack.c.b16 %v5156, %v5155
        %v5181 = vpack.c.b16 %v5158, %v5157
        %v5182 = vpack.c.b16 %v5160, %v5159
        %v5183 = vpack.c.b16 %v5162, %v5161
        %v5184 = vpack.c.b16 %v5164, %v5163
        %v5185 = vpack.c.b16 %v5166, %v5165
        %v5186 = vpack.c.b16 %v5168, %v5167
        %v5187 = vpack.c.b16 %v5170, %v5169
        %v5188 = vpack.c.b16 %v5172, %v5171
        %v5193 = vunpack.c.l.b16 %v5105
        %v5194 = vunpack.c.l.b16 %v5106
        %v5195 = vunpack.c.l.b16 %v5107
        %v5196 = vunpack.c.l.b16 %v5108
        %v5197 = vpack.c.b16 %v5194, %v5193
        %v5198 = vpack.c.b16 %v5196, %v5195
        %v5202 = vsel %vm588, %v5173, 0
        %v5205 = vsel %vm588, %v5174, 0
        %v5208 = vsel %vm588, %v5175, 0
        %v5211 = vsel %vm588, %v5176, 0
        %v5214 = vsel %vm588, %v5177, 0
        %v5217 = vsel %vm588, %v5178, 0
        %v5220 = vsel %vm588, %v5179, 0
        %v5223 = vsel %vm588, %v5180, 0
        %v5226 = vsel %vm588, %v5181, 0
        %v5229 = vsel %vm588, %v5182, 0
        %v5232 = vsel %vm588, %v5183, 0
        %v5235 = vsel %vm588, %v5184, 0
        %v5238 = vsel %vm588, %v5185, 0
        %v5241 = vsel %vm588, %v5186, 0
        %v5244 = vsel %vm588, %v5187, 0
        %v5247 = vsel %vm588, %v5188, 0
        %5249 = vmatpush.bf16.msra.mxu0 0
        %5250 = vmatpush.bf16.msra.mxu0 0
        %5251 = vmatpush.bf16.msra.mxu0 0
        %5252 = vmatpush.bf16.msra.mxu0 0
        %5253 = vmatpush.bf16.msra.mxu0 0
        %5254 = vmatpush.bf16.msra.mxu0 0
        %5255 = vmatpush.bf16.msra.mxu0 %v5198
        %5256 = vmatpush.bf16.msra.mxu0 %v5197
        %5257 = vmatmul.bf16.gmra.mxu0 %v5202
        %v5258 = vpop.f32.mrf.mxu0
        %v5259 = vadd.f32 0.0, %v5258
        %v5260 = vpop.f32.mrf.mxu0
        %v5261 = vadd.f32 0.0, %v5260
        %5262 = vmatmul.bf16.gmra.mxu0 %v5205
        %v5263 = vpop.f32.mrf.mxu0
        %v5264 = vadd.f32 0.0, %v5263
        %v5265 = vpop.f32.mrf.mxu0
        %v5266 = vadd.f32 0.0, %v5265
        %5267 = vmatmul.bf16.gmra.mxu0 %v5208
        %v5268 = vpop.f32.mrf.mxu0
        %v5269 = vadd.f32 0.0, %v5268
        %v5270 = vpop.f32.mrf.mxu0
        %v5271 = vadd.f32 0.0, %v5270
        %5272 = vmatmul.bf16.gmra.mxu0 %v5211
        %v5273 = vpop.f32.mrf.mxu0
        %v5274 = vadd.f32 0.0, %v5273
        %v5275 = vpop.f32.mrf.mxu0
        %v5276 = vadd.f32 0.0, %v5275
        %5277 = vmatmul.bf16.gmra.mxu0 %v5214
        %v5278 = vpop.f32.mrf.mxu0
        %v5279 = vadd.f32 0.0, %v5278
        %v5280 = vpop.f32.mrf.mxu0
        %v5281 = vadd.f32 0.0, %v5280
        %5282 = vmatmul.bf16.gmra.mxu0 %v5217
        %v5283 = vpop.f32.mrf.mxu0
        %v5284 = vadd.f32 0.0, %v5283
        %v5285 = vpop.f32.mrf.mxu0
        %v5286 = vadd.f32 0.0, %v5285
        %5287 = vmatmul.bf16.gmra.mxu0 %v5220
        %v5288 = vpop.f32.mrf.mxu0
        %v5289 = vadd.f32 0.0, %v5288
        %v5290 = vpop.f32.mrf.mxu0
        %v5291 = vadd.f32 0.0, %v5290
        %5292 = vmatmul.bf16.gmra.mxu0 %v5223
        %v5293 = vpop.f32.mrf.mxu0
        %v5294 = vadd.f32 0.0, %v5293
        %v5295 = vpop.f32.mrf.mxu0
        %v5296 = vadd.f32 0.0, %v5295
        %5297 = vmatmul.bf16.gmra.mxu0 %v5226
        %v5298 = vpop.f32.mrf.mxu0
        %v5299 = vadd.f32 0.0, %v5298
        %v5300 = vpop.f32.mrf.mxu0
        %v5301 = vadd.f32 0.0, %v5300
        %5302 = vmatmul.bf16.gmra.mxu0 %v5229
        %v5303 = vpop.f32.mrf.mxu0
        %v5304 = vadd.f32 0.0, %v5303
        %v5305 = vpop.f32.mrf.mxu0
        %v5306 = vadd.f32 0.0, %v5305
        %5307 = vmatmul.bf16.gmra.mxu0 %v5232
        %v5308 = vpop.f32.mrf.mxu0
        %v5309 = vadd.f32 0.0, %v5308
        %v5310 = vpop.f32.mrf.mxu0
        %v5311 = vadd.f32 0.0, %v5310
        %5312 = vmatmul.bf16.gmra.mxu0 %v5235
        %v5313 = vpop.f32.mrf.mxu0
        %v5314 = vadd.f32 0.0, %v5313
        %v5315 = vpop.f32.mrf.mxu0
        %v5316 = vadd.f32 0.0, %v5315
        %5317 = vmatmul.bf16.gmra.mxu0 %v5238
        %v5318 = vpop.f32.mrf.mxu0
        %v5319 = vadd.f32 0.0, %v5318
        %v5320 = vpop.f32.mrf.mxu0
        %v5321 = vadd.f32 0.0, %v5320
        %5322 = vmatmul.bf16.gmra.mxu0 %v5241
        %v5323 = vpop.f32.mrf.mxu0
        %v5324 = vadd.f32 0.0, %v5323
        %v5325 = vpop.f32.mrf.mxu0
        %v5326 = vadd.f32 0.0, %v5325
        %5327 = vmatmul.bf16.gmra.mxu0 %v5244
        %v5328 = vpop.f32.mrf.mxu0
        %v5329 = vadd.f32 0.0, %v5328
        %v5330 = vpop.f32.mrf.mxu0
        %v5331 = vadd.f32 0.0, %v5330
        %5332 = vmatmul.bf16.gmra.mxu0 %v5247
        %v5333 = vpop.f32.mrf.mxu0
        %v5334 = vadd.f32 0.0, %v5333
        %v5335 = vpop.f32.mrf.mxu0
        %v5336 = vadd.f32 0.0, %v5335
        %5337 = vdwg.mxu0
        %v5370 = vunpack.c.l.b16 %v4992
        %v5371 = vunpack.c.l.b16 %v4993
        %v5372 = vunpack.c.l.b16 %v4994
        %v5373 = vunpack.c.l.b16 %v4995
        %v5374 = vunpack.c.l.b16 %v4996
        %v5375 = vunpack.c.l.b16 %v4997
        %v5376 = vunpack.c.l.b16 %v4998
        %v5377 = vunpack.c.l.b16 %v4999
        %v5378 = vunpack.c.l.b16 %v5000
        %v5379 = vunpack.c.l.b16 %v5001
        %v5380 = vunpack.c.l.b16 %v5002
        %v5381 = vunpack.c.l.b16 %v5003
        %v5382 = vunpack.c.l.b16 %v5004
        %v5383 = vunpack.c.l.b16 %v5005
        %v5384 = vunpack.c.l.b16 %v5006
        %v5385 = vunpack.c.l.b16 %v5007
        %v5386 = vunpack.c.l.b16 %v5008
        %v5387 = vunpack.c.l.b16 %v5009
        %v5388 = vunpack.c.l.b16 %v5010
        %v5389 = vunpack.c.l.b16 %v5011
        %v5390 = vunpack.c.l.b16 %v5012
        %v5391 = vunpack.c.l.b16 %v5013
        %v5392 = vunpack.c.l.b16 %v5014
        %v5393 = vunpack.c.l.b16 %v5015
        %v5394 = vunpack.c.l.b16 %v5016
        %v5395 = vunpack.c.l.b16 %v5017
        %v5396 = vunpack.c.l.b16 %v5018
        %v5397 = vunpack.c.l.b16 %v5019
        %v5398 = vunpack.c.l.b16 %v5020
        %v5399 = vunpack.c.l.b16 %v5021
        %v5400 = vunpack.c.l.b16 %v5022
        %v5401 = vunpack.c.l.b16 %v5023
        %v5402 = vpack.c.b16 %v5371, %v5370
        %v5403 = vpack.c.b16 %v5373, %v5372
        %v5404 = vpack.c.b16 %v5375, %v5374
        %v5405 = vpack.c.b16 %v5377, %v5376
        %v5406 = vpack.c.b16 %v5379, %v5378
        %v5407 = vpack.c.b16 %v5381, %v5380
        %v5408 = vpack.c.b16 %v5383, %v5382
        %v5409 = vpack.c.b16 %v5385, %v5384
        %v5410 = vpack.c.b16 %v5387, %v5386
        %v5411 = vpack.c.b16 %v5389, %v5388
        %v5412 = vpack.c.b16 %v5391, %v5390
        %v5413 = vpack.c.b16 %v5393, %v5392
        %v5414 = vpack.c.b16 %v5395, %v5394
        %v5415 = vpack.c.b16 %v5397, %v5396
        %v5416 = vpack.c.b16 %v5399, %v5398
        %v5417 = vpack.c.b16 %v5401, %v5400
        %v5422 = vunpack.c.l.b16 %v5100
        %v5423 = vunpack.c.l.b16 %v5101
        %v5424 = vunpack.c.l.b16 %v5102
        %v5425 = vunpack.c.l.b16 %v5103
        %v5426 = vpack.c.b16 %v5423, %v5422
        %v5427 = vpack.c.b16 %v5425, %v5424
        %v5431 = vsel %vm588, %v5402, 0
        %v5434 = vsel %vm588, %v5403, 0
        %v5437 = vsel %vm588, %v5404, 0
        %v5440 = vsel %vm588, %v5405, 0
        %v5443 = vsel %vm588, %v5406, 0
        %v5446 = vsel %vm588, %v5407, 0
        %v5449 = vsel %vm588, %v5408, 0
        %v5452 = vsel %vm588, %v5409, 0
        %v5455 = vsel %vm588, %v5410, 0
        %v5458 = vsel %vm588, %v5411, 0
        %v5461 = vsel %vm588, %v5412, 0
        %v5464 = vsel %vm588, %v5413, 0
        %v5467 = vsel %vm588, %v5414, 0
        %v5470 = vsel %vm588, %v5415, 0
        %v5473 = vsel %vm588, %v5416, 0
        %v5476 = vsel %vm588, %v5417, 0
        %5478 = vmatpush.bf16.msra.mxu0 0
        %5479 = vmatpush.bf16.msra.mxu0 0
        %5480 = vmatpush.bf16.msra.mxu0 0
        %5481 = vmatpush.bf16.msra.mxu0 0
        %5482 = vmatpush.bf16.msra.mxu0 0
        %5483 = vmatpush.bf16.msra.mxu0 0
        %5484 = vmatpush.bf16.msra.mxu0 %v5427
        %5485 = vmatpush.bf16.msra.mxu0 %v5426
        %5486 = vmatmul.bf16.gmra.mxu0 %v5431
        %v5487 = vpop.f32.mrf.mxu0
        %v5488 = vadd.f32 %v5259, %v5487
        %v5489 = vpop.f32.mrf.mxu0
        %v5490 = vadd.f32 %v5261, %v5489
        %5491 = vmatmul.bf16.gmra.mxu0 %v5434
        %v5492 = vpop.f32.mrf.mxu0
        %v5493 = vadd.f32 %v5264, %v5492
        %v5494 = vpop.f32.mrf.mxu0
        %v5495 = vadd.f32 %v5266, %v5494
        %5496 = vmatmul.bf16.gmra.mxu0 %v5437
        %v5497 = vpop.f32.mrf.mxu0
        %v5498 = vadd.f32 %v5269, %v5497
        %v5499 = vpop.f32.mrf.mxu0
        %v5500 = vadd.f32 %v5271, %v5499
        %5501 = vmatmul.bf16.gmra.mxu0 %v5440
        %v5502 = vpop.f32.mrf.mxu0
        %v5503 = vadd.f32 %v5274, %v5502
        %v5504 = vpop.f32.mrf.mxu0
        %v5505 = vadd.f32 %v5276, %v5504
        %5506 = vmatmul.bf16.gmra.mxu0 %v5443
        %v5507 = vpop.f32.mrf.mxu0
        %v5508 = vadd.f32 %v5279, %v5507
        %v5509 = vpop.f32.mrf.mxu0
        %v5510 = vadd.f32 %v5281, %v5509
        %5511 = vmatmul.bf16.gmra.mxu0 %v5446
        %v5512 = vpop.f32.mrf.mxu0
        %v5513 = vadd.f32 %v5284, %v5512
        %v5514 = vpop.f32.mrf.mxu0
        %v5515 = vadd.f32 %v5286, %v5514
        %5516 = vmatmul.bf16.gmra.mxu0 %v5449
        %v5517 = vpop.f32.mrf.mxu0
        %v5518 = vadd.f32 %v5289, %v5517
        %v5519 = vpop.f32.mrf.mxu0
        %v5520 = vadd.f32 %v5291, %v5519
        %5521 = vmatmul.bf16.gmra.mxu0 %v5452
        %v5522 = vpop.f32.mrf.mxu0
        %v5523 = vadd.f32 %v5294, %v5522
        %v5524 = vpop.f32.mrf.mxu0
        %v5525 = vadd.f32 %v5296, %v5524
        %5526 = vmatmul.bf16.gmra.mxu0 %v5455
        %v5527 = vpop.f32.mrf.mxu0
        %v5528 = vadd.f32 %v5299, %v5527
        %v5529 = vpop.f32.mrf.mxu0
        %v5530 = vadd.f32 %v5301, %v5529
        %5531 = vmatmul.bf16.gmra.mxu0 %v5458
        %v5532 = vpop.f32.mrf.mxu0
        %v5533 = vadd.f32 %v5304, %v5532
        %v5534 = vpop.f32.mrf.mxu0
        %v5535 = vadd.f32 %v5306, %v5534
        %5536 = vmatmul.bf16.gmra.mxu0 %v5461
        %v5537 = vpop.f32.mrf.mxu0
        %v5538 = vadd.f32 %v5309, %v5537
        %v5539 = vpop.f32.mrf.mxu0
        %v5540 = vadd.f32 %v5311, %v5539
        %5541 = vmatmul.bf16.gmra.mxu0 %v5464
        %v5542 = vpop.f32.mrf.mxu0
        %v5543 = vadd.f32 %v5314, %v5542
        %v5544 = vpop.f32.mrf.mxu0
        %v5545 = vadd.f32 %v5316, %v5544
        %5546 = vmatmul.bf16.gmra.mxu0 %v5467
        %v5547 = vpop.f32.mrf.mxu0
        %v5548 = vadd.f32 %v5319, %v5547
        %v5549 = vpop.f32.mrf.mxu0
        %v5550 = vadd.f32 %v5321, %v5549
        %5551 = vmatmul.bf16.gmra.mxu0 %v5470
        %v5552 = vpop.f32.mrf.mxu0
        %v5553 = vadd.f32 %v5324, %v5552
        %v5554 = vpop.f32.mrf.mxu0
        %v5555 = vadd.f32 %v5326, %v5554
        %5556 = vmatmul.bf16.gmra.mxu0 %v5473
        %v5557 = vpop.f32.mrf.mxu0
        %v5558 = vadd.f32 %v5329, %v5557
        %v5559 = vpop.f32.mrf.mxu0
        %v5560 = vadd.f32 %v5331, %v5559
        %5561 = vmatmul.bf16.gmra.mxu0 %v5476
        %v5562 = vpop.f32.mrf.mxu0
        %v5563 = vadd.f32 %v5334, %v5562
        %v5564 = vpop.f32.mrf.mxu0
        %v5565 = vadd.f32 %v5336, %v5564
        %5566 = vdwg.mxu0
        %s5567 = scalar_lea.vmem [#allocation12], 32
        %v5568 = vld [vmem:[%s5567] sm:$0xf]
        %v5569 = vld [vmem:[%s5567 + $0x4] sm:$0xf]
        %v5570 = vld [vmem:[%s5567 + $0x8] sm:$0xf]
        %v5571 = vld [vmem:[%s5567 + $0xc] sm:$0xf]
        %v5604 = vunpack.c.l.b16 %v5064
        %v5605 = vunpack.c.l.b16 %v5065
        %v5606 = vunpack.c.l.b16 %v5066
        %v5607 = vunpack.c.l.b16 %v5067
        %v5608 = vunpack.c.l.b16 %v5068
        %v5609 = vunpack.c.l.b16 %v5069
        %v5610 = vunpack.c.l.b16 %v5070
        %v5611 = vunpack.c.l.b16 %v5071
        %v5612 = vunpack.c.l.b16 %v5072
        %v5613 = vunpack.c.l.b16 %v5073
        %v5614 = vunpack.c.l.b16 %v5074
        %v5615 = vunpack.c.l.b16 %v5075
        %v5616 = vunpack.c.l.b16 %v5076
        %v5617 = vunpack.c.l.b16 %v5077
        %v5618 = vunpack.c.l.b16 %v5078
        %v5619 = vunpack.c.l.b16 %v5079
        %v5620 = vunpack.c.l.b16 %v5080
        %v5621 = vunpack.c.l.b16 %v5081
        %v5622 = vunpack.c.l.b16 %v5082
        %v5623 = vunpack.c.l.b16 %v5083
        %v5624 = vunpack.c.l.b16 %v5084
        %v5625 = vunpack.c.l.b16 %v5085
        %v5626 = vunpack.c.l.b16 %v5086
        %v5627 = vunpack.c.l.b16 %v5087
        %v5628 = vunpack.c.l.b16 %v5088
        %v5629 = vunpack.c.l.b16 %v5089
        %v5630 = vunpack.c.l.b16 %v5090
        %v5631 = vunpack.c.l.b16 %v5091
        %v5632 = vunpack.c.l.b16 %v5092
        %v5633 = vunpack.c.l.b16 %v5093
        %v5634 = vunpack.c.l.b16 %v5094
        %v5635 = vunpack.c.l.b16 %v5095
        %v5636 = vpack.c.b16 %v5605, %v5604
        %v5637 = vpack.c.b16 %v5607, %v5606
        %v5638 = vpack.c.b16 %v5609, %v5608
        %v5639 = vpack.c.b16 %v5611, %v5610
        %v5640 = vpack.c.b16 %v5613, %v5612
        %v5641 = vpack.c.b16 %v5615, %v5614
        %v5642 = vpack.c.b16 %v5617, %v5616
        %v5643 = vpack.c.b16 %v5619, %v5618
        %v5644 = vpack.c.b16 %v5621, %v5620
        %v5645 = vpack.c.b16 %v5623, %v5622
        %v5646 = vpack.c.b16 %v5625, %v5624
        %v5647 = vpack.c.b16 %v5627, %v5626
        %v5648 = vpack.c.b16 %v5629, %v5628
        %v5649 = vpack.c.b16 %v5631, %v5630
        %v5650 = vpack.c.b16 %v5633, %v5632
        %v5651 = vpack.c.b16 %v5635, %v5634
        %v5656 = vunpack.c.l.b16 %v5568
        %v5657 = vunpack.c.l.b16 %v5569
        %v5658 = vunpack.c.l.b16 %v5570
        %v5659 = vunpack.c.l.b16 %v5571
        %v5660 = vpack.c.b16 %v5657, %v5656
        %v5661 = vpack.c.b16 %v5659, %v5658
        %v5665 = vsel %vm588, %v5636, 0
        %v5668 = vsel %vm588, %v5637, 0
        %v5671 = vsel %vm588, %v5638, 0
        %v5674 = vsel %vm588, %v5639, 0
        %v5677 = vsel %vm588, %v5640, 0
        %v5680 = vsel %vm588, %v5641, 0
        %v5683 = vsel %vm588, %v5642, 0
        %v5686 = vsel %vm588, %v5643, 0
        %v5689 = vsel %vm588, %v5644, 0
        %v5692 = vsel %vm588, %v5645, 0
        %v5695 = vsel %vm588, %v5646, 0
        %v5698 = vsel %vm588, %v5647, 0
        %v5701 = vsel %vm588, %v5648, 0
        %v5704 = vsel %vm588, %v5649, 0
        %v5707 = vsel %vm588, %v5650, 0
        %v5710 = vsel %vm588, %v5651, 0
        %5712 = vmatpush.bf16.msra.mxu0 0
        %5713 = vmatpush.bf16.msra.mxu0 0
        %5714 = vmatpush.bf16.msra.mxu0 0
        %5715 = vmatpush.bf16.msra.mxu0 0
        %5716 = vmatpush.bf16.msra.mxu0 0
        %5717 = vmatpush.bf16.msra.mxu0 0
        %5718 = vmatpush.bf16.msra.mxu0 %v5661
        %5719 = vmatpush.bf16.msra.mxu0 %v5660
        %5720 = vmatmul.bf16.gmra.mxu0 %v5665
        %v5721 = vpop.f32.mrf.mxu0
        %v5722 = vadd.f32 0.0, %v5721
        %v5723 = vpop.f32.mrf.mxu0
        %v5724 = vadd.f32 0.0, %v5723
        %5725 = vmatmul.bf16.gmra.mxu0 %v5668
        %v5726 = vpop.f32.mrf.mxu0
        %v5727 = vadd.f32 0.0, %v5726
        %v5728 = vpop.f32.mrf.mxu0
        %v5729 = vadd.f32 0.0, %v5728
        %5730 = vmatmul.bf16.gmra.mxu0 %v5671
        %v5731 = vpop.f32.mrf.mxu0
        %v5732 = vadd.f32 0.0, %v5731
        %v5733 = vpop.f32.mrf.mxu0
        %v5734 = vadd.f32 0.0, %v5733
        %5735 = vmatmul.bf16.gmra.mxu0 %v5674
        %v5736 = vpop.f32.mrf.mxu0
        %v5737 = vadd.f32 0.0, %v5736
        %v5738 = vpop.f32.mrf.mxu0
        %v5739 = vadd.f32 0.0, %v5738
        %5740 = vmatmul.bf16.gmra.mxu0 %v5677
        %v5741 = vpop.f32.mrf.mxu0
        %v5742 = vadd.f32 0.0, %v5741
        %v5743 = vpop.f32.mrf.mxu0
        %v5744 = vadd.f32 0.0, %v5743
        %5745 = vmatmul.bf16.gmra.mxu0 %v5680
        %v5746 = vpop.f32.mrf.mxu0
        %v5747 = vadd.f32 0.0, %v5746
        %v5748 = vpop.f32.mrf.mxu0
        %v5749 = vadd.f32 0.0, %v5748
        %5750 = vmatmul.bf16.gmra.mxu0 %v5683
        %v5751 = vpop.f32.mrf.mxu0
        %v5752 = vadd.f32 0.0, %v5751
        %v5753 = vpop.f32.mrf.mxu0
        %v5754 = vadd.f32 0.0, %v5753
        %5755 = vmatmul.bf16.gmra.mxu0 %v5686
        %v5756 = vpop.f32.mrf.mxu0
        %v5757 = vadd.f32 0.0, %v5756
        %v5758 = vpop.f32.mrf.mxu0
        %v5759 = vadd.f32 0.0, %v5758
        %5760 = vmatmul.bf16.gmra.mxu0 %v5689
        %v5761 = vpop.f32.mrf.mxu0
        %v5762 = vadd.f32 0.0, %v5761
        %v5763 = vpop.f32.mrf.mxu0
        %v5764 = vadd.f32 0.0, %v5763
        %5765 = vmatmul.bf16.gmra.mxu0 %v5692
        %v5766 = vpop.f32.mrf.mxu0
        %v5767 = vadd.f32 0.0, %v5766
        %v5768 = vpop.f32.mrf.mxu0
        %v5769 = vadd.f32 0.0, %v5768
        %5770 = vmatmul.bf16.gmra.mxu0 %v5695
        %v5771 = vpop.f32.mrf.mxu0
        %v5772 = vadd.f32 0.0, %v5771
        %v5773 = vpop.f32.mrf.mxu0
        %v5774 = vadd.f32 0.0, %v5773
        %5775 = vmatmul.bf16.gmra.mxu0 %v5698
        %v5776 = vpop.f32.mrf.mxu0
        %v5777 = vadd.f32 0.0, %v5776
        %v5778 = vpop.f32.mrf.mxu0
        %v5779 = vadd.f32 0.0, %v5778
        %5780 = vmatmul.bf16.gmra.mxu0 %v5701
        %v5781 = vpop.f32.mrf.mxu0
        %v5782 = vadd.f32 0.0, %v5781
        %v5783 = vpop.f32.mrf.mxu0
        %v5784 = vadd.f32 0.0, %v5783
        %5785 = vmatmul.bf16.gmra.mxu0 %v5704
        %v5786 = vpop.f32.mrf.mxu0
        %v5787 = vadd.f32 0.0, %v5786
        %v5788 = vpop.f32.mrf.mxu0
        %v5789 = vadd.f32 0.0, %v5788
        %5790 = vmatmul.bf16.gmra.mxu0 %v5707
        %v5791 = vpop.f32.mrf.mxu0
        %v5792 = vadd.f32 0.0, %v5791
        %v5793 = vpop.f32.mrf.mxu0
        %v5794 = vadd.f32 0.0, %v5793
        %5795 = vmatmul.bf16.gmra.mxu0 %v5710
        %v5796 = vpop.f32.mrf.mxu0
        %v5797 = vadd.f32 0.0, %v5796
        %v5798 = vpop.f32.mrf.mxu0
        %v5799 = vadd.f32 0.0, %v5798
        %5800 = vdwg.mxu0
        %v5801 = vadd.f32 %v5488, %v5722
        %v5802 = vadd.f32 %v5490, %v5724
        %v5803 = vadd.f32 %v5493, %v5727
        %v5804 = vadd.f32 %v5495, %v5729
        %v5805 = vadd.f32 %v5498, %v5732
        %v5806 = vadd.f32 %v5500, %v5734
        %v5807 = vadd.f32 %v5503, %v5737
        %v5808 = vadd.f32 %v5505, %v5739
        %v5809 = vadd.f32 %v5508, %v5742
        %v5810 = vadd.f32 %v5510, %v5744
        %v5811 = vadd.f32 %v5513, %v5747
        %v5812 = vadd.f32 %v5515, %v5749
        %v5813 = vadd.f32 %v5518, %v5752
        %v5814 = vadd.f32 %v5520, %v5754
        %v5815 = vadd.f32 %v5523, %v5757
        %v5816 = vadd.f32 %v5525, %v5759
        %v5817 = vadd.f32 %v5528, %v5762
        %v5818 = vadd.f32 %v5530, %v5764
        %v5819 = vadd.f32 %v5533, %v5767
        %v5820 = vadd.f32 %v5535, %v5769
        %v5821 = vadd.f32 %v5538, %v5772
        %v5822 = vadd.f32 %v5540, %v5774
        %v5823 = vadd.f32 %v5543, %v5777
        %v5824 = vadd.f32 %v5545, %v5779
        %v5825 = vadd.f32 %v5548, %v5782
        %v5826 = vadd.f32 %v5550, %v5784
        %v5827 = vadd.f32 %v5553, %v5787
        %v5828 = vadd.f32 %v5555, %v5789
        %v5829 = vadd.f32 %v5558, %v5792
        %v5830 = vadd.f32 %v5560, %v5794
        %v5831 = vadd.f32 %v5563, %v5797
        %v5832 = vadd.f32 %v5565, %v5799
        %s5833 = scalar_lea.vmem [#allocation12], 48
        %v5834 = vld [vmem:[%s5833] sm:$0xf]
        %v5835 = vld [vmem:[%s5833 + $0x4] sm:$0xf]
        %v5836 = vld [vmem:[%s5833 + $0x8] sm:$0xf]
        %v5837 = vld [vmem:[%s5833 + $0xc] sm:$0xf]
        %v5840 = vunpack.c.l.b16 %v5024
        %v5841 = vunpack.c.l.b16 %v5025
        %v5842 = vpack.c.b16 %v5841, %v5840
        %v5847 = vunpack.c.l.b16 %v5834
        %v5848 = vunpack.c.l.b16 %v5835
        %v5849 = vunpack.c.l.b16 %v5836
        %v5850 = vunpack.c.l.b16 %v5837
        %v5851 = vpack.c.b16 %v5848, %v5847
        %v5852 = vpack.c.b16 %v5850, %v5849
        %v5856 = vsel %vm588, %v5842, 0
        %5858 = vmatpush.bf16.msra.mxu0 0
        %5859 = vmatpush.bf16.msra.mxu0 0
        %5860 = vmatpush.bf16.msra.mxu0 0
        %5861 = vmatpush.bf16.msra.mxu0 0
        %5862 = vmatpush.bf16.msra.mxu0 0
        %5863 = vmatpush.bf16.msra.mxu0 0
        %5864 = vmatpush.bf16.msra.mxu0 %v5852
        %5865 = vmatpush.bf16.msra.mxu0 %v5851
        %5866 = vmatmul.bf16.gmra.mxu0 %v5434
        %v5867 = vpop.f32.mrf.mxu0
        %v5868 = vadd.f32 0.0, %v5867
        %v5869 = vpop.f32.mrf.mxu0
        %v5870 = vadd.f32 0.0, %v5869
        %5871 = vmatmul.bf16.gmra.mxu0 %v5437
        %v5872 = vpop.f32.mrf.mxu0
        %v5873 = vadd.f32 0.0, %v5872
        %v5874 = vpop.f32.mrf.mxu0
        %v5875 = vadd.f32 0.0, %v5874
        %5876 = vmatmul.bf16.gmra.mxu0 %v5440
        %v5877 = vpop.f32.mrf.mxu0
        %v5878 = vadd.f32 0.0, %v5877
        %v5879 = vpop.f32.mrf.mxu0
        %v5880 = vadd.f32 0.0, %v5879
        %5881 = vmatmul.bf16.gmra.mxu0 %v5443
        %v5882 = vpop.f32.mrf.mxu0
        %v5883 = vadd.f32 0.0, %v5882
        %v5884 = vpop.f32.mrf.mxu0
        %v5885 = vadd.f32 0.0, %v5884
        %5886 = vmatmul.bf16.gmra.mxu0 %v5446
        %v5887 = vpop.f32.mrf.mxu0
        %v5888 = vadd.f32 0.0, %v5887
        %v5889 = vpop.f32.mrf.mxu0
        %v5890 = vadd.f32 0.0, %v5889
        %5891 = vmatmul.bf16.gmra.mxu0 %v5449
        %v5892 = vpop.f32.mrf.mxu0
        %v5893 = vadd.f32 0.0, %v5892
        %v5894 = vpop.f32.mrf.mxu0
        %v5895 = vadd.f32 0.0, %v5894
        %5896 = vmatmul.bf16.gmra.mxu0 %v5452
        %v5897 = vpop.f32.mrf.mxu0
        %v5898 = vadd.f32 0.0, %v5897
        %v5899 = vpop.f32.mrf.mxu0
        %v5900 = vadd.f32 0.0, %v5899
        %5901 = vmatmul.bf16.gmra.mxu0 %v5455
        %v5902 = vpop.f32.mrf.mxu0
        %v5903 = vadd.f32 0.0, %v5902
        %v5904 = vpop.f32.mrf.mxu0
        %v5905 = vadd.f32 0.0, %v5904
        %5906 = vmatmul.bf16.gmra.mxu0 %v5458
        %v5907 = vpop.f32.mrf.mxu0
        %v5908 = vadd.f32 0.0, %v5907
        %v5909 = vpop.f32.mrf.mxu0
        %v5910 = vadd.f32 0.0, %v5909
        %5911 = vmatmul.bf16.gmra.mxu0 %v5461
        %v5912 = vpop.f32.mrf.mxu0
        %v5913 = vadd.f32 0.0, %v5912
        %v5914 = vpop.f32.mrf.mxu0
        %v5915 = vadd.f32 0.0, %v5914
        %5916 = vmatmul.bf16.gmra.mxu0 %v5464
        %v5917 = vpop.f32.mrf.mxu0
        %v5918 = vadd.f32 0.0, %v5917
        %v5919 = vpop.f32.mrf.mxu0
        %v5920 = vadd.f32 0.0, %v5919
        %5921 = vmatmul.bf16.gmra.mxu0 %v5467
        %v5922 = vpop.f32.mrf.mxu0
        %v5923 = vadd.f32 0.0, %v5922
        %v5924 = vpop.f32.mrf.mxu0
        %v5925 = vadd.f32 0.0, %v5924
        %5926 = vmatmul.bf16.gmra.mxu0 %v5470
        %v5927 = vpop.f32.mrf.mxu0
        %v5928 = vadd.f32 0.0, %v5927
        %v5929 = vpop.f32.mrf.mxu0
        %v5930 = vadd.f32 0.0, %v5929
        %5931 = vmatmul.bf16.gmra.mxu0 %v5473
        %v5932 = vpop.f32.mrf.mxu0
        %v5933 = vadd.f32 0.0, %v5932
        %v5934 = vpop.f32.mrf.mxu0
        %v5935 = vadd.f32 0.0, %v5934
        %5936 = vmatmul.bf16.gmra.mxu0 %v5476
        %v5937 = vpop.f32.mrf.mxu0
        %v5938 = vadd.f32 0.0, %v5937
        %v5939 = vpop.f32.mrf.mxu0
        %v5940 = vadd.f32 0.0, %v5939
        %5941 = vmatmul.bf16.gmra.mxu0 %v5856
        %v5942 = vpop.f32.mrf.mxu0
        %v5943 = vadd.f32 0.0, %v5942
        %v5944 = vpop.f32.mrf.mxu0
        %v5945 = vadd.f32 0.0, %v5944
        %5946 = vdwg.mxu0
        %v5947 = vadd.f32 %v5801, %v5868
        %v5948 = vadd.f32 %v5802, %v5870
        %v5949 = vadd.f32 %v5803, %v5873
        %v5950 = vadd.f32 %v5804, %v5875
        %v5951 = vadd.f32 %v5805, %v5878
        %v5952 = vadd.f32 %v5806, %v5880
        %v5953 = vadd.f32 %v5807, %v5883
        %v5954 = vadd.f32 %v5808, %v5885
        %v5955 = vadd.f32 %v5809, %v5888
        %v5956 = vadd.f32 %v5810, %v5890
        %v5957 = vadd.f32 %v5811, %v5893
        %v5958 = vadd.f32 %v5812, %v5895
        %v5959 = vadd.f32 %v5813, %v5898
        %v5960 = vadd.f32 %v5814, %v5900
        %v5961 = vadd.f32 %v5815, %v5903
        %v5962 = vadd.f32 %v5816, %v5905
        %v5963 = vadd.f32 %v5817, %v5908
        %v5964 = vadd.f32 %v5818, %v5910
        %v5965 = vadd.f32 %v5819, %v5913
        %v5966 = vadd.f32 %v5820, %v5915
        %v5967 = vadd.f32 %v5821, %v5918
        %v5968 = vadd.f32 %v5822, %v5920
        %v5969 = vadd.f32 %v5823, %v5923
        %v5970 = vadd.f32 %v5824, %v5925
        %v5971 = vadd.f32 %v5825, %v5928
        %v5972 = vadd.f32 %v5826, %v5930
        %v5973 = vadd.f32 %v5827, %v5933
        %v5974 = vadd.f32 %v5828, %v5935
        %v5975 = vadd.f32 %v5829, %v5938
        %v5976 = vadd.f32 %v5830, %v5940
        %v5977 = vadd.f32 %v5831, %v5943
        %v5978 = vadd.f32 %v5832, %v5945
        %s5979 = scalar_lea.vmem [#allocation12], 64
        %v5980 = vld [vmem:[%s5979] sm:$0xf]
        %v5981 = vld [vmem:[%s5979 + $0x4] sm:$0xf]
        %v5982 = vld [vmem:[%s5979 + $0x8] sm:$0xf]
        %v5983 = vld [vmem:[%s5979 + $0xc] sm:$0xf]
        %v5986 = vunpack.c.l.b16 %v5060
        %v5987 = vunpack.c.l.b16 %v5061
        %v5988 = vpack.c.b16 %v5987, %v5986
        %v5993 = vunpack.c.l.b16 %v5980
        %v5994 = vunpack.c.l.b16 %v5981
        %v5995 = vunpack.c.l.b16 %v5982
        %v5996 = vunpack.c.l.b16 %v5983
        %v5997 = vpack.c.b16 %v5994, %v5993
        %v5998 = vpack.c.b16 %v5996, %v5995
        %v6002 = vsel %vm588, %v5988, 0
        %6004 = vmatpush.bf16.msra.mxu0 0
        %6005 = vmatpush.bf16.msra.mxu0 0
        %6006 = vmatpush.bf16.msra.mxu0 0
        %6007 = vmatpush.bf16.msra.mxu0 0
        %6008 = vmatpush.bf16.msra.mxu0 0
        %6009 = vmatpush.bf16.msra.mxu0 0
        %6010 = vmatpush.bf16.msra.mxu0 %v5998
        %6011 = vmatpush.bf16.msra.mxu0 %v5997
        %6012 = vmatmul.bf16.gmra.mxu0 %v5205
        %v6013 = vpop.f32.mrf.mxu0
        %v6014 = vadd.f32 0.0, %v6013
        %v6015 = vpop.f32.mrf.mxu0
        %v6016 = vadd.f32 0.0, %v6015
        %6017 = vmatmul.bf16.gmra.mxu0 %v5208
        %v6018 = vpop.f32.mrf.mxu0
        %v6019 = vadd.f32 0.0, %v6018
        %v6020 = vpop.f32.mrf.mxu0
        %v6021 = vadd.f32 0.0, %v6020
        %6022 = vmatmul.bf16.gmra.mxu0 %v5211
        %v6023 = vpop.f32.mrf.mxu0
        %v6024 = vadd.f32 0.0, %v6023
        %v6025 = vpop.f32.mrf.mxu0
        %v6026 = vadd.f32 0.0, %v6025
        %6027 = vmatmul.bf16.gmra.mxu0 %v5214
        %v6028 = vpop.f32.mrf.mxu0
        %v6029 = vadd.f32 0.0, %v6028
        %v6030 = vpop.f32.mrf.mxu0
        %v6031 = vadd.f32 0.0, %v6030
        %6032 = vmatmul.bf16.gmra.mxu0 %v5217
        %v6033 = vpop.f32.mrf.mxu0
        %v6034 = vadd.f32 0.0, %v6033
        %v6035 = vpop.f32.mrf.mxu0
        %v6036 = vadd.f32 0.0, %v6035
        %6037 = vmatmul.bf16.gmra.mxu0 %v5220
        %v6038 = vpop.f32.mrf.mxu0
        %v6039 = vadd.f32 0.0, %v6038
        %v6040 = vpop.f32.mrf.mxu0
        %v6041 = vadd.f32 0.0, %v6040
        %6042 = vmatmul.bf16.gmra.mxu0 %v5223
        %v6043 = vpop.f32.mrf.mxu0
        %v6044 = vadd.f32 0.0, %v6043
        %v6045 = vpop.f32.mrf.mxu0
        %v6046 = vadd.f32 0.0, %v6045
        %6047 = vmatmul.bf16.gmra.mxu0 %v5226
        %v6048 = vpop.f32.mrf.mxu0
        %v6049 = vadd.f32 0.0, %v6048
        %v6050 = vpop.f32.mrf.mxu0
        %v6051 = vadd.f32 0.0, %v6050
        %6052 = vmatmul.bf16.gmra.mxu0 %v5229
        %v6053 = vpop.f32.mrf.mxu0
        %v6054 = vadd.f32 0.0, %v6053
        %v6055 = vpop.f32.mrf.mxu0
        %v6056 = vadd.f32 0.0, %v6055
        %6057 = vmatmul.bf16.gmra.mxu0 %v5232
        %v6058 = vpop.f32.mrf.mxu0
        %v6059 = vadd.f32 0.0, %v6058
        %v6060 = vpop.f32.mrf.mxu0
        %v6061 = vadd.f32 0.0, %v6060
        %6062 = vmatmul.bf16.gmra.mxu0 %v5235
        %v6063 = vpop.f32.mrf.mxu0
        %v6064 = vadd.f32 0.0, %v6063
        %v6065 = vpop.f32.mrf.mxu0
        %v6066 = vadd.f32 0.0, %v6065
        %6067 = vmatmul.bf16.gmra.mxu0 %v5238
        %v6068 = vpop.f32.mrf.mxu0
        %v6069 = vadd.f32 0.0, %v6068
        %v6070 = vpop.f32.mrf.mxu0
        %v6071 = vadd.f32 0.0, %v6070
        %6072 = vmatmul.bf16.gmra.mxu0 %v5241
        %v6073 = vpop.f32.mrf.mxu0
        %v6074 = vadd.f32 0.0, %v6073
        %v6075 = vpop.f32.mrf.mxu0
        %v6076 = vadd.f32 0.0, %v6075
        %6077 = vmatmul.bf16.gmra.mxu0 %v5244
        %v6078 = vpop.f32.mrf.mxu0
        %v6079 = vadd.f32 0.0, %v6078
        %v6080 = vpop.f32.mrf.mxu0
        %v6081 = vadd.f32 0.0, %v6080
        %6082 = vmatmul.bf16.gmra.mxu0 %v5247
        %v6083 = vpop.f32.mrf.mxu0
        %v6084 = vadd.f32 0.0, %v6083
        %v6085 = vpop.f32.mrf.mxu0
        %v6086 = vadd.f32 0.0, %v6085
        %6087 = vmatmul.bf16.gmra.mxu0 %v6002
        %v6088 = vpop.f32.mrf.mxu0
        %v6089 = vadd.f32 0.0, %v6088
        %v6090 = vpop.f32.mrf.mxu0
        %v6091 = vadd.f32 0.0, %v6090
        %6092 = vdwg.mxu0
        %v6093 = vadd.f32 %v5947, %v6014
        %v6094 = vadd.f32 %v5948, %v6016
        %v6095 = vadd.f32 %v5949, %v6019
        %v6096 = vadd.f32 %v5950, %v6021
        %v6097 = vadd.f32 %v5951, %v6024
        %v6098 = vadd.f32 %v5952, %v6026
        %v6099 = vadd.f32 %v5953, %v6029
        %v6100 = vadd.f32 %v5954, %v6031
        %v6101 = vadd.f32 %v5955, %v6034
        %v6102 = vadd.f32 %v5956, %v6036
        %v6103 = vadd.f32 %v5957, %v6039
        %v6104 = vadd.f32 %v5958, %v6041
        %v6105 = vadd.f32 %v5959, %v6044
        %v6106 = vadd.f32 %v5960, %v6046
        %v6107 = vadd.f32 %v5961, %v6049
        %v6108 = vadd.f32 %v5962, %v6051
        %v6109 = vadd.f32 %v5963, %v6054
        %v6110 = vadd.f32 %v5964, %v6056
        %v6111 = vadd.f32 %v5965, %v6059
        %v6112 = vadd.f32 %v5966, %v6061
        %v6113 = vadd.f32 %v5967, %v6064
        %v6114 = vadd.f32 %v5968, %v6066
        %v6115 = vadd.f32 %v5969, %v6069
        %v6116 = vadd.f32 %v5970, %v6071
        %v6117 = vadd.f32 %v5971, %v6074
        %v6118 = vadd.f32 %v5972, %v6076
        %v6119 = vadd.f32 %v5973, %v6079
        %v6120 = vadd.f32 %v5974, %v6081
        %v6121 = vadd.f32 %v5975, %v6084
        %v6122 = vadd.f32 %v5976, %v6086
        %v6123 = vadd.f32 %v5977, %v6089
        %v6124 = vadd.f32 %v5978, %v6091
        %s6125 = scalar_lea.vmem [#allocation12], 80
        %v6126 = vld [vmem:[%s6125] sm:$0xf]
        %v6127 = vld [vmem:[%s6125 + $0x4] sm:$0xf]
        %v6128 = vld [vmem:[%s6125 + $0x8] sm:$0xf]
        %v6129 = vld [vmem:[%s6125 + $0xc] sm:$0xf]
        %v6132 = vunpack.c.l.b16 %v5096
        %v6133 = vunpack.c.l.b16 %v5097
        %v6134 = vpack.c.b16 %v6133, %v6132
        %v6139 = vunpack.c.l.b16 %v6126
        %v6140 = vunpack.c.l.b16 %v6127
        %v6141 = vunpack.c.l.b16 %v6128
        %v6142 = vunpack.c.l.b16 %v6129
        %v6143 = vpack.c.b16 %v6140, %v6139
        %v6144 = vpack.c.b16 %v6142, %v6141
        %v6148 = vsel %vm588, %v6134, 0
        %6150 = vmatpush.bf16.msra.mxu0 0
        %6151 = vmatpush.bf16.msra.mxu0 0
        %6152 = vmatpush.bf16.msra.mxu0 0
        %6153 = vmatpush.bf16.msra.mxu0 0
        %6154 = vmatpush.bf16.msra.mxu0 0
        %6155 = vmatpush.bf16.msra.mxu0 0
        %6156 = vmatpush.bf16.msra.mxu0 %v6144
        %6157 = vmatpush.bf16.msra.mxu0 %v6143
        %6158 = vmatmul.bf16.gmra.mxu0 %v5668
        %v6159 = vpop.f32.mrf.mxu0
        %v6160 = vadd.f32 0.0, %v6159
        %v6161 = vpop.f32.mrf.mxu0
        %v6162 = vadd.f32 0.0, %v6161
        %6163 = vmatmul.bf16.gmra.mxu0 %v5671
        %v6164 = vpop.f32.mrf.mxu0
        %v6165 = vadd.f32 0.0, %v6164
        %v6166 = vpop.f32.mrf.mxu0
        %v6167 = vadd.f32 0.0, %v6166
        %6168 = vmatmul.bf16.gmra.mxu0 %v5674
        %v6169 = vpop.f32.mrf.mxu0
        %v6170 = vadd.f32 0.0, %v6169
        %v6171 = vpop.f32.mrf.mxu0
        %v6172 = vadd.f32 0.0, %v6171
        %6173 = vmatmul.bf16.gmra.mxu0 %v5677
        %v6174 = vpop.f32.mrf.mxu0
        %v6175 = vadd.f32 0.0, %v6174
        %v6176 = vpop.f32.mrf.mxu0
        %v6177 = vadd.f32 0.0, %v6176
        %6178 = vmatmul.bf16.gmra.mxu0 %v5680
        %v6179 = vpop.f32.mrf.mxu0
        %v6180 = vadd.f32 0.0, %v6179
        %v6181 = vpop.f32.mrf.mxu0
        %v6182 = vadd.f32 0.0, %v6181
        %6183 = vmatmul.bf16.gmra.mxu0 %v5683
        %v6184 = vpop.f32.mrf.mxu0
        %v6185 = vadd.f32 0.0, %v6184
        %v6186 = vpop.f32.mrf.mxu0
        %v6187 = vadd.f32 0.0, %v6186
        %6188 = vmatmul.bf16.gmra.mxu0 %v5686
        %v6189 = vpop.f32.mrf.mxu0
        %v6190 = vadd.f32 0.0, %v6189
        %v6191 = vpop.f32.mrf.mxu0
        %v6192 = vadd.f32 0.0, %v6191
        %6193 = vmatmul.bf16.gmra.mxu0 %v5689
        %v6194 = vpop.f32.mrf.mxu0
        %v6195 = vadd.f32 0.0, %v6194
        %v6196 = vpop.f32.mrf.mxu0
        %v6197 = vadd.f32 0.0, %v6196
        %6198 = vmatmul.bf16.gmra.mxu0 %v5692
        %v6199 = vpop.f32.mrf.mxu0
        %v6200 = vadd.f32 0.0, %v6199
        %v6201 = vpop.f32.mrf.mxu0
        %v6202 = vadd.f32 0.0, %v6201
        %6203 = vmatmul.bf16.gmra.mxu0 %v5695
        %v6204 = vpop.f32.mrf.mxu0
        %v6205 = vadd.f32 0.0, %v6204
        %v6206 = vpop.f32.mrf.mxu0
        %v6207 = vadd.f32 0.0, %v6206
        %6208 = vmatmul.bf16.gmra.mxu0 %v5698
        %v6209 = vpop.f32.mrf.mxu0
        %v6210 = vadd.f32 0.0, %v6209
        %v6211 = vpop.f32.mrf.mxu0
        %v6212 = vadd.f32 0.0, %v6211
        %6213 = vmatmul.bf16.gmra.mxu0 %v5701
        %v6214 = vpop.f32.mrf.mxu0
        %v6215 = vadd.f32 0.0, %v6214
        %v6216 = vpop.f32.mrf.mxu0
        %v6217 = vadd.f32 0.0, %v6216
        %6218 = vmatmul.bf16.gmra.mxu0 %v5704
        %v6219 = vpop.f32.mrf.mxu0
        %v6220 = vadd.f32 0.0, %v6219
        %v6221 = vpop.f32.mrf.mxu0
        %v6222 = vadd.f32 0.0, %v6221
        %6223 = vmatmul.bf16.gmra.mxu0 %v5707
        %v6224 = vpop.f32.mrf.mxu0
        %v6225 = vadd.f32 0.0, %v6224
        %v6226 = vpop.f32.mrf.mxu0
        %v6227 = vadd.f32 0.0, %v6226
        %6228 = vmatmul.bf16.gmra.mxu0 %v5710
        %v6229 = vpop.f32.mrf.mxu0
        %v6230 = vadd.f32 0.0, %v6229
        %v6231 = vpop.f32.mrf.mxu0
        %v6232 = vadd.f32 0.0, %v6231
        %6233 = vmatmul.bf16.gmra.mxu0 %v6148
        %v6234 = vpop.f32.mrf.mxu0
        %v6235 = vadd.f32 0.0, %v6234
        %v6236 = vpop.f32.mrf.mxu0
        %v6237 = vadd.f32 0.0, %v6236
        %6238 = vdwg.mxu0
        %v6239 = vadd.f32 %v6093, %v6160
        %v6240 = vadd.f32 %v6094, %v6162
        %v6241 = vadd.f32 %v6095, %v6165
        %v6242 = vadd.f32 %v6096, %v6167
        %v6243 = vadd.f32 %v6097, %v6170
        %v6244 = vadd.f32 %v6098, %v6172
        %v6245 = vadd.f32 %v6099, %v6175
        %v6246 = vadd.f32 %v6100, %v6177
        %v6247 = vadd.f32 %v6101, %v6180
        %v6248 = vadd.f32 %v6102, %v6182
        %v6249 = vadd.f32 %v6103, %v6185
        %v6250 = vadd.f32 %v6104, %v6187
        %v6251 = vadd.f32 %v6105, %v6190
        %v6252 = vadd.f32 %v6106, %v6192
        %v6253 = vadd.f32 %v6107, %v6195
        %v6254 = vadd.f32 %v6108, %v6197
        %v6255 = vadd.f32 %v6109, %v6200
        %v6256 = vadd.f32 %v6110, %v6202
        %v6257 = vadd.f32 %v6111, %v6205
        %v6258 = vadd.f32 %v6112, %v6207
        %v6259 = vadd.f32 %v6113, %v6210
        %v6260 = vadd.f32 %v6114, %v6212
        %v6261 = vadd.f32 %v6115, %v6215
        %v6262 = vadd.f32 %v6116, %v6217
        %v6263 = vadd.f32 %v6117, %v6220
        %v6264 = vadd.f32 %v6118, %v6222
        %v6265 = vadd.f32 %v6119, %v6225
        %v6266 = vadd.f32 %v6120, %v6227
        %v6267 = vadd.f32 %v6121, %v6230
        %v6268 = vadd.f32 %v6122, %v6232
        %v6269 = vadd.f32 %v6123, %v6235
        %v6270 = vadd.f32 %v6124, %v6237
        %s6271 = scalar_lea.vmem [#allocation12], 96
        %v6272 = vld [vmem:[%s6271] sm:$0xf]
        %v6273 = vld [vmem:[%s6271 + $0x4] sm:$0xf]
        %v6274 = vld [vmem:[%s6271 + $0x8] sm:$0xf]
        %v6275 = vld [vmem:[%s6271 + $0xc] sm:$0xf]
        %v6278 = vunpack.c.l.b16 %v5026
        %v6279 = vunpack.c.l.b16 %v5027
        %v6280 = vpack.c.b16 %v6279, %v6278
        %v6285 = vunpack.c.l.b16 %v6272
        %v6286 = vunpack.c.l.b16 %v6273
        %v6287 = vunpack.c.l.b16 %v6274
        %v6288 = vunpack.c.l.b16 %v6275
        %v6289 = vpack.c.b16 %v6286, %v6285
        %v6290 = vpack.c.b16 %v6288, %v6287
        %v6294 = vsel %vm588, %v6280, 0
        %6296 = vmatpush.bf16.msra.mxu0 0
        %6297 = vmatpush.bf16.msra.mxu0 0
        %6298 = vmatpush.bf16.msra.mxu0 0
        %6299 = vmatpush.bf16.msra.mxu0 0
        %6300 = vmatpush.bf16.msra.mxu0 0
        %6301 = vmatpush.bf16.msra.mxu0 0
        %6302 = vmatpush.bf16.msra.mxu0 %v6290
        %6303 = vmatpush.bf16.msra.mxu0 %v6289
        %6304 = vmatmul.bf16.gmra.mxu0 %v5437
        %v6305 = vpop.f32.mrf.mxu0
        %v6306 = vadd.f32 0.0, %v6305
        %v6307 = vpop.f32.mrf.mxu0
        %v6308 = vadd.f32 0.0, %v6307
        %6309 = vmatmul.bf16.gmra.mxu0 %v5440
        %v6310 = vpop.f32.mrf.mxu0
        %v6311 = vadd.f32 0.0, %v6310
        %v6312 = vpop.f32.mrf.mxu0
        %v6313 = vadd.f32 0.0, %v6312
        %6314 = vmatmul.bf16.gmra.mxu0 %v5443
        %v6315 = vpop.f32.mrf.mxu0
        %v6316 = vadd.f32 0.0, %v6315
        %v6317 = vpop.f32.mrf.mxu0
        %v6318 = vadd.f32 0.0, %v6317
        %6319 = vmatmul.bf16.gmra.mxu0 %v5446
        %v6320 = vpop.f32.mrf.mxu0
        %v6321 = vadd.f32 0.0, %v6320
        %v6322 = vpop.f32.mrf.mxu0
        %v6323 = vadd.f32 0.0, %v6322
        %6324 = vmatmul.bf16.gmra.mxu0 %v5449
        %v6325 = vpop.f32.mrf.mxu0
        %v6326 = vadd.f32 0.0, %v6325
        %v6327 = vpop.f32.mrf.mxu0
        %v6328 = vadd.f32 0.0, %v6327
        %6329 = vmatmul.bf16.gmra.mxu0 %v5452
        %v6330 = vpop.f32.mrf.mxu0
        %v6331 = vadd.f32 0.0, %v6330
        %v6332 = vpop.f32.mrf.mxu0
        %v6333 = vadd.f32 0.0, %v6332
        %6334 = vmatmul.bf16.gmra.mxu0 %v5455
        %v6335 = vpop.f32.mrf.mxu0
        %v6336 = vadd.f32 0.0, %v6335
        %v6337 = vpop.f32.mrf.mxu0
        %v6338 = vadd.f32 0.0, %v6337
        %6339 = vmatmul.bf16.gmra.mxu0 %v5458
        %v6340 = vpop.f32.mrf.mxu0
        %v6341 = vadd.f32 0.0, %v6340
        %v6342 = vpop.f32.mrf.mxu0
        %v6343 = vadd.f32 0.0, %v6342
        %6344 = vmatmul.bf16.gmra.mxu0 %v5461
        %v6345 = vpop.f32.mrf.mxu0
        %v6346 = vadd.f32 0.0, %v6345
        %v6347 = vpop.f32.mrf.mxu0
        %v6348 = vadd.f32 0.0, %v6347
        %6349 = vmatmul.bf16.gmra.mxu0 %v5464
        %v6350 = vpop.f32.mrf.mxu0
        %v6351 = vadd.f32 0.0, %v6350
        %v6352 = vpop.f32.mrf.mxu0
        %v6353 = vadd.f32 0.0, %v6352
        %6354 = vmatmul.bf16.gmra.mxu0 %v5467
        %v6355 = vpop.f32.mrf.mxu0
        %v6356 = vadd.f32 0.0, %v6355
        %v6357 = vpop.f32.mrf.mxu0
        %v6358 = vadd.f32 0.0, %v6357
        %6359 = vmatmul.bf16.gmra.mxu0 %v5470
        %v6360 = vpop.f32.mrf.mxu0
        %v6361 = vadd.f32 0.0, %v6360
        %v6362 = vpop.f32.mrf.mxu0
        %v6363 = vadd.f32 0.0, %v6362
        %6364 = vmatmul.bf16.gmra.mxu0 %v5473
        %v6365 = vpop.f32.mrf.mxu0
        %v6366 = vadd.f32 0.0, %v6365
        %v6367 = vpop.f32.mrf.mxu0
        %v6368 = vadd.f32 0.0, %v6367
        %6369 = vmatmul.bf16.gmra.mxu0 %v5476
        %v6370 = vpop.f32.mrf.mxu0
        %v6371 = vadd.f32 0.0, %v6370
        %v6372 = vpop.f32.mrf.mxu0
        %v6373 = vadd.f32 0.0, %v6372
        %6374 = vmatmul.bf16.gmra.mxu0 %v5856
        %v6375 = vpop.f32.mrf.mxu0
        %v6376 = vadd.f32 0.0, %v6375
        %v6377 = vpop.f32.mrf.mxu0
        %v6378 = vadd.f32 0.0, %v6377
        %6379 = vmatmul.bf16.gmra.mxu0 %v6294
        %v6380 = vpop.f32.mrf.mxu0
        %v6381 = vadd.f32 0.0, %v6380
        %v6382 = vpop.f32.mrf.mxu0
        %v6383 = vadd.f32 0.0, %v6382
        %6384 = vdwg.mxu0
        %v6385 = vadd.f32 %v6239, %v6306
        %v6386 = vadd.f32 %v6240, %v6308
        %v6387 = vadd.f32 %v6241, %v6311
        %v6388 = vadd.f32 %v6242, %v6313
        %v6389 = vadd.f32 %v6243, %v6316
        %v6390 = vadd.f32 %v6244, %v6318
        %v6391 = vadd.f32 %v6245, %v6321
        %v6392 = vadd.f32 %v6246, %v6323
        %v6393 = vadd.f32 %v6247, %v6326
        %v6394 = vadd.f32 %v6248, %v6328
        %v6395 = vadd.f32 %v6249, %v6331
        %v6396 = vadd.f32 %v6250, %v6333
        %v6397 = vadd.f32 %v6251, %v6336
        %v6398 = vadd.f32 %v6252, %v6338
        %v6399 = vadd.f32 %v6253, %v6341
        %v6400 = vadd.f32 %v6254, %v6343
        %v6401 = vadd.f32 %v6255, %v6346
        %v6402 = vadd.f32 %v6256, %v6348
        %v6403 = vadd.f32 %v6257, %v6351
        %v6404 = vadd.f32 %v6258, %v6353
        %v6405 = vadd.f32 %v6259, %v6356
        %v6406 = vadd.f32 %v6260, %v6358
        %v6407 = vadd.f32 %v6261, %v6361
        %v6408 = vadd.f32 %v6262, %v6363
        %v6409 = vadd.f32 %v6263, %v6366
        %v6410 = vadd.f32 %v6264, %v6368
        %v6411 = vadd.f32 %v6265, %v6371
        %v6412 = vadd.f32 %v6266, %v6373
        %v6413 = vadd.f32 %v6267, %v6376
        %v6414 = vadd.f32 %v6268, %v6378
        %v6415 = vadd.f32 %v6269, %v6381
        %v6416 = vadd.f32 %v6270, %v6383
        %s6417 = scalar_lea.vmem [#allocation12], 112
        %v6418 = vld [vmem:[%s6417] sm:$0xf]
        %v6419 = vld [vmem:[%s6417 + $0x4] sm:$0xf]
        %v6420 = vld [vmem:[%s6417 + $0x8] sm:$0xf]
        %v6421 = vld [vmem:[%s6417 + $0xc] sm:$0xf]
        %v6424 = vunpack.c.l.b16 %v5062
        %v6425 = vunpack.c.l.b16 %v5063
        %v6426 = vpack.c.b16 %v6425, %v6424
        %v6431 = vunpack.c.l.b16 %v6418
        %v6432 = vunpack.c.l.b16 %v6419
        %v6433 = vunpack.c.l.b16 %v6420
        %v6434 = vunpack.c.l.b16 %v6421
        %v6435 = vpack.c.b16 %v6432, %v6431
        %v6436 = vpack.c.b16 %v6434, %v6433
        %v6440 = vsel %vm588, %v6426, 0
        %6442 = vmatpush.bf16.msra.mxu0 0
        %6443 = vmatpush.bf16.msra.mxu0 0
        %6444 = vmatpush.bf16.msra.mxu0 0
        %6445 = vmatpush.bf16.msra.mxu0 0
        %6446 = vmatpush.bf16.msra.mxu0 0
        %6447 = vmatpush.bf16.msra.mxu0 0
        %6448 = vmatpush.bf16.msra.mxu0 %v6436
        %6449 = vmatpush.bf16.msra.mxu0 %v6435
        %6450 = vmatmul.bf16.gmra.mxu0 %v5208
        %v6451 = vpop.f32.mrf.mxu0
        %v6452 = vadd.f32 0.0, %v6451
        %v6453 = vpop.f32.mrf.mxu0
        %v6454 = vadd.f32 0.0, %v6453
        %6455 = vmatmul.bf16.gmra.mxu0 %v5211
        %v6456 = vpop.f32.mrf.mxu0
        %v6457 = vadd.f32 0.0, %v6456
        %v6458 = vpop.f32.mrf.mxu0
        %v6459 = vadd.f32 0.0, %v6458
        %6460 = vmatmul.bf16.gmra.mxu0 %v5214
        %v6461 = vpop.f32.mrf.mxu0
        %v6462 = vadd.f32 0.0, %v6461
        %v6463 = vpop.f32.mrf.mxu0
        %v6464 = vadd.f32 0.0, %v6463
        %6465 = vmatmul.bf16.gmra.mxu0 %v5217
        %v6466 = vpop.f32.mrf.mxu0
        %v6467 = vadd.f32 0.0, %v6466
        %v6468 = vpop.f32.mrf.mxu0
        %v6469 = vadd.f32 0.0, %v6468
        %6470 = vmatmul.bf16.gmra.mxu0 %v5220
        %v6471 = vpop.f32.mrf.mxu0
        %v6472 = vadd.f32 0.0, %v6471
        %v6473 = vpop.f32.mrf.mxu0
        %v6474 = vadd.f32 0.0, %v6473
        %6475 = vmatmul.bf16.gmra.mxu0 %v5223
        %v6476 = vpop.f32.mrf.mxu0
        %v6477 = vadd.f32 0.0, %v6476
        %v6478 = vpop.f32.mrf.mxu0
        %v6479 = vadd.f32 0.0, %v6478
        %6480 = vmatmul.bf16.gmra.mxu0 %v5226
        %v6481 = vpop.f32.mrf.mxu0
        %v6482 = vadd.f32 0.0, %v6481
        %v6483 = vpop.f32.mrf.mxu0
        %v6484 = vadd.f32 0.0, %v6483
        %6485 = vmatmul.bf16.gmra.mxu0 %v5229
        %v6486 = vpop.f32.mrf.mxu0
        %v6487 = vadd.f32 0.0, %v6486
        %v6488 = vpop.f32.mrf.mxu0
        %v6489 = vadd.f32 0.0, %v6488
        %6490 = vmatmul.bf16.gmra.mxu0 %v5232
        %v6491 = vpop.f32.mrf.mxu0
        %v6492 = vadd.f32 0.0, %v6491
        %v6493 = vpop.f32.mrf.mxu0
        %v6494 = vadd.f32 0.0, %v6493
        %6495 = vmatmul.bf16.gmra.mxu0 %v5235
        %v6496 = vpop.f32.mrf.mxu0
        %v6497 = vadd.f32 0.0, %v6496
        %v6498 = vpop.f32.mrf.mxu0
        %v6499 = vadd.f32 0.0, %v6498
        %6500 = vmatmul.bf16.gmra.mxu0 %v5238
        %v6501 = vpop.f32.mrf.mxu0
        %v6502 = vadd.f32 0.0, %v6501
        %v6503 = vpop.f32.mrf.mxu0
        %v6504 = vadd.f32 0.0, %v6503
        %6505 = vmatmul.bf16.gmra.mxu0 %v5241
        %v6506 = vpop.f32.mrf.mxu0
        %v6507 = vadd.f32 0.0, %v6506
        %v6508 = vpop.f32.mrf.mxu0
        %v6509 = vadd.f32 0.0, %v6508
        %6510 = vmatmul.bf16.gmra.mxu0 %v5244
        %v6511 = vpop.f32.mrf.mxu0
        %v6512 = vadd.f32 0.0, %v6511
        %v6513 = vpop.f32.mrf.mxu0
        %v6514 = vadd.f32 0.0, %v6513
        %6515 = vmatmul.bf16.gmra.mxu0 %v5247
        %v6516 = vpop.f32.mrf.mxu0
        %v6517 = vadd.f32 0.0, %v6516
        %v6518 = vpop.f32.mrf.mxu0
        %v6519 = vadd.f32 0.0, %v6518
        %6520 = vmatmul.bf16.gmra.mxu0 %v6002
        %v6521 = vpop.f32.mrf.mxu0
        %v6522 = vadd.f32 0.0, %v6521
        %v6523 = vpop.f32.mrf.mxu0
        %v6524 = vadd.f32 0.0, %v6523
        %6525 = vmatmul.bf16.gmra.mxu0 %v6440
        %v6526 = vpop.f32.mrf.mxu0
        %v6527 = vadd.f32 0.0, %v6526
        %v6528 = vpop.f32.mrf.mxu0
        %v6529 = vadd.f32 0.0, %v6528
        %6530 = vdwg.mxu0
        %v6531 = vadd.f32 %v6385, %v6452
        %v6532 = vadd.f32 %v6386, %v6454
        %v6533 = vadd.f32 %v6387, %v6457
        %v6534 = vadd.f32 %v6388, %v6459
        %v6535 = vadd.f32 %v6389, %v6462
        %v6536 = vadd.f32 %v6390, %v6464
        %v6537 = vadd.f32 %v6391, %v6467
        %v6538 = vadd.f32 %v6392, %v6469
        %v6539 = vadd.f32 %v6393, %v6472
        %v6540 = vadd.f32 %v6394, %v6474
        %v6541 = vadd.f32 %v6395, %v6477
        %v6542 = vadd.f32 %v6396, %v6479
        %v6543 = vadd.f32 %v6397, %v6482
        %v6544 = vadd.f32 %v6398, %v6484
        %v6545 = vadd.f32 %v6399, %v6487
        %v6546 = vadd.f32 %v6400, %v6489
        %v6547 = vadd.f32 %v6401, %v6492
        %v6548 = vadd.f32 %v6402, %v6494
        %v6549 = vadd.f32 %v6403, %v6497
        %v6550 = vadd.f32 %v6404, %v6499
        %v6551 = vadd.f32 %v6405, %v6502
        %v6552 = vadd.f32 %v6406, %v6504
        %v6553 = vadd.f32 %v6407, %v6507
        %v6554 = vadd.f32 %v6408, %v6509
        %v6555 = vadd.f32 %v6409, %v6512
        %v6556 = vadd.f32 %v6410, %v6514
        %v6557 = vadd.f32 %v6411, %v6517
        %v6558 = vadd.f32 %v6412, %v6519
        %v6559 = vadd.f32 %v6413, %v6522
        %v6560 = vadd.f32 %v6414, %v6524
        %v6561 = vadd.f32 %v6415, %v6527
        %v6562 = vadd.f32 %v6416, %v6529
        %s6563 = scalar_lea.vmem [#allocation12], 128
        %v6564 = vld [vmem:[%s6563] sm:$0xf]
        %v6565 = vld [vmem:[%s6563 + $0x4] sm:$0xf]
        %v6566 = vld [vmem:[%s6563 + $0x8] sm:$0xf]
        %v6567 = vld [vmem:[%s6563 + $0xc] sm:$0xf]
        %v6570 = vunpack.c.l.b16 %v5098
        %v6571 = vunpack.c.l.b16 %v5099
        %v6572 = vpack.c.b16 %v6571, %v6570
        %v6577 = vunpack.c.l.b16 %v6564
        %v6578 = vunpack.c.l.b16 %v6565
        %v6579 = vunpack.c.l.b16 %v6566
        %v6580 = vunpack.c.l.b16 %v6567
        %v6581 = vpack.c.b16 %v6578, %v6577
        %v6582 = vpack.c.b16 %v6580, %v6579
        %v6586 = vsel %vm588, %v6572, 0
        %6588 = vmatpush.bf16.msra.mxu0 0
        %6589 = vmatpush.bf16.msra.mxu0 0
        %6590 = vmatpush.bf16.msra.mxu0 0
        %6591 = vmatpush.bf16.msra.mxu0 0
        %6592 = vmatpush.bf16.msra.mxu0 0
        %6593 = vmatpush.bf16.msra.mxu0 0
        %6594 = vmatpush.bf16.msra.mxu0 %v6582
        %6595 = vmatpush.bf16.msra.mxu0 %v6581
        %6596 = vmatmul.bf16.gmra.mxu0 %v5671
        %v6597 = vpop.f32.mrf.mxu0
        %v6598 = vadd.f32 0.0, %v6597
        %v6599 = vpop.f32.mrf.mxu0
        %v6600 = vadd.f32 0.0, %v6599
        %6601 = vmatmul.bf16.gmra.mxu0 %v5674
        %v6602 = vpop.f32.mrf.mxu0
        %v6603 = vadd.f32 0.0, %v6602
        %v6604 = vpop.f32.mrf.mxu0
        %v6605 = vadd.f32 0.0, %v6604
        %6606 = vmatmul.bf16.gmra.mxu0 %v5677
        %v6607 = vpop.f32.mrf.mxu0
        %v6608 = vadd.f32 0.0, %v6607
        %v6609 = vpop.f32.mrf.mxu0
        %v6610 = vadd.f32 0.0, %v6609
        %6611 = vmatmul.bf16.gmra.mxu0 %v5680
        %v6612 = vpop.f32.mrf.mxu0
        %v6613 = vadd.f32 0.0, %v6612
        %v6614 = vpop.f32.mrf.mxu0
        %v6615 = vadd.f32 0.0, %v6614
        %6616 = vmatmul.bf16.gmra.mxu0 %v5683
        %v6617 = vpop.f32.mrf.mxu0
        %v6618 = vadd.f32 0.0, %v6617
        %v6619 = vpop.f32.mrf.mxu0
        %v6620 = vadd.f32 0.0, %v6619
        %6621 = vmatmul.bf16.gmra.mxu0 %v5686
        %v6622 = vpop.f32.mrf.mxu0
        %v6623 = vadd.f32 0.0, %v6622
        %v6624 = vpop.f32.mrf.mxu0
        %v6625 = vadd.f32 0.0, %v6624
        %6626 = vmatmul.bf16.gmra.mxu0 %v5689
        %v6627 = vpop.f32.mrf.mxu0
        %v6628 = vadd.f32 0.0, %v6627
        %v6629 = vpop.f32.mrf.mxu0
        %v6630 = vadd.f32 0.0, %v6629
        %6631 = vmatmul.bf16.gmra.mxu0 %v5692
        %v6632 = vpop.f32.mrf.mxu0
        %v6633 = vadd.f32 0.0, %v6632
        %v6634 = vpop.f32.mrf.mxu0
        %v6635 = vadd.f32 0.0, %v6634
        %6636 = vmatmul.bf16.gmra.mxu0 %v5695
        %v6637 = vpop.f32.mrf.mxu0
        %v6638 = vadd.f32 0.0, %v6637
        %v6639 = vpop.f32.mrf.mxu0
        %v6640 = vadd.f32 0.0, %v6639
        %6641 = vmatmul.bf16.gmra.mxu0 %v5698
        %v6642 = vpop.f32.mrf.mxu0
        %v6643 = vadd.f32 0.0, %v6642
        %v6644 = vpop.f32.mrf.mxu0
        %v6645 = vadd.f32 0.0, %v6644
        %6646 = vmatmul.bf16.gmra.mxu0 %v5701
        %v6647 = vpop.f32.mrf.mxu0
        %v6648 = vadd.f32 0.0, %v6647
        %v6649 = vpop.f32.mrf.mxu0
        %v6650 = vadd.f32 0.0, %v6649
        %6651 = vmatmul.bf16.gmra.mxu0 %v5704
        %v6652 = vpop.f32.mrf.mxu0
        %v6653 = vadd.f32 0.0, %v6652
        %v6654 = vpop.f32.mrf.mxu0
        %v6655 = vadd.f32 0.0, %v6654
        %6656 = vmatmul.bf16.gmra.mxu0 %v5707
        %v6657 = vpop.f32.mrf.mxu0
        %v6658 = vadd.f32 0.0, %v6657
        %v6659 = vpop.f32.mrf.mxu0
        %v6660 = vadd.f32 0.0, %v6659
        %6661 = vmatmul.bf16.gmra.mxu0 %v5710
        %v6662 = vpop.f32.mrf.mxu0
        %v6663 = vadd.f32 0.0, %v6662
        %v6664 = vpop.f32.mrf.mxu0
        %v6665 = vadd.f32 0.0, %v6664
        %6666 = vmatmul.bf16.gmra.mxu0 %v6148
        %v6667 = vpop.f32.mrf.mxu0
        %v6668 = vadd.f32 0.0, %v6667
        %v6669 = vpop.f32.mrf.mxu0
        %v6670 = vadd.f32 0.0, %v6669
        %6671 = vmatmul.bf16.gmra.mxu0 %v6586
        %v6672 = vpop.f32.mrf.mxu0
        %v6673 = vadd.f32 0.0, %v6672
        %v6674 = vpop.f32.mrf.mxu0
        %v6675 = vadd.f32 0.0, %v6674
        %6676 = vdwg.mxu0
        %v6677 = vadd.f32 %v6531, %v6598
        %v6678 = vadd.f32 %v6532, %v6600
        %v6679 = vadd.f32 %v6533, %v6603
        %v6680 = vadd.f32 %v6534, %v6605
        %v6681 = vadd.f32 %v6535, %v6608
        %v6682 = vadd.f32 %v6536, %v6610
        %v6683 = vadd.f32 %v6537, %v6613
        %v6684 = vadd.f32 %v6538, %v6615
        %v6685 = vadd.f32 %v6539, %v6618
        %v6686 = vadd.f32 %v6540, %v6620
        %v6687 = vadd.f32 %v6541, %v6623
        %v6688 = vadd.f32 %v6542, %v6625
        %v6689 = vadd.f32 %v6543, %v6628
        %v6690 = vadd.f32 %v6544, %v6630
        %v6691 = vadd.f32 %v6545, %v6633
        %v6692 = vadd.f32 %v6546, %v6635
        %v6693 = vadd.f32 %v6547, %v6638
        %v6694 = vadd.f32 %v6548, %v6640
        %v6695 = vadd.f32 %v6549, %v6643
        %v6696 = vadd.f32 %v6550, %v6645
        %v6697 = vadd.f32 %v6551, %v6648
        %v6698 = vadd.f32 %v6552, %v6650
        %v6699 = vadd.f32 %v6553, %v6653
        %v6700 = vadd.f32 %v6554, %v6655
        %v6701 = vadd.f32 %v6555, %v6658
        %v6702 = vadd.f32 %v6556, %v6660
        %v6703 = vadd.f32 %v6557, %v6663
        %v6704 = vadd.f32 %v6558, %v6665
        %v6705 = vadd.f32 %v6559, %v6668
        %v6706 = vadd.f32 %v6560, %v6670
        %v6707 = vadd.f32 %v6561, %v6673
        %v6708 = vadd.f32 %v6562, %v6675
        %v6709 = vld [vmem:[#allocation13] sm:$0x1]
        %v6711 = vperm.slane %v6709, 0
        %v6713 = vadd.f32 %v6677, %v6711
        %v6714 = vadd.f32 %v6678, %v6711
        %v6715 = vadd.f32 %v6679, %v6711
        %v6716 = vadd.f32 %v6680, %v6711
        %v6717 = vadd.f32 %v6681, %v6711
        %v6718 = vadd.f32 %v6682, %v6711
        %v6719 = vadd.f32 %v6683, %v6711
        %v6720 = vadd.f32 %v6684, %v6711
        %v6721 = vadd.f32 %v6685, %v6711
        %v6722 = vadd.f32 %v6686, %v6711
        %v6723 = vadd.f32 %v6687, %v6711
        %v6724 = vadd.f32 %v6688, %v6711
        %v6725 = vadd.f32 %v6689, %v6711
        %v6726 = vadd.f32 %v6690, %v6711
        %v6727 = vadd.f32 %v6691, %v6711
        %v6728 = vadd.f32 %v6692, %v6711
        %v6729 = vadd.f32 %v6693, %v6711
        %v6730 = vadd.f32 %v6694, %v6711
        %v6731 = vadd.f32 %v6695, %v6711
        %v6732 = vadd.f32 %v6696, %v6711
        %v6733 = vadd.f32 %v6697, %v6711
        %v6734 = vadd.f32 %v6698, %v6711
        %v6735 = vadd.f32 %v6699, %v6711
        %v6736 = vadd.f32 %v6700, %v6711
        %v6737 = vadd.f32 %v6701, %v6711
        %v6738 = vadd.f32 %v6702, %v6711
        %v6739 = vadd.f32 %v6703, %v6711
        %v6740 = vadd.f32 %v6704, %v6711
        %v6741 = vadd.f32 %v6705, %v6711
        %v6742 = vadd.f32 %v6706, %v6711
        %v6743 = vadd.f32 %v6707, %v6711
        %v6744 = vadd.f32 %v6708, %v6711
        %v6745 = vmax.f32 %v6713, 0.0
        %v6746 = vmax.f32 %v6714, 0.0
        %v6747 = vmax.f32 %v6715, 0.0
        %v6748 = vmax.f32 %v6716, 0.0
        %v6749 = vmax.f32 %v6717, 0.0
        %v6750 = vmax.f32 %v6718, 0.0
        %v6751 = vmax.f32 %v6719, 0.0
        %v6752 = vmax.f32 %v6720, 0.0
        %v6753 = vmax.f32 %v6721, 0.0
        %v6754 = vmax.f32 %v6722, 0.0
        %v6755 = vmax.f32 %v6723, 0.0
        %v6756 = vmax.f32 %v6724, 0.0
        %v6757 = vmax.f32 %v6725, 0.0
        %v6758 = vmax.f32 %v6726, 0.0
        %v6759 = vmax.f32 %v6727, 0.0
        %v6760 = vmax.f32 %v6728, 0.0
        %v6761 = vmax.f32 %v6729, 0.0
        %v6762 = vmax.f32 %v6730, 0.0
        %v6763 = vmax.f32 %v6731, 0.0
        %v6764 = vmax.f32 %v6732, 0.0
        %v6765 = vmax.f32 %v6733, 0.0
        %v6766 = vmax.f32 %v6734, 0.0
        %v6767 = vmax.f32 %v6735, 0.0
        %v6768 = vmax.f32 %v6736, 0.0
        %v6769 = vmax.f32 %v6737, 0.0
        %v6770 = vmax.f32 %v6738, 0.0
        %v6771 = vmax.f32 %v6739, 0.0
        %v6772 = vmax.f32 %v6740, 0.0
        %v6773 = vmax.f32 %v6741, 0.0
        %v6774 = vmax.f32 %v6742, 0.0
        %v6775 = vmax.f32 %v6743, 0.0
        %v6776 = vmax.f32 %v6744, 0.0
        %6777 = vst.msk [vmem:[%s2638] sm:$0xff] %vm588, %v6745
        %6778 = vst.msk [vmem:[%s2638 + $0x8] sm:$0xff] %vm588, %v6746
        %6779 = vst.msk [vmem:[%s2638 + $0x10] sm:$0xff] %vm588, %v6747
        %6780 = vst.msk [vmem:[%s2638 + $0x18] sm:$0xff] %vm588, %v6748
        %6781 = vst.msk [vmem:[%s2638 + $0x20] sm:$0xff] %vm588, %v6749
        %6782 = vst.msk [vmem:[%s2638 + $0x28] sm:$0xff] %vm588, %v6750
        %6783 = vst.msk [vmem:[%s2638 + $0x30] sm:$0xff] %vm588, %v6751
        %6784 = vst.msk [vmem:[%s2638 + $0x38] sm:$0xff] %vm588, %v6752
        %6785 = vst.msk [vmem:[%s2638 + $0x40] sm:$0xff] %vm588, %v6753
        %6786 = vst.msk [vmem:[%s2638 + $0x48] sm:$0xff] %vm588, %v6754
        %6787 = vst.msk [vmem:[%s2638 + $0x50] sm:$0xff] %vm588, %v6755
        %6788 = vst.msk [vmem:[%s2638 + $0x58] sm:$0xff] %vm588, %v6756
        %6789 = vst.msk [vmem:[%s2638 + $0x60] sm:$0xff] %vm588, %v6757
        %6790 = vst.msk [vmem:[%s2638 + $0x68] sm:$0xff] %vm588, %v6758
        %6791 = vst.msk [vmem:[%s2638 + $0x70] sm:$0xff] %vm588, %v6759
        %6792 = vst.msk [vmem:[%s2638 + $0x78] sm:$0xff] %vm588, %v6760
        %6793 = vst.msk [vmem:[%s2638 + $0x80] sm:$0xff] %vm588, %v6761
        %6794 = vst.msk [vmem:[%s2638 + $0x88] sm:$0xff] %vm588, %v6762
        %6795 = vst.msk [vmem:[%s2638 + $0x90] sm:$0xff] %vm588, %v6763
        %6796 = vst.msk [vmem:[%s2638 + $0x98] sm:$0xff] %vm588, %v6764
        %6797 = vst.msk [vmem:[%s2638 + $0xa0] sm:$0xff] %vm588, %v6765
        %6798 = vst.msk [vmem:[%s2638 + $0xa8] sm:$0xff] %vm588, %v6766
        %6799 = vst.msk [vmem:[%s2638 + $0xb0] sm:$0xff] %vm588, %v6767
        %6800 = vst.msk [vmem:[%s2638 + $0xb8] sm:$0xff] %vm588, %v6768
        %6801 = vst.msk [vmem:[%s2638 + $0xc0] sm:$0xff] %vm588, %v6769
        %6802 = vst.msk [vmem:[%s2638 + $0xc8] sm:$0xff] %vm588, %v6770
        %6803 = vst.msk [vmem:[%s2638 + $0xd0] sm:$0xff] %vm588, %v6771
        %6804 = vst.msk [vmem:[%s2638 + $0xd8] sm:$0xff] %vm588, %v6772
        %6805 = vst.msk [vmem:[%s2638 + $0xe0] sm:$0xff] %vm588, %v6773
        %6806 = vst.msk [vmem:[%s2638 + $0xe8] sm:$0xff] %vm588, %v6774
        %6807 = vst.msk [vmem:[%s2638 + $0xf0] sm:$0xff] %vm588, %v6775
        %6808 = vst.msk [vmem:[%s2638 + $0xf8] sm:$0xff] %vm588, %v6776
        %v6809 = vld [vmem:[#allocation3] sm:$0xff]
        %v6810 = vld [vmem:[#allocation3 + $0x8] sm:$0xff]
        %v6811 = vld [vmem:[#allocation3 + $0x10] sm:$0xff]
        %v6812 = vld [vmem:[#allocation3 + $0x18] sm:$0xff]
        %v6813 = vld [vmem:[#allocation3 + $0x20] sm:$0xff]
        %v6814 = vld [vmem:[#allocation3 + $0x28] sm:$0xff]
        %v6815 = vld [vmem:[#allocation3 + $0x30] sm:$0xff]
        %v6816 = vld [vmem:[#allocation3 + $0x38] sm:$0xff]
        %v6817 = vld [vmem:[#allocation3 + $0x40] sm:$0xff]
        %v6818 = vld [vmem:[#allocation3 + $0x48] sm:$0xff]
        %v6819 = vld [vmem:[#allocation3 + $0x50] sm:$0xff]
        %v6820 = vld [vmem:[#allocation3 + $0x58] sm:$0xff]
        %v6821 = vld [vmem:[#allocation3 + $0x60] sm:$0xff]
        %v6822 = vld [vmem:[#allocation3 + $0x68] sm:$0xff]
        %v6823 = vld [vmem:[#allocation3 + $0x70] sm:$0xff]
        %v6824 = vld [vmem:[#allocation3 + $0x78] sm:$0xff]
        %v6825 = vld [vmem:[#allocation3 + $0x80] sm:$0xff]
        %v6826 = vld [vmem:[#allocation3 + $0x88] sm:$0xff]
        %v6827 = vld [vmem:[#allocation3 + $0x90] sm:$0xff]
        %v6828 = vld [vmem:[#allocation3 + $0x98] sm:$0xff]
        %v6829 = vld [vmem:[#allocation3 + $0xa0] sm:$0xff]
        %v6830 = vld [vmem:[#allocation3 + $0xa8] sm:$0xff]
        %v6831 = vld [vmem:[#allocation3 + $0xb0] sm:$0xff]
        %v6832 = vld [vmem:[#allocation3 + $0xb8] sm:$0xff]
        %v6833 = vld [vmem:[#allocation3 + $0xc0] sm:$0xff]
        %v6834 = vld [vmem:[#allocation3 + $0xc8] sm:$0xff]
        %v6835 = vld [vmem:[#allocation3 + $0xd0] sm:$0xff]
        %v6836 = vld [vmem:[#allocation3 + $0xd8] sm:$0xff]
        %v6837 = vld [vmem:[#allocation3 + $0xe0] sm:$0xff]
        %v6838 = vld [vmem:[#allocation3 + $0xe8] sm:$0xff]
        %v6839 = vld [vmem:[#allocation3 + $0xf0] sm:$0xff]
        %v6840 = vld [vmem:[#allocation3 + $0xf8] sm:$0xff]
        %v6841 = vld [vmem:[#allocation3 + $0x100] sm:$0xff]
        %v6842 = vld [vmem:[#allocation3 + $0x108] sm:$0xff]
        %v6843 = vld [vmem:[#allocation3 + $0x110] sm:$0xff]
        %v6844 = vld [vmem:[#allocation3 + $0x118] sm:$0xff]
        %v6845 = vrot.slane %v6809, 7
        %v6846 = vrot.slane %v6811, 7
        %v6847 = vrot.slane %v6813, 7
        %v6848 = vrot.slane %v6815, 7
        %v6849 = vrot.slane %v6817, 7
        %v6850 = vrot.slane %v6819, 7
        %v6851 = vrot.slane %v6821, 7
        %v6852 = vrot.slane %v6823, 7
        %v6853 = vrot.slane %v6825, 7
        %v6854 = vrot.slane %v6827, 7
        %v6855 = vrot.slane %v6829, 7
        %v6856 = vrot.slane %v6831, 7
        %v6857 = vrot.slane %v6833, 7
        %v6858 = vrot.slane %v6835, 7
        %v6859 = vrot.slane %v6837, 7
        %v6860 = vrot.slane %v6839, 7
        %v6861 = vrot.slane %v6841, 7
        %v6862 = vrot.slane %v6843, 7
        %v6863 = vrot.slane %v6810, 7
        %v6864 = vrot.slane %v6812, 7
        %v6865 = vrot.slane %v6814, 7
        %v6866 = vrot.slane %v6816, 7
        %v6867 = vrot.slane %v6818, 7
        %v6868 = vrot.slane %v6820, 7
        %v6869 = vrot.slane %v6822, 7
        %v6870 = vrot.slane %v6824, 7
        %v6871 = vrot.slane %v6826, 7
        %v6872 = vrot.slane %v6828, 7
        %v6873 = vrot.slane %v6830, 7
        %v6874 = vrot.slane %v6832, 7
        %v6875 = vrot.slane %v6834, 7
        %v6876 = vrot.slane %v6836, 7
        %v6877 = vrot.slane %v6838, 7
        %v6878 = vrot.slane %v6840, 7
        %v6879 = vrot.slane %v6842, 7
        %v6880 = vrot.slane %v6844, 7
        %v6881 = vsel %vm736, %v6845, %v6863
        %v6882 = vsel %vm736, %v6846, %v6864
        %v6883 = vsel %vm736, %v6847, %v6865
        %v6884 = vsel %vm736, %v6848, %v6866
        %v6885 = vsel %vm736, %v6849, %v6867
        %v6886 = vsel %vm736, %v6850, %v6868
        %v6887 = vsel %vm736, %v6851, %v6869
        %v6888 = vsel %vm736, %v6852, %v6870
        %v6889 = vsel %vm736, %v6853, %v6871
        %v6890 = vsel %vm736, %v6854, %v6872
        %v6891 = vsel %vm736, %v6855, %v6873
        %v6892 = vsel %vm736, %v6856, %v6874
        %v6893 = vsel %vm736, %v6857, %v6875
        %v6894 = vsel %vm736, %v6858, %v6876
        %v6895 = vsel %vm736, %v6859, %v6877
        %v6896 = vsel %vm736, %v6860, %v6878
        %v6897 = vsel %vm736, %v6861, %v6879
        %v6898 = vsel %vm736, %v6862, %v6880
        %v6899 = vsel %vm736, %v6863, %v6845
        %v6900 = vsel %vm736, %v6864, %v6846
        %v6901 = vsel %vm736, %v6865, %v6847
        %v6902 = vsel %vm736, %v6866, %v6848
        %v6903 = vsel %vm736, %v6867, %v6849
        %v6904 = vsel %vm736, %v6868, %v6850
        %v6905 = vsel %vm736, %v6869, %v6851
        %v6906 = vsel %vm736, %v6870, %v6852
        %v6907 = vsel %vm736, %v6871, %v6853
        %v6908 = vsel %vm736, %v6872, %v6854
        %v6909 = vsel %vm736, %v6873, %v6855
        %v6910 = vsel %vm736, %v6874, %v6856
        %v6911 = vsel %vm736, %v6875, %v6857
        %v6912 = vsel %vm736, %v6876, %v6858
        %v6913 = vsel %vm736, %v6877, %v6859
        %v6914 = vsel %vm736, %v6878, %v6860
        %v6915 = vsel %vm736, %v6879, %v6861
        %v6916 = vsel %vm736, %v6880, %v6862
        %v6917 = vsel %vm775, 0.0, %v6899
        %v6918 = vsel %vm776, 0.0, %v6881
        %v6919 = vsel %vm775, 0.0, %v6900
        %v6920 = vsel %vm776, 0.0, %v6882
        %v6921 = vsel %vm775, 0.0, %v6901
        %v6922 = vsel %vm776, 0.0, %v6883
        %v6923 = vsel %vm775, 0.0, %v6902
        %v6924 = vsel %vm776, 0.0, %v6884
        %v6925 = vsel %vm775, 0.0, %v6903
        %v6926 = vsel %vm776, 0.0, %v6885
        %v6927 = vsel %vm775, 0.0, %v6904
        %v6928 = vsel %vm776, 0.0, %v6886
        %v6929 = vsel %vm775, 0.0, %v6905
        %v6930 = vsel %vm776, 0.0, %v6887
        %v6931 = vsel %vm775, 0.0, %v6906
        %v6932 = vsel %vm776, 0.0, %v6888
        %v6933 = vsel %vm775, 0.0, %v6907
        %v6934 = vsel %vm776, 0.0, %v6889
        %v6935 = vsel %vm775, 0.0, %v6908
        %v6936 = vsel %vm776, 0.0, %v6890
        %v6937 = vsel %vm775, 0.0, %v6909
        %v6938 = vsel %vm776, 0.0, %v6891
        %v6939 = vsel %vm775, 0.0, %v6910
        %v6940 = vsel %vm776, 0.0, %v6892
        %v6941 = vsel %vm775, 0.0, %v6911
        %v6942 = vsel %vm776, 0.0, %v6893
        %v6943 = vsel %vm775, 0.0, %v6912
        %v6944 = vsel %vm776, 0.0, %v6894
        %v6945 = vsel %vm775, 0.0, %v6913
        %v6946 = vsel %vm776, 0.0, %v6895
        %v6947 = vsel %vm775, 0.0, %v6914
        %v6948 = vsel %vm776, 0.0, %v6896
        %v6949 = vsel %vm775, 0.0, %v6915
        %v6950 = vsel %vm776, 0.0, %v6897
        %v6951 = vsel %vm775, 0.0, %v6916
        %v6952 = vsel %vm776, 0.0, %v6898
        %v6953 = vrot.slane %v6809, 1
        %v6954 = vrot.slane %v6811, 1
        %v6955 = vrot.slane %v6813, 1
        %v6956 = vrot.slane %v6815, 1
        %v6957 = vrot.slane %v6817, 1
        %v6958 = vrot.slane %v6819, 1
        %v6959 = vrot.slane %v6821, 1
        %v6960 = vrot.slane %v6823, 1
        %v6961 = vrot.slane %v6825, 1
        %v6962 = vrot.slane %v6827, 1
        %v6963 = vrot.slane %v6829, 1
        %v6964 = vrot.slane %v6831, 1
        %v6965 = vrot.slane %v6833, 1
        %v6966 = vrot.slane %v6835, 1
        %v6967 = vrot.slane %v6837, 1
        %v6968 = vrot.slane %v6839, 1
        %v6969 = vrot.slane %v6841, 1
        %v6970 = vrot.slane %v6843, 1
        %v6971 = vrot.slane %v6810, 1
        %v6972 = vrot.slane %v6812, 1
        %v6973 = vrot.slane %v6814, 1
        %v6974 = vrot.slane %v6816, 1
        %v6975 = vrot.slane %v6818, 1
        %v6976 = vrot.slane %v6820, 1
        %v6977 = vrot.slane %v6822, 1
        %v6978 = vrot.slane %v6824, 1
        %v6979 = vrot.slane %v6826, 1
        %v6980 = vrot.slane %v6828, 1
        %v6981 = vrot.slane %v6830, 1
        %v6982 = vrot.slane %v6832, 1
        %v6983 = vrot.slane %v6834, 1
        %v6984 = vrot.slane %v6836, 1
        %v6985 = vrot.slane %v6838, 1
        %v6986 = vrot.slane %v6840, 1
        %v6987 = vrot.slane %v6842, 1
        %v6988 = vrot.slane %v6844, 1
        %v6989 = vsel %vm851, %v6953, %v6971
        %v6990 = vsel %vm851, %v6954, %v6972
        %v6991 = vsel %vm851, %v6955, %v6973
        %v6992 = vsel %vm851, %v6956, %v6974
        %v6993 = vsel %vm851, %v6957, %v6975
        %v6994 = vsel %vm851, %v6958, %v6976
        %v6995 = vsel %vm851, %v6959, %v6977
        %v6996 = vsel %vm851, %v6960, %v6978
        %v6997 = vsel %vm851, %v6961, %v6979
        %v6998 = vsel %vm851, %v6962, %v6980
        %v6999 = vsel %vm851, %v6963, %v6981
        %v7000 = vsel %vm851, %v6964, %v6982
        %v7001 = vsel %vm851, %v6965, %v6983
        %v7002 = vsel %vm851, %v6966, %v6984
        %v7003 = vsel %vm851, %v6967, %v6985
        %v7004 = vsel %vm851, %v6968, %v6986
        %v7005 = vsel %vm851, %v6969, %v6987
        %v7006 = vsel %vm851, %v6970, %v6988
        %v7007 = vsel %vm851, %v6971, %v6953
        %v7008 = vsel %vm851, %v6972, %v6954
        %v7009 = vsel %vm851, %v6973, %v6955
        %v7010 = vsel %vm851, %v6974, %v6956
        %v7011 = vsel %vm851, %v6975, %v6957
        %v7012 = vsel %vm851, %v6976, %v6958
        %v7013 = vsel %vm851, %v6977, %v6959
        %v7014 = vsel %vm851, %v6978, %v6960
        %v7015 = vsel %vm851, %v6979, %v6961
        %v7016 = vsel %vm851, %v6980, %v6962
        %v7017 = vsel %vm851, %v6981, %v6963
        %v7018 = vsel %vm851, %v6982, %v6964
        %v7019 = vsel %vm851, %v6983, %v6965
        %v7020 = vsel %vm851, %v6984, %v6966
        %v7021 = vsel %vm851, %v6985, %v6967
        %v7022 = vsel %vm851, %v6986, %v6968
        %v7023 = vsel %vm851, %v6987, %v6969
        %v7024 = vsel %vm851, %v6988, %v6970
        %v7025 = vsel %vm890, 0.0, %v6989
        %v7026 = vsel %vm891, 0.0, %v7007
        %v7027 = vsel %vm890, 0.0, %v6990
        %v7028 = vsel %vm891, 0.0, %v7008
        %v7029 = vsel %vm890, 0.0, %v6991
        %v7030 = vsel %vm891, 0.0, %v7009
        %v7031 = vsel %vm890, 0.0, %v6992
        %v7032 = vsel %vm891, 0.0, %v7010
        %v7033 = vsel %vm890, 0.0, %v6993
        %v7034 = vsel %vm891, 0.0, %v7011
        %v7035 = vsel %vm890, 0.0, %v6994
        %v7036 = vsel %vm891, 0.0, %v7012
        %v7037 = vsel %vm890, 0.0, %v6995
        %v7038 = vsel %vm891, 0.0, %v7013
        %v7039 = vsel %vm890, 0.0, %v6996
        %v7040 = vsel %vm891, 0.0, %v7014
        %v7041 = vsel %vm890, 0.0, %v6997
        %v7042 = vsel %vm891, 0.0, %v7015
        %v7043 = vsel %vm890, 0.0, %v6998
        %v7044 = vsel %vm891, 0.0, %v7016
        %v7045 = vsel %vm890, 0.0, %v6999
        %v7046 = vsel %vm891, 0.0, %v7017
        %v7047 = vsel %vm890, 0.0, %v7000
        %v7048 = vsel %vm891, 0.0, %v7018
        %v7049 = vsel %vm890, 0.0, %v7001
        %v7050 = vsel %vm891, 0.0, %v7019
        %v7051 = vsel %vm890, 0.0, %v7002
        %v7052 = vsel %vm891, 0.0, %v7020
        %v7053 = vsel %vm890, 0.0, %v7003
        %v7054 = vsel %vm891, 0.0, %v7021
        %v7055 = vsel %vm890, 0.0, %v7004
        %v7056 = vsel %vm891, 0.0, %v7022
        %v7057 = vsel %vm890, 0.0, %v7005
        %v7058 = vsel %vm891, 0.0, %v7023
        %v7059 = vsel %vm890, 0.0, %v7006
        %v7060 = vsel %vm891, 0.0, %v7024
        %v7061 = vpack.c.bf16 %v6917, %v6917
        %v7062 = vpack.c.bf16 %v6918, %v6918
        %v7063 = vpack.c.bf16 %v6919, %v6919
        %v7064 = vpack.c.bf16 %v6920, %v6920
        %v7065 = vpack.c.bf16 %v6921, %v6921
        %v7066 = vpack.c.bf16 %v6922, %v6922
        %v7067 = vpack.c.bf16 %v6923, %v6923
        %v7068 = vpack.c.bf16 %v6924, %v6924
        %v7069 = vpack.c.bf16 %v6925, %v6925
        %v7070 = vpack.c.bf16 %v6926, %v6926
        %v7071 = vpack.c.bf16 %v6927, %v6927
        %v7072 = vpack.c.bf16 %v6928, %v6928
        %v7073 = vpack.c.bf16 %v6929, %v6929
        %v7074 = vpack.c.bf16 %v6930, %v6930
        %v7075 = vpack.c.bf16 %v6931, %v6931
        %v7076 = vpack.c.bf16 %v6932, %v6932
        %v7077 = vpack.c.bf16 %v6933, %v6933
        %v7078 = vpack.c.bf16 %v6934, %v6934
        %v7079 = vpack.c.bf16 %v6935, %v6935
        %v7080 = vpack.c.bf16 %v6936, %v6936
        %v7081 = vpack.c.bf16 %v6937, %v6937
        %v7082 = vpack.c.bf16 %v6938, %v6938
        %v7083 = vpack.c.bf16 %v6939, %v6939
        %v7084 = vpack.c.bf16 %v6940, %v6940
        %v7085 = vpack.c.bf16 %v6941, %v6941
        %v7086 = vpack.c.bf16 %v6942, %v6942
        %v7087 = vpack.c.bf16 %v6943, %v6943
        %v7088 = vpack.c.bf16 %v6944, %v6944
        %v7089 = vpack.c.bf16 %v6945, %v6945
        %v7090 = vpack.c.bf16 %v6946, %v6946
        %v7091 = vpack.c.bf16 %v6947, %v6947
        %v7092 = vpack.c.bf16 %v6948, %v6948
        %v7093 = vpack.c.bf16 %v6949, %v6949
        %v7094 = vpack.c.bf16 %v6950, %v6950
        %v7095 = vpack.c.bf16 %v6951, %v6951
        %v7096 = vpack.c.bf16 %v6952, %v6952
        %v7097 = vpack.c.bf16 %v6809, %v6809
        %v7098 = vpack.c.bf16 %v6810, %v6810
        %v7099 = vpack.c.bf16 %v6811, %v6811
        %v7100 = vpack.c.bf16 %v6812, %v6812
        %v7101 = vpack.c.bf16 %v6813, %v6813
        %v7102 = vpack.c.bf16 %v6814, %v6814
        %v7103 = vpack.c.bf16 %v6815, %v6815
        %v7104 = vpack.c.bf16 %v6816, %v6816
        %v7105 = vpack.c.bf16 %v6817, %v6817
        %v7106 = vpack.c.bf16 %v6818, %v6818
        %v7107 = vpack.c.bf16 %v6819, %v6819
        %v7108 = vpack.c.bf16 %v6820, %v6820
        %v7109 = vpack.c.bf16 %v6821, %v6821
        %v7110 = vpack.c.bf16 %v6822, %v6822
        %v7111 = vpack.c.bf16 %v6823, %v6823
        %v7112 = vpack.c.bf16 %v6824, %v6824
        %v7113 = vpack.c.bf16 %v6825, %v6825
        %v7114 = vpack.c.bf16 %v6826, %v6826
        %v7115 = vpack.c.bf16 %v6827, %v6827
        %v7116 = vpack.c.bf16 %v6828, %v6828
        %v7117 = vpack.c.bf16 %v6829, %v6829
        %v7118 = vpack.c.bf16 %v6830, %v6830
        %v7119 = vpack.c.bf16 %v6831, %v6831
        %v7120 = vpack.c.bf16 %v6832, %v6832
        %v7121 = vpack.c.bf16 %v6833, %v6833
        %v7122 = vpack.c.bf16 %v6834, %v6834
        %v7123 = vpack.c.bf16 %v6835, %v6835
        %v7124 = vpack.c.bf16 %v6836, %v6836
        %v7125 = vpack.c.bf16 %v6837, %v6837
        %v7126 = vpack.c.bf16 %v6838, %v6838
        %v7127 = vpack.c.bf16 %v6839, %v6839
        %v7128 = vpack.c.bf16 %v6840, %v6840
        %v7129 = vpack.c.bf16 %v6841, %v6841
        %v7130 = vpack.c.bf16 %v6842, %v6842
        %v7131 = vpack.c.bf16 %v6843, %v6843
        %v7132 = vpack.c.bf16 %v6844, %v6844
        %v7133 = vpack.c.bf16 %v7025, %v7025
        %v7134 = vpack.c.bf16 %v7026, %v7026
        %v7135 = vpack.c.bf16 %v7027, %v7027
        %v7136 = vpack.c.bf16 %v7028, %v7028
        %v7137 = vpack.c.bf16 %v7029, %v7029
        %v7138 = vpack.c.bf16 %v7030, %v7030
        %v7139 = vpack.c.bf16 %v7031, %v7031
        %v7140 = vpack.c.bf16 %v7032, %v7032
        %v7141 = vpack.c.bf16 %v7033, %v7033
        %v7142 = vpack.c.bf16 %v7034, %v7034
        %v7143 = vpack.c.bf16 %v7035, %v7035
        %v7144 = vpack.c.bf16 %v7036, %v7036
        %v7145 = vpack.c.bf16 %v7037, %v7037
        %v7146 = vpack.c.bf16 %v7038, %v7038
        %v7147 = vpack.c.bf16 %v7039, %v7039
        %v7148 = vpack.c.bf16 %v7040, %v7040
        %v7149 = vpack.c.bf16 %v7041, %v7041
        %v7150 = vpack.c.bf16 %v7042, %v7042
        %v7151 = vpack.c.bf16 %v7043, %v7043
        %v7152 = vpack.c.bf16 %v7044, %v7044
        %v7153 = vpack.c.bf16 %v7045, %v7045
        %v7154 = vpack.c.bf16 %v7046, %v7046
        %v7155 = vpack.c.bf16 %v7047, %v7047
        %v7156 = vpack.c.bf16 %v7048, %v7048
        %v7157 = vpack.c.bf16 %v7049, %v7049
        %v7158 = vpack.c.bf16 %v7050, %v7050
        %v7159 = vpack.c.bf16 %v7051, %v7051
        %v7160 = vpack.c.bf16 %v7052, %v7052
        %v7161 = vpack.c.bf16 %v7053, %v7053
        %v7162 = vpack.c.bf16 %v7054, %v7054
        %v7163 = vpack.c.bf16 %v7055, %v7055
        %v7164 = vpack.c.bf16 %v7056, %v7056
        %v7165 = vpack.c.bf16 %v7057, %v7057
        %v7166 = vpack.c.bf16 %v7058, %v7058
        %v7167 = vpack.c.bf16 %v7059, %v7059
        %v7168 = vpack.c.bf16 %v7060, %v7060
        %v7169 = vld [vmem:[#allocation15] sm:$0xf]
        %v7170 = vld [vmem:[#allocation15 + $0x4] sm:$0xf]
        %v7171 = vld [vmem:[#allocation15 + $0x8] sm:$0xf]
        %v7172 = vld [vmem:[#allocation15 + $0xc] sm:$0xf]
        %s7173 = scalar_lea.vmem [#allocation15], 16
        %v7174 = vld [vmem:[%s7173] sm:$0xf]
        %v7175 = vld [vmem:[%s7173 + $0x4] sm:$0xf]
        %v7176 = vld [vmem:[%s7173 + $0x8] sm:$0xf]
        %v7177 = vld [vmem:[%s7173 + $0xc] sm:$0xf]
        %v7210 = vunpack.c.l.b16 %v7097
        %v7211 = vunpack.c.l.b16 %v7098
        %v7212 = vunpack.c.l.b16 %v7099
        %v7213 = vunpack.c.l.b16 %v7100
        %v7214 = vunpack.c.l.b16 %v7101
        %v7215 = vunpack.c.l.b16 %v7102
        %v7216 = vunpack.c.l.b16 %v7103
        %v7217 = vunpack.c.l.b16 %v7104
        %v7218 = vunpack.c.l.b16 %v7105
        %v7219 = vunpack.c.l.b16 %v7106
        %v7220 = vunpack.c.l.b16 %v7107
        %v7221 = vunpack.c.l.b16 %v7108
        %v7222 = vunpack.c.l.b16 %v7109
        %v7223 = vunpack.c.l.b16 %v7110
        %v7224 = vunpack.c.l.b16 %v7111
        %v7225 = vunpack.c.l.b16 %v7112
        %v7226 = vunpack.c.l.b16 %v7113
        %v7227 = vunpack.c.l.b16 %v7114
        %v7228 = vunpack.c.l.b16 %v7115
        %v7229 = vunpack.c.l.b16 %v7116
        %v7230 = vunpack.c.l.b16 %v7117
        %v7231 = vunpack.c.l.b16 %v7118
        %v7232 = vunpack.c.l.b16 %v7119
        %v7233 = vunpack.c.l.b16 %v7120
        %v7234 = vunpack.c.l.b16 %v7121
        %v7235 = vunpack.c.l.b16 %v7122
        %v7236 = vunpack.c.l.b16 %v7123
        %v7237 = vunpack.c.l.b16 %v7124
        %v7238 = vunpack.c.l.b16 %v7125
        %v7239 = vunpack.c.l.b16 %v7126
        %v7240 = vunpack.c.l.b16 %v7127
        %v7241 = vunpack.c.l.b16 %v7128
        %v7242 = vpack.c.b16 %v7211, %v7210
        %v7243 = vpack.c.b16 %v7213, %v7212
        %v7244 = vpack.c.b16 %v7215, %v7214
        %v7245 = vpack.c.b16 %v7217, %v7216
        %v7246 = vpack.c.b16 %v7219, %v7218
        %v7247 = vpack.c.b16 %v7221, %v7220
        %v7248 = vpack.c.b16 %v7223, %v7222
        %v7249 = vpack.c.b16 %v7225, %v7224
        %v7250 = vpack.c.b16 %v7227, %v7226
        %v7251 = vpack.c.b16 %v7229, %v7228
        %v7252 = vpack.c.b16 %v7231, %v7230
        %v7253 = vpack.c.b16 %v7233, %v7232
        %v7254 = vpack.c.b16 %v7235, %v7234
        %v7255 = vpack.c.b16 %v7237, %v7236
        %v7256 = vpack.c.b16 %v7239, %v7238
        %v7257 = vpack.c.b16 %v7241, %v7240
        %v7262 = vunpack.c.l.b16 %v7174
        %v7263 = vunpack.c.l.b16 %v7175
        %v7264 = vunpack.c.l.b16 %v7176
        %v7265 = vunpack.c.l.b16 %v7177
        %v7266 = vpack.c.b16 %v7263, %v7262
        %v7267 = vpack.c.b16 %v7265, %v7264
        %v7271 = vsel %vm588, %v7242, 0
        %v7274 = vsel %vm588, %v7243, 0
        %v7277 = vsel %vm588, %v7244, 0
        %v7280 = vsel %vm588, %v7245, 0
        %v7283 = vsel %vm588, %v7246, 0
        %v7286 = vsel %vm588, %v7247, 0
        %v7289 = vsel %vm588, %v7248, 0
        %v7292 = vsel %vm588, %v7249, 0
        %v7295 = vsel %vm588, %v7250, 0
        %v7298 = vsel %vm588, %v7251, 0
        %v7301 = vsel %vm588, %v7252, 0
        %v7304 = vsel %vm588, %v7253, 0
        %v7307 = vsel %vm588, %v7254, 0
        %v7310 = vsel %vm588, %v7255, 0
        %v7313 = vsel %vm588, %v7256, 0
        %v7316 = vsel %vm588, %v7257, 0
        %7318 = vmatpush.bf16.msra.mxu0 0
        %7319 = vmatpush.bf16.msra.mxu0 0
        %7320 = vmatpush.bf16.msra.mxu0 0
        %7321 = vmatpush.bf16.msra.mxu0 0
        %7322 = vmatpush.bf16.msra.mxu0 0
        %7323 = vmatpush.bf16.msra.mxu0 0
        %7324 = vmatpush.bf16.msra.mxu0 %v7267
        %7325 = vmatpush.bf16.msra.mxu0 %v7266
        %7326 = vmatmul.bf16.gmra.mxu0 %v7271
        %v7327 = vpop.f32.mrf.mxu0
        %v7328 = vadd.f32 0.0, %v7327
        %v7329 = vpop.f32.mrf.mxu0
        %v7330 = vadd.f32 0.0, %v7329
        %7331 = vmatmul.bf16.gmra.mxu0 %v7274
        %v7332 = vpop.f32.mrf.mxu0
        %v7333 = vadd.f32 0.0, %v7332
        %v7334 = vpop.f32.mrf.mxu0
        %v7335 = vadd.f32 0.0, %v7334
        %7336 = vmatmul.bf16.gmra.mxu0 %v7277
        %v7337 = vpop.f32.mrf.mxu0
        %v7338 = vadd.f32 0.0, %v7337
        %v7339 = vpop.f32.mrf.mxu0
        %v7340 = vadd.f32 0.0, %v7339
        %7341 = vmatmul.bf16.gmra.mxu0 %v7280
        %v7342 = vpop.f32.mrf.mxu0
        %v7343 = vadd.f32 0.0, %v7342
        %v7344 = vpop.f32.mrf.mxu0
        %v7345 = vadd.f32 0.0, %v7344
        %7346 = vmatmul.bf16.gmra.mxu0 %v7283
        %v7347 = vpop.f32.mrf.mxu0
        %v7348 = vadd.f32 0.0, %v7347
        %v7349 = vpop.f32.mrf.mxu0
        %v7350 = vadd.f32 0.0, %v7349
        %7351 = vmatmul.bf16.gmra.mxu0 %v7286
        %v7352 = vpop.f32.mrf.mxu0
        %v7353 = vadd.f32 0.0, %v7352
        %v7354 = vpop.f32.mrf.mxu0
        %v7355 = vadd.f32 0.0, %v7354
        %7356 = vmatmul.bf16.gmra.mxu0 %v7289
        %v7357 = vpop.f32.mrf.mxu0
        %v7358 = vadd.f32 0.0, %v7357
        %v7359 = vpop.f32.mrf.mxu0
        %v7360 = vadd.f32 0.0, %v7359
        %7361 = vmatmul.bf16.gmra.mxu0 %v7292
        %v7362 = vpop.f32.mrf.mxu0
        %v7363 = vadd.f32 0.0, %v7362
        %v7364 = vpop.f32.mrf.mxu0
        %v7365 = vadd.f32 0.0, %v7364
        %7366 = vmatmul.bf16.gmra.mxu0 %v7295
        %v7367 = vpop.f32.mrf.mxu0
        %v7368 = vadd.f32 0.0, %v7367
        %v7369 = vpop.f32.mrf.mxu0
        %v7370 = vadd.f32 0.0, %v7369
        %7371 = vmatmul.bf16.gmra.mxu0 %v7298
        %v7372 = vpop.f32.mrf.mxu0
        %v7373 = vadd.f32 0.0, %v7372
        %v7374 = vpop.f32.mrf.mxu0
        %v7375 = vadd.f32 0.0, %v7374
        %7376 = vmatmul.bf16.gmra.mxu0 %v7301
        %v7377 = vpop.f32.mrf.mxu0
        %v7378 = vadd.f32 0.0, %v7377
        %v7379 = vpop.f32.mrf.mxu0
        %v7380 = vadd.f32 0.0, %v7379
        %7381 = vmatmul.bf16.gmra.mxu0 %v7304
        %v7382 = vpop.f32.mrf.mxu0
        %v7383 = vadd.f32 0.0, %v7382
        %v7384 = vpop.f32.mrf.mxu0
        %v7385 = vadd.f32 0.0, %v7384
        %7386 = vmatmul.bf16.gmra.mxu0 %v7307
        %v7387 = vpop.f32.mrf.mxu0
        %v7388 = vadd.f32 0.0, %v7387
        %v7389 = vpop.f32.mrf.mxu0
        %v7390 = vadd.f32 0.0, %v7389
        %7391 = vmatmul.bf16.gmra.mxu0 %v7310
        %v7392 = vpop.f32.mrf.mxu0
        %v7393 = vadd.f32 0.0, %v7392
        %v7394 = vpop.f32.mrf.mxu0
        %v7395 = vadd.f32 0.0, %v7394
        %7396 = vmatmul.bf16.gmra.mxu0 %v7313
        %v7397 = vpop.f32.mrf.mxu0
        %v7398 = vadd.f32 0.0, %v7397
        %v7399 = vpop.f32.mrf.mxu0
        %v7400 = vadd.f32 0.0, %v7399
        %7401 = vmatmul.bf16.gmra.mxu0 %v7316
        %v7402 = vpop.f32.mrf.mxu0
        %v7403 = vadd.f32 0.0, %v7402
        %v7404 = vpop.f32.mrf.mxu0
        %v7405 = vadd.f32 0.0, %v7404
        %7406 = vdwg.mxu0
        %v7439 = vunpack.c.l.b16 %v7061
        %v7440 = vunpack.c.l.b16 %v7062
        %v7441 = vunpack.c.l.b16 %v7063
        %v7442 = vunpack.c.l.b16 %v7064
        %v7443 = vunpack.c.l.b16 %v7065
        %v7444 = vunpack.c.l.b16 %v7066
        %v7445 = vunpack.c.l.b16 %v7067
        %v7446 = vunpack.c.l.b16 %v7068
        %v7447 = vunpack.c.l.b16 %v7069
        %v7448 = vunpack.c.l.b16 %v7070
        %v7449 = vunpack.c.l.b16 %v7071
        %v7450 = vunpack.c.l.b16 %v7072
        %v7451 = vunpack.c.l.b16 %v7073
        %v7452 = vunpack.c.l.b16 %v7074
        %v7453 = vunpack.c.l.b16 %v7075
        %v7454 = vunpack.c.l.b16 %v7076
        %v7455 = vunpack.c.l.b16 %v7077
        %v7456 = vunpack.c.l.b16 %v7078
        %v7457 = vunpack.c.l.b16 %v7079
        %v7458 = vunpack.c.l.b16 %v7080
        %v7459 = vunpack.c.l.b16 %v7081
        %v7460 = vunpack.c.l.b16 %v7082
        %v7461 = vunpack.c.l.b16 %v7083
        %v7462 = vunpack.c.l.b16 %v7084
        %v7463 = vunpack.c.l.b16 %v7085
        %v7464 = vunpack.c.l.b16 %v7086
        %v7465 = vunpack.c.l.b16 %v7087
        %v7466 = vunpack.c.l.b16 %v7088
        %v7467 = vunpack.c.l.b16 %v7089
        %v7468 = vunpack.c.l.b16 %v7090
        %v7469 = vunpack.c.l.b16 %v7091
        %v7470 = vunpack.c.l.b16 %v7092
        %v7471 = vpack.c.b16 %v7440, %v7439
        %v7472 = vpack.c.b16 %v7442, %v7441
        %v7473 = vpack.c.b16 %v7444, %v7443
        %v7474 = vpack.c.b16 %v7446, %v7445
        %v7475 = vpack.c.b16 %v7448, %v7447
        %v7476 = vpack.c.b16 %v7450, %v7449
        %v7477 = vpack.c.b16 %v7452, %v7451
        %v7478 = vpack.c.b16 %v7454, %v7453
        %v7479 = vpack.c.b16 %v7456, %v7455
        %v7480 = vpack.c.b16 %v7458, %v7457
        %v7481 = vpack.c.b16 %v7460, %v7459
        %v7482 = vpack.c.b16 %v7462, %v7461
        %v7483 = vpack.c.b16 %v7464, %v7463
        %v7484 = vpack.c.b16 %v7466, %v7465
        %v7485 = vpack.c.b16 %v7468, %v7467
        %v7486 = vpack.c.b16 %v7470, %v7469
        %v7491 = vunpack.c.l.b16 %v7169
        %v7492 = vunpack.c.l.b16 %v7170
        %v7493 = vunpack.c.l.b16 %v7171
        %v7494 = vunpack.c.l.b16 %v7172
        %v7495 = vpack.c.b16 %v7492, %v7491
        %v7496 = vpack.c.b16 %v7494, %v7493
        %v7500 = vsel %vm588, %v7471, 0
        %v7503 = vsel %vm588, %v7472, 0
        %v7506 = vsel %vm588, %v7473, 0
        %v7509 = vsel %vm588, %v7474, 0
        %v7512 = vsel %vm588, %v7475, 0
        %v7515 = vsel %vm588, %v7476, 0
        %v7518 = vsel %vm588, %v7477, 0
        %v7521 = vsel %vm588, %v7478, 0
        %v7524 = vsel %vm588, %v7479, 0
        %v7527 = vsel %vm588, %v7480, 0
        %v7530 = vsel %vm588, %v7481, 0
        %v7533 = vsel %vm588, %v7482, 0
        %v7536 = vsel %vm588, %v7483, 0
        %v7539 = vsel %vm588, %v7484, 0
        %v7542 = vsel %vm588, %v7485, 0
        %v7545 = vsel %vm588, %v7486, 0
        %7547 = vmatpush.bf16.msra.mxu0 0
        %7548 = vmatpush.bf16.msra.mxu0 0
        %7549 = vmatpush.bf16.msra.mxu0 0
        %7550 = vmatpush.bf16.msra.mxu0 0
        %7551 = vmatpush.bf16.msra.mxu0 0
        %7552 = vmatpush.bf16.msra.mxu0 0
        %7553 = vmatpush.bf16.msra.mxu0 %v7496
        %7554 = vmatpush.bf16.msra.mxu0 %v7495
        %7555 = vmatmul.bf16.gmra.mxu0 %v7500
        %v7556 = vpop.f32.mrf.mxu0
        %v7557 = vadd.f32 %v7328, %v7556
        %v7558 = vpop.f32.mrf.mxu0
        %v7559 = vadd.f32 %v7330, %v7558
        %7560 = vmatmul.bf16.gmra.mxu0 %v7503
        %v7561 = vpop.f32.mrf.mxu0
        %v7562 = vadd.f32 %v7333, %v7561
        %v7563 = vpop.f32.mrf.mxu0
        %v7564 = vadd.f32 %v7335, %v7563
        %7565 = vmatmul.bf16.gmra.mxu0 %v7506
        %v7566 = vpop.f32.mrf.mxu0
        %v7567 = vadd.f32 %v7338, %v7566
        %v7568 = vpop.f32.mrf.mxu0
        %v7569 = vadd.f32 %v7340, %v7568
        %7570 = vmatmul.bf16.gmra.mxu0 %v7509
        %v7571 = vpop.f32.mrf.mxu0
        %v7572 = vadd.f32 %v7343, %v7571
        %v7573 = vpop.f32.mrf.mxu0
        %v7574 = vadd.f32 %v7345, %v7573
        %7575 = vmatmul.bf16.gmra.mxu0 %v7512
        %v7576 = vpop.f32.mrf.mxu0
        %v7577 = vadd.f32 %v7348, %v7576
        %v7578 = vpop.f32.mrf.mxu0
        %v7579 = vadd.f32 %v7350, %v7578
        %7580 = vmatmul.bf16.gmra.mxu0 %v7515
        %v7581 = vpop.f32.mrf.mxu0
        %v7582 = vadd.f32 %v7353, %v7581
        %v7583 = vpop.f32.mrf.mxu0
        %v7584 = vadd.f32 %v7355, %v7583
        %7585 = vmatmul.bf16.gmra.mxu0 %v7518
        %v7586 = vpop.f32.mrf.mxu0
        %v7587 = vadd.f32 %v7358, %v7586
        %v7588 = vpop.f32.mrf.mxu0
        %v7589 = vadd.f32 %v7360, %v7588
        %7590 = vmatmul.bf16.gmra.mxu0 %v7521
        %v7591 = vpop.f32.mrf.mxu0
        %v7592 = vadd.f32 %v7363, %v7591
        %v7593 = vpop.f32.mrf.mxu0
        %v7594 = vadd.f32 %v7365, %v7593
        %7595 = vmatmul.bf16.gmra.mxu0 %v7524
        %v7596 = vpop.f32.mrf.mxu0
        %v7597 = vadd.f32 %v7368, %v7596
        %v7598 = vpop.f32.mrf.mxu0
        %v7599 = vadd.f32 %v7370, %v7598
        %7600 = vmatmul.bf16.gmra.mxu0 %v7527
        %v7601 = vpop.f32.mrf.mxu0
        %v7602 = vadd.f32 %v7373, %v7601
        %v7603 = vpop.f32.mrf.mxu0
        %v7604 = vadd.f32 %v7375, %v7603
        %7605 = vmatmul.bf16.gmra.mxu0 %v7530
        %v7606 = vpop.f32.mrf.mxu0
        %v7607 = vadd.f32 %v7378, %v7606
        %v7608 = vpop.f32.mrf.mxu0
        %v7609 = vadd.f32 %v7380, %v7608
        %7610 = vmatmul.bf16.gmra.mxu0 %v7533
        %v7611 = vpop.f32.mrf.mxu0
        %v7612 = vadd.f32 %v7383, %v7611
        %v7613 = vpop.f32.mrf.mxu0
        %v7614 = vadd.f32 %v7385, %v7613
        %7615 = vmatmul.bf16.gmra.mxu0 %v7536
        %v7616 = vpop.f32.mrf.mxu0
        %v7617 = vadd.f32 %v7388, %v7616
        %v7618 = vpop.f32.mrf.mxu0
        %v7619 = vadd.f32 %v7390, %v7618
        %7620 = vmatmul.bf16.gmra.mxu0 %v7539
        %v7621 = vpop.f32.mrf.mxu0
        %v7622 = vadd.f32 %v7393, %v7621
        %v7623 = vpop.f32.mrf.mxu0
        %v7624 = vadd.f32 %v7395, %v7623
        %7625 = vmatmul.bf16.gmra.mxu0 %v7542
        %v7626 = vpop.f32.mrf.mxu0
        %v7627 = vadd.f32 %v7398, %v7626
        %v7628 = vpop.f32.mrf.mxu0
        %v7629 = vadd.f32 %v7400, %v7628
        %7630 = vmatmul.bf16.gmra.mxu0 %v7545
        %v7631 = vpop.f32.mrf.mxu0
        %v7632 = vadd.f32 %v7403, %v7631
        %v7633 = vpop.f32.mrf.mxu0
        %v7634 = vadd.f32 %v7405, %v7633
        %7635 = vdwg.mxu0
        %s7636 = scalar_lea.vmem [#allocation15], 32
        %v7637 = vld [vmem:[%s7636] sm:$0xf]
        %v7638 = vld [vmem:[%s7636 + $0x4] sm:$0xf]
        %v7639 = vld [vmem:[%s7636 + $0x8] sm:$0xf]
        %v7640 = vld [vmem:[%s7636 + $0xc] sm:$0xf]
        %v7673 = vunpack.c.l.b16 %v7133
        %v7674 = vunpack.c.l.b16 %v7134
        %v7675 = vunpack.c.l.b16 %v7135
        %v7676 = vunpack.c.l.b16 %v7136
        %v7677 = vunpack.c.l.b16 %v7137
        %v7678 = vunpack.c.l.b16 %v7138
        %v7679 = vunpack.c.l.b16 %v7139
        %v7680 = vunpack.c.l.b16 %v7140
        %v7681 = vunpack.c.l.b16 %v7141
        %v7682 = vunpack.c.l.b16 %v7142
        %v7683 = vunpack.c.l.b16 %v7143
        %v7684 = vunpack.c.l.b16 %v7144
        %v7685 = vunpack.c.l.b16 %v7145
        %v7686 = vunpack.c.l.b16 %v7146
        %v7687 = vunpack.c.l.b16 %v7147
        %v7688 = vunpack.c.l.b16 %v7148
        %v7689 = vunpack.c.l.b16 %v7149
        %v7690 = vunpack.c.l.b16 %v7150
        %v7691 = vunpack.c.l.b16 %v7151
        %v7692 = vunpack.c.l.b16 %v7152
        %v7693 = vunpack.c.l.b16 %v7153
        %v7694 = vunpack.c.l.b16 %v7154
        %v7695 = vunpack.c.l.b16 %v7155
        %v7696 = vunpack.c.l.b16 %v7156
        %v7697 = vunpack.c.l.b16 %v7157
        %v7698 = vunpack.c.l.b16 %v7158
        %v7699 = vunpack.c.l.b16 %v7159
        %v7700 = vunpack.c.l.b16 %v7160
        %v7701 = vunpack.c.l.b16 %v7161
        %v7702 = vunpack.c.l.b16 %v7162
        %v7703 = vunpack.c.l.b16 %v7163
        %v7704 = vunpack.c.l.b16 %v7164
        %v7705 = vpack.c.b16 %v7674, %v7673
        %v7706 = vpack.c.b16 %v7676, %v7675
        %v7707 = vpack.c.b16 %v7678, %v7677
        %v7708 = vpack.c.b16 %v7680, %v7679
        %v7709 = vpack.c.b16 %v7682, %v7681
        %v7710 = vpack.c.b16 %v7684, %v7683
        %v7711 = vpack.c.b16 %v7686, %v7685
        %v7712 = vpack.c.b16 %v7688, %v7687
        %v7713 = vpack.c.b16 %v7690, %v7689
        %v7714 = vpack.c.b16 %v7692, %v7691
        %v7715 = vpack.c.b16 %v7694, %v7693
        %v7716 = vpack.c.b16 %v7696, %v7695
        %v7717 = vpack.c.b16 %v7698, %v7697
        %v7718 = vpack.c.b16 %v7700, %v7699
        %v7719 = vpack.c.b16 %v7702, %v7701
        %v7720 = vpack.c.b16 %v7704, %v7703
        %v7725 = vunpack.c.l.b16 %v7637
        %v7726 = vunpack.c.l.b16 %v7638
        %v7727 = vunpack.c.l.b16 %v7639
        %v7728 = vunpack.c.l.b16 %v7640
        %v7729 = vpack.c.b16 %v7726, %v7725
        %v7730 = vpack.c.b16 %v7728, %v7727
        %v7734 = vsel %vm588, %v7705, 0
        %v7737 = vsel %vm588, %v7706, 0
        %v7740 = vsel %vm588, %v7707, 0
        %v7743 = vsel %vm588, %v7708, 0
        %v7746 = vsel %vm588, %v7709, 0
        %v7749 = vsel %vm588, %v7710, 0
        %v7752 = vsel %vm588, %v7711, 0
        %v7755 = vsel %vm588, %v7712, 0
        %v7758 = vsel %vm588, %v7713, 0
        %v7761 = vsel %vm588, %v7714, 0
        %v7764 = vsel %vm588, %v7715, 0
        %v7767 = vsel %vm588, %v7716, 0
        %v7770 = vsel %vm588, %v7717, 0
        %v7773 = vsel %vm588, %v7718, 0
        %v7776 = vsel %vm588, %v7719, 0
        %v7779 = vsel %vm588, %v7720, 0
        %7781 = vmatpush.bf16.msra.mxu0 0
        %7782 = vmatpush.bf16.msra.mxu0 0
        %7783 = vmatpush.bf16.msra.mxu0 0
        %7784 = vmatpush.bf16.msra.mxu0 0
        %7785 = vmatpush.bf16.msra.mxu0 0
        %7786 = vmatpush.bf16.msra.mxu0 0
        %7787 = vmatpush.bf16.msra.mxu0 %v7730
        %7788 = vmatpush.bf16.msra.mxu0 %v7729
        %7789 = vmatmul.bf16.gmra.mxu0 %v7734
        %v7790 = vpop.f32.mrf.mxu0
        %v7791 = vadd.f32 0.0, %v7790
        %v7792 = vpop.f32.mrf.mxu0
        %v7793 = vadd.f32 0.0, %v7792
        %7794 = vmatmul.bf16.gmra.mxu0 %v7737
        %v7795 = vpop.f32.mrf.mxu0
        %v7796 = vadd.f32 0.0, %v7795
        %v7797 = vpop.f32.mrf.mxu0
        %v7798 = vadd.f32 0.0, %v7797
        %7799 = vmatmul.bf16.gmra.mxu0 %v7740
        %v7800 = vpop.f32.mrf.mxu0
        %v7801 = vadd.f32 0.0, %v7800
        %v7802 = vpop.f32.mrf.mxu0
        %v7803 = vadd.f32 0.0, %v7802
        %7804 = vmatmul.bf16.gmra.mxu0 %v7743
        %v7805 = vpop.f32.mrf.mxu0
        %v7806 = vadd.f32 0.0, %v7805
        %v7807 = vpop.f32.mrf.mxu0
        %v7808 = vadd.f32 0.0, %v7807
        %7809 = vmatmul.bf16.gmra.mxu0 %v7746
        %v7810 = vpop.f32.mrf.mxu0
        %v7811 = vadd.f32 0.0, %v7810
        %v7812 = vpop.f32.mrf.mxu0
        %v7813 = vadd.f32 0.0, %v7812
        %7814 = vmatmul.bf16.gmra.mxu0 %v7749
        %v7815 = vpop.f32.mrf.mxu0
        %v7816 = vadd.f32 0.0, %v7815
        %v7817 = vpop.f32.mrf.mxu0
        %v7818 = vadd.f32 0.0, %v7817
        %7819 = vmatmul.bf16.gmra.mxu0 %v7752
        %v7820 = vpop.f32.mrf.mxu0
        %v7821 = vadd.f32 0.0, %v7820
        %v7822 = vpop.f32.mrf.mxu0
        %v7823 = vadd.f32 0.0, %v7822
        %7824 = vmatmul.bf16.gmra.mxu0 %v7755
        %v7825 = vpop.f32.mrf.mxu0
        %v7826 = vadd.f32 0.0, %v7825
        %v7827 = vpop.f32.mrf.mxu0
        %v7828 = vadd.f32 0.0, %v7827
        %7829 = vmatmul.bf16.gmra.mxu0 %v7758
        %v7830 = vpop.f32.mrf.mxu0
        %v7831 = vadd.f32 0.0, %v7830
        %v7832 = vpop.f32.mrf.mxu0
        %v7833 = vadd.f32 0.0, %v7832
        %7834 = vmatmul.bf16.gmra.mxu0 %v7761
        %v7835 = vpop.f32.mrf.mxu0
        %v7836 = vadd.f32 0.0, %v7835
        %v7837 = vpop.f32.mrf.mxu0
        %v7838 = vadd.f32 0.0, %v7837
        %7839 = vmatmul.bf16.gmra.mxu0 %v7764
        %v7840 = vpop.f32.mrf.mxu0
        %v7841 = vadd.f32 0.0, %v7840
        %v7842 = vpop.f32.mrf.mxu0
        %v7843 = vadd.f32 0.0, %v7842
        %7844 = vmatmul.bf16.gmra.mxu0 %v7767
        %v7845 = vpop.f32.mrf.mxu0
        %v7846 = vadd.f32 0.0, %v7845
        %v7847 = vpop.f32.mrf.mxu0
        %v7848 = vadd.f32 0.0, %v7847
        %7849 = vmatmul.bf16.gmra.mxu0 %v7770
        %v7850 = vpop.f32.mrf.mxu0
        %v7851 = vadd.f32 0.0, %v7850
        %v7852 = vpop.f32.mrf.mxu0
        %v7853 = vadd.f32 0.0, %v7852
        %7854 = vmatmul.bf16.gmra.mxu0 %v7773
        %v7855 = vpop.f32.mrf.mxu0
        %v7856 = vadd.f32 0.0, %v7855
        %v7857 = vpop.f32.mrf.mxu0
        %v7858 = vadd.f32 0.0, %v7857
        %7859 = vmatmul.bf16.gmra.mxu0 %v7776
        %v7860 = vpop.f32.mrf.mxu0
        %v7861 = vadd.f32 0.0, %v7860
        %v7862 = vpop.f32.mrf.mxu0
        %v7863 = vadd.f32 0.0, %v7862
        %7864 = vmatmul.bf16.gmra.mxu0 %v7779
        %v7865 = vpop.f32.mrf.mxu0
        %v7866 = vadd.f32 0.0, %v7865
        %v7867 = vpop.f32.mrf.mxu0
        %v7868 = vadd.f32 0.0, %v7867
        %7869 = vdwg.mxu0
        %v7870 = vadd.f32 %v7557, %v7791
        %v7871 = vadd.f32 %v7559, %v7793
        %v7872 = vadd.f32 %v7562, %v7796
        %v7873 = vadd.f32 %v7564, %v7798
        %v7874 = vadd.f32 %v7567, %v7801
        %v7875 = vadd.f32 %v7569, %v7803
        %v7876 = vadd.f32 %v7572, %v7806
        %v7877 = vadd.f32 %v7574, %v7808
        %v7878 = vadd.f32 %v7577, %v7811
        %v7879 = vadd.f32 %v7579, %v7813
        %v7880 = vadd.f32 %v7582, %v7816
        %v7881 = vadd.f32 %v7584, %v7818
        %v7882 = vadd.f32 %v7587, %v7821
        %v7883 = vadd.f32 %v7589, %v7823
        %v7884 = vadd.f32 %v7592, %v7826
        %v7885 = vadd.f32 %v7594, %v7828
        %v7886 = vadd.f32 %v7597, %v7831
        %v7887 = vadd.f32 %v7599, %v7833
        %v7888 = vadd.f32 %v7602, %v7836
        %v7889 = vadd.f32 %v7604, %v7838
        %v7890 = vadd.f32 %v7607, %v7841
        %v7891 = vadd.f32 %v7609, %v7843
        %v7892 = vadd.f32 %v7612, %v7846
        %v7893 = vadd.f32 %v7614, %v7848
        %v7894 = vadd.f32 %v7617, %v7851
        %v7895 = vadd.f32 %v7619, %v7853
        %v7896 = vadd.f32 %v7622, %v7856
        %v7897 = vadd.f32 %v7624, %v7858
        %v7898 = vadd.f32 %v7627, %v7861
        %v7899 = vadd.f32 %v7629, %v7863
        %v7900 = vadd.f32 %v7632, %v7866
        %v7901 = vadd.f32 %v7634, %v7868
        %s7902 = scalar_lea.vmem [#allocation15], 48
        %v7903 = vld [vmem:[%s7902] sm:$0xf]
        %v7904 = vld [vmem:[%s7902 + $0x4] sm:$0xf]
        %v7905 = vld [vmem:[%s7902 + $0x8] sm:$0xf]
        %v7906 = vld [vmem:[%s7902 + $0xc] sm:$0xf]
        %v7909 = vunpack.c.l.b16 %v7093
        %v7910 = vunpack.c.l.b16 %v7094
        %v7911 = vpack.c.b16 %v7910, %v7909
        %v7916 = vunpack.c.l.b16 %v7903
        %v7917 = vunpack.c.l.b16 %v7904
        %v7918 = vunpack.c.l.b16 %v7905
        %v7919 = vunpack.c.l.b16 %v7906
        %v7920 = vpack.c.b16 %v7917, %v7916
        %v7921 = vpack.c.b16 %v7919, %v7918
        %v7925 = vsel %vm588, %v7911, 0
        %7927 = vmatpush.bf16.msra.mxu0 0
        %7928 = vmatpush.bf16.msra.mxu0 0
        %7929 = vmatpush.bf16.msra.mxu0 0
        %7930 = vmatpush.bf16.msra.mxu0 0
        %7931 = vmatpush.bf16.msra.mxu0 0
        %7932 = vmatpush.bf16.msra.mxu0 0
        %7933 = vmatpush.bf16.msra.mxu0 %v7921
        %7934 = vmatpush.bf16.msra.mxu0 %v7920
        %7935 = vmatmul.bf16.gmra.mxu0 %v7503
        %v7936 = vpop.f32.mrf.mxu0
        %v7937 = vadd.f32 0.0, %v7936
        %v7938 = vpop.f32.mrf.mxu0
        %v7939 = vadd.f32 0.0, %v7938
        %7940 = vmatmul.bf16.gmra.mxu0 %v7506
        %v7941 = vpop.f32.mrf.mxu0
        %v7942 = vadd.f32 0.0, %v7941
        %v7943 = vpop.f32.mrf.mxu0
        %v7944 = vadd.f32 0.0, %v7943
        %7945 = vmatmul.bf16.gmra.mxu0 %v7509
        %v7946 = vpop.f32.mrf.mxu0
        %v7947 = vadd.f32 0.0, %v7946
        %v7948 = vpop.f32.mrf.mxu0
        %v7949 = vadd.f32 0.0, %v7948
        %7950 = vmatmul.bf16.gmra.mxu0 %v7512
        %v7951 = vpop.f32.mrf.mxu0
        %v7952 = vadd.f32 0.0, %v7951
        %v7953 = vpop.f32.mrf.mxu0
        %v7954 = vadd.f32 0.0, %v7953
        %7955 = vmatmul.bf16.gmra.mxu0 %v7515
        %v7956 = vpop.f32.mrf.mxu0
        %v7957 = vadd.f32 0.0, %v7956
        %v7958 = vpop.f32.mrf.mxu0
        %v7959 = vadd.f32 0.0, %v7958
        %7960 = vmatmul.bf16.gmra.mxu0 %v7518
        %v7961 = vpop.f32.mrf.mxu0
        %v7962 = vadd.f32 0.0, %v7961
        %v7963 = vpop.f32.mrf.mxu0
        %v7964 = vadd.f32 0.0, %v7963
        %7965 = vmatmul.bf16.gmra.mxu0 %v7521
        %v7966 = vpop.f32.mrf.mxu0
        %v7967 = vadd.f32 0.0, %v7966
        %v7968 = vpop.f32.mrf.mxu0
        %v7969 = vadd.f32 0.0, %v7968
        %7970 = vmatmul.bf16.gmra.mxu0 %v7524
        %v7971 = vpop.f32.mrf.mxu0
        %v7972 = vadd.f32 0.0, %v7971
        %v7973 = vpop.f32.mrf.mxu0
        %v7974 = vadd.f32 0.0, %v7973
        %7975 = vmatmul.bf16.gmra.mxu0 %v7527
        %v7976 = vpop.f32.mrf.mxu0
        %v7977 = vadd.f32 0.0, %v7976
        %v7978 = vpop.f32.mrf.mxu0
        %v7979 = vadd.f32 0.0, %v7978
        %7980 = vmatmul.bf16.gmra.mxu0 %v7530
        %v7981 = vpop.f32.mrf.mxu0
        %v7982 = vadd.f32 0.0, %v7981
        %v7983 = vpop.f32.mrf.mxu0
        %v7984 = vadd.f32 0.0, %v7983
        %7985 = vmatmul.bf16.gmra.mxu0 %v7533
        %v7986 = vpop.f32.mrf.mxu0
        %v7987 = vadd.f32 0.0, %v7986
        %v7988 = vpop.f32.mrf.mxu0
        %v7989 = vadd.f32 0.0, %v7988
        %7990 = vmatmul.bf16.gmra.mxu0 %v7536
        %v7991 = vpop.f32.mrf.mxu0
        %v7992 = vadd.f32 0.0, %v7991
        %v7993 = vpop.f32.mrf.mxu0
        %v7994 = vadd.f32 0.0, %v7993
        %7995 = vmatmul.bf16.gmra.mxu0 %v7539
        %v7996 = vpop.f32.mrf.mxu0
        %v7997 = vadd.f32 0.0, %v7996
        %v7998 = vpop.f32.mrf.mxu0
        %v7999 = vadd.f32 0.0, %v7998
        %8000 = vmatmul.bf16.gmra.mxu0 %v7542
        %v8001 = vpop.f32.mrf.mxu0
        %v8002 = vadd.f32 0.0, %v8001
        %v8003 = vpop.f32.mrf.mxu0
        %v8004 = vadd.f32 0.0, %v8003
        %8005 = vmatmul.bf16.gmra.mxu0 %v7545
        %v8006 = vpop.f32.mrf.mxu0
        %v8007 = vadd.f32 0.0, %v8006
        %v8008 = vpop.f32.mrf.mxu0
        %v8009 = vadd.f32 0.0, %v8008
        %8010 = vmatmul.bf16.gmra.mxu0 %v7925
        %v8011 = vpop.f32.mrf.mxu0
        %v8012 = vadd.f32 0.0, %v8011
        %v8013 = vpop.f32.mrf.mxu0
        %v8014 = vadd.f32 0.0, %v8013
        %8015 = vdwg.mxu0
        %v8016 = vadd.f32 %v7870, %v7937
        %v8017 = vadd.f32 %v7871, %v7939
        %v8018 = vadd.f32 %v7872, %v7942
        %v8019 = vadd.f32 %v7873, %v7944
        %v8020 = vadd.f32 %v7874, %v7947
        %v8021 = vadd.f32 %v7875, %v7949
        %v8022 = vadd.f32 %v7876, %v7952
        %v8023 = vadd.f32 %v7877, %v7954
        %v8024 = vadd.f32 %v7878, %v7957
        %v8025 = vadd.f32 %v7879, %v7959
        %v8026 = vadd.f32 %v7880, %v7962
        %v8027 = vadd.f32 %v7881, %v7964
        %v8028 = vadd.f32 %v7882, %v7967
        %v8029 = vadd.f32 %v7883, %v7969
        %v8030 = vadd.f32 %v7884, %v7972
        %v8031 = vadd.f32 %v7885, %v7974
        %v8032 = vadd.f32 %v7886, %v7977
        %v8033 = vadd.f32 %v7887, %v7979
        %v8034 = vadd.f32 %v7888, %v7982
        %v8035 = vadd.f32 %v7889, %v7984
        %v8036 = vadd.f32 %v7890, %v7987
        %v8037 = vadd.f32 %v7891, %v7989
        %v8038 = vadd.f32 %v7892, %v7992
        %v8039 = vadd.f32 %v7893, %v7994
        %v8040 = vadd.f32 %v7894, %v7997
        %v8041 = vadd.f32 %v7895, %v7999
        %v8042 = vadd.f32 %v7896, %v8002
        %v8043 = vadd.f32 %v7897, %v8004
        %v8044 = vadd.f32 %v7898, %v8007
        %v8045 = vadd.f32 %v7899, %v8009
        %v8046 = vadd.f32 %v7900, %v8012
        %v8047 = vadd.f32 %v7901, %v8014
        %s8048 = scalar_lea.vmem [#allocation15], 64
        %v8049 = vld [vmem:[%s8048] sm:$0xf]
        %v8050 = vld [vmem:[%s8048 + $0x4] sm:$0xf]
        %v8051 = vld [vmem:[%s8048 + $0x8] sm:$0xf]
        %v8052 = vld [vmem:[%s8048 + $0xc] sm:$0xf]
        %v8055 = vunpack.c.l.b16 %v7129
        %v8056 = vunpack.c.l.b16 %v7130
        %v8057 = vpack.c.b16 %v8056, %v8055
        %v8062 = vunpack.c.l.b16 %v8049
        %v8063 = vunpack.c.l.b16 %v8050
        %v8064 = vunpack.c.l.b16 %v8051
        %v8065 = vunpack.c.l.b16 %v8052
        %v8066 = vpack.c.b16 %v8063, %v8062
        %v8067 = vpack.c.b16 %v8065, %v8064
        %v8071 = vsel %vm588, %v8057, 0
        %8073 = vmatpush.bf16.msra.mxu0 0
        %8074 = vmatpush.bf16.msra.mxu0 0
        %8075 = vmatpush.bf16.msra.mxu0 0
        %8076 = vmatpush.bf16.msra.mxu0 0
        %8077 = vmatpush.bf16.msra.mxu0 0
        %8078 = vmatpush.bf16.msra.mxu0 0
        %8079 = vmatpush.bf16.msra.mxu0 %v8067
        %8080 = vmatpush.bf16.msra.mxu0 %v8066
        %8081 = vmatmul.bf16.gmra.mxu0 %v7274
        %v8082 = vpop.f32.mrf.mxu0
        %v8083 = vadd.f32 0.0, %v8082
        %v8084 = vpop.f32.mrf.mxu0
        %v8085 = vadd.f32 0.0, %v8084
        %8086 = vmatmul.bf16.gmra.mxu0 %v7277
        %v8087 = vpop.f32.mrf.mxu0
        %v8088 = vadd.f32 0.0, %v8087
        %v8089 = vpop.f32.mrf.mxu0
        %v8090 = vadd.f32 0.0, %v8089
        %8091 = vmatmul.bf16.gmra.mxu0 %v7280
        %v8092 = vpop.f32.mrf.mxu0
        %v8093 = vadd.f32 0.0, %v8092
        %v8094 = vpop.f32.mrf.mxu0
        %v8095 = vadd.f32 0.0, %v8094
        %8096 = vmatmul.bf16.gmra.mxu0 %v7283
        %v8097 = vpop.f32.mrf.mxu0
        %v8098 = vadd.f32 0.0, %v8097
        %v8099 = vpop.f32.mrf.mxu0
        %v8100 = vadd.f32 0.0, %v8099
        %8101 = vmatmul.bf16.gmra.mxu0 %v7286
        %v8102 = vpop.f32.mrf.mxu0
        %v8103 = vadd.f32 0.0, %v8102
        %v8104 = vpop.f32.mrf.mxu0
        %v8105 = vadd.f32 0.0, %v8104
        %8106 = vmatmul.bf16.gmra.mxu0 %v7289
        %v8107 = vpop.f32.mrf.mxu0
        %v8108 = vadd.f32 0.0, %v8107
        %v8109 = vpop.f32.mrf.mxu0
        %v8110 = vadd.f32 0.0, %v8109
        %8111 = vmatmul.bf16.gmra.mxu0 %v7292
        %v8112 = vpop.f32.mrf.mxu0
        %v8113 = vadd.f32 0.0, %v8112
        %v8114 = vpop.f32.mrf.mxu0
        %v8115 = vadd.f32 0.0, %v8114
        %8116 = vmatmul.bf16.gmra.mxu0 %v7295
        %v8117 = vpop.f32.mrf.mxu0
        %v8118 = vadd.f32 0.0, %v8117
        %v8119 = vpop.f32.mrf.mxu0
        %v8120 = vadd.f32 0.0, %v8119
        %8121 = vmatmul.bf16.gmra.mxu0 %v7298
        %v8122 = vpop.f32.mrf.mxu0
        %v8123 = vadd.f32 0.0, %v8122
        %v8124 = vpop.f32.mrf.mxu0
        %v8125 = vadd.f32 0.0, %v8124
        %8126 = vmatmul.bf16.gmra.mxu0 %v7301
        %v8127 = vpop.f32.mrf.mxu0
        %v8128 = vadd.f32 0.0, %v8127
        %v8129 = vpop.f32.mrf.mxu0
        %v8130 = vadd.f32 0.0, %v8129
        %8131 = vmatmul.bf16.gmra.mxu0 %v7304
        %v8132 = vpop.f32.mrf.mxu0
        %v8133 = vadd.f32 0.0, %v8132
        %v8134 = vpop.f32.mrf.mxu0
        %v8135 = vadd.f32 0.0, %v8134
        %8136 = vmatmul.bf16.gmra.mxu0 %v7307
        %v8137 = vpop.f32.mrf.mxu0
        %v8138 = vadd.f32 0.0, %v8137
        %v8139 = vpop.f32.mrf.mxu0
        %v8140 = vadd.f32 0.0, %v8139
        %8141 = vmatmul.bf16.gmra.mxu0 %v7310
        %v8142 = vpop.f32.mrf.mxu0
        %v8143 = vadd.f32 0.0, %v8142
        %v8144 = vpop.f32.mrf.mxu0
        %v8145 = vadd.f32 0.0, %v8144
        %8146 = vmatmul.bf16.gmra.mxu0 %v7313
        %v8147 = vpop.f32.mrf.mxu0
        %v8148 = vadd.f32 0.0, %v8147
        %v8149 = vpop.f32.mrf.mxu0
        %v8150 = vadd.f32 0.0, %v8149
        %8151 = vmatmul.bf16.gmra.mxu0 %v7316
        %v8152 = vpop.f32.mrf.mxu0
        %v8153 = vadd.f32 0.0, %v8152
        %v8154 = vpop.f32.mrf.mxu0
        %v8155 = vadd.f32 0.0, %v8154
        %8156 = vmatmul.bf16.gmra.mxu0 %v8071
        %v8157 = vpop.f32.mrf.mxu0
        %v8158 = vadd.f32 0.0, %v8157
        %v8159 = vpop.f32.mrf.mxu0
        %v8160 = vadd.f32 0.0, %v8159
        %8161 = vdwg.mxu0
        %v8162 = vadd.f32 %v8016, %v8083
        %v8163 = vadd.f32 %v8017, %v8085
        %v8164 = vadd.f32 %v8018, %v8088
        %v8165 = vadd.f32 %v8019, %v8090
        %v8166 = vadd.f32 %v8020, %v8093
        %v8167 = vadd.f32 %v8021, %v8095
        %v8168 = vadd.f32 %v8022, %v8098
        %v8169 = vadd.f32 %v8023, %v8100
        %v8170 = vadd.f32 %v8024, %v8103
        %v8171 = vadd.f32 %v8025, %v8105
        %v8172 = vadd.f32 %v8026, %v8108
        %v8173 = vadd.f32 %v8027, %v8110
        %v8174 = vadd.f32 %v8028, %v8113
        %v8175 = vadd.f32 %v8029, %v8115
        %v8176 = vadd.f32 %v8030, %v8118
        %v8177 = vadd.f32 %v8031, %v8120
        %v8178 = vadd.f32 %v8032, %v8123
        %v8179 = vadd.f32 %v8033, %v8125
        %v8180 = vadd.f32 %v8034, %v8128
        %v8181 = vadd.f32 %v8035, %v8130
        %v8182 = vadd.f32 %v8036, %v8133
        %v8183 = vadd.f32 %v8037, %v8135
        %v8184 = vadd.f32 %v8038, %v8138
        %v8185 = vadd.f32 %v8039, %v8140
        %v8186 = vadd.f32 %v8040, %v8143
        %v8187 = vadd.f32 %v8041, %v8145
        %v8188 = vadd.f32 %v8042, %v8148
        %v8189 = vadd.f32 %v8043, %v8150
        %v8190 = vadd.f32 %v8044, %v8153
        %v8191 = vadd.f32 %v8045, %v8155
        %v8192 = vadd.f32 %v8046, %v8158
        %v8193 = vadd.f32 %v8047, %v8160
        %s8194 = scalar_lea.vmem [#allocation15], 80
        %v8195 = vld [vmem:[%s8194] sm:$0xf]
        %v8196 = vld [vmem:[%s8194 + $0x4] sm:$0xf]
        %v8197 = vld [vmem:[%s8194 + $0x8] sm:$0xf]
        %v8198 = vld [vmem:[%s8194 + $0xc] sm:$0xf]
        %v8201 = vunpack.c.l.b16 %v7165
        %v8202 = vunpack.c.l.b16 %v7166
        %v8203 = vpack.c.b16 %v8202, %v8201
        %v8208 = vunpack.c.l.b16 %v8195
        %v8209 = vunpack.c.l.b16 %v8196
        %v8210 = vunpack.c.l.b16 %v8197
        %v8211 = vunpack.c.l.b16 %v8198
        %v8212 = vpack.c.b16 %v8209, %v8208
        %v8213 = vpack.c.b16 %v8211, %v8210
        %v8217 = vsel %vm588, %v8203, 0
        %8219 = vmatpush.bf16.msra.mxu0 0
        %8220 = vmatpush.bf16.msra.mxu0 0
        %8221 = vmatpush.bf16.msra.mxu0 0
        %8222 = vmatpush.bf16.msra.mxu0 0
        %8223 = vmatpush.bf16.msra.mxu0 0
        %8224 = vmatpush.bf16.msra.mxu0 0
        %8225 = vmatpush.bf16.msra.mxu0 %v8213
        %8226 = vmatpush.bf16.msra.mxu0 %v8212
        %8227 = vmatmul.bf16.gmra.mxu0 %v7737
        %v8228 = vpop.f32.mrf.mxu0
        %v8229 = vadd.f32 0.0, %v8228
        %v8230 = vpop.f32.mrf.mxu0
        %v8231 = vadd.f32 0.0, %v8230
        %8232 = vmatmul.bf16.gmra.mxu0 %v7740
        %v8233 = vpop.f32.mrf.mxu0
        %v8234 = vadd.f32 0.0, %v8233
        %v8235 = vpop.f32.mrf.mxu0
        %v8236 = vadd.f32 0.0, %v8235
        %8237 = vmatmul.bf16.gmra.mxu0 %v7743
        %v8238 = vpop.f32.mrf.mxu0
        %v8239 = vadd.f32 0.0, %v8238
        %v8240 = vpop.f32.mrf.mxu0
        %v8241 = vadd.f32 0.0, %v8240
        %8242 = vmatmul.bf16.gmra.mxu0 %v7746
        %v8243 = vpop.f32.mrf.mxu0
        %v8244 = vadd.f32 0.0, %v8243
        %v8245 = vpop.f32.mrf.mxu0
        %v8246 = vadd.f32 0.0, %v8245
        %8247 = vmatmul.bf16.gmra.mxu0 %v7749
        %v8248 = vpop.f32.mrf.mxu0
        %v8249 = vadd.f32 0.0, %v8248
        %v8250 = vpop.f32.mrf.mxu0
        %v8251 = vadd.f32 0.0, %v8250
        %8252 = vmatmul.bf16.gmra.mxu0 %v7752
        %v8253 = vpop.f32.mrf.mxu0
        %v8254 = vadd.f32 0.0, %v8253
        %v8255 = vpop.f32.mrf.mxu0
        %v8256 = vadd.f32 0.0, %v8255
        %8257 = vmatmul.bf16.gmra.mxu0 %v7755
        %v8258 = vpop.f32.mrf.mxu0
        %v8259 = vadd.f32 0.0, %v8258
        %v8260 = vpop.f32.mrf.mxu0
        %v8261 = vadd.f32 0.0, %v8260
        %8262 = vmatmul.bf16.gmra.mxu0 %v7758
        %v8263 = vpop.f32.mrf.mxu0
        %v8264 = vadd.f32 0.0, %v8263
        %v8265 = vpop.f32.mrf.mxu0
        %v8266 = vadd.f32 0.0, %v8265
        %8267 = vmatmul.bf16.gmra.mxu0 %v7761
        %v8268 = vpop.f32.mrf.mxu0
        %v8269 = vadd.f32 0.0, %v8268
        %v8270 = vpop.f32.mrf.mxu0
        %v8271 = vadd.f32 0.0, %v8270
        %8272 = vmatmul.bf16.gmra.mxu0 %v7764
        %v8273 = vpop.f32.mrf.mxu0
        %v8274 = vadd.f32 0.0, %v8273
        %v8275 = vpop.f32.mrf.mxu0
        %v8276 = vadd.f32 0.0, %v8275
        %8277 = vmatmul.bf16.gmra.mxu0 %v7767
        %v8278 = vpop.f32.mrf.mxu0
        %v8279 = vadd.f32 0.0, %v8278
        %v8280 = vpop.f32.mrf.mxu0
        %v8281 = vadd.f32 0.0, %v8280
        %8282 = vmatmul.bf16.gmra.mxu0 %v7770
        %v8283 = vpop.f32.mrf.mxu0
        %v8284 = vadd.f32 0.0, %v8283
        %v8285 = vpop.f32.mrf.mxu0
        %v8286 = vadd.f32 0.0, %v8285
        %8287 = vmatmul.bf16.gmra.mxu0 %v7773
        %v8288 = vpop.f32.mrf.mxu0
        %v8289 = vadd.f32 0.0, %v8288
        %v8290 = vpop.f32.mrf.mxu0
        %v8291 = vadd.f32 0.0, %v8290
        %8292 = vmatmul.bf16.gmra.mxu0 %v7776
        %v8293 = vpop.f32.mrf.mxu0
        %v8294 = vadd.f32 0.0, %v8293
        %v8295 = vpop.f32.mrf.mxu0
        %v8296 = vadd.f32 0.0, %v8295
        %8297 = vmatmul.bf16.gmra.mxu0 %v7779
        %v8298 = vpop.f32.mrf.mxu0
        %v8299 = vadd.f32 0.0, %v8298
        %v8300 = vpop.f32.mrf.mxu0
        %v8301 = vadd.f32 0.0, %v8300
        %8302 = vmatmul.bf16.gmra.mxu0 %v8217
        %v8303 = vpop.f32.mrf.mxu0
        %v8304 = vadd.f32 0.0, %v8303
        %v8305 = vpop.f32.mrf.mxu0
        %v8306 = vadd.f32 0.0, %v8305
        %8307 = vdwg.mxu0
        %v8308 = vadd.f32 %v8162, %v8229
        %v8309 = vadd.f32 %v8163, %v8231
        %v8310 = vadd.f32 %v8164, %v8234
        %v8311 = vadd.f32 %v8165, %v8236
        %v8312 = vadd.f32 %v8166, %v8239
        %v8313 = vadd.f32 %v8167, %v8241
        %v8314 = vadd.f32 %v8168, %v8244
        %v8315 = vadd.f32 %v8169, %v8246
        %v8316 = vadd.f32 %v8170, %v8249
        %v8317 = vadd.f32 %v8171, %v8251
        %v8318 = vadd.f32 %v8172, %v8254
        %v8319 = vadd.f32 %v8173, %v8256
        %v8320 = vadd.f32 %v8174, %v8259
        %v8321 = vadd.f32 %v8175, %v8261
        %v8322 = vadd.f32 %v8176, %v8264
        %v8323 = vadd.f32 %v8177, %v8266
        %v8324 = vadd.f32 %v8178, %v8269
        %v8325 = vadd.f32 %v8179, %v8271
        %v8326 = vadd.f32 %v8180, %v8274
        %v8327 = vadd.f32 %v8181, %v8276
        %v8328 = vadd.f32 %v8182, %v8279
        %v8329 = vadd.f32 %v8183, %v8281
        %v8330 = vadd.f32 %v8184, %v8284
        %v8331 = vadd.f32 %v8185, %v8286
        %v8332 = vadd.f32 %v8186, %v8289
        %v8333 = vadd.f32 %v8187, %v8291
        %v8334 = vadd.f32 %v8188, %v8294
        %v8335 = vadd.f32 %v8189, %v8296
        %v8336 = vadd.f32 %v8190, %v8299
        %v8337 = vadd.f32 %v8191, %v8301
        %v8338 = vadd.f32 %v8192, %v8304
        %v8339 = vadd.f32 %v8193, %v8306
        %s8340 = scalar_lea.vmem [#allocation15], 96
        %v8341 = vld [vmem:[%s8340] sm:$0xf]
        %v8342 = vld [vmem:[%s8340 + $0x4] sm:$0xf]
        %v8343 = vld [vmem:[%s8340 + $0x8] sm:$0xf]
        %v8344 = vld [vmem:[%s8340 + $0xc] sm:$0xf]
        %v8347 = vunpack.c.l.b16 %v7095
        %v8348 = vunpack.c.l.b16 %v7096
        %v8349 = vpack.c.b16 %v8348, %v8347
        %v8354 = vunpack.c.l.b16 %v8341
        %v8355 = vunpack.c.l.b16 %v8342
        %v8356 = vunpack.c.l.b16 %v8343
        %v8357 = vunpack.c.l.b16 %v8344
        %v8358 = vpack.c.b16 %v8355, %v8354
        %v8359 = vpack.c.b16 %v8357, %v8356
        %v8363 = vsel %vm588, %v8349, 0
        %8365 = vmatpush.bf16.msra.mxu0 0
        %8366 = vmatpush.bf16.msra.mxu0 0
        %8367 = vmatpush.bf16.msra.mxu0 0
        %8368 = vmatpush.bf16.msra.mxu0 0
        %8369 = vmatpush.bf16.msra.mxu0 0
        %8370 = vmatpush.bf16.msra.mxu0 0
        %8371 = vmatpush.bf16.msra.mxu0 %v8359
        %8372 = vmatpush.bf16.msra.mxu0 %v8358
        %8373 = vmatmul.bf16.gmra.mxu0 %v7506
        %v8374 = vpop.f32.mrf.mxu0
        %v8375 = vadd.f32 0.0, %v8374
        %v8376 = vpop.f32.mrf.mxu0
        %v8377 = vadd.f32 0.0, %v8376
        %8378 = vmatmul.bf16.gmra.mxu0 %v7509
        %v8379 = vpop.f32.mrf.mxu0
        %v8380 = vadd.f32 0.0, %v8379
        %v8381 = vpop.f32.mrf.mxu0
        %v8382 = vadd.f32 0.0, %v8381
        %8383 = vmatmul.bf16.gmra.mxu0 %v7512
        %v8384 = vpop.f32.mrf.mxu0
        %v8385 = vadd.f32 0.0, %v8384
        %v8386 = vpop.f32.mrf.mxu0
        %v8387 = vadd.f32 0.0, %v8386
        %8388 = vmatmul.bf16.gmra.mxu0 %v7515
        %v8389 = vpop.f32.mrf.mxu0
        %v8390 = vadd.f32 0.0, %v8389
        %v8391 = vpop.f32.mrf.mxu0
        %v8392 = vadd.f32 0.0, %v8391
        %8393 = vmatmul.bf16.gmra.mxu0 %v7518
        %v8394 = vpop.f32.mrf.mxu0
        %v8395 = vadd.f32 0.0, %v8394
        %v8396 = vpop.f32.mrf.mxu0
        %v8397 = vadd.f32 0.0, %v8396
        %8398 = vmatmul.bf16.gmra.mxu0 %v7521
        %v8399 = vpop.f32.mrf.mxu0
        %v8400 = vadd.f32 0.0, %v8399
        %v8401 = vpop.f32.mrf.mxu0
        %v8402 = vadd.f32 0.0, %v8401
        %8403 = vmatmul.bf16.gmra.mxu0 %v7524
        %v8404 = vpop.f32.mrf.mxu0
        %v8405 = vadd.f32 0.0, %v8404
        %v8406 = vpop.f32.mrf.mxu0
        %v8407 = vadd.f32 0.0, %v8406
        %8408 = vmatmul.bf16.gmra.mxu0 %v7527
        %v8409 = vpop.f32.mrf.mxu0
        %v8410 = vadd.f32 0.0, %v8409
        %v8411 = vpop.f32.mrf.mxu0
        %v8412 = vadd.f32 0.0, %v8411
        %8413 = vmatmul.bf16.gmra.mxu0 %v7530
        %v8414 = vpop.f32.mrf.mxu0
        %v8415 = vadd.f32 0.0, %v8414
        %v8416 = vpop.f32.mrf.mxu0
        %v8417 = vadd.f32 0.0, %v8416
        %8418 = vmatmul.bf16.gmra.mxu0 %v7533
        %v8419 = vpop.f32.mrf.mxu0
        %v8420 = vadd.f32 0.0, %v8419
        %v8421 = vpop.f32.mrf.mxu0
        %v8422 = vadd.f32 0.0, %v8421
        %8423 = vmatmul.bf16.gmra.mxu0 %v7536
        %v8424 = vpop.f32.mrf.mxu0
        %v8425 = vadd.f32 0.0, %v8424
        %v8426 = vpop.f32.mrf.mxu0
        %v8427 = vadd.f32 0.0, %v8426
        %8428 = vmatmul.bf16.gmra.mxu0 %v7539
        %v8429 = vpop.f32.mrf.mxu0
        %v8430 = vadd.f32 0.0, %v8429
        %v8431 = vpop.f32.mrf.mxu0
        %v8432 = vadd.f32 0.0, %v8431
        %8433 = vmatmul.bf16.gmra.mxu0 %v7542
        %v8434 = vpop.f32.mrf.mxu0
        %v8435 = vadd.f32 0.0, %v8434
        %v8436 = vpop.f32.mrf.mxu0
        %v8437 = vadd.f32 0.0, %v8436
        %8438 = vmatmul.bf16.gmra.mxu0 %v7545
        %v8439 = vpop.f32.mrf.mxu0
        %v8440 = vadd.f32 0.0, %v8439
        %v8441 = vpop.f32.mrf.mxu0
        %v8442 = vadd.f32 0.0, %v8441
        %8443 = vmatmul.bf16.gmra.mxu0 %v7925
        %v8444 = vpop.f32.mrf.mxu0
        %v8445 = vadd.f32 0.0, %v8444
        %v8446 = vpop.f32.mrf.mxu0
        %v8447 = vadd.f32 0.0, %v8446
        %8448 = vmatmul.bf16.gmra.mxu0 %v8363
        %v8449 = vpop.f32.mrf.mxu0
        %v8450 = vadd.f32 0.0, %v8449
        %v8451 = vpop.f32.mrf.mxu0
        %v8452 = vadd.f32 0.0, %v8451
        %8453 = vdwg.mxu0
        %v8454 = vadd.f32 %v8308, %v8375
        %v8455 = vadd.f32 %v8309, %v8377
        %v8456 = vadd.f32 %v8310, %v8380
        %v8457 = vadd.f32 %v8311, %v8382
        %v8458 = vadd.f32 %v8312, %v8385
        %v8459 = vadd.f32 %v8313, %v8387
        %v8460 = vadd.f32 %v8314, %v8390
        %v8461 = vadd.f32 %v8315, %v8392
        %v8462 = vadd.f32 %v8316, %v8395
        %v8463 = vadd.f32 %v8317, %v8397
        %v8464 = vadd.f32 %v8318, %v8400
        %v8465 = vadd.f32 %v8319, %v8402
        %v8466 = vadd.f32 %v8320, %v8405
        %v8467 = vadd.f32 %v8321, %v8407
        %v8468 = vadd.f32 %v8322, %v8410
        %v8469 = vadd.f32 %v8323, %v8412
        %v8470 = vadd.f32 %v8324, %v8415
        %v8471 = vadd.f32 %v8325, %v8417
        %v8472 = vadd.f32 %v8326, %v8420
        %v8473 = vadd.f32 %v8327, %v8422
        %v8474 = vadd.f32 %v8328, %v8425
        %v8475 = vadd.f32 %v8329, %v8427
        %v8476 = vadd.f32 %v8330, %v8430
        %v8477 = vadd.f32 %v8331, %v8432
        %v8478 = vadd.f32 %v8332, %v8435
        %v8479 = vadd.f32 %v8333, %v8437
        %v8480 = vadd.f32 %v8334, %v8440
        %v8481 = vadd.f32 %v8335, %v8442
        %v8482 = vadd.f32 %v8336, %v8445
        %v8483 = vadd.f32 %v8337, %v8447
        %v8484 = vadd.f32 %v8338, %v8450
        %v8485 = vadd.f32 %v8339, %v8452
        %s8486 = scalar_lea.vmem [#allocation15], 112
        %v8487 = vld [vmem:[%s8486] sm:$0xf]
        %v8488 = vld [vmem:[%s8486 + $0x4] sm:$0xf]
        %v8489 = vld [vmem:[%s8486 + $0x8] sm:$0xf]
        %v8490 = vld [vmem:[%s8486 + $0xc] sm:$0xf]
        %v8493 = vunpack.c.l.b16 %v7131
        %v8494 = vunpack.c.l.b16 %v7132
        %v8495 = vpack.c.b16 %v8494, %v8493
        %v8500 = vunpack.c.l.b16 %v8487
        %v8501 = vunpack.c.l.b16 %v8488
        %v8502 = vunpack.c.l.b16 %v8489
        %v8503 = vunpack.c.l.b16 %v8490
        %v8504 = vpack.c.b16 %v8501, %v8500
        %v8505 = vpack.c.b16 %v8503, %v8502
        %v8509 = vsel %vm588, %v8495, 0
        %8511 = vmatpush.bf16.msra.mxu0 0
        %8512 = vmatpush.bf16.msra.mxu0 0
        %8513 = vmatpush.bf16.msra.mxu0 0
        %8514 = vmatpush.bf16.msra.mxu0 0
        %8515 = vmatpush.bf16.msra.mxu0 0
        %8516 = vmatpush.bf16.msra.mxu0 0
        %8517 = vmatpush.bf16.msra.mxu0 %v8505
        %8518 = vmatpush.bf16.msra.mxu0 %v8504
        %8519 = vmatmul.bf16.gmra.mxu0 %v7277
        %v8520 = vpop.f32.mrf.mxu0
        %v8521 = vadd.f32 0.0, %v8520
        %v8522 = vpop.f32.mrf.mxu0
        %v8523 = vadd.f32 0.0, %v8522
        %8524 = vmatmul.bf16.gmra.mxu0 %v7280
        %v8525 = vpop.f32.mrf.mxu0
        %v8526 = vadd.f32 0.0, %v8525
        %v8527 = vpop.f32.mrf.mxu0
        %v8528 = vadd.f32 0.0, %v8527
        %8529 = vmatmul.bf16.gmra.mxu0 %v7283
        %v8530 = vpop.f32.mrf.mxu0
        %v8531 = vadd.f32 0.0, %v8530
        %v8532 = vpop.f32.mrf.mxu0
        %v8533 = vadd.f32 0.0, %v8532
        %8534 = vmatmul.bf16.gmra.mxu0 %v7286
        %v8535 = vpop.f32.mrf.mxu0
        %v8536 = vadd.f32 0.0, %v8535
        %v8537 = vpop.f32.mrf.mxu0
        %v8538 = vadd.f32 0.0, %v8537
        %8539 = vmatmul.bf16.gmra.mxu0 %v7289
        %v8540 = vpop.f32.mrf.mxu0
        %v8541 = vadd.f32 0.0, %v8540
        %v8542 = vpop.f32.mrf.mxu0
        %v8543 = vadd.f32 0.0, %v8542
        %8544 = vmatmul.bf16.gmra.mxu0 %v7292
        %v8545 = vpop.f32.mrf.mxu0
        %v8546 = vadd.f32 0.0, %v8545
        %v8547 = vpop.f32.mrf.mxu0
        %v8548 = vadd.f32 0.0, %v8547
        %8549 = vmatmul.bf16.gmra.mxu0 %v7295
        %v8550 = vpop.f32.mrf.mxu0
        %v8551 = vadd.f32 0.0, %v8550
        %v8552 = vpop.f32.mrf.mxu0
        %v8553 = vadd.f32 0.0, %v8552
        %8554 = vmatmul.bf16.gmra.mxu0 %v7298
        %v8555 = vpop.f32.mrf.mxu0
        %v8556 = vadd.f32 0.0, %v8555
        %v8557 = vpop.f32.mrf.mxu0
        %v8558 = vadd.f32 0.0, %v8557
        %8559 = vmatmul.bf16.gmra.mxu0 %v7301
        %v8560 = vpop.f32.mrf.mxu0
        %v8561 = vadd.f32 0.0, %v8560
        %v8562 = vpop.f32.mrf.mxu0
        %v8563 = vadd.f32 0.0, %v8562
        %8564 = vmatmul.bf16.gmra.mxu0 %v7304
        %v8565 = vpop.f32.mrf.mxu0
        %v8566 = vadd.f32 0.0, %v8565
        %v8567 = vpop.f32.mrf.mxu0
        %v8568 = vadd.f32 0.0, %v8567
        %8569 = vmatmul.bf16.gmra.mxu0 %v7307
        %v8570 = vpop.f32.mrf.mxu0
        %v8571 = vadd.f32 0.0, %v8570
        %v8572 = vpop.f32.mrf.mxu0
        %v8573 = vadd.f32 0.0, %v8572
        %8574 = vmatmul.bf16.gmra.mxu0 %v7310
        %v8575 = vpop.f32.mrf.mxu0
        %v8576 = vadd.f32 0.0, %v8575
        %v8577 = vpop.f32.mrf.mxu0
        %v8578 = vadd.f32 0.0, %v8577
        %8579 = vmatmul.bf16.gmra.mxu0 %v7313
        %v8580 = vpop.f32.mrf.mxu0
        %v8581 = vadd.f32 0.0, %v8580
        %v8582 = vpop.f32.mrf.mxu0
        %v8583 = vadd.f32 0.0, %v8582
        %8584 = vmatmul.bf16.gmra.mxu0 %v7316
        %v8585 = vpop.f32.mrf.mxu0
        %v8586 = vadd.f32 0.0, %v8585
        %v8587 = vpop.f32.mrf.mxu0
        %v8588 = vadd.f32 0.0, %v8587
        %8589 = vmatmul.bf16.gmra.mxu0 %v8071
        %v8590 = vpop.f32.mrf.mxu0
        %v8591 = vadd.f32 0.0, %v8590
        %v8592 = vpop.f32.mrf.mxu0
        %v8593 = vadd.f32 0.0, %v8592
        %8594 = vmatmul.bf16.gmra.mxu0 %v8509
        %v8595 = vpop.f32.mrf.mxu0
        %v8596 = vadd.f32 0.0, %v8595
        %v8597 = vpop.f32.mrf.mxu0
        %v8598 = vadd.f32 0.0, %v8597
        %8599 = vdwg.mxu0
        %v8600 = vadd.f32 %v8454, %v8521
        %v8601 = vadd.f32 %v8455, %v8523
        %v8602 = vadd.f32 %v8456, %v8526
        %v8603 = vadd.f32 %v8457, %v8528
        %v8604 = vadd.f32 %v8458, %v8531
        %v8605 = vadd.f32 %v8459, %v8533
        %v8606 = vadd.f32 %v8460, %v8536
        %v8607 = vadd.f32 %v8461, %v8538
        %v8608 = vadd.f32 %v8462, %v8541
        %v8609 = vadd.f32 %v8463, %v8543
        %v8610 = vadd.f32 %v8464, %v8546
        %v8611 = vadd.f32 %v8465, %v8548
        %v8612 = vadd.f32 %v8466, %v8551
        %v8613 = vadd.f32 %v8467, %v8553
        %v8614 = vadd.f32 %v8468, %v8556
        %v8615 = vadd.f32 %v8469, %v8558
        %v8616 = vadd.f32 %v8470, %v8561
        %v8617 = vadd.f32 %v8471, %v8563
        %v8618 = vadd.f32 %v8472, %v8566
        %v8619 = vadd.f32 %v8473, %v8568
        %v8620 = vadd.f32 %v8474, %v8571
        %v8621 = vadd.f32 %v8475, %v8573
        %v8622 = vadd.f32 %v8476, %v8576
        %v8623 = vadd.f32 %v8477, %v8578
        %v8624 = vadd.f32 %v8478, %v8581
        %v8625 = vadd.f32 %v8479, %v8583
        %v8626 = vadd.f32 %v8480, %v8586
        %v8627 = vadd.f32 %v8481, %v8588
        %v8628 = vadd.f32 %v8482, %v8591
        %v8629 = vadd.f32 %v8483, %v8593
        %v8630 = vadd.f32 %v8484, %v8596
        %v8631 = vadd.f32 %v8485, %v8598
        %s8632 = scalar_lea.vmem [#allocation15], 128
        %v8633 = vld [vmem:[%s8632] sm:$0xf]
        %v8634 = vld [vmem:[%s8632 + $0x4] sm:$0xf]
        %v8635 = vld [vmem:[%s8632 + $0x8] sm:$0xf]
        %v8636 = vld [vmem:[%s8632 + $0xc] sm:$0xf]
        %v8639 = vunpack.c.l.b16 %v7167
        %v8640 = vunpack.c.l.b16 %v7168
        %v8641 = vpack.c.b16 %v8640, %v8639
        %v8646 = vunpack.c.l.b16 %v8633
        %v8647 = vunpack.c.l.b16 %v8634
        %v8648 = vunpack.c.l.b16 %v8635
        %v8649 = vunpack.c.l.b16 %v8636
        %v8650 = vpack.c.b16 %v8647, %v8646
        %v8651 = vpack.c.b16 %v8649, %v8648
        %v8655 = vsel %vm588, %v8641, 0
        %8657 = vmatpush.bf16.msra.mxu0 0
        %8658 = vmatpush.bf16.msra.mxu0 0
        %8659 = vmatpush.bf16.msra.mxu0 0
        %8660 = vmatpush.bf16.msra.mxu0 0
        %8661 = vmatpush.bf16.msra.mxu0 0
        %8662 = vmatpush.bf16.msra.mxu0 0
        %8663 = vmatpush.bf16.msra.mxu0 %v8651
        %8664 = vmatpush.bf16.msra.mxu0 %v8650
        %8665 = vmatmul.bf16.gmra.mxu0 %v7740
        %v8666 = vpop.f32.mrf.mxu0
        %v8667 = vadd.f32 0.0, %v8666
        %v8668 = vpop.f32.mrf.mxu0
        %v8669 = vadd.f32 0.0, %v8668
        %8670 = vmatmul.bf16.gmra.mxu0 %v7743
        %v8671 = vpop.f32.mrf.mxu0
        %v8672 = vadd.f32 0.0, %v8671
        %v8673 = vpop.f32.mrf.mxu0
        %v8674 = vadd.f32 0.0, %v8673
        %8675 = vmatmul.bf16.gmra.mxu0 %v7746
        %v8676 = vpop.f32.mrf.mxu0
        %v8677 = vadd.f32 0.0, %v8676
        %v8678 = vpop.f32.mrf.mxu0
        %v8679 = vadd.f32 0.0, %v8678
        %8680 = vmatmul.bf16.gmra.mxu0 %v7749
        %v8681 = vpop.f32.mrf.mxu0
        %v8682 = vadd.f32 0.0, %v8681
        %v8683 = vpop.f32.mrf.mxu0
        %v8684 = vadd.f32 0.0, %v8683
        %8685 = vmatmul.bf16.gmra.mxu0 %v7752
        %v8686 = vpop.f32.mrf.mxu0
        %v8687 = vadd.f32 0.0, %v8686
        %v8688 = vpop.f32.mrf.mxu0
        %v8689 = vadd.f32 0.0, %v8688
        %8690 = vmatmul.bf16.gmra.mxu0 %v7755
        %v8691 = vpop.f32.mrf.mxu0
        %v8692 = vadd.f32 0.0, %v8691
        %v8693 = vpop.f32.mrf.mxu0
        %v8694 = vadd.f32 0.0, %v8693
        %8695 = vmatmul.bf16.gmra.mxu0 %v7758
        %v8696 = vpop.f32.mrf.mxu0
        %v8697 = vadd.f32 0.0, %v8696
        %v8698 = vpop.f32.mrf.mxu0
        %v8699 = vadd.f32 0.0, %v8698
        %8700 = vmatmul.bf16.gmra.mxu0 %v7761
        %v8701 = vpop.f32.mrf.mxu0
        %v8702 = vadd.f32 0.0, %v8701
        %v8703 = vpop.f32.mrf.mxu0
        %v8704 = vadd.f32 0.0, %v8703
        %8705 = vmatmul.bf16.gmra.mxu0 %v7764
        %v8706 = vpop.f32.mrf.mxu0
        %v8707 = vadd.f32 0.0, %v8706
        %v8708 = vpop.f32.mrf.mxu0
        %v8709 = vadd.f32 0.0, %v8708
        %8710 = vmatmul.bf16.gmra.mxu0 %v7767
        %v8711 = vpop.f32.mrf.mxu0
        %v8712 = vadd.f32 0.0, %v8711
        %v8713 = vpop.f32.mrf.mxu0
        %v8714 = vadd.f32 0.0, %v8713
        %8715 = vmatmul.bf16.gmra.mxu0 %v7770
        %v8716 = vpop.f32.mrf.mxu0
        %v8717 = vadd.f32 0.0, %v8716
        %v8718 = vpop.f32.mrf.mxu0
        %v8719 = vadd.f32 0.0, %v8718
        %8720 = vmatmul.bf16.gmra.mxu0 %v7773
        %v8721 = vpop.f32.mrf.mxu0
        %v8722 = vadd.f32 0.0, %v8721
        %v8723 = vpop.f32.mrf.mxu0
        %v8724 = vadd.f32 0.0, %v8723
        %8725 = vmatmul.bf16.gmra.mxu0 %v7776
        %v8726 = vpop.f32.mrf.mxu0
        %v8727 = vadd.f32 0.0, %v8726
        %v8728 = vpop.f32.mrf.mxu0
        %v8729 = vadd.f32 0.0, %v8728
        %8730 = vmatmul.bf16.gmra.mxu0 %v7779
        %v8731 = vpop.f32.mrf.mxu0
        %v8732 = vadd.f32 0.0, %v8731
        %v8733 = vpop.f32.mrf.mxu0
        %v8734 = vadd.f32 0.0, %v8733
        %8735 = vmatmul.bf16.gmra.mxu0 %v8217
        %v8736 = vpop.f32.mrf.mxu0
        %v8737 = vadd.f32 0.0, %v8736
        %v8738 = vpop.f32.mrf.mxu0
        %v8739 = vadd.f32 0.0, %v8738
        %8740 = vmatmul.bf16.gmra.mxu0 %v8655
        %v8741 = vpop.f32.mrf.mxu0
        %v8742 = vadd.f32 0.0, %v8741
        %v8743 = vpop.f32.mrf.mxu0
        %v8744 = vadd.f32 0.0, %v8743
        %8745 = vdwg.mxu0
        %v8746 = vadd.f32 %v8600, %v8667
        %v8747 = vadd.f32 %v8601, %v8669
        %v8748 = vadd.f32 %v8602, %v8672
        %v8749 = vadd.f32 %v8603, %v8674
        %v8750 = vadd.f32 %v8604, %v8677
        %v8751 = vadd.f32 %v8605, %v8679
        %v8752 = vadd.f32 %v8606, %v8682
        %v8753 = vadd.f32 %v8607, %v8684
        %v8754 = vadd.f32 %v8608, %v8687
        %v8755 = vadd.f32 %v8609, %v8689
        %v8756 = vadd.f32 %v8610, %v8692
        %v8757 = vadd.f32 %v8611, %v8694
        %v8758 = vadd.f32 %v8612, %v8697
        %v8759 = vadd.f32 %v8613, %v8699
        %v8760 = vadd.f32 %v8614, %v8702
        %v8761 = vadd.f32 %v8615, %v8704
        %v8762 = vadd.f32 %v8616, %v8707
        %v8763 = vadd.f32 %v8617, %v8709
        %v8764 = vadd.f32 %v8618, %v8712
        %v8765 = vadd.f32 %v8619, %v8714
        %v8766 = vadd.f32 %v8620, %v8717
        %v8767 = vadd.f32 %v8621, %v8719
        %v8768 = vadd.f32 %v8622, %v8722
        %v8769 = vadd.f32 %v8623, %v8724
        %v8770 = vadd.f32 %v8624, %v8727
        %v8771 = vadd.f32 %v8625, %v8729
        %v8772 = vadd.f32 %v8626, %v8732
        %v8773 = vadd.f32 %v8627, %v8734
        %v8774 = vadd.f32 %v8628, %v8737
        %v8775 = vadd.f32 %v8629, %v8739
        %v8776 = vadd.f32 %v8630, %v8742
        %v8777 = vadd.f32 %v8631, %v8744
        %v8778 = vld [vmem:[#allocation16] sm:$0x1]
        %v8780 = vperm.slane %v8778, 0
        %v8782 = vadd.f32 %v8746, %v8780
        %v8783 = vadd.f32 %v8747, %v8780
        %v8784 = vadd.f32 %v8748, %v8780
        %v8785 = vadd.f32 %v8749, %v8780
        %v8786 = vadd.f32 %v8750, %v8780
        %v8787 = vadd.f32 %v8751, %v8780
        %v8788 = vadd.f32 %v8752, %v8780
        %v8789 = vadd.f32 %v8753, %v8780
        %v8790 = vadd.f32 %v8754, %v8780
        %v8791 = vadd.f32 %v8755, %v8780
        %v8792 = vadd.f32 %v8756, %v8780
        %v8793 = vadd.f32 %v8757, %v8780
        %v8794 = vadd.f32 %v8758, %v8780
        %v8795 = vadd.f32 %v8759, %v8780
        %v8796 = vadd.f32 %v8760, %v8780
        %v8797 = vadd.f32 %v8761, %v8780
        %v8798 = vadd.f32 %v8762, %v8780
        %v8799 = vadd.f32 %v8763, %v8780
        %v8800 = vadd.f32 %v8764, %v8780
        %v8801 = vadd.f32 %v8765, %v8780
        %v8802 = vadd.f32 %v8766, %v8780
        %v8803 = vadd.f32 %v8767, %v8780
        %v8804 = vadd.f32 %v8768, %v8780
        %v8805 = vadd.f32 %v8769, %v8780
        %v8806 = vadd.f32 %v8770, %v8780
        %v8807 = vadd.f32 %v8771, %v8780
        %v8808 = vadd.f32 %v8772, %v8780
        %v8809 = vadd.f32 %v8773, %v8780
        %v8810 = vadd.f32 %v8774, %v8780
        %v8811 = vadd.f32 %v8775, %v8780
        %v8812 = vadd.f32 %v8776, %v8780
        %v8813 = vadd.f32 %v8777, %v8780
        %v8814 = vmax.f32 %v8782, 0.0
        %v8815 = vmax.f32 %v8783, 0.0
        %v8816 = vmax.f32 %v8784, 0.0
        %v8817 = vmax.f32 %v8785, 0.0
        %v8818 = vmax.f32 %v8786, 0.0
        %v8819 = vmax.f32 %v8787, 0.0
        %v8820 = vmax.f32 %v8788, 0.0
        %v8821 = vmax.f32 %v8789, 0.0
        %v8822 = vmax.f32 %v8790, 0.0
        %v8823 = vmax.f32 %v8791, 0.0
        %v8824 = vmax.f32 %v8792, 0.0
        %v8825 = vmax.f32 %v8793, 0.0
        %v8826 = vmax.f32 %v8794, 0.0
        %v8827 = vmax.f32 %v8795, 0.0
        %v8828 = vmax.f32 %v8796, 0.0
        %v8829 = vmax.f32 %v8797, 0.0
        %v8830 = vmax.f32 %v8798, 0.0
        %v8831 = vmax.f32 %v8799, 0.0
        %v8832 = vmax.f32 %v8800, 0.0
        %v8833 = vmax.f32 %v8801, 0.0
        %v8834 = vmax.f32 %v8802, 0.0
        %v8835 = vmax.f32 %v8803, 0.0
        %v8836 = vmax.f32 %v8804, 0.0
        %v8837 = vmax.f32 %v8805, 0.0
        %v8838 = vmax.f32 %v8806, 0.0
        %v8839 = vmax.f32 %v8807, 0.0
        %v8840 = vmax.f32 %v8808, 0.0
        %v8841 = vmax.f32 %v8809, 0.0
        %v8842 = vmax.f32 %v8810, 0.0
        %v8843 = vmax.f32 %v8811, 0.0
        %v8844 = vmax.f32 %v8812, 0.0
        %v8845 = vmax.f32 %v8813, 0.0
        %8846 = vst.msk [vmem:[%s2638] sm:$0xff] %vm588, %v8814
        %8847 = vst.msk [vmem:[%s2638 + $0x8] sm:$0xff] %vm588, %v8815
        %8848 = vst.msk [vmem:[%s2638 + $0x10] sm:$0xff] %vm588, %v8816
        %8849 = vst.msk [vmem:[%s2638 + $0x18] sm:$0xff] %vm588, %v8817
        %8850 = vst.msk [vmem:[%s2638 + $0x20] sm:$0xff] %vm588, %v8818
        %8851 = vst.msk [vmem:[%s2638 + $0x28] sm:$0xff] %vm588, %v8819
        %8852 = vst.msk [vmem:[%s2638 + $0x30] sm:$0xff] %vm588, %v8820
        %8853 = vst.msk [vmem:[%s2638 + $0x38] sm:$0xff] %vm588, %v8821
        %8854 = vst.msk [vmem:[%s2638 + $0x40] sm:$0xff] %vm588, %v8822
        %8855 = vst.msk [vmem:[%s2638 + $0x48] sm:$0xff] %vm588, %v8823
        %8856 = vst.msk [vmem:[%s2638 + $0x50] sm:$0xff] %vm588, %v8824
        %8857 = vst.msk [vmem:[%s2638 + $0x58] sm:$0xff] %vm588, %v8825
        %8858 = vst.msk [vmem:[%s2638 + $0x60] sm:$0xff] %vm588, %v8826
        %8859 = vst.msk [vmem:[%s2638 + $0x68] sm:$0xff] %vm588, %v8827
        %8860 = vst.msk [vmem:[%s2638 + $0x70] sm:$0xff] %vm588, %v8828
        %8861 = vst.msk [vmem:[%s2638 + $0x78] sm:$0xff] %vm588, %v8829
        %8862 = vst.msk [vmem:[%s2638 + $0x80] sm:$0xff] %vm588, %v8830
        %8863 = vst.msk [vmem:[%s2638 + $0x88] sm:$0xff] %vm588, %v8831
        %8864 = vst.msk [vmem:[%s2638 + $0x90] sm:$0xff] %vm588, %v8832
        %8865 = vst.msk [vmem:[%s2638 + $0x98] sm:$0xff] %vm588, %v8833
        %8866 = vst.msk [vmem:[%s2638 + $0xa0] sm:$0xff] %vm588, %v8834
        %8867 = vst.msk [vmem:[%s2638 + $0xa8] sm:$0xff] %vm588, %v8835
        %8868 = vst.msk [vmem:[%s2638 + $0xb0] sm:$0xff] %vm588, %v8836
        %8869 = vst.msk [vmem:[%s2638 + $0xb8] sm:$0xff] %vm588, %v8837
        %8870 = vst.msk [vmem:[%s2638 + $0xc0] sm:$0xff] %vm588, %v8838
        %8871 = vst.msk [vmem:[%s2638 + $0xc8] sm:$0xff] %vm588, %v8839
        %8872 = vst.msk [vmem:[%s2638 + $0xd0] sm:$0xff] %vm588, %v8840
        %8873 = vst.msk [vmem:[%s2638 + $0xd8] sm:$0xff] %vm588, %v8841
        %8874 = vst.msk [vmem:[%s2638 + $0xe0] sm:$0xff] %vm588, %v8842
        %8875 = vst.msk [vmem:[%s2638 + $0xe8] sm:$0xff] %vm588, %v8843
        %8876 = vst.msk [vmem:[%s2638 + $0xf0] sm:$0xff] %vm588, %v8844
        %8877 = vst.msk [vmem:[%s2638 + $0xf8] sm:$0xff] %vm588, %v8845
        %v8878 = vld [vmem:[#allocation3] sm:$0xff]
        %v8879 = vld [vmem:[#allocation3 + $0x8] sm:$0xff]
        %v8880 = vld [vmem:[#allocation3 + $0x10] sm:$0xff]
        %v8881 = vld [vmem:[#allocation3 + $0x18] sm:$0xff]
        %v8882 = vld [vmem:[#allocation3 + $0x20] sm:$0xff]
        %v8883 = vld [vmem:[#allocation3 + $0x28] sm:$0xff]
        %v8884 = vld [vmem:[#allocation3 + $0x30] sm:$0xff]
        %v8885 = vld [vmem:[#allocation3 + $0x38] sm:$0xff]
        %v8886 = vld [vmem:[#allocation3 + $0x40] sm:$0xff]
        %v8887 = vld [vmem:[#allocation3 + $0x48] sm:$0xff]
        %v8888 = vld [vmem:[#allocation3 + $0x50] sm:$0xff]
        %v8889 = vld [vmem:[#allocation3 + $0x58] sm:$0xff]
        %v8890 = vld [vmem:[#allocation3 + $0x60] sm:$0xff]
        %v8891 = vld [vmem:[#allocation3 + $0x68] sm:$0xff]
        %v8892 = vld [vmem:[#allocation3 + $0x70] sm:$0xff]
        %v8893 = vld [vmem:[#allocation3 + $0x78] sm:$0xff]
        %v8894 = vld [vmem:[#allocation3 + $0x80] sm:$0xff]
        %v8895 = vld [vmem:[#allocation3 + $0x88] sm:$0xff]
        %v8896 = vld [vmem:[#allocation3 + $0x90] sm:$0xff]
        %v8897 = vld [vmem:[#allocation3 + $0x98] sm:$0xff]
        %v8898 = vld [vmem:[#allocation3 + $0xa0] sm:$0xff]
        %v8899 = vld [vmem:[#allocation3 + $0xa8] sm:$0xff]
        %v8900 = vld [vmem:[#allocation3 + $0xb0] sm:$0xff]
        %v8901 = vld [vmem:[#allocation3 + $0xb8] sm:$0xff]
        %v8902 = vld [vmem:[#allocation3 + $0xc0] sm:$0xff]
        %v8903 = vld [vmem:[#allocation3 + $0xc8] sm:$0xff]
        %v8904 = vld [vmem:[#allocation3 + $0xd0] sm:$0xff]
        %v8905 = vld [vmem:[#allocation3 + $0xd8] sm:$0xff]
        %v8906 = vld [vmem:[#allocation3 + $0xe0] sm:$0xff]
        %v8907 = vld [vmem:[#allocation3 + $0xe8] sm:$0xff]
        %v8908 = vld [vmem:[#allocation3 + $0xf0] sm:$0xff]
        %v8909 = vld [vmem:[#allocation3 + $0xf8] sm:$0xff]
        %v8910 = vld [vmem:[#allocation3 + $0x100] sm:$0xff]
        %v8911 = vld [vmem:[#allocation3 + $0x108] sm:$0xff]
        %v8912 = vld [vmem:[#allocation3 + $0x110] sm:$0xff]
        %v8913 = vld [vmem:[#allocation3 + $0x118] sm:$0xff]
        %v8914 = vrot.slane %v8878, 7
        %v8915 = vrot.slane %v8880, 7
        %v8916 = vrot.slane %v8882, 7
        %v8917 = vrot.slane %v8884, 7
        %v8918 = vrot.slane %v8886, 7
        %v8919 = vrot.slane %v8888, 7
        %v8920 = vrot.slane %v8890, 7
        %v8921 = vrot.slane %v8892, 7
        %v8922 = vrot.slane %v8894, 7
        %v8923 = vrot.slane %v8896, 7
        %v8924 = vrot.slane %v8898, 7
        %v8925 = vrot.slane %v8900, 7
        %v8926 = vrot.slane %v8902, 7
        %v8927 = vrot.slane %v8904, 7
        %v8928 = vrot.slane %v8906, 7
        %v8929 = vrot.slane %v8908, 7
        %v8930 = vrot.slane %v8910, 7
        %v8931 = vrot.slane %v8912, 7
        %v8932 = vrot.slane %v8879, 7
        %v8933 = vrot.slane %v8881, 7
        %v8934 = vrot.slane %v8883, 7
        %v8935 = vrot.slane %v8885, 7
        %v8936 = vrot.slane %v8887, 7
        %v8937 = vrot.slane %v8889, 7
        %v8938 = vrot.slane %v8891, 7
        %v8939 = vrot.slane %v8893, 7
        %v8940 = vrot.slane %v8895, 7
        %v8941 = vrot.slane %v8897, 7
        %v8942 = vrot.slane %v8899, 7
        %v8943 = vrot.slane %v8901, 7
        %v8944 = vrot.slane %v8903, 7
        %v8945 = vrot.slane %v8905, 7
        %v8946 = vrot.slane %v8907, 7
        %v8947 = vrot.slane %v8909, 7
        %v8948 = vrot.slane %v8911, 7
        %v8949 = vrot.slane %v8913, 7
        %v8950 = vsel %vm736, %v8914, %v8932
        %v8951 = vsel %vm736, %v8915, %v8933
        %v8952 = vsel %vm736, %v8916, %v8934
        %v8953 = vsel %vm736, %v8917, %v8935
        %v8954 = vsel %vm736, %v8918, %v8936
        %v8955 = vsel %vm736, %v8919, %v8937
        %v8956 = vsel %vm736, %v8920, %v8938
        %v8957 = vsel %vm736, %v8921, %v8939
        %v8958 = vsel %vm736, %v8922, %v8940
        %v8959 = vsel %vm736, %v8923, %v8941
        %v8960 = vsel %vm736, %v8924, %v8942
        %v8961 = vsel %vm736, %v8925, %v8943
        %v8962 = vsel %vm736, %v8926, %v8944
        %v8963 = vsel %vm736, %v8927, %v8945
        %v8964 = vsel %vm736, %v8928, %v8946
        %v8965 = vsel %vm736, %v8929, %v8947
        %v8966 = vsel %vm736, %v8930, %v8948
        %v8967 = vsel %vm736, %v8931, %v8949
        %v8968 = vsel %vm736, %v8932, %v8914
        %v8969 = vsel %vm736, %v8933, %v8915
        %v8970 = vsel %vm736, %v8934, %v8916
        %v8971 = vsel %vm736, %v8935, %v8917
        %v8972 = vsel %vm736, %v8936, %v8918
        %v8973 = vsel %vm736, %v8937, %v8919
        %v8974 = vsel %vm736, %v8938, %v8920
        %v8975 = vsel %vm736, %v8939, %v8921
        %v8976 = vsel %vm736, %v8940, %v8922
        %v8977 = vsel %vm736, %v8941, %v8923
        %v8978 = vsel %vm736, %v8942, %v8924
        %v8979 = vsel %vm736, %v8943, %v8925
        %v8980 = vsel %vm736, %v8944, %v8926
        %v8981 = vsel %vm736, %v8945, %v8927
        %v8982 = vsel %vm736, %v8946, %v8928
        %v8983 = vsel %vm736, %v8947, %v8929
        %v8984 = vsel %vm736, %v8948, %v8930
        %v8985 = vsel %vm736, %v8949, %v8931
        %v8986 = vsel %vm775, 0.0, %v8968
        %v8987 = vsel %vm776, 0.0, %v8950
        %v8988 = vsel %vm775, 0.0, %v8969
        %v8989 = vsel %vm776, 0.0, %v8951
        %v8990 = vsel %vm775, 0.0, %v8970
        %v8991 = vsel %vm776, 0.0, %v8952
        %v8992 = vsel %vm775, 0.0, %v8971
        %v8993 = vsel %vm776, 0.0, %v8953
        %v8994 = vsel %vm775, 0.0, %v8972
        %v8995 = vsel %vm776, 0.0, %v8954
        %v8996 = vsel %vm775, 0.0, %v8973
        %v8997 = vsel %vm776, 0.0, %v8955
        %v8998 = vsel %vm775, 0.0, %v8974
        %v8999 = vsel %vm776, 0.0, %v8956
        %v9000 = vsel %vm775, 0.0, %v8975
        %v9001 = vsel %vm776, 0.0, %v8957
        %v9002 = vsel %vm775, 0.0, %v8976
        %v9003 = vsel %vm776, 0.0, %v8958
        %v9004 = vsel %vm775, 0.0, %v8977
        %v9005 = vsel %vm776, 0.0, %v8959
        %v9006 = vsel %vm775, 0.0, %v8978
        %v9007 = vsel %vm776, 0.0, %v8960
        %v9008 = vsel %vm775, 0.0, %v8979
        %v9009 = vsel %vm776, 0.0, %v8961
        %v9010 = vsel %vm775, 0.0, %v8980
        %v9011 = vsel %vm776, 0.0, %v8962
        %v9012 = vsel %vm775, 0.0, %v8981
        %v9013 = vsel %vm776, 0.0, %v8963
        %v9014 = vsel %vm775, 0.0, %v8982
        %v9015 = vsel %vm776, 0.0, %v8964
        %v9016 = vsel %vm775, 0.0, %v8983
        %v9017 = vsel %vm776, 0.0, %v8965
        %v9018 = vsel %vm775, 0.0, %v8984
        %v9019 = vsel %vm776, 0.0, %v8966
        %v9020 = vsel %vm775, 0.0, %v8985
        %v9021 = vsel %vm776, 0.0, %v8967
        %v9022 = vrot.slane %v8878, 1
        %v9023 = vrot.slane %v8880, 1
        %v9024 = vrot.slane %v8882, 1
        %v9025 = vrot.slane %v8884, 1
        %v9026 = vrot.slane %v8886, 1
        %v9027 = vrot.slane %v8888, 1
        %v9028 = vrot.slane %v8890, 1
        %v9029 = vrot.slane %v8892, 1
        %v9030 = vrot.slane %v8894, 1
        %v9031 = vrot.slane %v8896, 1
        %v9032 = vrot.slane %v8898, 1
        %v9033 = vrot.slane %v8900, 1
        %v9034 = vrot.slane %v8902, 1
        %v9035 = vrot.slane %v8904, 1
        %v9036 = vrot.slane %v8906, 1
        %v9037 = vrot.slane %v8908, 1
        %v9038 = vrot.slane %v8910, 1
        %v9039 = vrot.slane %v8912, 1
        %v9040 = vrot.slane %v8879, 1
        %v9041 = vrot.slane %v8881, 1
        %v9042 = vrot.slane %v8883, 1
        %v9043 = vrot.slane %v8885, 1
        %v9044 = vrot.slane %v8887, 1
        %v9045 = vrot.slane %v8889, 1
        %v9046 = vrot.slane %v8891, 1
        %v9047 = vrot.slane %v8893, 1
        %v9048 = vrot.slane %v8895, 1
        %v9049 = vrot.slane %v8897, 1
        %v9050 = vrot.slane %v8899, 1
        %v9051 = vrot.slane %v8901, 1
        %v9052 = vrot.slane %v8903, 1
        %v9053 = vrot.slane %v8905, 1
        %v9054 = vrot.slane %v8907, 1
        %v9055 = vrot.slane %v8909, 1
        %v9056 = vrot.slane %v8911, 1
        %v9057 = vrot.slane %v8913, 1
        %v9058 = vsel %vm851, %v9022, %v9040
        %v9059 = vsel %vm851, %v9023, %v9041
        %v9060 = vsel %vm851, %v9024, %v9042
        %v9061 = vsel %vm851, %v9025, %v9043
        %v9062 = vsel %vm851, %v9026, %v9044
        %v9063 = vsel %vm851, %v9027, %v9045
        %v9064 = vsel %vm851, %v9028, %v9046
        %v9065 = vsel %vm851, %v9029, %v9047
        %v9066 = vsel %vm851, %v9030, %v9048
        %v9067 = vsel %vm851, %v9031, %v9049
        %v9068 = vsel %vm851, %v9032, %v9050
        %v9069 = vsel %vm851, %v9033, %v9051
        %v9070 = vsel %vm851, %v9034, %v9052
        %v9071 = vsel %vm851, %v9035, %v9053
        %v9072 = vsel %vm851, %v9036, %v9054
        %v9073 = vsel %vm851, %v9037, %v9055
        %v9074 = vsel %vm851, %v9038, %v9056
        %v9075 = vsel %vm851, %v9039, %v9057
        %v9076 = vsel %vm851, %v9040, %v9022
        %v9077 = vsel %vm851, %v9041, %v9023
        %v9078 = vsel %vm851, %v9042, %v9024
        %v9079 = vsel %vm851, %v9043, %v9025
        %v9080 = vsel %vm851, %v9044, %v9026
        %v9081 = vsel %vm851, %v9045, %v9027
        %v9082 = vsel %vm851, %v9046, %v9028
        %v9083 = vsel %vm851, %v9047, %v9029
        %v9084 = vsel %vm851, %v9048, %v9030
        %v9085 = vsel %vm851, %v9049, %v9031
        %v9086 = vsel %vm851, %v9050, %v9032
        %v9087 = vsel %vm851, %v9051, %v9033
        %v9088 = vsel %vm851, %v9052, %v9034
        %v9089 = vsel %vm851, %v9053, %v9035
        %v9090 = vsel %vm851, %v9054, %v9036
        %v9091 = vsel %vm851, %v9055, %v9037
        %v9092 = vsel %vm851, %v9056, %v9038
        %v9093 = vsel %vm851, %v9057, %v9039
        %v9094 = vsel %vm890, 0.0, %v9058
        %v9095 = vsel %vm891, 0.0, %v9076
        %v9096 = vsel %vm890, 0.0, %v9059
        %v9097 = vsel %vm891, 0.0, %v9077
        %v9098 = vsel %vm890, 0.0, %v9060
        %v9099 = vsel %vm891, 0.0, %v9078
        %v9100 = vsel %vm890, 0.0, %v9061
        %v9101 = vsel %vm891, 0.0, %v9079
        %v9102 = vsel %vm890, 0.0, %v9062
        %v9103 = vsel %vm891, 0.0, %v9080
        %v9104 = vsel %vm890, 0.0, %v9063
        %v9105 = vsel %vm891, 0.0, %v9081
        %v9106 = vsel %vm890, 0.0, %v9064
        %v9107 = vsel %vm891, 0.0, %v9082
        %v9108 = vsel %vm890, 0.0, %v9065
        %v9109 = vsel %vm891, 0.0, %v9083
        %v9110 = vsel %vm890, 0.0, %v9066
        %v9111 = vsel %vm891, 0.0, %v9084
        %v9112 = vsel %vm890, 0.0, %v9067
        %v9113 = vsel %vm891, 0.0, %v9085
        %v9114 = vsel %vm890, 0.0, %v9068
        %v9115 = vsel %vm891, 0.0, %v9086
        %v9116 = vsel %vm890, 0.0, %v9069
        %v9117 = vsel %vm891, 0.0, %v9087
        %v9118 = vsel %vm890, 0.0, %v9070
        %v9119 = vsel %vm891, 0.0, %v9088
        %v9120 = vsel %vm890, 0.0, %v9071
        %v9121 = vsel %vm891, 0.0, %v9089
        %v9122 = vsel %vm890, 0.0, %v9072
        %v9123 = vsel %vm891, 0.0, %v9090
        %v9124 = vsel %vm890, 0.0, %v9073
        %v9125 = vsel %vm891, 0.0, %v9091
        %v9126 = vsel %vm890, 0.0, %v9074
        %v9127 = vsel %vm891, 0.0, %v9092
        %v9128 = vsel %vm890, 0.0, %v9075
        %v9129 = vsel %vm891, 0.0, %v9093
        %v9130 = vpack.c.bf16 %v8986, %v8986
        %v9131 = vpack.c.bf16 %v8987, %v8987
        %v9132 = vpack.c.bf16 %v8988, %v8988
        %v9133 = vpack.c.bf16 %v8989, %v8989
        %v9134 = vpack.c.bf16 %v8990, %v8990
        %v9135 = vpack.c.bf16 %v8991, %v8991
        %v9136 = vpack.c.bf16 %v8992, %v8992
        %v9137 = vpack.c.bf16 %v8993, %v8993
        %v9138 = vpack.c.bf16 %v8994, %v8994
        %v9139 = vpack.c.bf16 %v8995, %v8995
        %v9140 = vpack.c.bf16 %v8996, %v8996
        %v9141 = vpack.c.bf16 %v8997, %v8997
        %v9142 = vpack.c.bf16 %v8998, %v8998
        %v9143 = vpack.c.bf16 %v8999, %v8999
        %v9144 = vpack.c.bf16 %v9000, %v9000
        %v9145 = vpack.c.bf16 %v9001, %v9001
        %v9146 = vpack.c.bf16 %v9002, %v9002
        %v9147 = vpack.c.bf16 %v9003, %v9003
        %v9148 = vpack.c.bf16 %v9004, %v9004
        %v9149 = vpack.c.bf16 %v9005, %v9005
        %v9150 = vpack.c.bf16 %v9006, %v9006
        %v9151 = vpack.c.bf16 %v9007, %v9007
        %v9152 = vpack.c.bf16 %v9008, %v9008
        %v9153 = vpack.c.bf16 %v9009, %v9009
        %v9154 = vpack.c.bf16 %v9010, %v9010
        %v9155 = vpack.c.bf16 %v9011, %v9011
        %v9156 = vpack.c.bf16 %v9012, %v9012
        %v9157 = vpack.c.bf16 %v9013, %v9013
        %v9158 = vpack.c.bf16 %v9014, %v9014
        %v9159 = vpack.c.bf16 %v9015, %v9015
        %v9160 = vpack.c.bf16 %v9016, %v9016
        %v9161 = vpack.c.bf16 %v9017, %v9017
        %v9162 = vpack.c.bf16 %v9018, %v9018
        %v9163 = vpack.c.bf16 %v9019, %v9019
        %v9164 = vpack.c.bf16 %v9020, %v9020
        %v9165 = vpack.c.bf16 %v9021, %v9021
        %v9166 = vpack.c.bf16 %v8878, %v8878
        %v9167 = vpack.c.bf16 %v8879, %v8879
        %v9168 = vpack.c.bf16 %v8880, %v8880
        %v9169 = vpack.c.bf16 %v8881, %v8881
        %v9170 = vpack.c.bf16 %v8882, %v8882
        %v9171 = vpack.c.bf16 %v8883, %v8883
        %v9172 = vpack.c.bf16 %v8884, %v8884
        %v9173 = vpack.c.bf16 %v8885, %v8885
        %v9174 = vpack.c.bf16 %v8886, %v8886
        %v9175 = vpack.c.bf16 %v8887, %v8887
        %v9176 = vpack.c.bf16 %v8888, %v8888
        %v9177 = vpack.c.bf16 %v8889, %v8889
        %v9178 = vpack.c.bf16 %v8890, %v8890
        %v9179 = vpack.c.bf16 %v8891, %v8891
        %v9180 = vpack.c.bf16 %v8892, %v8892
        %v9181 = vpack.c.bf16 %v8893, %v8893
        %v9182 = vpack.c.bf16 %v8894, %v8894
        %v9183 = vpack.c.bf16 %v8895, %v8895
        %v9184 = vpack.c.bf16 %v8896, %v8896
        %v9185 = vpack.c.bf16 %v8897, %v8897
        %v9186 = vpack.c.bf16 %v8898, %v8898
        %v9187 = vpack.c.bf16 %v8899, %v8899
        %v9188 = vpack.c.bf16 %v8900, %v8900
        %v9189 = vpack.c.bf16 %v8901, %v8901
        %v9190 = vpack.c.bf16 %v8902, %v8902
        %v9191 = vpack.c.bf16 %v8903, %v8903
        %v9192 = vpack.c.bf16 %v8904, %v8904
        %v9193 = vpack.c.bf16 %v8905, %v8905
        %v9194 = vpack.c.bf16 %v8906, %v8906
        %v9195 = vpack.c.bf16 %v8907, %v8907
        %v9196 = vpack.c.bf16 %v8908, %v8908
        %v9197 = vpack.c.bf16 %v8909, %v8909
        %v9198 = vpack.c.bf16 %v8910, %v8910
        %v9199 = vpack.c.bf16 %v8911, %v8911
        %v9200 = vpack.c.bf16 %v8912, %v8912
        %v9201 = vpack.c.bf16 %v8913, %v8913
        %v9202 = vpack.c.bf16 %v9094, %v9094
        %v9203 = vpack.c.bf16 %v9095, %v9095
        %v9204 = vpack.c.bf16 %v9096, %v9096
        %v9205 = vpack.c.bf16 %v9097, %v9097
        %v9206 = vpack.c.bf16 %v9098, %v9098
        %v9207 = vpack.c.bf16 %v9099, %v9099
        %v9208 = vpack.c.bf16 %v9100, %v9100
        %v9209 = vpack.c.bf16 %v9101, %v9101
        %v9210 = vpack.c.bf16 %v9102, %v9102
        %v9211 = vpack.c.bf16 %v9103, %v9103
        %v9212 = vpack.c.bf16 %v9104, %v9104
        %v9213 = vpack.c.bf16 %v9105, %v9105
        %v9214 = vpack.c.bf16 %v9106, %v9106
        %v9215 = vpack.c.bf16 %v9107, %v9107
        %v9216 = vpack.c.bf16 %v9108, %v9108
        %v9217 = vpack.c.bf16 %v9109, %v9109
        %v9218 = vpack.c.bf16 %v9110, %v9110
        %v9219 = vpack.c.bf16 %v9111, %v9111
        %v9220 = vpack.c.bf16 %v9112, %v9112
        %v9221 = vpack.c.bf16 %v9113, %v9113
        %v9222 = vpack.c.bf16 %v9114, %v9114
        %v9223 = vpack.c.bf16 %v9115, %v9115
        %v9224 = vpack.c.bf16 %v9116, %v9116
        %v9225 = vpack.c.bf16 %v9117, %v9117
        %v9226 = vpack.c.bf16 %v9118, %v9118
        %v9227 = vpack.c.bf16 %v9119, %v9119
        %v9228 = vpack.c.bf16 %v9120, %v9120
        %v9229 = vpack.c.bf16 %v9121, %v9121
        %v9230 = vpack.c.bf16 %v9122, %v9122
        %v9231 = vpack.c.bf16 %v9123, %v9123
        %v9232 = vpack.c.bf16 %v9124, %v9124
        %v9233 = vpack.c.bf16 %v9125, %v9125
        %v9234 = vpack.c.bf16 %v9126, %v9126
        %v9235 = vpack.c.bf16 %v9127, %v9127
        %v9236 = vpack.c.bf16 %v9128, %v9128
        %v9237 = vpack.c.bf16 %v9129, %v9129
        %v9238 = vld [vmem:[#allocation18] sm:$0xf]
        %v9239 = vld [vmem:[#allocation18 + $0x4] sm:$0xf]
        %v9240 = vld [vmem:[#allocation18 + $0x8] sm:$0xf]
        %v9241 = vld [vmem:[#allocation18 + $0xc] sm:$0xf]
        %s9242 = scalar_lea.vmem [#allocation18], 16
        %v9243 = vld [vmem:[%s9242] sm:$0xf]
        %v9244 = vld [vmem:[%s9242 + $0x4] sm:$0xf]
        %v9245 = vld [vmem:[%s9242 + $0x8] sm:$0xf]
        %v9246 = vld [vmem:[%s9242 + $0xc] sm:$0xf]
        %v9279 = vunpack.c.l.b16 %v9166
        %v9280 = vunpack.c.l.b16 %v9167
        %v9281 = vunpack.c.l.b16 %v9168
        %v9282 = vunpack.c.l.b16 %v9169
        %v9283 = vunpack.c.l.b16 %v9170
        %v9284 = vunpack.c.l.b16 %v9171
        %v9285 = vunpack.c.l.b16 %v9172
        %v9286 = vunpack.c.l.b16 %v9173
        %v9287 = vunpack.c.l.b16 %v9174
        %v9288 = vunpack.c.l.b16 %v9175
        %v9289 = vunpack.c.l.b16 %v9176
        %v9290 = vunpack.c.l.b16 %v9177
        %v9291 = vunpack.c.l.b16 %v9178
        %v9292 = vunpack.c.l.b16 %v9179
        %v9293 = vunpack.c.l.b16 %v9180
        %v9294 = vunpack.c.l.b16 %v9181
        %v9295 = vunpack.c.l.b16 %v9182
        %v9296 = vunpack.c.l.b16 %v9183
        %v9297 = vunpack.c.l.b16 %v9184
        %v9298 = vunpack.c.l.b16 %v9185
        %v9299 = vunpack.c.l.b16 %v9186
        %v9300 = vunpack.c.l.b16 %v9187
        %v9301 = vunpack.c.l.b16 %v9188
        %v9302 = vunpack.c.l.b16 %v9189
        %v9303 = vunpack.c.l.b16 %v9190
        %v9304 = vunpack.c.l.b16 %v9191
        %v9305 = vunpack.c.l.b16 %v9192
        %v9306 = vunpack.c.l.b16 %v9193
        %v9307 = vunpack.c.l.b16 %v9194
        %v9308 = vunpack.c.l.b16 %v9195
        %v9309 = vunpack.c.l.b16 %v9196
        %v9310 = vunpack.c.l.b16 %v9197
        %v9311 = vpack.c.b16 %v9280, %v9279
        %v9312 = vpack.c.b16 %v9282, %v9281
        %v9313 = vpack.c.b16 %v9284, %v9283
        %v9314 = vpack.c.b16 %v9286, %v9285
        %v9315 = vpack.c.b16 %v9288, %v9287
        %v9316 = vpack.c.b16 %v9290, %v9289
        %v9317 = vpack.c.b16 %v9292, %v9291
        %v9318 = vpack.c.b16 %v9294, %v9293
        %v9319 = vpack.c.b16 %v9296, %v9295
        %v9320 = vpack.c.b16 %v9298, %v9297
        %v9321 = vpack.c.b16 %v9300, %v9299
        %v9322 = vpack.c.b16 %v9302, %v9301
        %v9323 = vpack.c.b16 %v9304, %v9303
        %v9324 = vpack.c.b16 %v9306, %v9305
        %v9325 = vpack.c.b16 %v9308, %v9307
        %v9326 = vpack.c.b16 %v9310, %v9309
        %v9331 = vunpack.c.l.b16 %v9243
        %v9332 = vunpack.c.l.b16 %v9244
        %v9333 = vunpack.c.l.b16 %v9245
        %v9334 = vunpack.c.l.b16 %v9246
        %v9335 = vpack.c.b16 %v9332, %v9331
        %v9336 = vpack.c.b16 %v9334, %v9333
        %v9340 = vsel %vm588, %v9311, 0
        %v9343 = vsel %vm588, %v9312, 0
        %v9346 = vsel %vm588, %v9313, 0
        %v9349 = vsel %vm588, %v9314, 0
        %v9352 = vsel %vm588, %v9315, 0
        %v9355 = vsel %vm588, %v9316, 0
        %v9358 = vsel %vm588, %v9317, 0
        %v9361 = vsel %vm588, %v9318, 0
        %v9364 = vsel %vm588, %v9319, 0
        %v9367 = vsel %vm588, %v9320, 0
        %v9370 = vsel %vm588, %v9321, 0
        %v9373 = vsel %vm588, %v9322, 0
        %v9376 = vsel %vm588, %v9323, 0
        %v9379 = vsel %vm588, %v9324, 0
        %v9382 = vsel %vm588, %v9325, 0
        %v9385 = vsel %vm588, %v9326, 0
        %9387 = vmatpush.bf16.msra.mxu0 0
        %9388 = vmatpush.bf16.msra.mxu0 0
        %9389 = vmatpush.bf16.msra.mxu0 0
        %9390 = vmatpush.bf16.msra.mxu0 0
        %9391 = vmatpush.bf16.msra.mxu0 0
        %9392 = vmatpush.bf16.msra.mxu0 0
        %9393 = vmatpush.bf16.msra.mxu0 %v9336
        %9394 = vmatpush.bf16.msra.mxu0 %v9335
        %9395 = vmatmul.bf16.gmra.mxu0 %v9340
        %v9396 = vpop.f32.mrf.mxu0
        %v9397 = vadd.f32 0.0, %v9396
        %v9398 = vpop.f32.mrf.mxu0
        %v9399 = vadd.f32 0.0, %v9398
        %9400 = vmatmul.bf16.gmra.mxu0 %v9343
        %v9401 = vpop.f32.mrf.mxu0
        %v9402 = vadd.f32 0.0, %v9401
        %v9403 = vpop.f32.mrf.mxu0
        %v9404 = vadd.f32 0.0, %v9403
        %9405 = vmatmul.bf16.gmra.mxu0 %v9346
        %v9406 = vpop.f32.mrf.mxu0
        %v9407 = vadd.f32 0.0, %v9406
        %v9408 = vpop.f32.mrf.mxu0
        %v9409 = vadd.f32 0.0, %v9408
        %9410 = vmatmul.bf16.gmra.mxu0 %v9349
        %v9411 = vpop.f32.mrf.mxu0
        %v9412 = vadd.f32 0.0, %v9411
        %v9413 = vpop.f32.mrf.mxu0
        %v9414 = vadd.f32 0.0, %v9413
        %9415 = vmatmul.bf16.gmra.mxu0 %v9352
        %v9416 = vpop.f32.mrf.mxu0
        %v9417 = vadd.f32 0.0, %v9416
        %v9418 = vpop.f32.mrf.mxu0
        %v9419 = vadd.f32 0.0, %v9418
        %9420 = vmatmul.bf16.gmra.mxu0 %v9355
        %v9421 = vpop.f32.mrf.mxu0
        %v9422 = vadd.f32 0.0, %v9421
        %v9423 = vpop.f32.mrf.mxu0
        %v9424 = vadd.f32 0.0, %v9423
        %9425 = vmatmul.bf16.gmra.mxu0 %v9358
        %v9426 = vpop.f32.mrf.mxu0
        %v9427 = vadd.f32 0.0, %v9426
        %v9428 = vpop.f32.mrf.mxu0
        %v9429 = vadd.f32 0.0, %v9428
        %9430 = vmatmul.bf16.gmra.mxu0 %v9361
        %v9431 = vpop.f32.mrf.mxu0
        %v9432 = vadd.f32 0.0, %v9431
        %v9433 = vpop.f32.mrf.mxu0
        %v9434 = vadd.f32 0.0, %v9433
        %9435 = vmatmul.bf16.gmra.mxu0 %v9364
        %v9436 = vpop.f32.mrf.mxu0
        %v9437 = vadd.f32 0.0, %v9436
        %v9438 = vpop.f32.mrf.mxu0
        %v9439 = vadd.f32 0.0, %v9438
        %9440 = vmatmul.bf16.gmra.mxu0 %v9367
        %v9441 = vpop.f32.mrf.mxu0
        %v9442 = vadd.f32 0.0, %v9441
        %v9443 = vpop.f32.mrf.mxu0
        %v9444 = vadd.f32 0.0, %v9443
        %9445 = vmatmul.bf16.gmra.mxu0 %v9370
        %v9446 = vpop.f32.mrf.mxu0
        %v9447 = vadd.f32 0.0, %v9446
        %v9448 = vpop.f32.mrf.mxu0
        %v9449 = vadd.f32 0.0, %v9448
        %9450 = vmatmul.bf16.gmra.mxu0 %v9373
        %v9451 = vpop.f32.mrf.mxu0
        %v9452 = vadd.f32 0.0, %v9451
        %v9453 = vpop.f32.mrf.mxu0
        %v9454 = vadd.f32 0.0, %v9453
        %9455 = vmatmul.bf16.gmra.mxu0 %v9376
        %v9456 = vpop.f32.mrf.mxu0
        %v9457 = vadd.f32 0.0, %v9456
        %v9458 = vpop.f32.mrf.mxu0
        %v9459 = vadd.f32 0.0, %v9458
        %9460 = vmatmul.bf16.gmra.mxu0 %v9379
        %v9461 = vpop.f32.mrf.mxu0
        %v9462 = vadd.f32 0.0, %v9461
        %v9463 = vpop.f32.mrf.mxu0
        %v9464 = vadd.f32 0.0, %v9463
        %9465 = vmatmul.bf16.gmra.mxu0 %v9382
        %v9466 = vpop.f32.mrf.mxu0
        %v9467 = vadd.f32 0.0, %v9466
        %v9468 = vpop.f32.mrf.mxu0
        %v9469 = vadd.f32 0.0, %v9468
        %9470 = vmatmul.bf16.gmra.mxu0 %v9385
        %v9471 = vpop.f32.mrf.mxu0
        %v9472 = vadd.f32 0.0, %v9471
        %v9473 = vpop.f32.mrf.mxu0
        %v9474 = vadd.f32 0.0, %v9473
        %9475 = vdwg.mxu0
        %v9508 = vunpack.c.l.b16 %v9130
        %v9509 = vunpack.c.l.b16 %v9131
        %v9510 = vunpack.c.l.b16 %v9132
        %v9511 = vunpack.c.l.b16 %v9133
        %v9512 = vunpack.c.l.b16 %v9134
        %v9513 = vunpack.c.l.b16 %v9135
        %v9514 = vunpack.c.l.b16 %v9136
        %v9515 = vunpack.c.l.b16 %v9137
        %v9516 = vunpack.c.l.b16 %v9138
        %v9517 = vunpack.c.l.b16 %v9139
        %v9518 = vunpack.c.l.b16 %v9140
        %v9519 = vunpack.c.l.b16 %v9141
        %v9520 = vunpack.c.l.b16 %v9142
        %v9521 = vunpack.c.l.b16 %v9143
        %v9522 = vunpack.c.l.b16 %v9144
        %v9523 = vunpack.c.l.b16 %v9145
        %v9524 = vunpack.c.l.b16 %v9146
        %v9525 = vunpack.c.l.b16 %v9147
        %v9526 = vunpack.c.l.b16 %v9148
        %v9527 = vunpack.c.l.b16 %v9149
        %v9528 = vunpack.c.l.b16 %v9150
        %v9529 = vunpack.c.l.b16 %v9151
        %v9530 = vunpack.c.l.b16 %v9152
        %v9531 = vunpack.c.l.b16 %v9153
        %v9532 = vunpack.c.l.b16 %v9154
        %v9533 = vunpack.c.l.b16 %v9155
        %v9534 = vunpack.c.l.b16 %v9156
        %v9535 = vunpack.c.l.b16 %v9157
        %v9536 = vunpack.c.l.b16 %v9158
        %v9537 = vunpack.c.l.b16 %v9159
        %v9538 = vunpack.c.l.b16 %v9160
        %v9539 = vunpack.c.l.b16 %v9161
        %v9540 = vpack.c.b16 %v9509, %v9508
        %v9541 = vpack.c.b16 %v9511, %v9510
        %v9542 = vpack.c.b16 %v9513, %v9512
        %v9543 = vpack.c.b16 %v9515, %v9514
        %v9544 = vpack.c.b16 %v9517, %v9516
        %v9545 = vpack.c.b16 %v9519, %v9518
        %v9546 = vpack.c.b16 %v9521, %v9520
        %v9547 = vpack.c.b16 %v9523, %v9522
        %v9548 = vpack.c.b16 %v9525, %v9524
        %v9549 = vpack.c.b16 %v9527, %v9526
        %v9550 = vpack.c.b16 %v9529, %v9528
        %v9551 = vpack.c.b16 %v9531, %v9530
        %v9552 = vpack.c.b16 %v9533, %v9532
        %v9553 = vpack.c.b16 %v9535, %v9534
        %v9554 = vpack.c.b16 %v9537, %v9536
        %v9555 = vpack.c.b16 %v9539, %v9538
        %v9560 = vunpack.c.l.b16 %v9238
        %v9561 = vunpack.c.l.b16 %v9239
        %v9562 = vunpack.c.l.b16 %v9240
        %v9563 = vunpack.c.l.b16 %v9241
        %v9564 = vpack.c.b16 %v9561, %v9560
        %v9565 = vpack.c.b16 %v9563, %v9562
        %v9569 = vsel %vm588, %v9540, 0
        %v9572 = vsel %vm588, %v9541, 0
        %v9575 = vsel %vm588, %v9542, 0
        %v9578 = vsel %vm588, %v9543, 0
        %v9581 = vsel %vm588, %v9544, 0
        %v9584 = vsel %vm588, %v9545, 0
        %v9587 = vsel %vm588, %v9546, 0
        %v9590 = vsel %vm588, %v9547, 0
        %v9593 = vsel %vm588, %v9548, 0
        %v9596 = vsel %vm588, %v9549, 0
        %v9599 = vsel %vm588, %v9550, 0
        %v9602 = vsel %vm588, %v9551, 0
        %v9605 = vsel %vm588, %v9552, 0
        %v9608 = vsel %vm588, %v9553, 0
        %v9611 = vsel %vm588, %v9554, 0
        %v9614 = vsel %vm588, %v9555, 0
        %9616 = vmatpush.bf16.msra.mxu0 0
        %9617 = vmatpush.bf16.msra.mxu0 0
        %9618 = vmatpush.bf16.msra.mxu0 0
        %9619 = vmatpush.bf16.msra.mxu0 0
        %9620 = vmatpush.bf16.msra.mxu0 0
        %9621 = vmatpush.bf16.msra.mxu0 0
        %9622 = vmatpush.bf16.msra.mxu0 %v9565
        %9623 = vmatpush.bf16.msra.mxu0 %v9564
        %9624 = vmatmul.bf16.gmra.mxu0 %v9569
        %v9625 = vpop.f32.mrf.mxu0
        %v9626 = vadd.f32 %v9397, %v9625
        %v9627 = vpop.f32.mrf.mxu0
        %v9628 = vadd.f32 %v9399, %v9627
        %9629 = vmatmul.bf16.gmra.mxu0 %v9572
        %v9630 = vpop.f32.mrf.mxu0
        %v9631 = vadd.f32 %v9402, %v9630
        %v9632 = vpop.f32.mrf.mxu0
        %v9633 = vadd.f32 %v9404, %v9632
        %9634 = vmatmul.bf16.gmra.mxu0 %v9575
        %v9635 = vpop.f32.mrf.mxu0
        %v9636 = vadd.f32 %v9407, %v9635
        %v9637 = vpop.f32.mrf.mxu0
        %v9638 = vadd.f32 %v9409, %v9637
        %9639 = vmatmul.bf16.gmra.mxu0 %v9578
        %v9640 = vpop.f32.mrf.mxu0
        %v9641 = vadd.f32 %v9412, %v9640
        %v9642 = vpop.f32.mrf.mxu0
        %v9643 = vadd.f32 %v9414, %v9642
        %9644 = vmatmul.bf16.gmra.mxu0 %v9581
        %v9645 = vpop.f32.mrf.mxu0
        %v9646 = vadd.f32 %v9417, %v9645
        %v9647 = vpop.f32.mrf.mxu0
        %v9648 = vadd.f32 %v9419, %v9647
        %9649 = vmatmul.bf16.gmra.mxu0 %v9584
        %v9650 = vpop.f32.mrf.mxu0
        %v9651 = vadd.f32 %v9422, %v9650
        %v9652 = vpop.f32.mrf.mxu0
        %v9653 = vadd.f32 %v9424, %v9652
        %9654 = vmatmul.bf16.gmra.mxu0 %v9587
        %v9655 = vpop.f32.mrf.mxu0
        %v9656 = vadd.f32 %v9427, %v9655
        %v9657 = vpop.f32.mrf.mxu0
        %v9658 = vadd.f32 %v9429, %v9657
        %9659 = vmatmul.bf16.gmra.mxu0 %v9590
        %v9660 = vpop.f32.mrf.mxu0
        %v9661 = vadd.f32 %v9432, %v9660
        %v9662 = vpop.f32.mrf.mxu0
        %v9663 = vadd.f32 %v9434, %v9662
        %9664 = vmatmul.bf16.gmra.mxu0 %v9593
        %v9665 = vpop.f32.mrf.mxu0
        %v9666 = vadd.f32 %v9437, %v9665
        %v9667 = vpop.f32.mrf.mxu0
        %v9668 = vadd.f32 %v9439, %v9667
        %9669 = vmatmul.bf16.gmra.mxu0 %v9596
        %v9670 = vpop.f32.mrf.mxu0
        %v9671 = vadd.f32 %v9442, %v9670
        %v9672 = vpop.f32.mrf.mxu0
        %v9673 = vadd.f32 %v9444, %v9672
        %9674 = vmatmul.bf16.gmra.mxu0 %v9599
        %v9675 = vpop.f32.mrf.mxu0
        %v9676 = vadd.f32 %v9447, %v9675
        %v9677 = vpop.f32.mrf.mxu0
        %v9678 = vadd.f32 %v9449, %v9677
        %9679 = vmatmul.bf16.gmra.mxu0 %v9602
        %v9680 = vpop.f32.mrf.mxu0
        %v9681 = vadd.f32 %v9452, %v9680
        %v9682 = vpop.f32.mrf.mxu0
        %v9683 = vadd.f32 %v9454, %v9682
        %9684 = vmatmul.bf16.gmra.mxu0 %v9605
        %v9685 = vpop.f32.mrf.mxu0
        %v9686 = vadd.f32 %v9457, %v9685
        %v9687 = vpop.f32.mrf.mxu0
        %v9688 = vadd.f32 %v9459, %v9687
        %9689 = vmatmul.bf16.gmra.mxu0 %v9608
        %v9690 = vpop.f32.mrf.mxu0
        %v9691 = vadd.f32 %v9462, %v9690
        %v9692 = vpop.f32.mrf.mxu0
        %v9693 = vadd.f32 %v9464, %v9692
        %9694 = vmatmul.bf16.gmra.mxu0 %v9611
        %v9695 = vpop.f32.mrf.mxu0
        %v9696 = vadd.f32 %v9467, %v9695
        %v9697 = vpop.f32.mrf.mxu0
        %v9698 = vadd.f32 %v9469, %v9697
        %9699 = vmatmul.bf16.gmra.mxu0 %v9614
        %v9700 = vpop.f32.mrf.mxu0
        %v9701 = vadd.f32 %v9472, %v9700
        %v9702 = vpop.f32.mrf.mxu0
        %v9703 = vadd.f32 %v9474, %v9702
        %9704 = vdwg.mxu0
        %s9705 = scalar_lea.vmem [#allocation18], 32
        %v9706 = vld [vmem:[%s9705] sm:$0xf]
        %v9707 = vld [vmem:[%s9705 + $0x4] sm:$0xf]
        %v9708 = vld [vmem:[%s9705 + $0x8] sm:$0xf]
        %v9709 = vld [vmem:[%s9705 + $0xc] sm:$0xf]
        %v9742 = vunpack.c.l.b16 %v9202
        %v9743 = vunpack.c.l.b16 %v9203
        %v9744 = vunpack.c.l.b16 %v9204
        %v9745 = vunpack.c.l.b16 %v9205
        %v9746 = vunpack.c.l.b16 %v9206
        %v9747 = vunpack.c.l.b16 %v9207
        %v9748 = vunpack.c.l.b16 %v9208
        %v9749 = vunpack.c.l.b16 %v9209
        %v9750 = vunpack.c.l.b16 %v9210
        %v9751 = vunpack.c.l.b16 %v9211
        %v9752 = vunpack.c.l.b16 %v9212
        %v9753 = vunpack.c.l.b16 %v9213
        %v9754 = vunpack.c.l.b16 %v9214
        %v9755 = vunpack.c.l.b16 %v9215
        %v9756 = vunpack.c.l.b16 %v9216
        %v9757 = vunpack.c.l.b16 %v9217
        %v9758 = vunpack.c.l.b16 %v9218
        %v9759 = vunpack.c.l.b16 %v9219
        %v9760 = vunpack.c.l.b16 %v9220
        %v9761 = vunpack.c.l.b16 %v9221
        %v9762 = vunpack.c.l.b16 %v9222
        %v9763 = vunpack.c.l.b16 %v9223
        %v9764 = vunpack.c.l.b16 %v9224
        %v9765 = vunpack.c.l.b16 %v9225
        %v9766 = vunpack.c.l.b16 %v9226
        %v9767 = vunpack.c.l.b16 %v9227
        %v9768 = vunpack.c.l.b16 %v9228
        %v9769 = vunpack.c.l.b16 %v9229
        %v9770 = vunpack.c.l.b16 %v9230
        %v9771 = vunpack.c.l.b16 %v9231
        %v9772 = vunpack.c.l.b16 %v9232
        %v9773 = vunpack.c.l.b16 %v9233
        %v9774 = vpack.c.b16 %v9743, %v9742
        %v9775 = vpack.c.b16 %v9745, %v9744
        %v9776 = vpack.c.b16 %v9747, %v9746
        %v9777 = vpack.c.b16 %v9749, %v9748
        %v9778 = vpack.c.b16 %v9751, %v9750
        %v9779 = vpack.c.b16 %v9753, %v9752
        %v9780 = vpack.c.b16 %v9755, %v9754
        %v9781 = vpack.c.b16 %v9757, %v9756
        %v9782 = vpack.c.b16 %v9759, %v9758
        %v9783 = vpack.c.b16 %v9761, %v9760
        %v9784 = vpack.c.b16 %v9763, %v9762
        %v9785 = vpack.c.b16 %v9765, %v9764
        %v9786 = vpack.c.b16 %v9767, %v9766
        %v9787 = vpack.c.b16 %v9769, %v9768
        %v9788 = vpack.c.b16 %v9771, %v9770
        %v9789 = vpack.c.b16 %v9773, %v9772
        %v9794 = vunpack.c.l.b16 %v9706
        %v9795 = vunpack.c.l.b16 %v9707
        %v9796 = vunpack.c.l.b16 %v9708
        %v9797 = vunpack.c.l.b16 %v9709
        %v9798 = vpack.c.b16 %v9795, %v9794
        %v9799 = vpack.c.b16 %v9797, %v9796
        %v9803 = vsel %vm588, %v9774, 0
        %v9806 = vsel %vm588, %v9775, 0
        %v9809 = vsel %vm588, %v9776, 0
        %v9812 = vsel %vm588, %v9777, 0
        %v9815 = vsel %vm588, %v9778, 0
        %v9818 = vsel %vm588, %v9779, 0
        %v9821 = vsel %vm588, %v9780, 0
        %v9824 = vsel %vm588, %v9781, 0
        %v9827 = vsel %vm588, %v9782, 0
        %v9830 = vsel %vm588, %v9783, 0
        %v9833 = vsel %vm588, %v9784, 0
        %v9836 = vsel %vm588, %v9785, 0
        %v9839 = vsel %vm588, %v9786, 0
        %v9842 = vsel %vm588, %v9787, 0
        %v9845 = vsel %vm588, %v9788, 0
        %v9848 = vsel %vm588, %v9789, 0
        %9850 = vmatpush.bf16.msra.mxu0 0
        %9851 = vmatpush.bf16.msra.mxu0 0
        %9852 = vmatpush.bf16.msra.mxu0 0
        %9853 = vmatpush.bf16.msra.mxu0 0
        %9854 = vmatpush.bf16.msra.mxu0 0
        %9855 = vmatpush.bf16.msra.mxu0 0
        %9856 = vmatpush.bf16.msra.mxu0 %v9799
        %9857 = vmatpush.bf16.msra.mxu0 %v9798
        %9858 = vmatmul.bf16.gmra.mxu0 %v9803
        %v9859 = vpop.f32.mrf.mxu0
        %v9860 = vadd.f32 0.0, %v9859
        %v9861 = vpop.f32.mrf.mxu0
        %v9862 = vadd.f32 0.0, %v9861
        %9863 = vmatmul.bf16.gmra.mxu0 %v9806
        %v9864 = vpop.f32.mrf.mxu0
        %v9865 = vadd.f32 0.0, %v9864
        %v9866 = vpop.f32.mrf.mxu0
        %v9867 = vadd.f32 0.0, %v9866
        %9868 = vmatmul.bf16.gmra.mxu0 %v9809
        %v9869 = vpop.f32.mrf.mxu0
        %v9870 = vadd.f32 0.0, %v9869
        %v9871 = vpop.f32.mrf.mxu0
        %v9872 = vadd.f32 0.0, %v9871
        %9873 = vmatmul.bf16.gmra.mxu0 %v9812
        %v9874 = vpop.f32.mrf.mxu0
        %v9875 = vadd.f32 0.0, %v9874
        %v9876 = vpop.f32.mrf.mxu0
        %v9877 = vadd.f32 0.0, %v9876
        %9878 = vmatmul.bf16.gmra.mxu0 %v9815
        %v9879 = vpop.f32.mrf.mxu0
        %v9880 = vadd.f32 0.0, %v9879
        %v9881 = vpop.f32.mrf.mxu0
        %v9882 = vadd.f32 0.0, %v9881
        %9883 = vmatmul.bf16.gmra.mxu0 %v9818
        %v9884 = vpop.f32.mrf.mxu0
        %v9885 = vadd.f32 0.0, %v9884
        %v9886 = vpop.f32.mrf.mxu0
        %v9887 = vadd.f32 0.0, %v9886
        %9888 = vmatmul.bf16.gmra.mxu0 %v9821
        %v9889 = vpop.f32.mrf.mxu0
        %v9890 = vadd.f32 0.0, %v9889
        %v9891 = vpop.f32.mrf.mxu0
        %v9892 = vadd.f32 0.0, %v9891
        %9893 = vmatmul.bf16.gmra.mxu0 %v9824
        %v9894 = vpop.f32.mrf.mxu0
        %v9895 = vadd.f32 0.0, %v9894
        %v9896 = vpop.f32.mrf.mxu0
        %v9897 = vadd.f32 0.0, %v9896
        %9898 = vmatmul.bf16.gmra.mxu0 %v9827
        %v9899 = vpop.f32.mrf.mxu0
        %v9900 = vadd.f32 0.0, %v9899
        %v9901 = vpop.f32.mrf.mxu0
        %v9902 = vadd.f32 0.0, %v9901
        %9903 = vmatmul.bf16.gmra.mxu0 %v9830
        %v9904 = vpop.f32.mrf.mxu0
        %v9905 = vadd.f32 0.0, %v9904
        %v9906 = vpop.f32.mrf.mxu0
        %v9907 = vadd.f32 0.0, %v9906
        %9908 = vmatmul.bf16.gmra.mxu0 %v9833
        %v9909 = vpop.f32.mrf.mxu0
        %v9910 = vadd.f32 0.0, %v9909
        %v9911 = vpop.f32.mrf.mxu0
        %v9912 = vadd.f32 0.0, %v9911
        %9913 = vmatmul.bf16.gmra.mxu0 %v9836
        %v9914 = vpop.f32.mrf.mxu0
        %v9915 = vadd.f32 0.0, %v9914
        %v9916 = vpop.f32.mrf.mxu0
        %v9917 = vadd.f32 0.0, %v9916
        %9918 = vmatmul.bf16.gmra.mxu0 %v9839
        %v9919 = vpop.f32.mrf.mxu0
        %v9920 = vadd.f32 0.0, %v9919
        %v9921 = vpop.f32.mrf.mxu0
        %v9922 = vadd.f32 0.0, %v9921
        %9923 = vmatmul.bf16.gmra.mxu0 %v9842
        %v9924 = vpop.f32.mrf.mxu0
        %v9925 = vadd.f32 0.0, %v9924
        %v9926 = vpop.f32.mrf.mxu0
        %v9927 = vadd.f32 0.0, %v9926
        %9928 = vmatmul.bf16.gmra.mxu0 %v9845
        %v9929 = vpop.f32.mrf.mxu0
        %v9930 = vadd.f32 0.0, %v9929
        %v9931 = vpop.f32.mrf.mxu0
        %v9932 = vadd.f32 0.0, %v9931
        %9933 = vmatmul.bf16.gmra.mxu0 %v9848
        %v9934 = vpop.f32.mrf.mxu0
        %v9935 = vadd.f32 0.0, %v9934
        %v9936 = vpop.f32.mrf.mxu0
        %v9937 = vadd.f32 0.0, %v9936
        %9938 = vdwg.mxu0
        %v9939 = vadd.f32 %v9626, %v9860
        %v9940 = vadd.f32 %v9628, %v9862
        %v9941 = vadd.f32 %v9631, %v9865
        %v9942 = vadd.f32 %v9633, %v9867
        %v9943 = vadd.f32 %v9636, %v9870
        %v9944 = vadd.f32 %v9638, %v9872
        %v9945 = vadd.f32 %v9641, %v9875
        %v9946 = vadd.f32 %v9643, %v9877
        %v9947 = vadd.f32 %v9646, %v9880
        %v9948 = vadd.f32 %v9648, %v9882
        %v9949 = vadd.f32 %v9651, %v9885
        %v9950 = vadd.f32 %v9653, %v9887
        %v9951 = vadd.f32 %v9656, %v9890
        %v9952 = vadd.f32 %v9658, %v9892
        %v9953 = vadd.f32 %v9661, %v9895
        %v9954 = vadd.f32 %v9663, %v9897
        %v9955 = vadd.f32 %v9666, %v9900
        %v9956 = vadd.f32 %v9668, %v9902
        %v9957 = vadd.f32 %v9671, %v9905
        %v9958 = vadd.f32 %v9673, %v9907
        %v9959 = vadd.f32 %v9676, %v9910
        %v9960 = vadd.f32 %v9678, %v9912
        %v9961 = vadd.f32 %v9681, %v9915
        %v9962 = vadd.f32 %v9683, %v9917
        %v9963 = vadd.f32 %v9686, %v9920
        %v9964 = vadd.f32 %v9688, %v9922
        %v9965 = vadd.f32 %v9691, %v9925
        %v9966 = vadd.f32 %v9693, %v9927
        %v9967 = vadd.f32 %v9696, %v9930
        %v9968 = vadd.f32 %v9698, %v9932
        %v9969 = vadd.f32 %v9701, %v9935
        %v9970 = vadd.f32 %v9703, %v9937
        %s9971 = scalar_lea.vmem [#allocation18], 48
        %v9972 = vld [vmem:[%s9971] sm:$0xf]
        %v9973 = vld [vmem:[%s9971 + $0x4] sm:$0xf]
        %v9974 = vld [vmem:[%s9971 + $0x8] sm:$0xf]
        %v9975 = vld [vmem:[%s9971 + $0xc] sm:$0xf]
        %v9978 = vunpack.c.l.b16 %v9162
        %v9979 = vunpack.c.l.b16 %v9163
        %v9980 = vpack.c.b16 %v9979, %v9978
        %v9985 = vunpack.c.l.b16 %v9972
        %v9986 = vunpack.c.l.b16 %v9973
        %v9987 = vunpack.c.l.b16 %v9974
        %v9988 = vunpack.c.l.b16 %v9975
        %v9989 = vpack.c.b16 %v9986, %v9985
        %v9990 = vpack.c.b16 %v9988, %v9987
        %v9994 = vsel %vm588, %v9980, 0
        %9996 = vmatpush.bf16.msra.mxu0 0
        %9997 = vmatpush.bf16.msra.mxu0 0
        %9998 = vmatpush.bf16.msra.mxu0 0
        %9999 = vmatpush.bf16.msra.mxu0 0
        %10000 = vmatpush.bf16.msra.mxu0 0
        %10001 = vmatpush.bf16.msra.mxu0 0
        %10002 = vmatpush.bf16.msra.mxu0 %v9990
        %10003 = vmatpush.bf16.msra.mxu0 %v9989
        %10004 = vmatmul.bf16.gmra.mxu0 %v9572
        %v10005 = vpop.f32.mrf.mxu0
        %v10006 = vadd.f32 0.0, %v10005
        %v10007 = vpop.f32.mrf.mxu0
        %v10008 = vadd.f32 0.0, %v10007
        %10009 = vmatmul.bf16.gmra.mxu0 %v9575
        %v10010 = vpop.f32.mrf.mxu0
        %v10011 = vadd.f32 0.0, %v10010
        %v10012 = vpop.f32.mrf.mxu0
        %v10013 = vadd.f32 0.0, %v10012
        %10014 = vmatmul.bf16.gmra.mxu0 %v9578
        %v10015 = vpop.f32.mrf.mxu0
        %v10016 = vadd.f32 0.0, %v10015
        %v10017 = vpop.f32.mrf.mxu0
        %v10018 = vadd.f32 0.0, %v10017
        %10019 = vmatmul.bf16.gmra.mxu0 %v9581
        %v10020 = vpop.f32.mrf.mxu0
        %v10021 = vadd.f32 0.0, %v10020
        %v10022 = vpop.f32.mrf.mxu0
        %v10023 = vadd.f32 0.0, %v10022
        %10024 = vmatmul.bf16.gmra.mxu0 %v9584
        %v10025 = vpop.f32.mrf.mxu0
        %v10026 = vadd.f32 0.0, %v10025
        %v10027 = vpop.f32.mrf.mxu0
        %v10028 = vadd.f32 0.0, %v10027
        %10029 = vmatmul.bf16.gmra.mxu0 %v9587
        %v10030 = vpop.f32.mrf.mxu0
        %v10031 = vadd.f32 0.0, %v10030
        %v10032 = vpop.f32.mrf.mxu0
        %v10033 = vadd.f32 0.0, %v10032
        %10034 = vmatmul.bf16.gmra.mxu0 %v9590
        %v10035 = vpop.f32.mrf.mxu0
        %v10036 = vadd.f32 0.0, %v10035
        %v10037 = vpop.f32.mrf.mxu0
        %v10038 = vadd.f32 0.0, %v10037
        %10039 = vmatmul.bf16.gmra.mxu0 %v9593
        %v10040 = vpop.f32.mrf.mxu0
        %v10041 = vadd.f32 0.0, %v10040
        %v10042 = vpop.f32.mrf.mxu0
        %v10043 = vadd.f32 0.0, %v10042
        %10044 = vmatmul.bf16.gmra.mxu0 %v9596
        %v10045 = vpop.f32.mrf.mxu0
        %v10046 = vadd.f32 0.0, %v10045
        %v10047 = vpop.f32.mrf.mxu0
        %v10048 = vadd.f32 0.0, %v10047
        %10049 = vmatmul.bf16.gmra.mxu0 %v9599
        %v10050 = vpop.f32.mrf.mxu0
        %v10051 = vadd.f32 0.0, %v10050
        %v10052 = vpop.f32.mrf.mxu0
        %v10053 = vadd.f32 0.0, %v10052
        %10054 = vmatmul.bf16.gmra.mxu0 %v9602
        %v10055 = vpop.f32.mrf.mxu0
        %v10056 = vadd.f32 0.0, %v10055
        %v10057 = vpop.f32.mrf.mxu0
        %v10058 = vadd.f32 0.0, %v10057
        %10059 = vmatmul.bf16.gmra.mxu0 %v9605
        %v10060 = vpop.f32.mrf.mxu0
        %v10061 = vadd.f32 0.0, %v10060
        %v10062 = vpop.f32.mrf.mxu0
        %v10063 = vadd.f32 0.0, %v10062
        %10064 = vmatmul.bf16.gmra.mxu0 %v9608
        %v10065 = vpop.f32.mrf.mxu0
        %v10066 = vadd.f32 0.0, %v10065
        %v10067 = vpop.f32.mrf.mxu0
        %v10068 = vadd.f32 0.0, %v10067
        %10069 = vmatmul.bf16.gmra.mxu0 %v9611
        %v10070 = vpop.f32.mrf.mxu0
        %v10071 = vadd.f32 0.0, %v10070
        %v10072 = vpop.f32.mrf.mxu0
        %v10073 = vadd.f32 0.0, %v10072
        %10074 = vmatmul.bf16.gmra.mxu0 %v9614
        %v10075 = vpop.f32.mrf.mxu0
        %v10076 = vadd.f32 0.0, %v10075
        %v10077 = vpop.f32.mrf.mxu0
        %v10078 = vadd.f32 0.0, %v10077
        %10079 = vmatmul.bf16.gmra.mxu0 %v9994
        %v10080 = vpop.f32.mrf.mxu0
        %v10081 = vadd.f32 0.0, %v10080
        %v10082 = vpop.f32.mrf.mxu0
        %v10083 = vadd.f32 0.0, %v10082
        %10084 = vdwg.mxu0
        %v10085 = vadd.f32 %v9939, %v10006
        %v10086 = vadd.f32 %v9940, %v10008
        %v10087 = vadd.f32 %v9941, %v10011
        %v10088 = vadd.f32 %v9942, %v10013
        %v10089 = vadd.f32 %v9943, %v10016
        %v10090 = vadd.f32 %v9944, %v10018
        %v10091 = vadd.f32 %v9945, %v10021
        %v10092 = vadd.f32 %v9946, %v10023
        %v10093 = vadd.f32 %v9947, %v10026
        %v10094 = vadd.f32 %v9948, %v10028
        %v10095 = vadd.f32 %v9949, %v10031
        %v10096 = vadd.f32 %v9950, %v10033
        %v10097 = vadd.f32 %v9951, %v10036
        %v10098 = vadd.f32 %v9952, %v10038
        %v10099 = vadd.f32 %v9953, %v10041
        %v10100 = vadd.f32 %v9954, %v10043
        %v10101 = vadd.f32 %v9955, %v10046
        %v10102 = vadd.f32 %v9956, %v10048
        %v10103 = vadd.f32 %v9957, %v10051
        %v10104 = vadd.f32 %v9958, %v10053
        %v10105 = vadd.f32 %v9959, %v10056
        %v10106 = vadd.f32 %v9960, %v10058
        %v10107 = vadd.f32 %v9961, %v10061
        %v10108 = vadd.f32 %v9962, %v10063
        %v10109 = vadd.f32 %v9963, %v10066
        %v10110 = vadd.f32 %v9964, %v10068
        %v10111 = vadd.f32 %v9965, %v10071
        %v10112 = vadd.f32 %v9966, %v10073
        %v10113 = vadd.f32 %v9967, %v10076
        %v10114 = vadd.f32 %v9968, %v10078
        %v10115 = vadd.f32 %v9969, %v10081
        %v10116 = vadd.f32 %v9970, %v10083
        %s10117 = scalar_lea.vmem [#allocation18], 64
        %v10118 = vld [vmem:[%s10117] sm:$0xf]
        %v10119 = vld [vmem:[%s10117 + $0x4] sm:$0xf]
        %v10120 = vld [vmem:[%s10117 + $0x8] sm:$0xf]
        %v10121 = vld [vmem:[%s10117 + $0xc] sm:$0xf]
        %v10124 = vunpack.c.l.b16 %v9198
        %v10125 = vunpack.c.l.b16 %v9199
        %v10126 = vpack.c.b16 %v10125, %v10124
        %v10131 = vunpack.c.l.b16 %v10118
        %v10132 = vunpack.c.l.b16 %v10119
        %v10133 = vunpack.c.l.b16 %v10120
        %v10134 = vunpack.c.l.b16 %v10121
        %v10135 = vpack.c.b16 %v10132, %v10131
        %v10136 = vpack.c.b16 %v10134, %v10133
        %v10140 = vsel %vm588, %v10126, 0
        %10142 = vmatpush.bf16.msra.mxu0 0
        %10143 = vmatpush.bf16.msra.mxu0 0
        %10144 = vmatpush.bf16.msra.mxu0 0
        %10145 = vmatpush.bf16.msra.mxu0 0
        %10146 = vmatpush.bf16.msra.mxu0 0
        %10147 = vmatpush.bf16.msra.mxu0 0
        %10148 = vmatpush.bf16.msra.mxu0 %v10136
        %10149 = vmatpush.bf16.msra.mxu0 %v10135
        %10150 = vmatmul.bf16.gmra.mxu0 %v9343
        %v10151 = vpop.f32.mrf.mxu0
        %v10152 = vadd.f32 0.0, %v10151
        %v10153 = vpop.f32.mrf.mxu0
        %v10154 = vadd.f32 0.0, %v10153
        %10155 = vmatmul.bf16.gmra.mxu0 %v9346
        %v10156 = vpop.f32.mrf.mxu0
        %v10157 = vadd.f32 0.0, %v10156
        %v10158 = vpop.f32.mrf.mxu0
        %v10159 = vadd.f32 0.0, %v10158
        %10160 = vmatmul.bf16.gmra.mxu0 %v9349
        %v10161 = vpop.f32.mrf.mxu0
        %v10162 = vadd.f32 0.0, %v10161
        %v10163 = vpop.f32.mrf.mxu0
        %v10164 = vadd.f32 0.0, %v10163
        %10165 = vmatmul.bf16.gmra.mxu0 %v9352
        %v10166 = vpop.f32.mrf.mxu0
        %v10167 = vadd.f32 0.0, %v10166
        %v10168 = vpop.f32.mrf.mxu0
        %v10169 = vadd.f32 0.0, %v10168
        %10170 = vmatmul.bf16.gmra.mxu0 %v9355
        %v10171 = vpop.f32.mrf.mxu0
        %v10172 = vadd.f32 0.0, %v10171
        %v10173 = vpop.f32.mrf.mxu0
        %v10174 = vadd.f32 0.0, %v10173
        %10175 = vmatmul.bf16.gmra.mxu0 %v9358
        %v10176 = vpop.f32.mrf.mxu0
        %v10177 = vadd.f32 0.0, %v10176
        %v10178 = vpop.f32.mrf.mxu0
        %v10179 = vadd.f32 0.0, %v10178
        %10180 = vmatmul.bf16.gmra.mxu0 %v9361
        %v10181 = vpop.f32.mrf.mxu0
        %v10182 = vadd.f32 0.0, %v10181
        %v10183 = vpop.f32.mrf.mxu0
        %v10184 = vadd.f32 0.0, %v10183
        %10185 = vmatmul.bf16.gmra.mxu0 %v9364
        %v10186 = vpop.f32.mrf.mxu0
        %v10187 = vadd.f32 0.0, %v10186
        %v10188 = vpop.f32.mrf.mxu0
        %v10189 = vadd.f32 0.0, %v10188
        %10190 = vmatmul.bf16.gmra.mxu0 %v9367
        %v10191 = vpop.f32.mrf.mxu0
        %v10192 = vadd.f32 0.0, %v10191
        %v10193 = vpop.f32.mrf.mxu0
        %v10194 = vadd.f32 0.0, %v10193
        %10195 = vmatmul.bf16.gmra.mxu0 %v9370
        %v10196 = vpop.f32.mrf.mxu0
        %v10197 = vadd.f32 0.0, %v10196
        %v10198 = vpop.f32.mrf.mxu0
        %v10199 = vadd.f32 0.0, %v10198
        %10200 = vmatmul.bf16.gmra.mxu0 %v9373
        %v10201 = vpop.f32.mrf.mxu0
        %v10202 = vadd.f32 0.0, %v10201
        %v10203 = vpop.f32.mrf.mxu0
        %v10204 = vadd.f32 0.0, %v10203
        %10205 = vmatmul.bf16.gmra.mxu0 %v9376
        %v10206 = vpop.f32.mrf.mxu0
        %v10207 = vadd.f32 0.0, %v10206
        %v10208 = vpop.f32.mrf.mxu0
        %v10209 = vadd.f32 0.0, %v10208
        %10210 = vmatmul.bf16.gmra.mxu0 %v9379
        %v10211 = vpop.f32.mrf.mxu0
        %v10212 = vadd.f32 0.0, %v10211
        %v10213 = vpop.f32.mrf.mxu0
        %v10214 = vadd.f32 0.0, %v10213
        %10215 = vmatmul.bf16.gmra.mxu0 %v9382
        %v10216 = vpop.f32.mrf.mxu0
        %v10217 = vadd.f32 0.0, %v10216
        %v10218 = vpop.f32.mrf.mxu0
        %v10219 = vadd.f32 0.0, %v10218
        %10220 = vmatmul.bf16.gmra.mxu0 %v9385
        %v10221 = vpop.f32.mrf.mxu0
        %v10222 = vadd.f32 0.0, %v10221
        %v10223 = vpop.f32.mrf.mxu0
        %v10224 = vadd.f32 0.0, %v10223
        %10225 = vmatmul.bf16.gmra.mxu0 %v10140
        %v10226 = vpop.f32.mrf.mxu0
        %v10227 = vadd.f32 0.0, %v10226
        %v10228 = vpop.f32.mrf.mxu0
        %v10229 = vadd.f32 0.0, %v10228
        %10230 = vdwg.mxu0
        %v10231 = vadd.f32 %v10085, %v10152
        %v10232 = vadd.f32 %v10086, %v10154
        %v10233 = vadd.f32 %v10087, %v10157
        %v10234 = vadd.f32 %v10088, %v10159
        %v10235 = vadd.f32 %v10089, %v10162
        %v10236 = vadd.f32 %v10090, %v10164
        %v10237 = vadd.f32 %v10091, %v10167
        %v10238 = vadd.f32 %v10092, %v10169
        %v10239 = vadd.f32 %v10093, %v10172
        %v10240 = vadd.f32 %v10094, %v10174
        %v10241 = vadd.f32 %v10095, %v10177
        %v10242 = vadd.f32 %v10096, %v10179
        %v10243 = vadd.f32 %v10097, %v10182
        %v10244 = vadd.f32 %v10098, %v10184
        %v10245 = vadd.f32 %v10099, %v10187
        %v10246 = vadd.f32 %v10100, %v10189
        %v10247 = vadd.f32 %v10101, %v10192
        %v10248 = vadd.f32 %v10102, %v10194
        %v10249 = vadd.f32 %v10103, %v10197
        %v10250 = vadd.f32 %v10104, %v10199
        %v10251 = vadd.f32 %v10105, %v10202
        %v10252 = vadd.f32 %v10106, %v10204
        %v10253 = vadd.f32 %v10107, %v10207
        %v10254 = vadd.f32 %v10108, %v10209
        %v10255 = vadd.f32 %v10109, %v10212
        %v10256 = vadd.f32 %v10110, %v10214
        %v10257 = vadd.f32 %v10111, %v10217
        %v10258 = vadd.f32 %v10112, %v10219
        %v10259 = vadd.f32 %v10113, %v10222
        %v10260 = vadd.f32 %v10114, %v10224
        %v10261 = vadd.f32 %v10115, %v10227
        %v10262 = vadd.f32 %v10116, %v10229
        %s10263 = scalar_lea.vmem [#allocation18], 80
        %v10264 = vld [vmem:[%s10263] sm:$0xf]
        %v10265 = vld [vmem:[%s10263 + $0x4] sm:$0xf]
        %v10266 = vld [vmem:[%s10263 + $0x8] sm:$0xf]
        %v10267 = vld [vmem:[%s10263 + $0xc] sm:$0xf]
        %v10270 = vunpack.c.l.b16 %v9234
        %v10271 = vunpack.c.l.b16 %v9235
        %v10272 = vpack.c.b16 %v10271, %v10270
        %v10277 = vunpack.c.l.b16 %v10264
        %v10278 = vunpack.c.l.b16 %v10265
        %v10279 = vunpack.c.l.b16 %v10266
        %v10280 = vunpack.c.l.b16 %v10267
        %v10281 = vpack.c.b16 %v10278, %v10277
        %v10282 = vpack.c.b16 %v10280, %v10279
        %v10286 = vsel %vm588, %v10272, 0
        %10288 = vmatpush.bf16.msra.mxu0 0
        %10289 = vmatpush.bf16.msra.mxu0 0
        %10290 = vmatpush.bf16.msra.mxu0 0
        %10291 = vmatpush.bf16.msra.mxu0 0
        %10292 = vmatpush.bf16.msra.mxu0 0
        %10293 = vmatpush.bf16.msra.mxu0 0
        %10294 = vmatpush.bf16.msra.mxu0 %v10282
        %10295 = vmatpush.bf16.msra.mxu0 %v10281
        %10296 = vmatmul.bf16.gmra.mxu0 %v9806
        %v10297 = vpop.f32.mrf.mxu0
        %v10298 = vadd.f32 0.0, %v10297
        %v10299 = vpop.f32.mrf.mxu0
        %v10300 = vadd.f32 0.0, %v10299
        %10301 = vmatmul.bf16.gmra.mxu0 %v9809
        %v10302 = vpop.f32.mrf.mxu0
        %v10303 = vadd.f32 0.0, %v10302
        %v10304 = vpop.f32.mrf.mxu0
        %v10305 = vadd.f32 0.0, %v10304
        %10306 = vmatmul.bf16.gmra.mxu0 %v9812
        %v10307 = vpop.f32.mrf.mxu0
        %v10308 = vadd.f32 0.0, %v10307
        %v10309 = vpop.f32.mrf.mxu0
        %v10310 = vadd.f32 0.0, %v10309
        %10311 = vmatmul.bf16.gmra.mxu0 %v9815
        %v10312 = vpop.f32.mrf.mxu0
        %v10313 = vadd.f32 0.0, %v10312
        %v10314 = vpop.f32.mrf.mxu0
        %v10315 = vadd.f32 0.0, %v10314
        %10316 = vmatmul.bf16.gmra.mxu0 %v9818
        %v10317 = vpop.f32.mrf.mxu0
        %v10318 = vadd.f32 0.0, %v10317
        %v10319 = vpop.f32.mrf.mxu0
        %v10320 = vadd.f32 0.0, %v10319
        %10321 = vmatmul.bf16.gmra.mxu0 %v9821
        %v10322 = vpop.f32.mrf.mxu0
        %v10323 = vadd.f32 0.0, %v10322
        %v10324 = vpop.f32.mrf.mxu0
        %v10325 = vadd.f32 0.0, %v10324
        %10326 = vmatmul.bf16.gmra.mxu0 %v9824
        %v10327 = vpop.f32.mrf.mxu0
        %v10328 = vadd.f32 0.0, %v10327
        %v10329 = vpop.f32.mrf.mxu0
        %v10330 = vadd.f32 0.0, %v10329
        %10331 = vmatmul.bf16.gmra.mxu0 %v9827
        %v10332 = vpop.f32.mrf.mxu0
        %v10333 = vadd.f32 0.0, %v10332
        %v10334 = vpop.f32.mrf.mxu0
        %v10335 = vadd.f32 0.0, %v10334
        %10336 = vmatmul.bf16.gmra.mxu0 %v9830
        %v10337 = vpop.f32.mrf.mxu0
        %v10338 = vadd.f32 0.0, %v10337
        %v10339 = vpop.f32.mrf.mxu0
        %v10340 = vadd.f32 0.0, %v10339
        %10341 = vmatmul.bf16.gmra.mxu0 %v9833
        %v10342 = vpop.f32.mrf.mxu0
        %v10343 = vadd.f32 0.0, %v10342
        %v10344 = vpop.f32.mrf.mxu0
        %v10345 = vadd.f32 0.0, %v10344
        %10346 = vmatmul.bf16.gmra.mxu0 %v9836
        %v10347 = vpop.f32.mrf.mxu0
        %v10348 = vadd.f32 0.0, %v10347
        %v10349 = vpop.f32.mrf.mxu0
        %v10350 = vadd.f32 0.0, %v10349
        %10351 = vmatmul.bf16.gmra.mxu0 %v9839
        %v10352 = vpop.f32.mrf.mxu0
        %v10353 = vadd.f32 0.0, %v10352
        %v10354 = vpop.f32.mrf.mxu0
        %v10355 = vadd.f32 0.0, %v10354
        %10356 = vmatmul.bf16.gmra.mxu0 %v9842
        %v10357 = vpop.f32.mrf.mxu0
        %v10358 = vadd.f32 0.0, %v10357
        %v10359 = vpop.f32.mrf.mxu0
        %v10360 = vadd.f32 0.0, %v10359
        %10361 = vmatmul.bf16.gmra.mxu0 %v9845
        %v10362 = vpop.f32.mrf.mxu0
        %v10363 = vadd.f32 0.0, %v10362
        %v10364 = vpop.f32.mrf.mxu0
        %v10365 = vadd.f32 0.0, %v10364
        %10366 = vmatmul.bf16.gmra.mxu0 %v9848
        %v10367 = vpop.f32.mrf.mxu0
        %v10368 = vadd.f32 0.0, %v10367
        %v10369 = vpop.f32.mrf.mxu0
        %v10370 = vadd.f32 0.0, %v10369
        %10371 = vmatmul.bf16.gmra.mxu0 %v10286
        %v10372 = vpop.f32.mrf.mxu0
        %v10373 = vadd.f32 0.0, %v10372
        %v10374 = vpop.f32.mrf.mxu0
        %v10375 = vadd.f32 0.0, %v10374
        %10376 = vdwg.mxu0
        %v10377 = vadd.f32 %v10231, %v10298
        %v10378 = vadd.f32 %v10232, %v10300
        %v10379 = vadd.f32 %v10233, %v10303
        %v10380 = vadd.f32 %v10234, %v10305
        %v10381 = vadd.f32 %v10235, %v10308
        %v10382 = vadd.f32 %v10236, %v10310
        %v10383 = vadd.f32 %v10237, %v10313
        %v10384 = vadd.f32 %v10238, %v10315
        %v10385 = vadd.f32 %v10239, %v10318
        %v10386 = vadd.f32 %v10240, %v10320
        %v10387 = vadd.f32 %v10241, %v10323
        %v10388 = vadd.f32 %v10242, %v10325
        %v10389 = vadd.f32 %v10243, %v10328
        %v10390 = vadd.f32 %v10244, %v10330
        %v10391 = vadd.f32 %v10245, %v10333
        %v10392 = vadd.f32 %v10246, %v10335
        %v10393 = vadd.f32 %v10247, %v10338
        %v10394 = vadd.f32 %v10248, %v10340
        %v10395 = vadd.f32 %v10249, %v10343
        %v10396 = vadd.f32 %v10250, %v10345
        %v10397 = vadd.f32 %v10251, %v10348
        %v10398 = vadd.f32 %v10252, %v10350
        %v10399 = vadd.f32 %v10253, %v10353
        %v10400 = vadd.f32 %v10254, %v10355
        %v10401 = vadd.f32 %v10255, %v10358
        %v10402 = vadd.f32 %v10256, %v10360
        %v10403 = vadd.f32 %v10257, %v10363
        %v10404 = vadd.f32 %v10258, %v10365
        %v10405 = vadd.f32 %v10259, %v10368
        %v10406 = vadd.f32 %v10260, %v10370
        %v10407 = vadd.f32 %v10261, %v10373
        %v10408 = vadd.f32 %v10262, %v10375
        %s10409 = scalar_lea.vmem [#allocation18], 96
        %v10410 = vld [vmem:[%s10409] sm:$0xf]
        %v10411 = vld [vmem:[%s10409 + $0x4] sm:$0xf]
        %v10412 = vld [vmem:[%s10409 + $0x8] sm:$0xf]
        %v10413 = vld [vmem:[%s10409 + $0xc] sm:$0xf]
        %v10416 = vunpack.c.l.b16 %v9164
        %v10417 = vunpack.c.l.b16 %v9165
        %v10418 = vpack.c.b16 %v10417, %v10416
        %v10423 = vunpack.c.l.b16 %v10410
        %v10424 = vunpack.c.l.b16 %v10411
        %v10425 = vunpack.c.l.b16 %v10412
        %v10426 = vunpack.c.l.b16 %v10413
        %v10427 = vpack.c.b16 %v10424, %v10423
        %v10428 = vpack.c.b16 %v10426, %v10425
        %v10432 = vsel %vm588, %v10418, 0
        %10434 = vmatpush.bf16.msra.mxu0 0
        %10435 = vmatpush.bf16.msra.mxu0 0
        %10436 = vmatpush.bf16.msra.mxu0 0
        %10437 = vmatpush.bf16.msra.mxu0 0
        %10438 = vmatpush.bf16.msra.mxu0 0
        %10439 = vmatpush.bf16.msra.mxu0 0
        %10440 = vmatpush.bf16.msra.mxu0 %v10428
        %10441 = vmatpush.bf16.msra.mxu0 %v10427
        %10442 = vmatmul.bf16.gmra.mxu0 %v9575
        %v10443 = vpop.f32.mrf.mxu0
        %v10444 = vadd.f32 0.0, %v10443
        %v10445 = vpop.f32.mrf.mxu0
        %v10446 = vadd.f32 0.0, %v10445
        %10447 = vmatmul.bf16.gmra.mxu0 %v9578
        %v10448 = vpop.f32.mrf.mxu0
        %v10449 = vadd.f32 0.0, %v10448
        %v10450 = vpop.f32.mrf.mxu0
        %v10451 = vadd.f32 0.0, %v10450
        %10452 = vmatmul.bf16.gmra.mxu0 %v9581
        %v10453 = vpop.f32.mrf.mxu0
        %v10454 = vadd.f32 0.0, %v10453
        %v10455 = vpop.f32.mrf.mxu0
        %v10456 = vadd.f32 0.0, %v10455
        %10457 = vmatmul.bf16.gmra.mxu0 %v9584
        %v10458 = vpop.f32.mrf.mxu0
        %v10459 = vadd.f32 0.0, %v10458
        %v10460 = vpop.f32.mrf.mxu0
        %v10461 = vadd.f32 0.0, %v10460
        %10462 = vmatmul.bf16.gmra.mxu0 %v9587
        %v10463 = vpop.f32.mrf.mxu0
        %v10464 = vadd.f32 0.0, %v10463
        %v10465 = vpop.f32.mrf.mxu0
        %v10466 = vadd.f32 0.0, %v10465
        %10467 = vmatmul.bf16.gmra.mxu0 %v9590
        %v10468 = vpop.f32.mrf.mxu0
        %v10469 = vadd.f32 0.0, %v10468
        %v10470 = vpop.f32.mrf.mxu0
        %v10471 = vadd.f32 0.0, %v10470
        %10472 = vmatmul.bf16.gmra.mxu0 %v9593
        %v10473 = vpop.f32.mrf.mxu0
        %v10474 = vadd.f32 0.0, %v10473
        %v10475 = vpop.f32.mrf.mxu0
        %v10476 = vadd.f32 0.0, %v10475
        %10477 = vmatmul.bf16.gmra.mxu0 %v9596
        %v10478 = vpop.f32.mrf.mxu0
        %v10479 = vadd.f32 0.0, %v10478
        %v10480 = vpop.f32.mrf.mxu0
        %v10481 = vadd.f32 0.0, %v10480
        %10482 = vmatmul.bf16.gmra.mxu0 %v9599
        %v10483 = vpop.f32.mrf.mxu0
        %v10484 = vadd.f32 0.0, %v10483
        %v10485 = vpop.f32.mrf.mxu0
        %v10486 = vadd.f32 0.0, %v10485
        %10487 = vmatmul.bf16.gmra.mxu0 %v9602
        %v10488 = vpop.f32.mrf.mxu0
        %v10489 = vadd.f32 0.0, %v10488
        %v10490 = vpop.f32.mrf.mxu0
        %v10491 = vadd.f32 0.0, %v10490
        %10492 = vmatmul.bf16.gmra.mxu0 %v9605
        %v10493 = vpop.f32.mrf.mxu0
        %v10494 = vadd.f32 0.0, %v10493
        %v10495 = vpop.f32.mrf.mxu0
        %v10496 = vadd.f32 0.0, %v10495
        %10497 = vmatmul.bf16.gmra.mxu0 %v9608
        %v10498 = vpop.f32.mrf.mxu0
        %v10499 = vadd.f32 0.0, %v10498
        %v10500 = vpop.f32.mrf.mxu0
        %v10501 = vadd.f32 0.0, %v10500
        %10502 = vmatmul.bf16.gmra.mxu0 %v9611
        %v10503 = vpop.f32.mrf.mxu0
        %v10504 = vadd.f32 0.0, %v10503
        %v10505 = vpop.f32.mrf.mxu0
        %v10506 = vadd.f32 0.0, %v10505
        %10507 = vmatmul.bf16.gmra.mxu0 %v9614
        %v10508 = vpop.f32.mrf.mxu0
        %v10509 = vadd.f32 0.0, %v10508
        %v10510 = vpop.f32.mrf.mxu0
        %v10511 = vadd.f32 0.0, %v10510
        %10512 = vmatmul.bf16.gmra.mxu0 %v9994
        %v10513 = vpop.f32.mrf.mxu0
        %v10514 = vadd.f32 0.0, %v10513
        %v10515 = vpop.f32.mrf.mxu0
        %v10516 = vadd.f32 0.0, %v10515
        %10517 = vmatmul.bf16.gmra.mxu0 %v10432
        %v10518 = vpop.f32.mrf.mxu0
        %v10519 = vadd.f32 0.0, %v10518
        %v10520 = vpop.f32.mrf.mxu0
        %v10521 = vadd.f32 0.0, %v10520
        %10522 = vdwg.mxu0
        %v10523 = vadd.f32 %v10377, %v10444
        %v10524 = vadd.f32 %v10378, %v10446
        %v10525 = vadd.f32 %v10379, %v10449
        %v10526 = vadd.f32 %v10380, %v10451
        %v10527 = vadd.f32 %v10381, %v10454
        %v10528 = vadd.f32 %v10382, %v10456
        %v10529 = vadd.f32 %v10383, %v10459
        %v10530 = vadd.f32 %v10384, %v10461
        %v10531 = vadd.f32 %v10385, %v10464
        %v10532 = vadd.f32 %v10386, %v10466
        %v10533 = vadd.f32 %v10387, %v10469
        %v10534 = vadd.f32 %v10388, %v10471
        %v10535 = vadd.f32 %v10389, %v10474
        %v10536 = vadd.f32 %v10390, %v10476
        %v10537 = vadd.f32 %v10391, %v10479
        %v10538 = vadd.f32 %v10392, %v10481
        %v10539 = vadd.f32 %v10393, %v10484
        %v10540 = vadd.f32 %v10394, %v10486
        %v10541 = vadd.f32 %v10395, %v10489
        %v10542 = vadd.f32 %v10396, %v10491
        %v10543 = vadd.f32 %v10397, %v10494
        %v10544 = vadd.f32 %v10398, %v10496
        %v10545 = vadd.f32 %v10399, %v10499
        %v10546 = vadd.f32 %v10400, %v10501
        %v10547 = vadd.f32 %v10401, %v10504
        %v10548 = vadd.f32 %v10402, %v10506
        %v10549 = vadd.f32 %v10403, %v10509
        %v10550 = vadd.f32 %v10404, %v10511
        %v10551 = vadd.f32 %v10405, %v10514
        %v10552 = vadd.f32 %v10406, %v10516
        %v10553 = vadd.f32 %v10407, %v10519
        %v10554 = vadd.f32 %v10408, %v10521
        %s10555 = scalar_lea.vmem [#allocation18], 112
        %v10556 = vld [vmem:[%s10555] sm:$0xf]
        %v10557 = vld [vmem:[%s10555 + $0x4] sm:$0xf]
        %v10558 = vld [vmem:[%s10555 + $0x8] sm:$0xf]
        %v10559 = vld [vmem:[%s10555 + $0xc] sm:$0xf]
        %v10562 = vunpack.c.l.b16 %v9200
        %v10563 = vunpack.c.l.b16 %v9201
        %v10564 = vpack.c.b16 %v10563, %v10562
        %v10569 = vunpack.c.l.b16 %v10556
        %v10570 = vunpack.c.l.b16 %v10557
        %v10571 = vunpack.c.l.b16 %v10558
        %v10572 = vunpack.c.l.b16 %v10559
        %v10573 = vpack.c.b16 %v10570, %v10569
        %v10574 = vpack.c.b16 %v10572, %v10571
        %v10578 = vsel %vm588, %v10564, 0
        %10580 = vmatpush.bf16.msra.mxu0 0
        %10581 = vmatpush.bf16.msra.mxu0 0
        %10582 = vmatpush.bf16.msra.mxu0 0
        %10583 = vmatpush.bf16.msra.mxu0 0
        %10584 = vmatpush.bf16.msra.mxu0 0
        %10585 = vmatpush.bf16.msra.mxu0 0
        %10586 = vmatpush.bf16.msra.mxu0 %v10574
        %10587 = vmatpush.bf16.msra.mxu0 %v10573
        %10588 = vmatmul.bf16.gmra.mxu0 %v9346
        %v10589 = vpop.f32.mrf.mxu0
        %v10590 = vadd.f32 0.0, %v10589
        %v10591 = vpop.f32.mrf.mxu0
        %v10592 = vadd.f32 0.0, %v10591
        %10593 = vmatmul.bf16.gmra.mxu0 %v9349
        %v10594 = vpop.f32.mrf.mxu0
        %v10595 = vadd.f32 0.0, %v10594
        %v10596 = vpop.f32.mrf.mxu0
        %v10597 = vadd.f32 0.0, %v10596
        %10598 = vmatmul.bf16.gmra.mxu0 %v9352
        %v10599 = vpop.f32.mrf.mxu0
        %v10600 = vadd.f32 0.0, %v10599
        %v10601 = vpop.f32.mrf.mxu0
        %v10602 = vadd.f32 0.0, %v10601
        %10603 = vmatmul.bf16.gmra.mxu0 %v9355
        %v10604 = vpop.f32.mrf.mxu0
        %v10605 = vadd.f32 0.0, %v10604
        %v10606 = vpop.f32.mrf.mxu0
        %v10607 = vadd.f32 0.0, %v10606
        %10608 = vmatmul.bf16.gmra.mxu0 %v9358
        %v10609 = vpop.f32.mrf.mxu0
        %v10610 = vadd.f32 0.0, %v10609
        %v10611 = vpop.f32.mrf.mxu0
        %v10612 = vadd.f32 0.0, %v10611
        %10613 = vmatmul.bf16.gmra.mxu0 %v9361
        %v10614 = vpop.f32.mrf.mxu0
        %v10615 = vadd.f32 0.0, %v10614
        %v10616 = vpop.f32.mrf.mxu0
        %v10617 = vadd.f32 0.0, %v10616
        %10618 = vmatmul.bf16.gmra.mxu0 %v9364
        %v10619 = vpop.f32.mrf.mxu0
        %v10620 = vadd.f32 0.0, %v10619
        %v10621 = vpop.f32.mrf.mxu0
        %v10622 = vadd.f32 0.0, %v10621
        %10623 = vmatmul.bf16.gmra.mxu0 %v9367
        %v10624 = vpop.f32.mrf.mxu0
        %v10625 = vadd.f32 0.0, %v10624
        %v10626 = vpop.f32.mrf.mxu0
        %v10627 = vadd.f32 0.0, %v10626
        %10628 = vmatmul.bf16.gmra.mxu0 %v9370
        %v10629 = vpop.f32.mrf.mxu0
        %v10630 = vadd.f32 0.0, %v10629
        %v10631 = vpop.f32.mrf.mxu0
        %v10632 = vadd.f32 0.0, %v10631
        %10633 = vmatmul.bf16.gmra.mxu0 %v9373
        %v10634 = vpop.f32.mrf.mxu0
        %v10635 = vadd.f32 0.0, %v10634
        %v10636 = vpop.f32.mrf.mxu0
        %v10637 = vadd.f32 0.0, %v10636
        %10638 = vmatmul.bf16.gmra.mxu0 %v9376
        %v10639 = vpop.f32.mrf.mxu0
        %v10640 = vadd.f32 0.0, %v10639
        %v10641 = vpop.f32.mrf.mxu0
        %v10642 = vadd.f32 0.0, %v10641
        %10643 = vmatmul.bf16.gmra.mxu0 %v9379
        %v10644 = vpop.f32.mrf.mxu0
        %v10645 = vadd.f32 0.0, %v10644
        %v10646 = vpop.f32.mrf.mxu0
        %v10647 = vadd.f32 0.0, %v10646
        %10648 = vmatmul.bf16.gmra.mxu0 %v9382
        %v10649 = vpop.f32.mrf.mxu0
        %v10650 = vadd.f32 0.0, %v10649
        %v10651 = vpop.f32.mrf.mxu0
        %v10652 = vadd.f32 0.0, %v10651
        %10653 = vmatmul.bf16.gmra.mxu0 %v9385
        %v10654 = vpop.f32.mrf.mxu0
        %v10655 = vadd.f32 0.0, %v10654
        %v10656 = vpop.f32.mrf.mxu0
        %v10657 = vadd.f32 0.0, %v10656
        %10658 = vmatmul.bf16.gmra.mxu0 %v10140
        %v10659 = vpop.f32.mrf.mxu0
        %v10660 = vadd.f32 0.0, %v10659
        %v10661 = vpop.f32.mrf.mxu0
        %v10662 = vadd.f32 0.0, %v10661
        %10663 = vmatmul.bf16.gmra.mxu0 %v10578
        %v10664 = vpop.f32.mrf.mxu0
        %v10665 = vadd.f32 0.0, %v10664
        %v10666 = vpop.f32.mrf.mxu0
        %v10667 = vadd.f32 0.0, %v10666
        %10668 = vdwg.mxu0
        %v10669 = vadd.f32 %v10523, %v10590
        %v10670 = vadd.f32 %v10524, %v10592
        %v10671 = vadd.f32 %v10525, %v10595
        %v10672 = vadd.f32 %v10526, %v10597
        %v10673 = vadd.f32 %v10527, %v10600
        %v10674 = vadd.f32 %v10528, %v10602
        %v10675 = vadd.f32 %v10529, %v10605
        %v10676 = vadd.f32 %v10530, %v10607
        %v10677 = vadd.f32 %v10531, %v10610
        %v10678 = vadd.f32 %v10532, %v10612
        %v10679 = vadd.f32 %v10533, %v10615
        %v10680 = vadd.f32 %v10534, %v10617
        %v10681 = vadd.f32 %v10535, %v10620
        %v10682 = vadd.f32 %v10536, %v10622
        %v10683 = vadd.f32 %v10537, %v10625
        %v10684 = vadd.f32 %v10538, %v10627
        %v10685 = vadd.f32 %v10539, %v10630
        %v10686 = vadd.f32 %v10540, %v10632
        %v10687 = vadd.f32 %v10541, %v10635
        %v10688 = vadd.f32 %v10542, %v10637
        %v10689 = vadd.f32 %v10543, %v10640
        %v10690 = vadd.f32 %v10544, %v10642
        %v10691 = vadd.f32 %v10545, %v10645
        %v10692 = vadd.f32 %v10546, %v10647
        %v10693 = vadd.f32 %v10547, %v10650
        %v10694 = vadd.f32 %v10548, %v10652
        %v10695 = vadd.f32 %v10549, %v10655
        %v10696 = vadd.f32 %v10550, %v10657
        %v10697 = vadd.f32 %v10551, %v10660
        %v10698 = vadd.f32 %v10552, %v10662
        %v10699 = vadd.f32 %v10553, %v10665
        %v10700 = vadd.f32 %v10554, %v10667
        %s10701 = scalar_lea.vmem [#allocation18], 128
        %v10702 = vld [vmem:[%s10701] sm:$0xf]
        %v10703 = vld [vmem:[%s10701 + $0x4] sm:$0xf]
        %v10704 = vld [vmem:[%s10701 + $0x8] sm:$0xf]
        %v10705 = vld [vmem:[%s10701 + $0xc] sm:$0xf]
        %v10708 = vunpack.c.l.b16 %v9236
        %v10709 = vunpack.c.l.b16 %v9237
        %v10710 = vpack.c.b16 %v10709, %v10708
        %v10715 = vunpack.c.l.b16 %v10702
        %v10716 = vunpack.c.l.b16 %v10703
        %v10717 = vunpack.c.l.b16 %v10704
        %v10718 = vunpack.c.l.b16 %v10705
        %v10719 = vpack.c.b16 %v10716, %v10715
        %v10720 = vpack.c.b16 %v10718, %v10717
        %v10724 = vsel %vm588, %v10710, 0
        %10726 = vmatpush.bf16.msra.mxu0 0
        %10727 = vmatpush.bf16.msra.mxu0 0
        %10728 = vmatpush.bf16.msra.mxu0 0
        %10729 = vmatpush.bf16.msra.mxu0 0
        %10730 = vmatpush.bf16.msra.mxu0 0
        %10731 = vmatpush.bf16.msra.mxu0 0
        %10732 = vmatpush.bf16.msra.mxu0 %v10720
        %10733 = vmatpush.bf16.msra.mxu0 %v10719
        %10734 = vmatmul.bf16.gmra.mxu0 %v9809
        %v10735 = vpop.f32.mrf.mxu0
        %v10736 = vadd.f32 0.0, %v10735
        %v10737 = vpop.f32.mrf.mxu0
        %v10738 = vadd.f32 0.0, %v10737
        %10739 = vmatmul.bf16.gmra.mxu0 %v9812
        %v10740 = vpop.f32.mrf.mxu0
        %v10741 = vadd.f32 0.0, %v10740
        %v10742 = vpop.f32.mrf.mxu0
        %v10743 = vadd.f32 0.0, %v10742
        %10744 = vmatmul.bf16.gmra.mxu0 %v9815
        %v10745 = vpop.f32.mrf.mxu0
        %v10746 = vadd.f32 0.0, %v10745
        %v10747 = vpop.f32.mrf.mxu0
        %v10748 = vadd.f32 0.0, %v10747
        %10749 = vmatmul.bf16.gmra.mxu0 %v9818
        %v10750 = vpop.f32.mrf.mxu0
        %v10751 = vadd.f32 0.0, %v10750
        %v10752 = vpop.f32.mrf.mxu0
        %v10753 = vadd.f32 0.0, %v10752
        %10754 = vmatmul.bf16.gmra.mxu0 %v9821
        %v10755 = vpop.f32.mrf.mxu0
        %v10756 = vadd.f32 0.0, %v10755
        %v10757 = vpop.f32.mrf.mxu0
        %v10758 = vadd.f32 0.0, %v10757
        %10759 = vmatmul.bf16.gmra.mxu0 %v9824
        %v10760 = vpop.f32.mrf.mxu0
        %v10761 = vadd.f32 0.0, %v10760
        %v10762 = vpop.f32.mrf.mxu0
        %v10763 = vadd.f32 0.0, %v10762
        %10764 = vmatmul.bf16.gmra.mxu0 %v9827
        %v10765 = vpop.f32.mrf.mxu0
        %v10766 = vadd.f32 0.0, %v10765
        %v10767 = vpop.f32.mrf.mxu0
        %v10768 = vadd.f32 0.0, %v10767
        %10769 = vmatmul.bf16.gmra.mxu0 %v9830
        %v10770 = vpop.f32.mrf.mxu0
        %v10771 = vadd.f32 0.0, %v10770
        %v10772 = vpop.f32.mrf.mxu0
        %v10773 = vadd.f32 0.0, %v10772
        %10774 = vmatmul.bf16.gmra.mxu0 %v9833
        %v10775 = vpop.f32.mrf.mxu0
        %v10776 = vadd.f32 0.0, %v10775
        %v10777 = vpop.f32.mrf.mxu0
        %v10778 = vadd.f32 0.0, %v10777
        %10779 = vmatmul.bf16.gmra.mxu0 %v9836
        %v10780 = vpop.f32.mrf.mxu0
        %v10781 = vadd.f32 0.0, %v10780
        %v10782 = vpop.f32.mrf.mxu0
        %v10783 = vadd.f32 0.0, %v10782
        %10784 = vmatmul.bf16.gmra.mxu0 %v9839
        %v10785 = vpop.f32.mrf.mxu0
        %v10786 = vadd.f32 0.0, %v10785
        %v10787 = vpop.f32.mrf.mxu0
        %v10788 = vadd.f32 0.0, %v10787
        %10789 = vmatmul.bf16.gmra.mxu0 %v9842
        %v10790 = vpop.f32.mrf.mxu0
        %v10791 = vadd.f32 0.0, %v10790
        %v10792 = vpop.f32.mrf.mxu0
        %v10793 = vadd.f32 0.0, %v10792
        %10794 = vmatmul.bf16.gmra.mxu0 %v9845
        %v10795 = vpop.f32.mrf.mxu0
        %v10796 = vadd.f32 0.0, %v10795
        %v10797 = vpop.f32.mrf.mxu0
        %v10798 = vadd.f32 0.0, %v10797
        %10799 = vmatmul.bf16.gmra.mxu0 %v9848
        %v10800 = vpop.f32.mrf.mxu0
        %v10801 = vadd.f32 0.0, %v10800
        %v10802 = vpop.f32.mrf.mxu0
        %v10803 = vadd.f32 0.0, %v10802
        %10804 = vmatmul.bf16.gmra.mxu0 %v10286
        %v10805 = vpop.f32.mrf.mxu0
        %v10806 = vadd.f32 0.0, %v10805
        %v10807 = vpop.f32.mrf.mxu0
        %v10808 = vadd.f32 0.0, %v10807
        %10809 = vmatmul.bf16.gmra.mxu0 %v10724
        %v10810 = vpop.f32.mrf.mxu0
        %v10811 = vadd.f32 0.0, %v10810
        %v10812 = vpop.f32.mrf.mxu0
        %v10813 = vadd.f32 0.0, %v10812
        %10814 = vdwg.mxu0
        %v10815 = vadd.f32 %v10669, %v10736
        %v10816 = vadd.f32 %v10670, %v10738
        %v10817 = vadd.f32 %v10671, %v10741
        %v10818 = vadd.f32 %v10672, %v10743
        %v10819 = vadd.f32 %v10673, %v10746
        %v10820 = vadd.f32 %v10674, %v10748
        %v10821 = vadd.f32 %v10675, %v10751
        %v10822 = vadd.f32 %v10676, %v10753
        %v10823 = vadd.f32 %v10677, %v10756
        %v10824 = vadd.f32 %v10678, %v10758
        %v10825 = vadd.f32 %v10679, %v10761
        %v10826 = vadd.f32 %v10680, %v10763
        %v10827 = vadd.f32 %v10681, %v10766
        %v10828 = vadd.f32 %v10682, %v10768
        %v10829 = vadd.f32 %v10683, %v10771
        %v10830 = vadd.f32 %v10684, %v10773
        %v10831 = vadd.f32 %v10685, %v10776
        %v10832 = vadd.f32 %v10686, %v10778
        %v10833 = vadd.f32 %v10687, %v10781
        %v10834 = vadd.f32 %v10688, %v10783
        %v10835 = vadd.f32 %v10689, %v10786
        %v10836 = vadd.f32 %v10690, %v10788
        %v10837 = vadd.f32 %v10691, %v10791
        %v10838 = vadd.f32 %v10692, %v10793
        %v10839 = vadd.f32 %v10693, %v10796
        %v10840 = vadd.f32 %v10694, %v10798
        %v10841 = vadd.f32 %v10695, %v10801
        %v10842 = vadd.f32 %v10696, %v10803
        %v10843 = vadd.f32 %v10697, %v10806
        %v10844 = vadd.f32 %v10698, %v10808
        %v10845 = vadd.f32 %v10699, %v10811
        %v10846 = vadd.f32 %v10700, %v10813
        %v10847 = vld [vmem:[#allocation19] sm:$0x1]
        %v10849 = vperm.slane %v10847, 0
        %v10851 = vadd.f32 %v10815, %v10849
        %v10852 = vadd.f32 %v10816, %v10849
        %v10853 = vadd.f32 %v10817, %v10849
        %v10854 = vadd.f32 %v10818, %v10849
        %v10855 = vadd.f32 %v10819, %v10849
        %v10856 = vadd.f32 %v10820, %v10849
        %v10857 = vadd.f32 %v10821, %v10849
        %v10858 = vadd.f32 %v10822, %v10849
        %v10859 = vadd.f32 %v10823, %v10849
        %v10860 = vadd.f32 %v10824, %v10849
        %v10861 = vadd.f32 %v10825, %v10849
        %v10862 = vadd.f32 %v10826, %v10849
        %v10863 = vadd.f32 %v10827, %v10849
        %v10864 = vadd.f32 %v10828, %v10849
        %v10865 = vadd.f32 %v10829, %v10849
        %v10866 = vadd.f32 %v10830, %v10849
        %v10867 = vadd.f32 %v10831, %v10849
        %v10868 = vadd.f32 %v10832, %v10849
        %v10869 = vadd.f32 %v10833, %v10849
        %v10870 = vadd.f32 %v10834, %v10849
        %v10871 = vadd.f32 %v10835, %v10849
        %v10872 = vadd.f32 %v10836, %v10849
        %v10873 = vadd.f32 %v10837, %v10849
        %v10874 = vadd.f32 %v10838, %v10849
        %v10875 = vadd.f32 %v10839, %v10849
        %v10876 = vadd.f32 %v10840, %v10849
        %v10877 = vadd.f32 %v10841, %v10849
        %v10878 = vadd.f32 %v10842, %v10849
        %v10879 = vadd.f32 %v10843, %v10849
        %v10880 = vadd.f32 %v10844, %v10849
        %v10881 = vadd.f32 %v10845, %v10849
        %v10882 = vadd.f32 %v10846, %v10849
        %10883 = vst [vmem:[%s580] sm:$0xff] %v10851
        %10884 = vst [vmem:[%s580 + $0x8] sm:$0xff] %v10852
        %10885 = vst [vmem:[%s580 + $0x10] sm:$0xff] %v10853
        %10886 = vst [vmem:[%s580 + $0x18] sm:$0xff] %v10854
        %10887 = vst [vmem:[%s580 + $0x20] sm:$0xff] %v10855
        %10888 = vst [vmem:[%s580 + $0x28] sm:$0xff] %v10856
        %10889 = vst [vmem:[%s580 + $0x30] sm:$0xff] %v10857
        %10890 = vst [vmem:[%s580 + $0x38] sm:$0xff] %v10858
        %10891 = vst [vmem:[%s580 + $0x40] sm:$0xff] %v10859
        %10892 = vst [vmem:[%s580 + $0x48] sm:$0xff] %v10860
        %10893 = vst [vmem:[%s580 + $0x50] sm:$0xff] %v10861
        %10894 = vst [vmem:[%s580 + $0x58] sm:$0xff] %v10862
        %10895 = vst [vmem:[%s580 + $0x60] sm:$0xff] %v10863
        %10896 = vst [vmem:[%s580 + $0x68] sm:$0xff] %v10864
        %10897 = vst [vmem:[%s580 + $0x70] sm:$0xff] %v10865
        %10898 = vst [vmem:[%s580 + $0x78] sm:$0xff] %v10866
        %10899 = vst [vmem:[%s580 + $0x80] sm:$0xff] %v10867
        %10900 = vst [vmem:[%s580 + $0x88] sm:$0xff] %v10868
        %10901 = vst [vmem:[%s580 + $0x90] sm:$0xff] %v10869
        %10902 = vst [vmem:[%s580 + $0x98] sm:$0xff] %v10870
        %10903 = vst [vmem:[%s580 + $0xa0] sm:$0xff] %v10871
        %10904 = vst [vmem:[%s580 + $0xa8] sm:$0xff] %v10872
        %10905 = vst [vmem:[%s580 + $0xb0] sm:$0xff] %v10873
        %10906 = vst [vmem:[%s580 + $0xb8] sm:$0xff] %v10874
        %10907 = vst [vmem:[%s580 + $0xc0] sm:$0xff] %v10875
        %10908 = vst [vmem:[%s580 + $0xc8] sm:$0xff] %v10876
        %10909 = vst [vmem:[%s580 + $0xd0] sm:$0xff] %v10877
        %10910 = vst [vmem:[%s580 + $0xd8] sm:$0xff] %v10878
        %10911 = vst [vmem:[%s580 + $0xe0] sm:$0xff] %v10879
        %10912 = vst [vmem:[%s580 + $0xe8] sm:$0xff] %v10880
        %10913 = vst [vmem:[%s580 + $0xf0] sm:$0xff] %v10881
        %10914 = vst [vmem:[%s580 + $0xf8] sm:$0xff] %v10882
        %s10915 = sand.u32 %s277, 1
        %s10916 = scalar_lea.sflag [#allocation6], %s10915
        %s10917 = sand.u32 %s277, 1
        %s10918 = smul.addr %s10917, 256
        %s10919 = scalar_lea.vmem [#allocation21], %s10918
        %p10920 = scmp.lt.s32.totalorder %s33, 1
        %s10921 = scalar_select %p10920, %s33, 1
        %s10922 = smul.addr %s10921, 32
        %s10923 = smul.addr %s10922, 8
        %s10924 = scalar_lea.vmem %s12, %s10923
        // Predicated region
        $region105: #{regression_model_forward.1} parent=63 // pred_check
          %p10925 = pneg %p287
        $region106: #{regression_model_forward.1} parent=63 // pred_check_branch
          %10927 = sbr.rel (%p10925) target = $region108
        $region107: #{regression_model_forward.1} parent=63 // pred_region
          %10929 = vsyncadd %s10916, 0
          %s10930 = smul.addr %s33, 32
          %s10931 = smul.addr %s10930, 8
          %s10932 = scalar_lea.hbm %s11, %s10931
          %s10933 = sshll.u32 %s10919, 4
          %s10934 = int_to_ptr.vmem [resolvable:$true] %s10933
          %s10935 = sshll.u32 %s10932, 4
          %s10936 = int_to_ptr.hbm [resolvable:$true] %s10935
          %10941 = dma.vmem_to_hbm [thread:$0]  %s10934, 4096, %s10936, %s10916, 128, 128, 8
        $region108: #{regression_model_forward.1} parent=63 // pred_fallthru
          _
        // Predicated region
        $region109: #{regression_model_forward.1} parent=63 // pred_check
          %p10942 = pneg %p313
        $region110: #{regression_model_forward.1} parent=63 // pred_check_branch
          %10944 = sbr.rel (%p10942) target = $region112
        $region111: #{regression_model_forward.1} parent=63 // pred_region
          _
        $region112: #{regression_model_forward.1} parent=63 // pred_fallthru
          _
      $region64: #{regression_model_forward.1} parent=5 // pred_fallthru
        _
      %p10945 = scmp.le.s32.totalorder 2, %s28
      // Predicated region
      $region113: #{regression_model_forward.1} parent=5 // pred_check
        %p10946 = pneg %p10945
      $region114: #{regression_model_forward.1} parent=5 // pred_check_branch
        %10948 = sbr.rel (%p10946) target = $region116
      $region115: #{regression_model_forward.1} parent=5 // pred_region
        %s10949 = ssub.s32 %s28, 2
        // Predicated region
        $region117: #{regression_model_forward.1} parent=115 // pred_check
          %p10950 = pneg %p293
        $region118: #{regression_model_forward.1} parent=115 // pred_check_branch
          %10952 = sbr.rel (%p10950) target = $region120
        $region119: #{regression_model_forward.1} parent=115 // pred_region
          %s10953 = sand.u32 %s278, 1
          %s10954 = scalar_lea.sflag [#allocation6], %s10953
          %s10955 = sand.u32 %s278, 1
          %s10956 = smul.addr %s10955, 256
          %s10957 = scalar_lea.vmem [#allocation21], %s10956
          %10959 = dma.done %s10954, 4096
        $region120: #{regression_model_forward.1} parent=115 // pred_fallthru
          _
        // Predicated region
        $region121: #{regression_model_forward.1} parent=115 // pred_check
          %p10960 = pneg %p319
        $region122: #{regression_model_forward.1} parent=115 // pred_check_branch
          %10962 = sbr.rel (%p10960) target = $region124
        $region123: #{regression_model_forward.1} parent=115 // pred_region
          %p10963 = scmp.lt.s32.totalorder %s34, 1
          %s10964 = scalar_select %p10963, %s34, 1
          %s10965 = smul.addr %s10964, 32
          %s10966 = smul.addr %s10965, 8
          %s10967 = scalar_lea.vmem %s12, %s10966
        $region124: #{regression_model_forward.1} parent=115 // pred_fallthru
          _
      $region116: #{regression_model_forward.1} parent=5 // pred_fallthru
        _
    $region6: #{regression_model_forward.1} parent=1 // loop_footer
      %s32 = sadd.s32 1, %s28
    $region7: #{regression_model_forward.1} parent=1 // loop_footer_branch
      %27 = sbr.rel target = $region3
    $region8: #{regression_model_forward.1} parent=1 // loop_exit
      _
    %10968 = vsyncpa [#allocation5], 1
    %s10969 = scalar_lea.sflag [#allocation5], 1
    %10970 = vsyncpa %s10969, 1
    %10971 = vsyncpa [#allocation8], 1
    %10972 = vsyncpa [#allocation11], 1
    %10973 = vsyncpa [#allocation14], 1
    %10974 = vsyncpa [#allocation17], 1
    %10975 = vsyncpa [#allocation20], 1
    %10976 = vsyncpa [#allocation6], 1
    %s10977 = scalar_lea.sflag [#allocation6], 1
    %10978 = vsyncpa %s10977, 1

</llo_original>
